<compile_context>
chip_gen: v7x
topology: tpu7x:2x2x1
jax: 0.10.0
libtpu: 0.0.40
codegen_flags: <defaults>
</compile_context>

<pallas_src>
import numpy as np
import jax
import jax.numpy as jnp
from jax.experimental import pallas as pl
from jax.experimental.pallas import tpu as pltpu

_VMEM_LIMIT = 48 * 1024 * 1024  # <= v7x's 64 MiB physical VMEM per TensorCore


# --------------------------------------------------------------------------
# Pallas kernels
# --------------------------------------------------------------------------
def _conv3x3_kernel(x_ref, w_ref, b_ref, o_ref):
    # x_ref : (1, H, Cin, W)     bf16, full image (resident across h tiles)
    # w_ref : (Cout, 9*Cin)      bf16, im2col-packed, input affine pre-folded
    # b_ref : (Cout, 1)          f32
    # o_ref : (1, TH, Cout, Wo)  bf16, one H tile of the output ('valid', s=1)
    TH, Cout, Wo = o_ref.shape[1], o_ref.shape[2], o_ref.shape[3]
    h0 = pl.program_id(1) * TH
    bias = jnp.broadcast_to(b_ref[...], (Cout, Wo))  # hoisted out of the loop

    @pl.loop(0, TH)
    def _(t):
        h = h0 + t
        # dy-concat along sublanes (Cin is a multiple of 16 -> aligned).
        x3 = jnp.concatenate(
            [x_ref[0, h], x_ref[0, h + 1], x_ref[0, h + 2]], axis=0)   # (3Cin, W)
        # dx-concat -> full im2col row, single MXU call, contraction = 9*Cin.
        xc = jnp.concatenate(
            [x3[:, 0:Wo], x3[:, 1:Wo + 1], x3[:, 2:Wo + 2]], axis=0)   # (9Cin, Wo)
        acc = jnp.dot(w_ref[...], xc,
                      preferred_element_type=jnp.float32)              # (Cout, Wo)
        o_ref[0, t] = jnp.maximum(acc + bias, 0.0).astype(o_ref.dtype)


def _maxpool3x3_s2_kernel(x_ref, s_ref, o_ref):
    # Fused MaxPool2d((3,3),(2,2)): only pooled (strided) rows/cols are written.
    # x_ref : (1, H, C, W) bf16   s_ref : (W-2, Wp) 0/1 even-column selector
    # o_ref : (1, Hp, C, Wp) bf16
    Hp = o_ref.shape[1]
    Wd = s_ref.shape[0]
    sel = s_ref[...]

    @pl.loop(0, Hp)
    def _(ph):
        h = 2 * ph
        r = jnp.maximum(jnp.maximum(x_ref[0, h], x_ref[0, h + 1]),
                        x_ref[0, h + 2])                               # (C, W)
        m = jnp.maximum(jnp.maximum(r[:, 0:Wd], r[:, 1:Wd + 1]),
                        r[:, 2:Wd + 2])                                # (C, Wd)
        # stride-2 column subsample as an exact 0/1-selection matmul on the MXU
        o_ref[0, ph] = jnp.dot(m, sel,
                               preferred_element_type=jnp.float32
                               ).astype(o_ref.dtype)


def _linear_relu_kernel(x_ref, w_ref, b_ref, o_ref):
    # x: (N,16)  w: (16,6)  b: (1,6)  o: (N,6)
    o_ref[...] = jnp.maximum(
        jnp.dot(x_ref[...], w_ref[...], preferred_element_type=jnp.float32)
        + b_ref[...], 0.0)


# --------------------------------------------------------------------------
# Wrappers (pallas_call plumbing)
# --------------------------------------------------------------------------
def _pick_th(ho, cap=64):
    """Largest divisor of ho that is <= cap (full ho if small / no good divisor)."""
    if ho <= 128:
        return ho
    for d in range(cap, 0, -1):
        if ho % d == 0:
            return ho if d < 8 else d
    return ho


def conv3x3_relu(x, wcat, b):
    N, H, Cin, W = x.shape
    Cout = wcat.shape[0]
    Ho, Wo = H - 2, W - 2
    th = _pick_th(Ho)
    return pl.pallas_call(
        _conv3x3_kernel,
        out_shape=jax.ShapeDtypeStruct((N, Ho, Cout, Wo), jnp.bfloat16),
        grid=(N, Ho // th),
        in_specs=[
            # full image, index map constant in h -> stays VMEM-resident
            pl.BlockSpec((1, H, Cin, W), lambda n, h: (n, 0, 0, 0)),
            pl.BlockSpec((Cout, 9 * Cin), lambda n, h: (0, 0)),
            pl.BlockSpec((Cout, 1), lambda n, h: (0, 0)),
        ],
        out_specs=pl.BlockSpec((1, th, Cout, Wo), lambda n, h: (n, h, 0, 0)),
        compiler_params=pltpu.CompilerParams(
            dimension_semantics=("parallel", "arbitrary"),
            vmem_limit_bytes=_VMEM_LIMIT),
    )(x, wcat, b)


def maxpool3x3_s2(x):
    N, H, C, W = x.shape
    Hp, Wp = (H - 3) // 2 + 1, (W - 3) // 2 + 1
    Wd = W - 2
    sel = np.zeros((Wd, Wp), np.float32)
    sel[2 * np.arange(Wp), np.arange(Wp)] = 1.0       # compile-time constant
    sel = jnp.asarray(sel, dtype=x.dtype)
    return pl.pallas_call(
        _maxpool3x3_s2_kernel,
        out_shape=jax.ShapeDtypeStruct((N, Hp, C, Wp), x.dtype),
        grid=(N,),
        in_specs=[pl.BlockSpec((1, H, C, W), lambda n: (n, 0, 0, 0)),
                  pl.BlockSpec((Wd, Wp), lambda n: (0, 0))],
        out_specs=pl.BlockSpec((1, Hp, C, Wp), lambda n: (n, 0, 0, 0)),
        compiler_params=pltpu.CompilerParams(
            dimension_semantics=("parallel",),
            vmem_limit_bytes=_VMEM_LIMIT),
    )(x, sel)


def linear_relu(x, wt, b):
    N = x.shape[0]
    return pl.pallas_call(
        _linear_relu_kernel,
        out_shape=jax.ShapeDtypeStruct((N, wt.shape[1]), jnp.float32),
        grid=(1,),
        in_specs=[
            pl.BlockSpec(x.shape, lambda i: (0, 0)),
            pl.BlockSpec(wt.shape, lambda i: (0, 0)),
            pl.BlockSpec(b.shape, lambda i: (0, 0)),
        ],
        out_specs=pl.BlockSpec((N, wt.shape[1]), lambda i: (0, 0)),
        compiler_params=pltpu.CompilerParams(vmem_limit_bytes=_VMEM_LIMIT),
    )(x, wt, b)


# --------------------------------------------------------------------------
# Full forward pass (matches CNN.forward with apply_sfmax=False, eval mode)
# --------------------------------------------------------------------------
def cnn_forward(x_nchw, p):
    # Wrapper expects NCHW with C==3 (the torch permute branch is not taken).
    x = jnp.transpose(x_nchw, (0, 2, 1, 3))                          # (N,H,C,W)
    x = jnp.pad(x, ((0, 0), (0, 0), (0, 16 - x.shape[2]), (0, 0)))   # C: 3 -> 16
    x = x.astype(jnp.bfloat16)

    # --- conv_stage_1 ---  (eval-BN / dropout folded into weights host-side)
    x = conv3x3_relu(x, *p["conv1_0"])
    x = conv3x3_relu(x, *p["conv1_1"])
    x = maxpool3x3_s2(x)
    x = conv3x3_relu(x, *p["conv1_2"])
    x = maxpool3x3_s2(x)

    # --- conv_stage_2 ---  (bn1 folded into conv2_1 weights)
    x = conv3x3_relu(x, *p["conv2_1"])
    x = maxpool3x3_s2(x)
    x = conv3x3_relu(x, *p["conv2_2"])
    x = maxpool3x3_s2(x)

    # --- final_layers ---  (bn2 folded into conv3_1 weights)
    x = conv3x3_relu(x, *p["conv3_1"])
    x = conv3x3_relu(x, *p["conv3_2"])   # stride-1 compute (tiny layer)
    x = x[:, ::2, :, ::2]                # realize conv3_2 stride (2,2) in glue

    # torch.flatten(., 1) of NCHW (N,1,4,4) -> (N,16); C==1 so order matches.
    x = x.reshape(x.shape[0], -1).astype(jnp.float32)

    # --- classifier ---
    return linear_relu(x, p["fc_wt"], p["fc_b"])


# --------------------------------------------------------------------------
# Deterministic parameter init + host-side folding / im2col packing
# --------------------------------------------------------------------------
def _conv_raw(key, cout, cin):
    kw, kb = jax.random.split(key)
    bound = 1.0 / (cin * 9) ** 0.5
    w = jax.random.uniform(kw, (cout, cin, 3, 3), jnp.float32, -bound, bound)
    b = jax.random.uniform(kb, (cout,), jnp.float32, -bound, bound)
    return w, b


def _fold_pack(w, b, scale, shift, cin_pad=None):
    # Fold the per-input-channel affine (eval BatchNorm) into weights/bias:
    #   W'[o,i,:,:] = W[o,i,:,:]*scale[i],  b'[o] = b[o] + sum W[o,i,:,:]*shift[i]
    cout, cin = w.shape[0], w.shape[1]
    w_f = w * scale[None, :, None, None]
    b_f = b + jnp.einsum("oikl,i->o", w, shift)
    if cin_pad is not None and cin_pad > cin:
        w_f = jnp.pad(w_f, ((0, 0), (0, cin_pad - cin), (0, 0), (0, 0)))
        cin = cin_pad
    # im2col weight layout (Cout, 9*Cin) ordered (dx, dy, ci) to match the
    # in-kernel concat order.
    wcat = jnp.transpose(w_f, (0, 3, 2, 1)).reshape(cout, 9 * cin)
    return wcat.astype(jnp.bfloat16), b_f.reshape(cout, 1).astype(jnp.float32)


if __name__ == "__main__":
    key = jax.random.PRNGKey(0)
    keys = jax.random.split(key, 9)

    # Eval-mode BatchNorm with default init (gamma=1, beta=0, mean=0, var=1).
    eps = 1e-5
    bn_s32 = jnp.full((32,), 1.0 / (1.0 + eps) ** 0.5, jnp.float32)
    bn_s64 = jnp.full((64,), 1.0 / (1.0 + eps) ** 0.5, jnp.float32)
    zero32, zero64 = jnp.zeros((32,), jnp.float32), jnp.zeros((64,), jnp.float32)
    ident = lambda c: (jnp.ones((c,), jnp.float32), jnp.zeros((c,), jnp.float32))

    p = {}
    p["conv1_0"] = _fold_pack(*_conv_raw(keys[0], 32, 3), *ident(3), cin_pad=16)
    p["conv1_1"] = _fold_pack(*_conv_raw(keys[1], 32, 32), *ident(32))
    p["conv1_2"] = _fold_pack(*_conv_raw(keys[2], 32, 32), *ident(32))
    p["conv2_1"] = _fold_pack(*_conv_raw(keys[3], 64, 32), bn_s32, zero32)   # bn1
    p["conv2_2"] = _fold_pack(*_conv_raw(keys[4], 64, 64), *ident(64))
    p["conv3_1"] = _fold_pack(*_conv_raw(keys[5], 16, 64), bn_s64, zero64)   # bn2
    p["conv3_2"] = _fold_pack(*_conv_raw(keys[6], 1, 16), *ident(16))

    # Classifier Linear(16, 6)
    kfw, kfb = jax.random.split(keys[7])
    bound = 1.0 / (16 ** 0.5)
    fc_w = jax.random.uniform(kfw, (6, 16), jnp.float32, -bound, bound)  # (out,in)
    p["fc_wt"] = fc_w.T
    p["fc_b"] = jax.random.uniform(kfb, (6,), jnp.float32, -bound, bound).reshape(1, 6)

    # 224x224 is the spatial size implied by Linear(16, 6) after the conv/pool
    # pyramid; batch kept small (2).
    x = jax.random.normal(keys[8], (2, 3, 224, 224), jnp.float32)  # NCHW

    out = jax.jit(cnn_forward)(x, p)
    out = jax.block_until_ready(out)
    assert out.shape == (2, 6) and out.dtype == jnp.float32
    print("KERNEL_OK")
</pallas_src>

<mosaic_0001>
module attributes {stable_mosaic.version = 11 : i64} {
  func.func @_conv3x3_kernel(%arg0: i32, %arg1: i32, %arg2: memref<1x222x32x222xbf16, #tpu.memory_space<vmem>>, %arg3: memref<32x288xbf16, #tpu.memory_space<vmem>>, %arg4: memref<32x1xf32, #tpu.memory_space<vmem>>, %arg5: memref<1x55x32x220xbf16, #tpu.memory_space<vmem>>) attributes {dimension_semantics = [#tpu.dimension_semantics<parallel>, #tpu.dimension_semantics<arbitrary>], iteration_bounds = array<i64: 2, 4>, scalar_prefetch = 0 : i64, scratch_operands = 0 : i64, tpu.core_type = #tpu.core_type<tc>, window_params = [{transform_indices = @transform_0, window_bounds = array<i64: 1, 222, 32, 222>}, {pipeline_mode = #tpu.pipeline_mode<synchronous>, transform_indices = @transform_1, window_bounds = array<i64: 32, 288>}, {pipeline_mode = #tpu.pipeline_mode<synchronous>, transform_indices = @transform_2, window_bounds = array<i64: 32, 1>}, {transform_indices = @transform_3, window_bounds = array<i64: 1, 55, 32, 220>}]} {
    %c55_i32 = arith.constant 55 : i32
    %0 = arith.muli %arg1, %c55_i32 : i32
    %c0 = arith.constant 0 : index
    %c0_0 = arith.constant 0 : index
    %1 = vector.load %arg4[%c0, %c0_0] : memref<32x1xf32, #tpu.memory_space<vmem>>, vector<32x1xf32>
    %2 = vector.shape_cast %1 : vector<32x1xf32> to vector<32x1xf32>
    %3 = vector.broadcast %2 : vector<32x1xf32> to vector<32x220xf32>
    %c0_i32 = arith.constant 0 : i32
    %c55_i32_1 = arith.constant 55 : i32
    %4 = arith.addi %c0_i32, %c55_i32_1 : i32
    %c1_i32 = arith.constant 1 : i32
    scf.for %arg6 = %c0_i32 to %4 step %c1_i32  : i32 {
      %c1_i32_3 = arith.constant 1 : i32
      %5 = arith.muli %arg6, %c1_i32_3 : i32
      %c0_i32_4 = arith.constant 0 : i32
      %6 = arith.addi %c0_i32_4, %5 : i32
      %7 = arith.addi %0, %6 : i32
      %c0_5 = arith.constant 0 : index
      %8 = arith.index_cast %7 : i32 to index
      %c0_6 = arith.constant 0 : index
      %c0_7 = arith.constant 0 : index
      %9 = vector.load %arg2[%c0_5, %8, %c0_6, %c0_7] : memref<1x222x32x222xbf16, #tpu.memory_space<vmem>>, vector<1x1x32x222xbf16>
      %10 = vector.shape_cast %9 : vector<1x1x32x222xbf16> to vector<32x222xbf16>
      %c1_i32_8 = arith.constant 1 : i32
      %11 = arith.addi %7, %c1_i32_8 : i32
      %c0_9 = arith.constant 0 : index
      %12 = arith.index_cast %11 : i32 to index
      %c0_10 = arith.constant 0 : index
      %c0_11 = arith.constant 0 : index
      %13 = vector.load %arg2[%c0_9, %12, %c0_10, %c0_11] : memref<1x222x32x222xbf16, #tpu.memory_space<vmem>>, vector<1x1x32x222xbf16>
      %14 = vector.shape_cast %13 : vector<1x1x32x222xbf16> to vector<32x222xbf16>
      %c2_i32 = arith.constant 2 : i32
      %15 = arith.addi %7, %c2_i32 : i32
      %c0_12 = arith.constant 0 : index
      %16 = arith.index_cast %15 : i32 to index
      %c0_13 = arith.constant 0 : index
      %c0_14 = arith.constant 0 : index
      %17 = vector.load %arg2[%c0_12, %16, %c0_13, %c0_14] : memref<1x222x32x222xbf16, #tpu.memory_space<vmem>>, vector<1x1x32x222xbf16>
      %18 = vector.shape_cast %17 : vector<1x1x32x222xbf16> to vector<32x222xbf16>
      %19 = tpu.concatenate %10, %14, %18 in 0 : vector<32x222xbf16>, vector<32x222xbf16>, vector<32x222xbf16> -> vector<96x222xbf16>
      %20 = vector.extract_strided_slice %19 {offsets = [0, 0], sizes = [96, 220], strides = [1, 1]} : vector<96x222xbf16> to vector<96x220xbf16>
      %21 = vector.extract_strided_slice %19 {offsets = [0, 1], sizes = [96, 220], strides = [1, 1]} : vector<96x222xbf16> to vector<96x220xbf16>
      %22 = vector.extract_strided_slice %19 {offsets = [0, 2], sizes = [96, 220], strides = [1, 1]} : vector<96x222xbf16> to vector<96x220xbf16>
      %23 = tpu.concatenate %20, %21, %22 in 0 : vector<96x220xbf16>, vector<96x220xbf16>, vector<96x220xbf16> -> vector<288x220xbf16>
      %c0_15 = arith.constant 0 : index
      %c0_16 = arith.constant 0 : index
      %24 = vector.load %arg3[%c0_15, %c0_16] : memref<32x288xbf16, #tpu.memory_space<vmem>>, vector<32x288xbf16>
      %cst = arith.constant dense<0.000000e+00> : vector<32x220xf32>
      %25 = tpu.matmul %24, %23, %cst {dimension_numbers = #tpu.dot_dimension_numbers<[1], [0], [0], [1], [0, 0, 1, 1], [], []>} : vector<32x288xbf16>, vector<288x220xbf16>, vector<32x220xf32> -> vector<32x220xf32>
      %26 = arith.addf %25, %3 : vector<32x220xf32>
      %cst_17 = arith.constant 0.000000e+00 : f32
      %27 = vector.broadcast %cst_17 : f32 to vector<32x220xf32>
      %28 = arith.maximumf %26, %27 : vector<32x220xf32>
      %29 = arith.truncf %28 : vector<32x220xf32> to vector<32x220xbf16>
      %c0_18 = arith.constant 0 : index
      %30 = arith.index_cast %6 : i32 to index
      %c0_19 = arith.constant 0 : index
      %c0_20 = arith.constant 0 : index
      %31 = vector.load %arg5[%c0_18, %30, %c0_19, %c0_20] : memref<1x55x32x220xbf16, #tpu.memory_space<vmem>>, vector<1x1x32x220xbf16>
      %32 = vector.shape_cast %31 : vector<1x1x32x220xbf16> to vector<32x220xbf16>
      %33 = vector.shape_cast %29 : vector<32x220xbf16> to vector<1x1x32x220xbf16>
      tpu.vector_store %arg5[%c0_18, %30, %c0_19, %c0_20], %33 {strides = array<i32>} : memref<1x55x32x220xbf16, #tpu.memory_space<vmem>>, vector<1x1x32x220xbf16>,
    }
    %c55_i32_2 = arith.constant 55 : i32
    return
  }
  func.func @transform_0(%arg0: i32, %arg1: i32) -> (i32, i32, i32, i32) {
    %c0_i32 = arith.constant 0 : i32
    %c0_i32_0 = arith.constant 0 : i32
    %c0_i32_1 = arith.constant 0 : i32
    %c0_i32_2 = arith.constant 0 : i32
    return %arg0, %c0_i32, %c0_i32_0, %c0_i32_1 : i32, i32, i32, i32
  }
  func.func @transform_1(%arg0: i32, %arg1: i32) -> (i32, i32) {
    %c0_i32 = arith.constant 0 : i32
    %c0_i32_0 = arith.constant 0 : i32
    %c0_i32_1 = arith.constant 0 : i32
    return %c0_i32, %c0_i32_0 : i32, i32
  }
  func.func @transform_2(%arg0: i32, %arg1: i32) -> (i32, i32) {
    %c0_i32 = arith.constant 0 : i32
    %c0_i32_0 = arith.constant 0 : i32
    %c0_i32_1 = arith.constant 0 : i32
    return %c0_i32, %c0_i32_0 : i32, i32
  }
  func.func @transform_3(%arg0: i32, %arg1: i32) -> (i32, i32, i32, i32) {
    %c0_i32 = arith.constant 0 : i32
    %c0_i32_0 = arith.constant 0 : i32
    %c0_i32_1 = arith.constant 0 : i32
    return %arg0, %arg1, %c0_i32, %c0_i32_0 : i32, i32, i32, i32
  }
}

module attributes {stable_mosaic.version = 11 : i64} {
  func.func @_conv3x3_kernel(%arg0: i32, %arg1: i32, %arg2: memref<1x224x16x224xbf16, #tpu.memory_space<vmem>>, %arg3: memref<32x144xbf16, #tpu.memory_space<vmem>>, %arg4: memref<32x1xf32, #tpu.memory_space<vmem>>, %arg5: memref<1x37x32x222xbf16, #tpu.memory_space<vmem>>) attributes {dimension_semantics = [#tpu.dimension_semantics<parallel>, #tpu.dimension_semantics<arbitrary>], iteration_bounds = array<i64: 2, 6>, scalar_prefetch = 0 : i64, scratch_operands = 0 : i64, tpu.core_type = #tpu.core_type<tc>, window_params = [{transform_indices = @transform_0, window_bounds = array<i64: 1, 224, 16, 224>}, {pipeline_mode = #tpu.pipeline_mode<synchronous>, transform_indices = @transform_1, window_bounds = array<i64: 32, 144>}, {pipeline_mode = #tpu.pipeline_mode<synchronous>, transform_indices = @transform_2, window_bounds = array<i64: 32, 1>}, {transform_indices = @transform_3, window_bounds = array<i64: 1, 37, 32, 222>}]} {
    %c37_i32 = arith.constant 37 : i32
    %0 = arith.muli %arg1, %c37_i32 : i32
    %c0 = arith.constant 0 : index
    %c0_0 = arith.constant 0 : index
    %1 = vector.load %arg4[%c0, %c0_0] : memref<32x1xf32, #tpu.memory_space<vmem>>, vector<32x1xf32>
    %2 = vector.shape_cast %1 : vector<32x1xf32> to vector<32x1xf32>
    %3 = vector.broadcast %2 : vector<32x1xf32> to vector<32x222xf32>
    %c0_i32 = arith.constant 0 : i32
    %c37_i32_1 = arith.constant 37 : i32
    %4 = arith.addi %c0_i32, %c37_i32_1 : i32
    %c1_i32 = arith.constant 1 : i32
    scf.for %arg6 = %c0_i32 to %4 step %c1_i32  : i32 {
      %c1_i32_3 = arith.constant 1 : i32
      %5 = arith.muli %arg6, %c1_i32_3 : i32
      %c0_i32_4 = arith.constant 0 : i32
      %6 = arith.addi %c0_i32_4, %5 : i32
      %7 = arith.addi %0, %6 : i32
      %c0_5 = arith.constant 0 : index
      %8 = arith.index_cast %7 : i32 to index
      %c0_6 = arith.constant 0 : index
      %c0_7 = arith.constant 0 : index
      %9 = vector.load %arg2[%c0_5, %8, %c0_6, %c0_7] : memref<1x224x16x224xbf16, #tpu.memory_space<vmem>>, vector<1x1x16x224xbf16>
      %10 = vector.shape_cast %9 : vector<1x1x16x224xbf16> to vector<16x224xbf16>
      %c1_i32_8 = arith.constant 1 : i32
      %11 = arith.addi %7, %c1_i32_8 : i32
      %c0_9 = arith.constant 0 : index
      %12 = arith.index_cast %11 : i32 to index
      %c0_10 = arith.constant 0 : index
      %c0_11 = arith.constant 0 : index
      %13 = vector.load %arg2[%c0_9, %12, %c0_10, %c0_11] : memref<1x224x16x224xbf16, #tpu.memory_space<vmem>>, vector<1x1x16x224xbf16>
      %14 = vector.shape_cast %13 : vector<1x1x16x224xbf16> to vector<16x224xbf16>
      %c2_i32 = arith.constant 2 : i32
      %15 = arith.addi %7, %c2_i32 : i32
      %c0_12 = arith.constant 0 : index
      %16 = arith.index_cast %15 : i32 to index
      %c0_13 = arith.constant 0 : index
      %c0_14 = arith.constant 0 : index
      %17 = vector.load %arg2[%c0_12, %16, %c0_13, %c0_14] : memref<1x224x16x224xbf16, #tpu.memory_space<vmem>>, vector<1x1x16x224xbf16>
      %18 = vector.shape_cast %17 : vector<1x1x16x224xbf16> to vector<16x224xbf16>
      %19 = tpu.concatenate %10, %14, %18 in 0 : vector<16x224xbf16>, vector<16x224xbf16>, vector<16x224xbf16> -> vector<48x224xbf16>
      %20 = vector.extract_strided_slice %19 {offsets = [0, 0], sizes = [48, 222], strides = [1, 1]} : vector<48x224xbf16> to vector<48x222xbf16>
      %21 = vector.extract_strided_slice %19 {offsets = [0, 1], sizes = [48, 222], strides = [1, 1]} : vector<48x224xbf16> to vector<48x222xbf16>
      %22 = vector.extract_strided_slice %19 {offsets = [0, 2], sizes = [48, 222], strides = [1, 1]} : vector<48x224xbf16> to vector<48x222xbf16>
      %23 = tpu.concatenate %20, %21, %22 in 0 : vector<48x222xbf16>, vector<48x222xbf16>, vector<48x222xbf16> -> vector<144x222xbf16>
      %c0_15 = arith.constant 0 : index
      %c0_16 = arith.constant 0 : index
      %24 = vector.load %arg3[%c0_15, %c0_16] : memref<32x144xbf16, #tpu.memory_space<vmem>>, vector<32x144xbf16>
      %cst = arith.constant dense<0.000000e+00> : vector<32x222xf32>
      %25 = tpu.matmul %24, %23, %cst {dimension_numbers = #tpu.dot_dimension_numbers<[1], [0], [0], [1], [0, 0, 1, 1], [], []>} : vector<32x144xbf16>, vector<144x222xbf16>, vector<32x222xf32> -> vector<32x222xf32>
      %26 = arith.addf %25, %3 : vector<32x222xf32>
      %cst_17 = arith.constant 0.000000e+00 : f32
      %27 = vector.broadcast %cst_17 : f32 to vector<32x222xf32>
      %28 = arith.maximumf %26, %27 : vector<32x222xf32>
      %29 = arith.truncf %28 : vector<32x222xf32> to vector<32x222xbf16>
      %c0_18 = arith.constant 0 : index
      %30 = arith.index_cast %6 : i32 to index
      %c0_19 = arith.constant 0 : index
      %c0_20 = arith.constant 0 : index
      %31 = vector.load %arg5[%c0_18, %30, %c0_19, %c0_20] : memref<1x37x32x222xbf16, #tpu.memory_space<vmem>>, vector<1x1x32x222xbf16>
      %32 = vector.shape_cast %31 : vector<1x1x32x222xbf16> to vector<32x222xbf16>
      %33 = vector.shape_cast %29 : vector<32x222xbf16> to vector<1x1x32x222xbf16>
      tpu.vector_store %arg5[%c0_18, %30, %c0_19, %c0_20], %33 {strides = array<i32>} : memref<1x37x32x222xbf16, #tpu.memory_space<vmem>>, vector<1x1x32x222xbf16>,
    }
    %c37_i32_2 = arith.constant 37 : i32
    return
  }
  func.func @transform_0(%arg0: i32, %arg1: i32) -> (i32, i32, i32, i32) {
    %c0_i32 = arith.constant 0 : i32
    %c0_i32_0 = arith.constant 0 : i32
    %c0_i32_1 = arith.constant 0 : i32
    %c0_i32_2 = arith.constant 0 : i32
    return %arg0, %c0_i32, %c0_i32_0, %c0_i32_1 : i32, i32, i32, i32
  }
  func.func @transform_1(%arg0: i32, %arg1: i32) -> (i32, i32) {
    %c0_i32 = arith.constant 0 : i32
    %c0_i32_0 = arith.constant 0 : i32
    %c0_i32_1 = arith.constant 0 : i32
    return %c0_i32, %c0_i32_0 : i32, i32
  }
  func.func @transform_2(%arg0: i32, %arg1: i32) -> (i32, i32) {
    %c0_i32 = arith.constant 0 : i32
    %c0_i32_0 = arith.constant 0 : i32
    %c0_i32_1 = arith.constant 0 : i32
    return %c0_i32, %c0_i32_0 : i32, i32
  }
  func.func @transform_3(%arg0: i32, %arg1: i32) -> (i32, i32, i32, i32) {
    %c0_i32 = arith.constant 0 : i32
    %c0_i32_0 = arith.constant 0 : i32
    %c0_i32_1 = arith.constant 0 : i32
    return %arg0, %arg1, %c0_i32, %c0_i32_0 : i32, i32, i32, i32
  }
}

module attributes {stable_mosaic.version = 11 : i64} {
  func.func @_maxpool3x3_s2_kernel(%arg0: i32, %arg1: memref<1x220x32x220xbf16, #tpu.memory_space<vmem>>, %arg2: memref<218x109xbf16, #tpu.memory_space<vmem>>, %arg3: memref<1x109x32x109xbf16, #tpu.memory_space<vmem>>) attributes {dimension_semantics = [#tpu.dimension_semantics<parallel>], iteration_bounds = array<i64: 2>, scalar_prefetch = 0 : i64, scratch_operands = 0 : i64, tpu.core_type = #tpu.core_type<tc>, window_params = [{transform_indices = @transform_0, window_bounds = array<i64: 1, 220, 32, 220>}, {pipeline_mode = #tpu.pipeline_mode<synchronous>, transform_indices = @transform_1, window_bounds = array<i64: 218, 109>}, {transform_indices = @transform_2, window_bounds = array<i64: 1, 109, 32, 109>}]} {
    %c0 = arith.constant 0 : index
    %c0_0 = arith.constant 0 : index
    %0 = vector.load %arg2[%c0, %c0_0] : memref<218x109xbf16, #tpu.memory_space<vmem>>, vector<218x109xbf16>
    %c0_i32 = arith.constant 0 : i32
    %c109_i32 = arith.constant 109 : i32
    %1 = arith.addi %c0_i32, %c109_i32 : i32
    %c1_i32 = arith.constant 1 : i32
    scf.for %arg4 = %c0_i32 to %1 step %c1_i32  : i32 {
      %c1_i32_2 = arith.constant 1 : i32
      %2 = arith.muli %arg4, %c1_i32_2 : i32
      %c0_i32_3 = arith.constant 0 : i32
      %3 = arith.addi %c0_i32_3, %2 : i32
      %c2_i32 = arith.constant 2 : i32
      %4 = arith.muli %c2_i32, %3 : i32
      %c0_4 = arith.constant 0 : index
      %5 = arith.index_cast %4 : i32 to index
      %c0_5 = arith.constant 0 : index
      %c0_6 = arith.constant 0 : index
      %6 = vector.load %arg1[%c0_4, %5, %c0_5, %c0_6] : memref<1x220x32x220xbf16, #tpu.memory_space<vmem>>, vector<1x1x32x220xbf16>
      %7 = vector.shape_cast %6 : vector<1x1x32x220xbf16> to vector<32x220xbf16>
      %c1_i32_7 = arith.constant 1 : i32
      %8 = arith.addi %4, %c1_i32_7 : i32
      %c0_8 = arith.constant 0 : index
      %9 = arith.index_cast %8 : i32 to index
      %c0_9 = arith.constant 0 : index
      %c0_10 = arith.constant 0 : index
      %10 = vector.load %arg1[%c0_8, %9, %c0_9, %c0_10] : memref<1x220x32x220xbf16, #tpu.memory_space<vmem>>, vector<1x1x32x220xbf16>
      %11 = vector.shape_cast %10 : vector<1x1x32x220xbf16> to vector<32x220xbf16>
      %12 = arith.maximumf %7, %11 : vector<32x220xbf16>
      %c2_i32_11 = arith.constant 2 : i32
      %13 = arith.addi %4, %c2_i32_11 : i32
      %c0_12 = arith.constant 0 : index
      %14 = arith.index_cast %13 : i32 to index
      %c0_13 = arith.constant 0 : index
      %c0_14 = arith.constant 0 : index
      %15 = vector.load %arg1[%c0_12, %14, %c0_13, %c0_14] : memref<1x220x32x220xbf16, #tpu.memory_space<vmem>>, vector<1x1x32x220xbf16>
      %16 = vector.shape_cast %15 : vector<1x1x32x220xbf16> to vector<32x220xbf16>
      %17 = arith.maximumf %12, %16 : vector<32x220xbf16>
      %18 = vector.extract_strided_slice %17 {offsets = [0, 0], sizes = [32, 218], strides = [1, 1]} : vector<32x220xbf16> to vector<32x218xbf16>
      %19 = vector.extract_strided_slice %17 {offsets = [0, 1], sizes = [32, 218], strides = [1, 1]} : vector<32x220xbf16> to vector<32x218xbf16>
      %20 = arith.maximumf %18, %19 : vector<32x218xbf16>
      %21 = vector.extract_strided_slice %17 {offsets = [0, 2], sizes = [32, 218], strides = [1, 1]} : vector<32x220xbf16> to vector<32x218xbf16>
      %22 = arith.maximumf %20, %21 : vector<32x218xbf16>
      %cst = arith.constant dense<0.000000e+00> : vector<32x109xf32>
      %23 = tpu.matmul %22, %0, %cst {dimension_numbers = #tpu.dot_dimension_numbers<[1], [0], [0], [1], [0, 0, 1, 1], [], []>} : vector<32x218xbf16>, vector<218x109xbf16>, vector<32x109xf32> -> vector<32x109xf32>
      %24 = arith.truncf %23 : vector<32x109xf32> to vector<32x109xbf16>
      %c0_15 = arith.constant 0 : index
      %25 = arith.index_cast %3 : i32 to index
      %c0_16 = arith.constant 0 : index
      %c0_17 = arith.constant 0 : index
      %26 = vector.load %arg3[%c0_15, %25, %c0_16, %c0_17] : memref<1x109x32x109xbf16, #tpu.memory_space<vmem>>, vector<1x1x32x109xbf16>
      %27 = vector.shape_cast %26 : vector<1x1x32x109xbf16> to vector<32x109xbf16>
      %28 = vector.shape_cast %24 : vector<32x109xbf16> to vector<1x1x32x109xbf16>
      tpu.vector_store %arg3[%c0_15, %25, %c0_16, %c0_17], %28 {strides = array<i32>} : memref<1x109x32x109xbf16, #tpu.memory_space<vmem>>, vector<1x1x32x109xbf16>,
    }
    %c109_i32_1 = arith.constant 109 : i32
    return
  }
  func.func @transform_0(%arg0: i32) -> (i32, i32, i32, i32) {
    %c0_i32 = arith.constant 0 : i32
    %c0_i32_0 = arith.constant 0 : i32
    %c0_i32_1 = arith.constant 0 : i32
    %c0_i32_2 = arith.constant 0 : i32
    return %arg0, %c0_i32, %c0_i32_0, %c0_i32_1 : i32, i32, i32, i32
  }
  func.func @transform_1(%arg0: i32) -> (i32, i32) {
    %c0_i32 = arith.constant 0 : i32
    %c0_i32_0 = arith.constant 0 : i32
    %c0_i32_1 = arith.constant 0 : i32
    return %c0_i32, %c0_i32_0 : i32, i32
  }
  func.func @transform_2(%arg0: i32) -> (i32, i32, i32, i32) {
    %c0_i32 = arith.constant 0 : i32
    %c0_i32_0 = arith.constant 0 : i32
    %c0_i32_1 = arith.constant 0 : i32
    %c0_i32_2 = arith.constant 0 : i32
    return %arg0, %c0_i32, %c0_i32_0, %c0_i32_1 : i32, i32, i32, i32
  }
}

module attributes {stable_mosaic.version = 11 : i64} {
  func.func @_conv3x3_kernel(%arg0: i32, %arg1: i32, %arg2: memref<1x109x32x109xbf16, #tpu.memory_space<vmem>>, %arg3: memref<32x288xbf16, #tpu.memory_space<vmem>>, %arg4: memref<32x1xf32, #tpu.memory_space<vmem>>, %arg5: memref<1x107x32x107xbf16, #tpu.memory_space<vmem>>) attributes {dimension_semantics = [#tpu.dimension_semantics<parallel>, #tpu.dimension_semantics<arbitrary>], iteration_bounds = array<i64: 2, 1>, scalar_prefetch = 0 : i64, scratch_operands = 0 : i64, tpu.core_type = #tpu.core_type<tc>, window_params = [{transform_indices = @transform_0, window_bounds = array<i64: 1, 109, 32, 109>}, {pipeline_mode = #tpu.pipeline_mode<synchronous>, transform_indices = @transform_1, window_bounds = array<i64: 32, 288>}, {pipeline_mode = #tpu.pipeline_mode<synchronous>, transform_indices = @transform_2, window_bounds = array<i64: 32, 1>}, {transform_indices = @transform_3, window_bounds = array<i64: 1, 107, 32, 107>}]} {
    %c107_i32 = arith.constant 107 : i32
    %0 = arith.muli %arg1, %c107_i32 : i32
    %c0 = arith.constant 0 : index
    %c0_0 = arith.constant 0 : index
    %1 = vector.load %arg4[%c0, %c0_0] : memref<32x1xf32, #tpu.memory_space<vmem>>, vector<32x1xf32>
    %2 = vector.shape_cast %1 : vector<32x1xf32> to vector<32x1xf32>
    %3 = vector.broadcast %2 : vector<32x1xf32> to vector<32x107xf32>
    %c0_i32 = arith.constant 0 : i32
    %c107_i32_1 = arith.constant 107 : i32
    %4 = arith.addi %c0_i32, %c107_i32_1 : i32
    %c1_i32 = arith.constant 1 : i32
    scf.for %arg6 = %c0_i32 to %4 step %c1_i32  : i32 {
      %c1_i32_3 = arith.constant 1 : i32
      %5 = arith.muli %arg6, %c1_i32_3 : i32
      %c0_i32_4 = arith.constant 0 : i32
      %6 = arith.addi %c0_i32_4, %5 : i32
      %7 = arith.addi %0, %6 : i32
      %c0_5 = arith.constant 0 : index
      %8 = arith.index_cast %7 : i32 to index
      %c0_6 = arith.constant 0 : index
      %c0_7 = arith.constant 0 : index
      %9 = vector.load %arg2[%c0_5, %8, %c0_6, %c0_7] : memref<1x109x32x109xbf16, #tpu.memory_space<vmem>>, vector<1x1x32x109xbf16>
      %10 = vector.shape_cast %9 : vector<1x1x32x109xbf16> to vector<32x109xbf16>
      %c1_i32_8 = arith.constant 1 : i32
      %11 = arith.addi %7, %c1_i32_8 : i32
      %c0_9 = arith.constant 0 : index
      %12 = arith.index_cast %11 : i32 to index
      %c0_10 = arith.constant 0 : index
      %c0_11 = arith.constant 0 : index
      %13 = vector.load %arg2[%c0_9, %12, %c0_10, %c0_11] : memref<1x109x32x109xbf16, #tpu.memory_space<vmem>>, vector<1x1x32x109xbf16>
      %14 = vector.shape_cast %13 : vector<1x1x32x109xbf16> to vector<32x109xbf16>
      %c2_i32 = arith.constant 2 : i32
      %15 = arith.addi %7, %c2_i32 : i32
      %c0_12 = arith.constant 0 : index
      %16 = arith.index_cast %15 : i32 to index
      %c0_13 = arith.constant 0 : index
      %c0_14 = arith.constant 0 : index
      %17 = vector.load %arg2[%c0_12, %16, %c0_13, %c0_14] : memref<1x109x32x109xbf16, #tpu.memory_space<vmem>>, vector<1x1x32x109xbf16>
      %18 = vector.shape_cast %17 : vector<1x1x32x109xbf16> to vector<32x109xbf16>
      %19 = tpu.concatenate %10, %14, %18 in 0 : vector<32x109xbf16>, vector<32x109xbf16>, vector<32x109xbf16> -> vector<96x109xbf16>
      %20 = vector.extract_strided_slice %19 {offsets = [0, 0], sizes = [96, 107], strides = [1, 1]} : vector<96x109xbf16> to vector<96x107xbf16>
      %21 = vector.extract_strided_slice %19 {offsets = [0, 1], sizes = [96, 107], strides = [1, 1]} : vector<96x109xbf16> to vector<96x107xbf16>
      %22 = vector.extract_strided_slice %19 {offsets = [0, 2], sizes = [96, 107], strides = [1, 1]} : vector<96x109xbf16> to vector<96x107xbf16>
      %23 = tpu.concatenate %20, %21, %22 in 0 : vector<96x107xbf16>, vector<96x107xbf16>, vector<96x107xbf16> -> vector<288x107xbf16>
      %c0_15 = arith.constant 0 : index
      %c0_16 = arith.constant 0 : index
      %24 = vector.load %arg3[%c0_15, %c0_16] : memref<32x288xbf16, #tpu.memory_space<vmem>>, vector<32x288xbf16>
      %cst = arith.constant dense<0.000000e+00> : vector<32x107xf32>
      %25 = tpu.matmul %24, %23, %cst {dimension_numbers = #tpu.dot_dimension_numbers<[1], [0], [0], [1], [0, 0, 1, 1], [], []>} : vector<32x288xbf16>, vector<288x107xbf16>, vector<32x107xf32> -> vector<32x107xf32>
      %26 = arith.addf %25, %3 : vector<32x107xf32>
      %cst_17 = arith.constant 0.000000e+00 : f32
      %27 = vector.broadcast %cst_17 : f32 to vector<32x107xf32>
      %28 = arith.maximumf %26, %27 : vector<32x107xf32>
      %29 = arith.truncf %28 : vector<32x107xf32> to vector<32x107xbf16>
      %c0_18 = arith.constant 0 : index
      %30 = arith.index_cast %6 : i32 to index
      %c0_19 = arith.constant 0 : index
      %c0_20 = arith.constant 0 : index
      %31 = vector.load %arg5[%c0_18, %30, %c0_19, %c0_20] : memref<1x107x32x107xbf16, #tpu.memory_space<vmem>>, vector<1x1x32x107xbf16>
      %32 = vector.shape_cast %31 : vector<1x1x32x107xbf16> to vector<32x107xbf16>
      %33 = vector.shape_cast %29 : vector<32x107xbf16> to vector<1x1x32x107xbf16>
      tpu.vector_store %arg5[%c0_18, %30, %c0_19, %c0_20], %33 {strides = array<i32>} : memref<1x107x32x107xbf16, #tpu.memory_space<vmem>>, vector<1x1x32x107xbf16>,
    }
    %c107_i32_2 = arith.constant 107 : i32
    return
  }
  func.func @transform_0(%arg0: i32, %arg1: i32) -> (i32, i32, i32, i32) {
    %c0_i32 = arith.constant 0 : i32
    %c0_i32_0 = arith.constant 0 : i32
    %c0_i32_1 = arith.constant 0 : i32
    %c0_i32_2 = arith.constant 0 : i32
    return %arg0, %c0_i32, %c0_i32_0, %c0_i32_1 : i32, i32, i32, i32
  }
  func.func @transform_1(%arg0: i32, %arg1: i32) -> (i32, i32) {
    %c0_i32 = arith.constant 0 : i32
    %c0_i32_0 = arith.constant 0 : i32
    %c0_i32_1 = arith.constant 0 : i32
    return %c0_i32, %c0_i32_0 : i32, i32
  }
  func.func @transform_2(%arg0: i32, %arg1: i32) -> (i32, i32) {
    %c0_i32 = arith.constant 0 : i32
    %c0_i32_0 = arith.constant 0 : i32
    %c0_i32_1 = arith.constant 0 : i32
    return %c0_i32, %c0_i32_0 : i32, i32
  }
  func.func @transform_3(%arg0: i32, %arg1: i32) -> (i32, i32, i32, i32) {
    %c0_i32 = arith.constant 0 : i32
    %c0_i32_0 = arith.constant 0 : i32
    %c0_i32_1 = arith.constant 0 : i32
    return %arg0, %arg1, %c0_i32, %c0_i32_0 : i32, i32, i32, i32
  }
}

module attributes {stable_mosaic.version = 11 : i64} {
  func.func @_maxpool3x3_s2_kernel(%arg0: i32, %arg1: memref<1x107x32x107xbf16, #tpu.memory_space<vmem>>, %arg2: memref<105x53xbf16, #tpu.memory_space<vmem>>, %arg3: memref<1x53x32x53xbf16, #tpu.memory_space<vmem>>) attributes {dimension_semantics = [#tpu.dimension_semantics<parallel>], iteration_bounds = array<i64: 2>, scalar_prefetch = 0 : i64, scratch_operands = 0 : i64, tpu.core_type = #tpu.core_type<tc>, window_params = [{transform_indices = @transform_0, window_bounds = array<i64: 1, 107, 32, 107>}, {pipeline_mode = #tpu.pipeline_mode<synchronous>, transform_indices = @transform_1, window_bounds = array<i64: 105, 53>}, {transform_indices = @transform_2, window_bounds = array<i64: 1, 53, 32, 53>}]} {
    %c0 = arith.constant 0 : index
    %c0_0 = arith.constant 0 : index
    %0 = vector.load %arg2[%c0, %c0_0] : memref<105x53xbf16, #tpu.memory_space<vmem>>, vector<105x53xbf16>
    %c0_i32 = arith.constant 0 : i32
    %c53_i32 = arith.constant 53 : i32
    %1 = arith.addi %c0_i32, %c53_i32 : i32
    %c1_i32 = arith.constant 1 : i32
    scf.for %arg4 = %c0_i32 to %1 step %c1_i32  : i32 {
      %c1_i32_2 = arith.constant 1 : i32
      %2 = arith.muli %arg4, %c1_i32_2 : i32
      %c0_i32_3 = arith.constant 0 : i32
      %3 = arith.addi %c0_i32_3, %2 : i32
      %c2_i32 = arith.constant 2 : i32
      %4 = arith.muli %c2_i32, %3 : i32
      %c0_4 = arith.constant 0 : index
      %5 = arith.index_cast %4 : i32 to index
      %c0_5 = arith.constant 0 : index
      %c0_6 = arith.constant 0 : index
      %6 = vector.load %arg1[%c0_4, %5, %c0_5, %c0_6] : memref<1x107x32x107xbf16, #tpu.memory_space<vmem>>, vector<1x1x32x107xbf16>
      %7 = vector.shape_cast %6 : vector<1x1x32x107xbf16> to vector<32x107xbf16>
      %c1_i32_7 = arith.constant 1 : i32
      %8 = arith.addi %4, %c1_i32_7 : i32
      %c0_8 = arith.constant 0 : index
      %9 = arith.index_cast %8 : i32 to index
      %c0_9 = arith.constant 0 : index
      %c0_10 = arith.constant 0 : index
      %10 = vector.load %arg1[%c0_8, %9, %c0_9, %c0_10] : memref<1x107x32x107xbf16, #tpu.memory_space<vmem>>, vector<1x1x32x107xbf16>
      %11 = vector.shape_cast %10 : vector<1x1x32x107xbf16> to vector<32x107xbf16>
      %12 = arith.maximumf %7, %11 : vector<32x107xbf16>
      %c2_i32_11 = arith.constant 2 : i32
      %13 = arith.addi %4, %c2_i32_11 : i32
      %c0_12 = arith.constant 0 : index
      %14 = arith.index_cast %13 : i32 to index
      %c0_13 = arith.constant 0 : index
      %c0_14 = arith.constant 0 : index
      %15 = vector.load %arg1[%c0_12, %14, %c0_13, %c0_14] : memref<1x107x32x107xbf16, #tpu.memory_space<vmem>>, vector<1x1x32x107xbf16>
      %16 = vector.shape_cast %15 : vector<1x1x32x107xbf16> to vector<32x107xbf16>
      %17 = arith.maximumf %12, %16 : vector<32x107xbf16>
      %18 = vector.extract_strided_slice %17 {offsets = [0, 0], sizes = [32, 105], strides = [1, 1]} : vector<32x107xbf16> to vector<32x105xbf16>
      %19 = vector.extract_strided_slice %17 {offsets = [0, 1], sizes = [32, 105], strides = [1, 1]} : vector<32x107xbf16> to vector<32x105xbf16>
      %20 = arith.maximumf %18, %19 : vector<32x105xbf16>
      %21 = vector.extract_strided_slice %17 {offsets = [0, 2], sizes = [32, 105], strides = [1, 1]} : vector<32x107xbf16> to vector<32x105xbf16>
      %22 = arith.maximumf %20, %21 : vector<32x105xbf16>
      %cst = arith.constant dense<0.000000e+00> : vector<32x53xf32>
      %23 = tpu.matmul %22, %0, %cst {dimension_numbers = #tpu.dot_dimension_numbers<[1], [0], [0], [1], [0, 0, 1, 1], [], []>} : vector<32x105xbf16>, vector<105x53xbf16>, vector<32x53xf32> -> vector<32x53xf32>
      %24 = arith.truncf %23 : vector<32x53xf32> to vector<32x53xbf16>
      %c0_15 = arith.constant 0 : index
      %25 = arith.index_cast %3 : i32 to index
      %c0_16 = arith.constant 0 : index
      %c0_17 = arith.constant 0 : index
      %26 = vector.load %arg3[%c0_15, %25, %c0_16, %c0_17] : memref<1x53x32x53xbf16, #tpu.memory_space<vmem>>, vector<1x1x32x53xbf16>
      %27 = vector.shape_cast %26 : vector<1x1x32x53xbf16> to vector<32x53xbf16>
      %28 = vector.shape_cast %24 : vector<32x53xbf16> to vector<1x1x32x53xbf16>
      tpu.vector_store %arg3[%c0_15, %25, %c0_16, %c0_17], %28 {strides = array<i32>} : memref<1x53x32x53xbf16, #tpu.memory_space<vmem>>, vector<1x1x32x53xbf16>,
    }
    %c53_i32_1 = arith.constant 53 : i32
    return
  }
  func.func @transform_0(%arg0: i32) -> (i32, i32, i32, i32) {
    %c0_i32 = arith.constant 0 : i32
    %c0_i32_0 = arith.constant 0 : i32
    %c0_i32_1 = arith.constant 0 : i32
    %c0_i32_2 = arith.constant 0 : i32
    return %arg0, %c0_i32, %c0_i32_0, %c0_i32_1 : i32, i32, i32, i32
  }
  func.func @transform_1(%arg0: i32) -> (i32, i32) {
    %c0_i32 = arith.constant 0 : i32
    %c0_i32_0 = arith.constant 0 : i32
    %c0_i32_1 = arith.constant 0 : i32
    return %c0_i32, %c0_i32_0 : i32, i32
  }
  func.func @transform_2(%arg0: i32) -> (i32, i32, i32, i32) {
    %c0_i32 = arith.constant 0 : i32
    %c0_i32_0 = arith.constant 0 : i32
    %c0_i32_1 = arith.constant 0 : i32
    %c0_i32_2 = arith.constant 0 : i32
    return %arg0, %c0_i32, %c0_i32_0, %c0_i32_1 : i32, i32, i32, i32
  }
}

module attributes {stable_mosaic.version = 11 : i64} {
  func.func @_conv3x3_kernel(%arg0: i32, %arg1: i32, %arg2: memref<1x53x32x53xbf16, #tpu.memory_space<vmem>>, %arg3: memref<64x288xbf16, #tpu.memory_space<vmem>>, %arg4: memref<64x1xf32, #tpu.memory_space<vmem>>, %arg5: memref<1x51x64x51xbf16, #tpu.memory_space<vmem>>) attributes {dimension_semantics = [#tpu.dimension_semantics<parallel>, #tpu.dimension_semantics<arbitrary>], iteration_bounds = array<i64: 2, 1>, scalar_prefetch = 0 : i64, scratch_operands = 0 : i64, tpu.core_type = #tpu.core_type<tc>, window_params = [{transform_indices = @transform_0, window_bounds = array<i64: 1, 53, 32, 53>}, {pipeline_mode = #tpu.pipeline_mode<synchronous>, transform_indices = @transform_1, window_bounds = array<i64: 64, 288>}, {pipeline_mode = #tpu.pipeline_mode<synchronous>, transform_indices = @transform_2, window_bounds = array<i64: 64, 1>}, {transform_indices = @transform_3, window_bounds = array<i64: 1, 51, 64, 51>}]} {
    %c51_i32 = arith.constant 51 : i32
    %0 = arith.muli %arg1, %c51_i32 : i32
    %c0 = arith.constant 0 : index
    %c0_0 = arith.constant 0 : index
    %1 = vector.load %arg4[%c0, %c0_0] : memref<64x1xf32, #tpu.memory_space<vmem>>, vector<64x1xf32>
    %2 = vector.shape_cast %1 : vector<64x1xf32> to vector<64x1xf32>
    %3 = vector.broadcast %2 : vector<64x1xf32> to vector<64x51xf32>
    %c0_i32 = arith.constant 0 : i32
    %c51_i32_1 = arith.constant 51 : i32
    %4 = arith.addi %c0_i32, %c51_i32_1 : i32
    %c1_i32 = arith.constant 1 : i32
    scf.for %arg6 = %c0_i32 to %4 step %c1_i32  : i32 {
      %c1_i32_3 = arith.constant 1 : i32
      %5 = arith.muli %arg6, %c1_i32_3 : i32
      %c0_i32_4 = arith.constant 0 : i32
      %6 = arith.addi %c0_i32_4, %5 : i32
      %7 = arith.addi %0, %6 : i32
      %c0_5 = arith.constant 0 : index
      %8 = arith.index_cast %7 : i32 to index
      %c0_6 = arith.constant 0 : index
      %c0_7 = arith.constant 0 : index
      %9 = vector.load %arg2[%c0_5, %8, %c0_6, %c0_7] : memref<1x53x32x53xbf16, #tpu.memory_space<vmem>>, vector<1x1x32x53xbf16>
      %10 = vector.shape_cast %9 : vector<1x1x32x53xbf16> to vector<32x53xbf16>
      %c1_i32_8 = arith.constant 1 : i32
      %11 = arith.addi %7, %c1_i32_8 : i32
      %c0_9 = arith.constant 0 : index
      %12 = arith.index_cast %11 : i32 to index
      %c0_10 = arith.constant 0 : index
      %c0_11 = arith.constant 0 : index
      %13 = vector.load %arg2[%c0_9, %12, %c0_10, %c0_11] : memref<1x53x32x53xbf16, #tpu.memory_space<vmem>>, vector<1x1x32x53xbf16>
      %14 = vector.shape_cast %13 : vector<1x1x32x53xbf16> to vector<32x53xbf16>
      %c2_i32 = arith.constant 2 : i32
      %15 = arith.addi %7, %c2_i32 : i32
      %c0_12 = arith.constant 0 : index
      %16 = arith.index_cast %15 : i32 to index
      %c0_13 = arith.constant 0 : index
      %c0_14 = arith.constant 0 : index
      %17 = vector.load %arg2[%c0_12, %16, %c0_13, %c0_14] : memref<1x53x32x53xbf16, #tpu.memory_space<vmem>>, vector<1x1x32x53xbf16>
      %18 = vector.shape_cast %17 : vector<1x1x32x53xbf16> to vector<32x53xbf16>
      %19 = tpu.concatenate %10, %14, %18 in 0 : vector<32x53xbf16>, vector<32x53xbf16>, vector<32x53xbf16> -> vector<96x53xbf16>
      %20 = vector.extract_strided_slice %19 {offsets = [0, 0], sizes = [96, 51], strides = [1, 1]} : vector<96x53xbf16> to vector<96x51xbf16>
      %21 = vector.extract_strided_slice %19 {offsets = [0, 1], sizes = [96, 51], strides = [1, 1]} : vector<96x53xbf16> to vector<96x51xbf16>
      %22 = vector.extract_strided_slice %19 {offsets = [0, 2], sizes = [96, 51], strides = [1, 1]} : vector<96x53xbf16> to vector<96x51xbf16>
      %23 = tpu.concatenate %20, %21, %22 in 0 : vector<96x51xbf16>, vector<96x51xbf16>, vector<96x51xbf16> -> vector<288x51xbf16>
      %c0_15 = arith.constant 0 : index
      %c0_16 = arith.constant 0 : index
      %24 = vector.load %arg3[%c0_15, %c0_16] : memref<64x288xbf16, #tpu.memory_space<vmem>>, vector<64x288xbf16>
      %cst = arith.constant dense<0.000000e+00> : vector<64x51xf32>
      %25 = tpu.matmul %24, %23, %cst {dimension_numbers = #tpu.dot_dimension_numbers<[1], [0], [0], [1], [0, 0, 1, 1], [], []>} : vector<64x288xbf16>, vector<288x51xbf16>, vector<64x51xf32> -> vector<64x51xf32>
      %26 = arith.addf %25, %3 : vector<64x51xf32>
      %cst_17 = arith.constant 0.000000e+00 : f32
      %27 = vector.broadcast %cst_17 : f32 to vector<64x51xf32>
      %28 = arith.maximumf %26, %27 : vector<64x51xf32>
      %29 = arith.truncf %28 : vector<64x51xf32> to vector<64x51xbf16>
      %c0_18 = arith.constant 0 : index
      %30 = arith.index_cast %6 : i32 to index
      %c0_19 = arith.constant 0 : index
      %c0_20 = arith.constant 0 : index
      %31 = vector.load %arg5[%c0_18, %30, %c0_19, %c0_20] : memref<1x51x64x51xbf16, #tpu.memory_space<vmem>>, vector<1x1x64x51xbf16>
      %32 = vector.shape_cast %31 : vector<1x1x64x51xbf16> to vector<64x51xbf16>
      %33 = vector.shape_cast %29 : vector<64x51xbf16> to vector<1x1x64x51xbf16>
      tpu.vector_store %arg5[%c0_18, %30, %c0_19, %c0_20], %33 {strides = array<i32>} : memref<1x51x64x51xbf16, #tpu.memory_space<vmem>>, vector<1x1x64x51xbf16>,
    }
    %c51_i32_2 = arith.constant 51 : i32
    return
  }
  func.func @transform_0(%arg0: i32, %arg1: i32) -> (i32, i32, i32, i32) {
    %c0_i32 = arith.constant 0 : i32
    %c0_i32_0 = arith.constant 0 : i32
    %c0_i32_1 = arith.constant 0 : i32
    %c0_i32_2 = arith.constant 0 : i32
    return %arg0, %c0_i32, %c0_i32_0, %c0_i32_1 : i32, i32, i32, i32
  }
  func.func @transform_1(%arg0: i32, %arg1: i32) -> (i32, i32) {
    %c0_i32 = arith.constant 0 : i32
    %c0_i32_0 = arith.constant 0 : i32
    %c0_i32_1 = arith.constant 0 : i32
    return %c0_i32, %c0_i32_0 : i32, i32
  }
  func.func @transform_2(%arg0: i32, %arg1: i32) -> (i32, i32) {
    %c0_i32 = arith.constant 0 : i32
    %c0_i32_0 = arith.constant 0 : i32
    %c0_i32_1 = arith.constant 0 : i32
    return %c0_i32, %c0_i32_0 : i32, i32
  }
  func.func @transform_3(%arg0: i32, %arg1: i32) -> (i32, i32, i32, i32) {
    %c0_i32 = arith.constant 0 : i32
    %c0_i32_0 = arith.constant 0 : i32
    %c0_i32_1 = arith.constant 0 : i32
    return %arg0, %arg1, %c0_i32, %c0_i32_0 : i32, i32, i32, i32
  }
}

module attributes {stable_mosaic.version = 11 : i64} {
  func.func @_maxpool3x3_s2_kernel(%arg0: i32, %arg1: memref<1x51x64x51xbf16, #tpu.memory_space<vmem>>, %arg2: memref<49x25xbf16, #tpu.memory_space<vmem>>, %arg3: memref<1x25x64x25xbf16, #tpu.memory_space<vmem>>) attributes {dimension_semantics = [#tpu.dimension_semantics<parallel>], iteration_bounds = array<i64: 2>, scalar_prefetch = 0 : i64, scratch_operands = 0 : i64, tpu.core_type = #tpu.core_type<tc>, window_params = [{transform_indices = @transform_0, window_bounds = array<i64: 1, 51, 64, 51>}, {pipeline_mode = #tpu.pipeline_mode<synchronous>, transform_indices = @transform_1, window_bounds = array<i64: 49, 25>}, {transform_indices = @transform_2, window_bounds = array<i64: 1, 25, 64, 25>}]} {
    %c0 = arith.constant 0 : index
    %c0_0 = arith.constant 0 : index
    %0 = vector.load %arg2[%c0, %c0_0] : memref<49x25xbf16, #tpu.memory_space<vmem>>, vector<49x25xbf16>
    %c0_i32 = arith.constant 0 : i32
    %c25_i32 = arith.constant 25 : i32
    %1 = arith.addi %c0_i32, %c25_i32 : i32
    %c1_i32 = arith.constant 1 : i32
    scf.for %arg4 = %c0_i32 to %1 step %c1_i32  : i32 {
      %c1_i32_2 = arith.constant 1 : i32
      %2 = arith.muli %arg4, %c1_i32_2 : i32
      %c0_i32_3 = arith.constant 0 : i32
      %3 = arith.addi %c0_i32_3, %2 : i32
      %c2_i32 = arith.constant 2 : i32
      %4 = arith.muli %c2_i32, %3 : i32
      %c0_4 = arith.constant 0 : index
      %5 = arith.index_cast %4 : i32 to index
      %c0_5 = arith.constant 0 : index
      %c0_6 = arith.constant 0 : index
      %6 = vector.load %arg1[%c0_4, %5, %c0_5, %c0_6] : memref<1x51x64x51xbf16, #tpu.memory_space<vmem>>, vector<1x1x64x51xbf16>
      %7 = vector.shape_cast %6 : vector<1x1x64x51xbf16> to vector<64x51xbf16>
      %c1_i32_7 = arith.constant 1 : i32
      %8 = arith.addi %4, %c1_i32_7 : i32
      %c0_8 = arith.constant 0 : index
      %9 = arith.index_cast %8 : i32 to index
      %c0_9 = arith.constant 0 : index
      %c0_10 = arith.constant 0 : index
      %10 = vector.load %arg1[%c0_8, %9, %c0_9, %c0_10] : memref<1x51x64x51xbf16, #tpu.memory_space<vmem>>, vector<1x1x64x51xbf16>
      %11 = vector.shape_cast %10 : vector<1x1x64x51xbf16> to vector<64x51xbf16>
      %12 = arith.maximumf %7, %11 : vector<64x51xbf16>
      %c2_i32_11 = arith.constant 2 : i32
      %13 = arith.addi %4, %c2_i32_11 : i32
      %c0_12 = arith.constant 0 : index
      %14 = arith.index_cast %13 : i32 to index
      %c0_13 = arith.constant 0 : index
      %c0_14 = arith.constant 0 : index
      %15 = vector.load %arg1[%c0_12, %14, %c0_13, %c0_14] : memref<1x51x64x51xbf16, #tpu.memory_space<vmem>>, vector<1x1x64x51xbf16>
      %16 = vector.shape_cast %15 : vector<1x1x64x51xbf16> to vector<64x51xbf16>
      %17 = arith.maximumf %12, %16 : vector<64x51xbf16>
      %18 = vector.extract_strided_slice %17 {offsets = [0, 0], sizes = [64, 49], strides = [1, 1]} : vector<64x51xbf16> to vector<64x49xbf16>
      %19 = vector.extract_strided_slice %17 {offsets = [0, 1], sizes = [64, 49], strides = [1, 1]} : vector<64x51xbf16> to vector<64x49xbf16>
      %20 = arith.maximumf %18, %19 : vector<64x49xbf16>
      %21 = vector.extract_strided_slice %17 {offsets = [0, 2], sizes = [64, 49], strides = [1, 1]} : vector<64x51xbf16> to vector<64x49xbf16>
      %22 = arith.maximumf %20, %21 : vector<64x49xbf16>
      %cst = arith.constant dense<0.000000e+00> : vector<64x25xf32>
      %23 = tpu.matmul %22, %0, %cst {dimension_numbers = #tpu.dot_dimension_numbers<[1], [0], [0], [1], [0, 0, 1, 1], [], []>} : vector<64x49xbf16>, vector<49x25xbf16>, vector<64x25xf32> -> vector<64x25xf32>
      %24 = arith.truncf %23 : vector<64x25xf32> to vector<64x25xbf16>
      %c0_15 = arith.constant 0 : index
      %25 = arith.index_cast %3 : i32 to index
      %c0_16 = arith.constant 0 : index
      %c0_17 = arith.constant 0 : index
      %26 = vector.load %arg3[%c0_15, %25, %c0_16, %c0_17] : memref<1x25x64x25xbf16, #tpu.memory_space<vmem>>, vector<1x1x64x25xbf16>
      %27 = vector.shape_cast %26 : vector<1x1x64x25xbf16> to vector<64x25xbf16>
      %28 = vector.shape_cast %24 : vector<64x25xbf16> to vector<1x1x64x25xbf16>
      tpu.vector_store %arg3[%c0_15, %25, %c0_16, %c0_17], %28 {strides = array<i32>} : memref<1x25x64x25xbf16, #tpu.memory_space<vmem>>, vector<1x1x64x25xbf16>,
    }
    %c25_i32_1 = arith.constant 25 : i32
    return
  }
  func.func @transform_0(%arg0: i32) -> (i32, i32, i32, i32) {
    %c0_i32 = arith.constant 0 : i32
    %c0_i32_0 = arith.constant 0 : i32
    %c0_i32_1 = arith.constant 0 : i32
    %c0_i32_2 = arith.constant 0 : i32
    return %arg0, %c0_i32, %c0_i32_0, %c0_i32_1 : i32, i32, i32, i32
  }
  func.func @transform_1(%arg0: i32) -> (i32, i32) {
    %c0_i32 = arith.constant 0 : i32
    %c0_i32_0 = arith.constant 0 : i32
    %c0_i32_1 = arith.constant 0 : i32
    return %c0_i32, %c0_i32_0 : i32, i32
  }
  func.func @transform_2(%arg0: i32) -> (i32, i32, i32, i32) {
    %c0_i32 = arith.constant 0 : i32
    %c0_i32_0 = arith.constant 0 : i32
    %c0_i32_1 = arith.constant 0 : i32
    %c0_i32_2 = arith.constant 0 : i32
    return %arg0, %c0_i32, %c0_i32_0, %c0_i32_1 : i32, i32, i32, i32
  }
}

module attributes {stable_mosaic.version = 11 : i64} {
  func.func @_conv3x3_kernel(%arg0: i32, %arg1: i32, %arg2: memref<1x25x64x25xbf16, #tpu.memory_space<vmem>>, %arg3: memref<64x576xbf16, #tpu.memory_space<vmem>>, %arg4: memref<64x1xf32, #tpu.memory_space<vmem>>, %arg5: memref<1x23x64x23xbf16, #tpu.memory_space<vmem>>) attributes {dimension_semantics = [#tpu.dimension_semantics<parallel>, #tpu.dimension_semantics<arbitrary>], iteration_bounds = array<i64: 2, 1>, scalar_prefetch = 0 : i64, scratch_operands = 0 : i64, tpu.core_type = #tpu.core_type<tc>, window_params = [{transform_indices = @transform_0, window_bounds = array<i64: 1, 25, 64, 25>}, {pipeline_mode = #tpu.pipeline_mode<synchronous>, transform_indices = @transform_1, window_bounds = array<i64: 64, 576>}, {pipeline_mode = #tpu.pipeline_mode<synchronous>, transform_indices = @transform_2, window_bounds = array<i64: 64, 1>}, {transform_indices = @transform_3, window_bounds = array<i64: 1, 23, 64, 23>}]} {
    %c23_i32 = arith.constant 23 : i32
    %0 = arith.muli %arg1, %c23_i32 : i32
    %c0 = arith.constant 0 : index
    %c0_0 = arith.constant 0 : index
    %1 = vector.load %arg4[%c0, %c0_0] : memref<64x1xf32, #tpu.memory_space<vmem>>, vector<64x1xf32>
    %2 = vector.shape_cast %1 : vector<64x1xf32> to vector<64x1xf32>
    %3 = vector.broadcast %2 : vector<64x1xf32> to vector<64x23xf32>
    %c0_i32 = arith.constant 0 : i32
    %c23_i32_1 = arith.constant 23 : i32
    %4 = arith.addi %c0_i32, %c23_i32_1 : i32
    %c1_i32 = arith.constant 1 : i32
    scf.for %arg6 = %c0_i32 to %4 step %c1_i32  : i32 {
      %c1_i32_3 = arith.constant 1 : i32
      %5 = arith.muli %arg6, %c1_i32_3 : i32
      %c0_i32_4 = arith.constant 0 : i32
      %6 = arith.addi %c0_i32_4, %5 : i32
      %7 = arith.addi %0, %6 : i32
      %c0_5 = arith.constant 0 : index
      %8 = arith.index_cast %7 : i32 to index
      %c0_6 = arith.constant 0 : index
      %c0_7 = arith.constant 0 : index
      %9 = vector.load %arg2[%c0_5, %8, %c0_6, %c0_7] : memref<1x25x64x25xbf16, #tpu.memory_space<vmem>>, vector<1x1x64x25xbf16>
      %10 = vector.shape_cast %9 : vector<1x1x64x25xbf16> to vector<64x25xbf16>
      %c1_i32_8 = arith.constant 1 : i32
      %11 = arith.addi %7, %c1_i32_8 : i32
      %c0_9 = arith.constant 0 : index
      %12 = arith.index_cast %11 : i32 to index
      %c0_10 = arith.constant 0 : index
      %c0_11 = arith.constant 0 : index
      %13 = vector.load %arg2[%c0_9, %12, %c0_10, %c0_11] : memref<1x25x64x25xbf16, #tpu.memory_space<vmem>>, vector<1x1x64x25xbf16>
      %14 = vector.shape_cast %13 : vector<1x1x64x25xbf16> to vector<64x25xbf16>
      %c2_i32 = arith.constant 2 : i32
      %15 = arith.addi %7, %c2_i32 : i32
      %c0_12 = arith.constant 0 : index
      %16 = arith.index_cast %15 : i32 to index
      %c0_13 = arith.constant 0 : index
      %c0_14 = arith.constant 0 : index
      %17 = vector.load %arg2[%c0_12, %16, %c0_13, %c0_14] : memref<1x25x64x25xbf16, #tpu.memory_space<vmem>>, vector<1x1x64x25xbf16>
      %18 = vector.shape_cast %17 : vector<1x1x64x25xbf16> to vector<64x25xbf16>
      %19 = tpu.concatenate %10, %14, %18 in 0 : vector<64x25xbf16>, vector<64x25xbf16>, vector<64x25xbf16> -> vector<192x25xbf16>
      %20 = vector.extract_strided_slice %19 {offsets = [0, 0], sizes = [192, 23], strides = [1, 1]} : vector<192x25xbf16> to vector<192x23xbf16>
      %21 = vector.extract_strided_slice %19 {offsets = [0, 1], sizes = [192, 23], strides = [1, 1]} : vector<192x25xbf16> to vector<192x23xbf16>
      %22 = vector.extract_strided_slice %19 {offsets = [0, 2], sizes = [192, 23], strides = [1, 1]} : vector<192x25xbf16> to vector<192x23xbf16>
      %23 = tpu.concatenate %20, %21, %22 in 0 : vector<192x23xbf16>, vector<192x23xbf16>, vector<192x23xbf16> -> vector<576x23xbf16>
      %c0_15 = arith.constant 0 : index
      %c0_16 = arith.constant 0 : index
      %24 = vector.load %arg3[%c0_15, %c0_16] : memref<64x576xbf16, #tpu.memory_space<vmem>>, vector<64x576xbf16>
      %cst = arith.constant dense<0.000000e+00> : vector<64x23xf32>
      %25 = tpu.matmul %24, %23, %cst {dimension_numbers = #tpu.dot_dimension_numbers<[1], [0], [0], [1], [0, 0, 1, 1], [], []>} : vector<64x576xbf16>, vector<576x23xbf16>, vector<64x23xf32> -> vector<64x23xf32>
      %26 = arith.addf %25, %3 : vector<64x23xf32>
      %cst_17 = arith.constant 0.000000e+00 : f32
      %27 = vector.broadcast %cst_17 : f32 to vector<64x23xf32>
      %28 = arith.maximumf %26, %27 : vector<64x23xf32>
      %29 = arith.truncf %28 : vector<64x23xf32> to vector<64x23xbf16>
      %c0_18 = arith.constant 0 : index
      %30 = arith.index_cast %6 : i32 to index
      %c0_19 = arith.constant 0 : index
      %c0_20 = arith.constant 0 : index
      %31 = vector.load %arg5[%c0_18, %30, %c0_19, %c0_20] : memref<1x23x64x23xbf16, #tpu.memory_space<vmem>>, vector<1x1x64x23xbf16>
      %32 = vector.shape_cast %31 : vector<1x1x64x23xbf16> to vector<64x23xbf16>
      %33 = vector.shape_cast %29 : vector<64x23xbf16> to vector<1x1x64x23xbf16>
      tpu.vector_store %arg5[%c0_18, %30, %c0_19, %c0_20], %33 {strides = array<i32>} : memref<1x23x64x23xbf16, #tpu.memory_space<vmem>>, vector<1x1x64x23xbf16>,
    }
    %c23_i32_2 = arith.constant 23 : i32
    return
  }
  func.func @transform_0(%arg0: i32, %arg1: i32) -> (i32, i32, i32, i32) {
    %c0_i32 = arith.constant 0 : i32
    %c0_i32_0 = arith.constant 0 : i32
    %c0_i32_1 = arith.constant 0 : i32
    %c0_i32_2 = arith.constant 0 : i32
    return %arg0, %c0_i32, %c0_i32_0, %c0_i32_1 : i32, i32, i32, i32
  }
  func.func @transform_1(%arg0: i32, %arg1: i32) -> (i32, i32) {
    %c0_i32 = arith.constant 0 : i32
    %c0_i32_0 = arith.constant 0 : i32
    %c0_i32_1 = arith.constant 0 : i32
    return %c0_i32, %c0_i32_0 : i32, i32
  }
  func.func @transform_2(%arg0: i32, %arg1: i32) -> (i32, i32) {
    %c0_i32 = arith.constant 0 : i32
    %c0_i32_0 = arith.constant 0 : i32
    %c0_i32_1 = arith.constant 0 : i32
    return %c0_i32, %c0_i32_0 : i32, i32
  }
  func.func @transform_3(%arg0: i32, %arg1: i32) -> (i32, i32, i32, i32) {
    %c0_i32 = arith.constant 0 : i32
    %c0_i32_0 = arith.constant 0 : i32
    %c0_i32_1 = arith.constant 0 : i32
    return %arg0, %arg1, %c0_i32, %c0_i32_0 : i32, i32, i32, i32
  }
}

module attributes {stable_mosaic.version = 11 : i64} {
  func.func @_maxpool3x3_s2_kernel(%arg0: i32, %arg1: memref<1x23x64x23xbf16, #tpu.memory_space<vmem>>, %arg2: memref<21x11xbf16, #tpu.memory_space<vmem>>, %arg3: memref<1x11x64x11xbf16, #tpu.memory_space<vmem>>) attributes {dimension_semantics = [#tpu.dimension_semantics<parallel>], iteration_bounds = array<i64: 2>, scalar_prefetch = 0 : i64, scratch_operands = 0 : i64, tpu.core_type = #tpu.core_type<tc>, window_params = [{transform_indices = @transform_0, window_bounds = array<i64: 1, 23, 64, 23>}, {pipeline_mode = #tpu.pipeline_mode<synchronous>, transform_indices = @transform_1, window_bounds = array<i64: 21, 11>}, {transform_indices = @transform_2, window_bounds = array<i64: 1, 11, 64, 11>}]} {
    %c0 = arith.constant 0 : index
    %c0_0 = arith.constant 0 : index
    %0 = vector.load %arg2[%c0, %c0_0] : memref<21x11xbf16, #tpu.memory_space<vmem>>, vector<21x11xbf16>
    %c0_i32 = arith.constant 0 : i32
    %c11_i32 = arith.constant 11 : i32
    %1 = arith.addi %c0_i32, %c11_i32 : i32
    %c1_i32 = arith.constant 1 : i32
    scf.for %arg4 = %c0_i32 to %1 step %c1_i32  : i32 {
      %c1_i32_2 = arith.constant 1 : i32
      %2 = arith.muli %arg4, %c1_i32_2 : i32
      %c0_i32_3 = arith.constant 0 : i32
      %3 = arith.addi %c0_i32_3, %2 : i32
      %c2_i32 = arith.constant 2 : i32
      %4 = arith.muli %c2_i32, %3 : i32
      %c0_4 = arith.constant 0 : index
      %5 = arith.index_cast %4 : i32 to index
      %c0_5 = arith.constant 0 : index
      %c0_6 = arith.constant 0 : index
      %6 = vector.load %arg1[%c0_4, %5, %c0_5, %c0_6] : memref<1x23x64x23xbf16, #tpu.memory_space<vmem>>, vector<1x1x64x23xbf16>
      %7 = vector.shape_cast %6 : vector<1x1x64x23xbf16> to vector<64x23xbf16>
      %c1_i32_7 = arith.constant 1 : i32
      %8 = arith.addi %4, %c1_i32_7 : i32
      %c0_8 = arith.constant 0 : index
      %9 = arith.index_cast %8 : i32 to index
      %c0_9 = arith.constant 0 : index
      %c0_10 = arith.constant 0 : index
      %10 = vector.load %arg1[%c0_8, %9, %c0_9, %c0_10] : memref<1x23x64x23xbf16, #tpu.memory_space<vmem>>, vector<1x1x64x23xbf16>
      %11 = vector.shape_cast %10 : vector<1x1x64x23xbf16> to vector<64x23xbf16>
      %12 = arith.maximumf %7, %11 : vector<64x23xbf16>
      %c2_i32_11 = arith.constant 2 : i32
      %13 = arith.addi %4, %c2_i32_11 : i32
      %c0_12 = arith.constant 0 : index
      %14 = arith.index_cast %13 : i32 to index
      %c0_13 = arith.constant 0 : index
      %c0_14 = arith.constant 0 : index
      %15 = vector.load %arg1[%c0_12, %14, %c0_13, %c0_14] : memref<1x23x64x23xbf16, #tpu.memory_space<vmem>>, vector<1x1x64x23xbf16>
      %16 = vector.shape_cast %15 : vector<1x1x64x23xbf16> to vector<64x23xbf16>
      %17 = arith.maximumf %12, %16 : vector<64x23xbf16>
      %18 = vector.extract_strided_slice %17 {offsets = [0, 0], sizes = [64, 21], strides = [1, 1]} : vector<64x23xbf16> to vector<64x21xbf16>
      %19 = vector.extract_strided_slice %17 {offsets = [0, 1], sizes = [64, 21], strides = [1, 1]} : vector<64x23xbf16> to vector<64x21xbf16>
      %20 = arith.maximumf %18, %19 : vector<64x21xbf16>
      %21 = vector.extract_strided_slice %17 {offsets = [0, 2], sizes = [64, 21], strides = [1, 1]} : vector<64x23xbf16> to vector<64x21xbf16>
      %22 = arith.maximumf %20, %21 : vector<64x21xbf16>
      %cst = arith.constant dense<0.000000e+00> : vector<64x11xf32>
      %23 = tpu.matmul %22, %0, %cst {dimension_numbers = #tpu.dot_dimension_numbers<[1], [0], [0], [1], [0, 0, 1, 1], [], []>} : vector<64x21xbf16>, vector<21x11xbf16>, vector<64x11xf32> -> vector<64x11xf32>
      %24 = arith.truncf %23 : vector<64x11xf32> to vector<64x11xbf16>
      %c0_15 = arith.constant 0 : index
      %25 = arith.index_cast %3 : i32 to index
      %c0_16 = arith.constant 0 : index
      %c0_17 = arith.constant 0 : index
      %26 = vector.load %arg3[%c0_15, %25, %c0_16, %c0_17] : memref<1x11x64x11xbf16, #tpu.memory_space<vmem>>, vector<1x1x64x11xbf16>
      %27 = vector.shape_cast %26 : vector<1x1x64x11xbf16> to vector<64x11xbf16>
      %28 = vector.shape_cast %24 : vector<64x11xbf16> to vector<1x1x64x11xbf16>
      tpu.vector_store %arg3[%c0_15, %25, %c0_16, %c0_17], %28 {strides = array<i32>} : memref<1x11x64x11xbf16, #tpu.memory_space<vmem>>, vector<1x1x64x11xbf16>,
    }
    %c11_i32_1 = arith.constant 11 : i32
    return
  }
  func.func @transform_0(%arg0: i32) -> (i32, i32, i32, i32) {
    %c0_i32 = arith.constant 0 : i32
    %c0_i32_0 = arith.constant 0 : i32
    %c0_i32_1 = arith.constant 0 : i32
    %c0_i32_2 = arith.constant 0 : i32
    return %arg0, %c0_i32, %c0_i32_0, %c0_i32_1 : i32, i32, i32, i32
  }
  func.func @transform_1(%arg0: i32) -> (i32, i32) {
    %c0_i32 = arith.constant 0 : i32
    %c0_i32_0 = arith.constant 0 : i32
    %c0_i32_1 = arith.constant 0 : i32
    return %c0_i32, %c0_i32_0 : i32, i32
  }
  func.func @transform_2(%arg0: i32) -> (i32, i32, i32, i32) {
    %c0_i32 = arith.constant 0 : i32
    %c0_i32_0 = arith.constant 0 : i32
    %c0_i32_1 = arith.constant 0 : i32
    %c0_i32_2 = arith.constant 0 : i32
    return %arg0, %c0_i32, %c0_i32_0, %c0_i32_1 : i32, i32, i32, i32
  }
}

module attributes {stable_mosaic.version = 11 : i64} {
  func.func @_conv3x3_kernel(%arg0: i32, %arg1: i32, %arg2: memref<1x9x16x9xbf16, #tpu.memory_space<vmem>>, %arg3: memref<1x144xbf16, #tpu.memory_space<vmem>>, %arg4: memref<1x1xf32, #tpu.memory_space<vmem>>, %arg5: memref<1x7x1x7xbf16, #tpu.memory_space<vmem>>) attributes {dimension_semantics = [#tpu.dimension_semantics<parallel>, #tpu.dimension_semantics<arbitrary>], iteration_bounds = array<i64: 2, 1>, scalar_prefetch = 0 : i64, scratch_operands = 0 : i64, tpu.core_type = #tpu.core_type<tc>, window_params = [{transform_indices = @transform_0, window_bounds = array<i64: 1, 9, 16, 9>}, {pipeline_mode = #tpu.pipeline_mode<synchronous>, transform_indices = @transform_1, window_bounds = array<i64: 1, 144>}, {pipeline_mode = #tpu.pipeline_mode<synchronous>, transform_indices = @transform_2, window_bounds = array<i64: 1, 1>}, {transform_indices = @transform_3, window_bounds = array<i64: 1, 7, 1, 7>}]} {
    %c7_i32 = arith.constant 7 : i32
    %0 = arith.muli %arg1, %c7_i32 : i32
    %c0 = arith.constant 0 : index
    %c0_0 = arith.constant 0 : index
    %1 = vector.load %arg4[%c0, %c0_0] : memref<1x1xf32, #tpu.memory_space<vmem>>, vector<1x1xf32>
    %2 = vector.shape_cast %1 : vector<1x1xf32> to vector<1x1xf32>
    %3 = vector.broadcast %2 : vector<1x1xf32> to vector<1x7xf32>
    %c0_i32 = arith.constant 0 : i32
    %c7_i32_1 = arith.constant 7 : i32
    %4 = arith.addi %c0_i32, %c7_i32_1 : i32
    %c1_i32 = arith.constant 1 : i32
    scf.for %arg6 = %c0_i32 to %4 step %c1_i32  : i32 {
      %c1_i32_3 = arith.constant 1 : i32
      %5 = arith.muli %arg6, %c1_i32_3 : i32
      %c0_i32_4 = arith.constant 0 : i32
      %6 = arith.addi %c0_i32_4, %5 : i32
      %7 = arith.addi %0, %6 : i32
      %c0_5 = arith.constant 0 : index
      %8 = arith.index_cast %7 : i32 to index
      %c0_6 = arith.constant 0 : index
      %c0_7 = arith.constant 0 : index
      %9 = vector.load %arg2[%c0_5, %8, %c0_6, %c0_7] : memref<1x9x16x9xbf16, #tpu.memory_space<vmem>>, vector<1x1x16x9xbf16>
      %10 = vector.shape_cast %9 : vector<1x1x16x9xbf16> to vector<16x9xbf16>
      %c1_i32_8 = arith.constant 1 : i32
      %11 = arith.addi %7, %c1_i32_8 : i32
      %c0_9 = arith.constant 0 : index
      %12 = arith.index_cast %11 : i32 to index
      %c0_10 = arith.constant 0 : index
      %c0_11 = arith.constant 0 : index
      %13 = vector.load %arg2[%c0_9, %12, %c0_10, %c0_11] : memref<1x9x16x9xbf16, #tpu.memory_space<vmem>>, vector<1x1x16x9xbf16>
      %14 = vector.shape_cast %13 : vector<1x1x16x9xbf16> to vector<16x9xbf16>
      %c2_i32 = arith.constant 2 : i32
      %15 = arith.addi %7, %c2_i32 : i32
      %c0_12 = arith.constant 0 : index
      %16 = arith.index_cast %15 : i32 to index
      %c0_13 = arith.constant 0 : index
      %c0_14 = arith.constant 0 : index
      %17 = vector.load %arg2[%c0_12, %16, %c0_13, %c0_14] : memref<1x9x16x9xbf16, #tpu.memory_space<vmem>>, vector<1x1x16x9xbf16>
      %18 = vector.shape_cast %17 : vector<1x1x16x9xbf16> to vector<16x9xbf16>
      %19 = tpu.concatenate %10, %14, %18 in 0 : vector<16x9xbf16>, vector<16x9xbf16>, vector<16x9xbf16> -> vector<48x9xbf16>
      %20 = vector.extract_strided_slice %19 {offsets = [0, 0], sizes = [48, 7], strides = [1, 1]} : vector<48x9xbf16> to vector<48x7xbf16>
      %21 = vector.extract_strided_slice %19 {offsets = [0, 1], sizes = [48, 7], strides = [1, 1]} : vector<48x9xbf16> to vector<48x7xbf16>
      %22 = vector.extract_strided_slice %19 {offsets = [0, 2], sizes = [48, 7], strides = [1, 1]} : vector<48x9xbf16> to vector<48x7xbf16>
      %23 = tpu.concatenate %20, %21, %22 in 0 : vector<48x7xbf16>, vector<48x7xbf16>, vector<48x7xbf16> -> vector<144x7xbf16>
      %c0_15 = arith.constant 0 : index
      %c0_16 = arith.constant 0 : index
      %24 = vector.load %arg3[%c0_15, %c0_16] : memref<1x144xbf16, #tpu.memory_space<vmem>>, vector<1x144xbf16>
      %cst = arith.constant dense<0.000000e+00> : vector<1x7xf32>
      %25 = tpu.matmul %24, %23, %cst {dimension_numbers = #tpu.dot_dimension_numbers<[1], [0], [0], [1], [0, 0, 1, 1], [], []>} : vector<1x144xbf16>, vector<144x7xbf16>, vector<1x7xf32> -> vector<1x7xf32>
      %26 = arith.addf %25, %3 : vector<1x7xf32>
      %cst_17 = arith.constant 0.000000e+00 : f32
      %27 = vector.broadcast %cst_17 : f32 to vector<1x7xf32>
      %28 = arith.maximumf %26, %27 : vector<1x7xf32>
      %29 = arith.truncf %28 : vector<1x7xf32> to vector<1x7xbf16>
      %c0_18 = arith.constant 0 : index
      %30 = arith.index_cast %6 : i32 to index
      %c0_19 = arith.constant 0 : index
      %c0_20 = arith.constant 0 : index
      %31 = vector.load %arg5[%c0_18, %30, %c0_19, %c0_20] : memref<1x7x1x7xbf16, #tpu.memory_space<vmem>>, vector<1x1x1x7xbf16>
      %32 = vector.shape_cast %31 : vector<1x1x1x7xbf16> to vector<1x7xbf16>
      %33 = vector.shape_cast %29 : vector<1x7xbf16> to vector<1x1x1x7xbf16>
      tpu.vector_store %arg5[%c0_18, %30, %c0_19, %c0_20], %33 {strides = array<i32>} : memref<1x7x1x7xbf16, #tpu.memory_space<vmem>>, vector<1x1x1x7xbf16>,
    }
    %c7_i32_2 = arith.constant 7 : i32
    return
  }
  func.func @transform_0(%arg0: i32, %arg1: i32) -> (i32, i32, i32, i32) {
    %c0_i32 = arith.constant 0 : i32
    %c0_i32_0 = arith.constant 0 : i32
    %c0_i32_1 = arith.constant 0 : i32
    %c0_i32_2 = arith.constant 0 : i32
    return %arg0, %c0_i32, %c0_i32_0, %c0_i32_1 : i32, i32, i32, i32
  }
  func.func @transform_1(%arg0: i32, %arg1: i32) -> (i32, i32) {
    %c0_i32 = arith.constant 0 : i32
    %c0_i32_0 = arith.constant 0 : i32
    %c0_i32_1 = arith.constant 0 : i32
    return %c0_i32, %c0_i32_0 : i32, i32
  }
  func.func @transform_2(%arg0: i32, %arg1: i32) -> (i32, i32) {
    %c0_i32 = arith.constant 0 : i32
    %c0_i32_0 = arith.constant 0 : i32
    %c0_i32_1 = arith.constant 0 : i32
    return %c0_i32, %c0_i32_0 : i32, i32
  }
  func.func @transform_3(%arg0: i32, %arg1: i32) -> (i32, i32, i32, i32) {
    %c0_i32 = arith.constant 0 : i32
    %c0_i32_0 = arith.constant 0 : i32
    %c0_i32_1 = arith.constant 0 : i32
    return %arg0, %arg1, %c0_i32, %c0_i32_0 : i32, i32, i32, i32
  }
}

module attributes {stable_mosaic.version = 11 : i64} {
  func.func @_conv3x3_kernel(%arg0: i32, %arg1: i32, %arg2: memref<1x11x64x11xbf16, #tpu.memory_space<vmem>>, %arg3: memref<16x576xbf16, #tpu.memory_space<vmem>>, %arg4: memref<16x1xf32, #tpu.memory_space<vmem>>, %arg5: memref<1x9x16x9xbf16, #tpu.memory_space<vmem>>) attributes {dimension_semantics = [#tpu.dimension_semantics<parallel>, #tpu.dimension_semantics<arbitrary>], iteration_bounds = array<i64: 2, 1>, scalar_prefetch = 0 : i64, scratch_operands = 0 : i64, tpu.core_type = #tpu.core_type<tc>, window_params = [{transform_indices = @transform_0, window_bounds = array<i64: 1, 11, 64, 11>}, {pipeline_mode = #tpu.pipeline_mode<synchronous>, transform_indices = @transform_1, window_bounds = array<i64: 16, 576>}, {pipeline_mode = #tpu.pipeline_mode<synchronous>, transform_indices = @transform_2, window_bounds = array<i64: 16, 1>}, {transform_indices = @transform_3, window_bounds = array<i64: 1, 9, 16, 9>}]} {
    %c9_i32 = arith.constant 9 : i32
    %0 = arith.muli %arg1, %c9_i32 : i32
    %c0 = arith.constant 0 : index
    %c0_0 = arith.constant 0 : index
    %1 = vector.load %arg4[%c0, %c0_0] : memref<16x1xf32, #tpu.memory_space<vmem>>, vector<16x1xf32>
    %2 = vector.shape_cast %1 : vector<16x1xf32> to vector<16x1xf32>
    %3 = vector.broadcast %2 : vector<16x1xf32> to vector<16x9xf32>
    %c0_i32 = arith.constant 0 : i32
    %c9_i32_1 = arith.constant 9 : i32
    %4 = arith.addi %c0_i32, %c9_i32_1 : i32
    %c1_i32 = arith.constant 1 : i32
    scf.for %arg6 = %c0_i32 to %4 step %c1_i32  : i32 {
      %c1_i32_3 = arith.constant 1 : i32
      %5 = arith.muli %arg6, %c1_i32_3 : i32
      %c0_i32_4 = arith.constant 0 : i32
      %6 = arith.addi %c0_i32_4, %5 : i32
      %7 = arith.addi %0, %6 : i32
      %c0_5 = arith.constant 0 : index
      %8 = arith.index_cast %7 : i32 to index
      %c0_6 = arith.constant 0 : index
      %c0_7 = arith.constant 0 : index
      %9 = vector.load %arg2[%c0_5, %8, %c0_6, %c0_7] : memref<1x11x64x11xbf16, #tpu.memory_space<vmem>>, vector<1x1x64x11xbf16>
      %10 = vector.shape_cast %9 : vector<1x1x64x11xbf16> to vector<64x11xbf16>
      %c1_i32_8 = arith.constant 1 : i32
      %11 = arith.addi %7, %c1_i32_8 : i32
      %c0_9 = arith.constant 0 : index
      %12 = arith.index_cast %11 : i32 to index
      %c0_10 = arith.constant 0 : index
      %c0_11 = arith.constant 0 : index
      %13 = vector.load %arg2[%c0_9, %12, %c0_10, %c0_11] : memref<1x11x64x11xbf16, #tpu.memory_space<vmem>>, vector<1x1x64x11xbf16>
      %14 = vector.shape_cast %13 : vector<1x1x64x11xbf16> to vector<64x11xbf16>
      %c2_i32 = arith.constant 2 : i32
      %15 = arith.addi %7, %c2_i32 : i32
      %c0_12 = arith.constant 0 : index
      %16 = arith.index_cast %15 : i32 to index
      %c0_13 = arith.constant 0 : index
      %c0_14 = arith.constant 0 : index
      %17 = vector.load %arg2[%c0_12, %16, %c0_13, %c0_14] : memref<1x11x64x11xbf16, #tpu.memory_space<vmem>>, vector<1x1x64x11xbf16>
      %18 = vector.shape_cast %17 : vector<1x1x64x11xbf16> to vector<64x11xbf16>
      %19 = tpu.concatenate %10, %14, %18 in 0 : vector<64x11xbf16>, vector<64x11xbf16>, vector<64x11xbf16> -> vector<192x11xbf16>
      %20 = vector.extract_strided_slice %19 {offsets = [0, 0], sizes = [192, 9], strides = [1, 1]} : vector<192x11xbf16> to vector<192x9xbf16>
      %21 = vector.extract_strided_slice %19 {offsets = [0, 1], sizes = [192, 9], strides = [1, 1]} : vector<192x11xbf16> to vector<192x9xbf16>
      %22 = vector.extract_strided_slice %19 {offsets = [0, 2], sizes = [192, 9], strides = [1, 1]} : vector<192x11xbf16> to vector<192x9xbf16>
      %23 = tpu.concatenate %20, %21, %22 in 0 : vector<192x9xbf16>, vector<192x9xbf16>, vector<192x9xbf16> -> vector<576x9xbf16>
      %c0_15 = arith.constant 0 : index
      %c0_16 = arith.constant 0 : index
      %24 = vector.load %arg3[%c0_15, %c0_16] : memref<16x576xbf16, #tpu.memory_space<vmem>>, vector<16x576xbf16>
      %cst = arith.constant dense<0.000000e+00> : vector<16x9xf32>
      %25 = tpu.matmul %24, %23, %cst {dimension_numbers = #tpu.dot_dimension_numbers<[1], [0], [0], [1], [0, 0, 1, 1], [], []>} : vector<16x576xbf16>, vector<576x9xbf16>, vector<16x9xf32> -> vector<16x9xf32>
      %26 = arith.addf %25, %3 : vector<16x9xf32>
      %cst_17 = arith.constant 0.000000e+00 : f32
      %27 = vector.broadcast %cst_17 : f32 to vector<16x9xf32>
      %28 = arith.maximumf %26, %27 : vector<16x9xf32>
      %29 = arith.truncf %28 : vector<16x9xf32> to vector<16x9xbf16>
      %c0_18 = arith.constant 0 : index
      %30 = arith.index_cast %6 : i32 to index
      %c0_19 = arith.constant 0 : index
      %c0_20 = arith.constant 0 : index
      %31 = vector.load %arg5[%c0_18, %30, %c0_19, %c0_20] : memref<1x9x16x9xbf16, #tpu.memory_space<vmem>>, vector<1x1x16x9xbf16>
      %32 = vector.shape_cast %31 : vector<1x1x16x9xbf16> to vector<16x9xbf16>
      %33 = vector.shape_cast %29 : vector<16x9xbf16> to vector<1x1x16x9xbf16>
      tpu.vector_store %arg5[%c0_18, %30, %c0_19, %c0_20], %33 {strides = array<i32>} : memref<1x9x16x9xbf16, #tpu.memory_space<vmem>>, vector<1x1x16x9xbf16>,
    }
    %c9_i32_2 = arith.constant 9 : i32
    return
  }
  func.func @transform_0(%arg0: i32, %arg1: i32) -> (i32, i32, i32, i32) {
    %c0_i32 = arith.constant 0 : i32
    %c0_i32_0 = arith.constant 0 : i32
    %c0_i32_1 = arith.constant 0 : i32
    %c0_i32_2 = arith.constant 0 : i32
    return %arg0, %c0_i32, %c0_i32_0, %c0_i32_1 : i32, i32, i32, i32
  }
  func.func @transform_1(%arg0: i32, %arg1: i32) -> (i32, i32) {
    %c0_i32 = arith.constant 0 : i32
    %c0_i32_0 = arith.constant 0 : i32
    %c0_i32_1 = arith.constant 0 : i32
    return %c0_i32, %c0_i32_0 : i32, i32
  }
  func.func @transform_2(%arg0: i32, %arg1: i32) -> (i32, i32) {
    %c0_i32 = arith.constant 0 : i32
    %c0_i32_0 = arith.constant 0 : i32
    %c0_i32_1 = arith.constant 0 : i32
    return %c0_i32, %c0_i32_0 : i32, i32
  }
  func.func @transform_3(%arg0: i32, %arg1: i32) -> (i32, i32, i32, i32) {
    %c0_i32 = arith.constant 0 : i32
    %c0_i32_0 = arith.constant 0 : i32
    %c0_i32_1 = arith.constant 0 : i32
    return %arg0, %arg1, %c0_i32, %c0_i32_0 : i32, i32, i32, i32
  }
}

module attributes {stable_mosaic.version = 11 : i64} {
  func.func @_linear_relu_kernel(%arg0: i32, %arg1: memref<2x16xf32, #tpu.memory_space<vmem>>, %arg2: memref<16x6xf32, #tpu.memory_space<vmem>>, %arg3: memref<1x6xf32, #tpu.memory_space<vmem>>, %arg4: memref<2x6xf32, #tpu.memory_space<vmem>>) attributes {dimension_semantics = [#tpu.dimension_semantics<arbitrary>], iteration_bounds = array<i64: 1>, scalar_prefetch = 0 : i64, scratch_operands = 0 : i64, tpu.core_type = #tpu.core_type<tc>, window_params = [{pipeline_mode = #tpu.pipeline_mode<synchronous>, transform_indices = @transform_0, window_bounds = array<i64: 2, 16>}, {pipeline_mode = #tpu.pipeline_mode<synchronous>, transform_indices = @transform_1, window_bounds = array<i64: 16, 6>}, {pipeline_mode = #tpu.pipeline_mode<synchronous>, transform_indices = @transform_2, window_bounds = array<i64: 1, 6>}, {pipeline_mode = #tpu.pipeline_mode<synchronous>, transform_indices = @transform_3, window_bounds = array<i64: 2, 6>}]} {
    %c0 = arith.constant 0 : index
    %c0_0 = arith.constant 0 : index
    %0 = vector.load %arg1[%c0, %c0_0] : memref<2x16xf32, #tpu.memory_space<vmem>>, vector<2x16xf32>
    %c0_1 = arith.constant 0 : index
    %c0_2 = arith.constant 0 : index
    %1 = vector.load %arg2[%c0_1, %c0_2] : memref<16x6xf32, #tpu.memory_space<vmem>>, vector<16x6xf32>
    %cst = arith.constant dense<0.000000e+00> : vector<2x6xf32>
    %2 = tpu.matmul %0, %1, %cst {dimension_numbers = #tpu.dot_dimension_numbers<[1], [0], [0], [1], [0, 0, 1, 1], [], []>} : vector<2x16xf32>, vector<16x6xf32>, vector<2x6xf32> -> vector<2x6xf32>
    %c0_3 = arith.constant 0 : index
    %c0_4 = arith.constant 0 : index
    %3 = vector.load %arg3[%c0_3, %c0_4] : memref<1x6xf32, #tpu.memory_space<vmem>>, vector<1x6xf32>
    %4 = vector.broadcast %3 : vector<1x6xf32> to vector<2x6xf32>
    %5 = arith.addf %2, %4 : vector<2x6xf32>
    %cst_5 = arith.constant 0.000000e+00 : f32
    %6 = vector.broadcast %cst_5 : f32 to vector<2x6xf32>
    %7 = arith.maximumf %5, %6 : vector<2x6xf32>
    %c0_6 = arith.constant 0 : index
    %c0_7 = arith.constant 0 : index
    %8 = vector.load %arg4[%c0_6, %c0_7] : memref<2x6xf32, #tpu.memory_space<vmem>>, vector<2x6xf32>
    tpu.vector_store %arg4[%c0_6, %c0_7], %7 {strides = array<i32>} : memref<2x6xf32, #tpu.memory_space<vmem>>, vector<2x6xf32>,
    return
  }
  func.func @transform_0(%arg0: i32) -> (i32, i32) {
    %c0_i32 = arith.constant 0 : i32
    %c0_i32_0 = arith.constant 0 : i32
    %c0_i32_1 = arith.constant 0 : i32
    return %c0_i32, %c0_i32_0 : i32, i32
  }
  func.func @transform_1(%arg0: i32) -> (i32, i32) {
    %c0_i32 = arith.constant 0 : i32
    %c0_i32_0 = arith.constant 0 : i32
    %c0_i32_1 = arith.constant 0 : i32
    return %c0_i32, %c0_i32_0 : i32, i32
  }
  func.func @transform_2(%arg0: i32) -> (i32, i32) {
    %c0_i32 = arith.constant 0 : i32
    %c0_i32_0 = arith.constant 0 : i32
    %c0_i32_1 = arith.constant 0 : i32
    return %c0_i32, %c0_i32_0 : i32, i32
  }
  func.func @transform_3(%arg0: i32) -> (i32, i32) {
    %c0_i32 = arith.constant 0 : i32
    %c0_i32_0 = arith.constant 0 : i32
    %c0_i32_1 = arith.constant 0 : i32
    return %c0_i32, %c0_i32_0 : i32, i32
  }
}

</mosaic_0001>

<llo_original>
// kernel: cnn_forward.12
$region0: #{cnn_forward.12}
  #allocation0 [shape = 'u32[]', space=smem, size = 0x4, offset = 0x4, fixed_abs, tag = 'smem constant byte address 0x4 - core index']
  #allocation1 [shape = 'u32[144,128]{1,0:T(1,128)}', space=vmem, size = 0x12000, scoped, tag = 'internal scratch']
  %s0 = inlined_call_operand.vmem [shape: bf16[2,224,16,224], index: 0, kind: input, shape index: {}]
  %s1 = inlined_call_operand.vmem [shape: bf16[32,144], index: 1, kind: input, shape index: {}]
  %s2 = inlined_call_operand.vmem [shape: f32[32,1], index: 2, kind: input, shape index: {}]
  %s3 = inlined_call_operand.vmem [shape: bf16[2,222,32,222], index: 3, kind: output, shape index: {}]
  %s4 = sld [smem:[#allocation0]]
  $region52: #{cnn_forward.12} parent=0
    _
  %s6 = ssub.s32 1, %s4
  %s7 = scalar_select 0, %s6, %s4
  loop: start=0, step=1, limit=14
  $region2: #{cnn_forward.12} parent=0 // loop_pre_header
    _
  $region3: #{cnn_forward.12} parent=0 // loop_header
    %s9 = sphi 0, %s13
    %p10 = scmp.ge.s32.totalorder %s9, 14
    %s16 = sphi 0, %s28
    %s17 = sphi 0, %s24
    %s18 = sphi 0, %s16
    %s19 = sphi 0, %s17
    %s20 = sphi 0, %s18
    %s21 = sphi 0, %s19
    %s31 = sphi 0, %s33
    %s34 = sphi 0, %s31
    %s35 = sphi 0, %s34
    %s51 = sphi 0, %s35
    %s55 = sphi 0, %s55
    %s57 = sphi 0, %s55
    %s58 = sphi 0, %s57
    %s72 = sphi 0, %s58
    %s76 = sphi 0, %s76
    %s78 = sphi 0, %s76
    %s79 = sphi 0, %s78
    %s93 = sphi 0, %s79
    %s101 = sphi 0, %s103
    %s104 = sphi 0, %s101
    %s105 = sphi 0, %s104
    %s121 = sphi 0, %s105
  $region4: #{cnn_forward.12} parent=0 // loop_header_branch
    %12 = sbr.rel (%p10) target = $region8
  $region5: #{cnn_forward.12} parent=0 // loop_body
    %s14 = ssub.s32 %s9, 1
    %s15 = ssub.s32 %s9, 2
    %s22 = sadd.s32 1, %s17
    %p23 = scmp.ge.s32.totalorder %s22, 6
    %s24 = scalar_select %p23, 0, %s22
    %s25 = sadd.s32 1, %s16
    %s26 = scalar_select %p23, %s25, %s16
    %p27 = scmp.ge.s32.totalorder %s26, 2
    %s28 = scalar_select %p27, 0, %s26
    %s29 = ssub.s32 %s16, %s28
    %p30 = scmp.eq.s32.totalorder %s29, 0
    %s32 = sadd.s32 %s31, 1
    %s33 = scalar_select %p30, %s31, %s32
    %p36 = pneg %p30
    %p37 = scmp.eq.s32.totalorder %s9, 11
    %p38 = por %p36, %p37
    %p39 = scmp.ne.s32.totalorder %s31, %s34
    %p40 = scmp.eq.s32.totalorder %s9, 0
    %p41 = por %p39, %p40
    %p42 = scmp.ne.s32.totalorder %s31, %s34
    %p43 = scmp.eq.s32.totalorder %s14, 11
    %p44 = por %p42, %p43
    %p45 = scmp.ne.s32.totalorder %s34, %s35
    %p46 = scmp.eq.s32.totalorder %s14, 0
    %p47 = por %p45, %p46
    %p48 = scmp.ne.s32.totalorder %s34, %s35
    %p49 = scmp.eq.s32.totalorder %s15, 11
    %p50 = por %p48, %p49
    %p52 = scmp.ne.s32.totalorder %s35, %s51
    %p53 = scmp.eq.s32.totalorder %s15, 0
    %p54 = por %p52, %p53
    %s56 = sadd.s32 %s55, 1
    %p59 = scmp.eq.s32.totalorder %s9, 11
    %p60 = scmp.ne.s32.totalorder %s55, %s57
    %p61 = scmp.eq.s32.totalorder %s9, 0
    %p62 = por %p60, %p61
    %p63 = scmp.ne.s32.totalorder %s55, %s57
    %p64 = scmp.eq.s32.totalorder %s14, 11
    %p65 = por %p63, %p64
    %p66 = scmp.ne.s32.totalorder %s57, %s58
    %p67 = scmp.eq.s32.totalorder %s14, 0
    %p68 = por %p66, %p67
    %p69 = scmp.ne.s32.totalorder %s57, %s58
    %p70 = scmp.eq.s32.totalorder %s15, 11
    %p71 = por %p69, %p70
    %p73 = scmp.ne.s32.totalorder %s58, %s72
    %p74 = scmp.eq.s32.totalorder %s15, 0
    %p75 = por %p73, %p74
    %s77 = sadd.s32 %s76, 1
    %p80 = scmp.eq.s32.totalorder %s9, 11
    %p81 = scmp.ne.s32.totalorder %s76, %s78
    %p82 = scmp.eq.s32.totalorder %s9, 0
    %p83 = por %p81, %p82
    %p84 = scmp.ne.s32.totalorder %s76, %s78
    %p85 = scmp.eq.s32.totalorder %s14, 11
    %p86 = por %p84, %p85
    %p87 = scmp.ne.s32.totalorder %s78, %s79
    %p88 = scmp.eq.s32.totalorder %s14, 0
    %p89 = por %p87, %p88
    %p90 = scmp.ne.s32.totalorder %s78, %s79
    %p91 = scmp.eq.s32.totalorder %s15, 11
    %p92 = por %p90, %p91
    %p94 = scmp.ne.s32.totalorder %s79, %s93
    %p95 = scmp.eq.s32.totalorder %s15, 0
    %p96 = por %p94, %p95
    %s97 = ssub.s32 %s16, %s28
    %s98 = ssub.s32 %s17, %s24
    %s99 = sor.u32 %s97, %s98
    %p100 = scmp.eq.s32.totalorder %s99, 0
    %s102 = sadd.s32 %s101, 1
    %s103 = scalar_select %p100, %s101, %s102
    %p106 = pneg %p100
    %p107 = scmp.eq.s32.totalorder %s9, 11
    %p108 = por %p106, %p107
    %p109 = scmp.ne.s32.totalorder %s101, %s104
    %p110 = scmp.eq.s32.totalorder %s9, 0
    %p111 = por %p109, %p110
    %p112 = scmp.ne.s32.totalorder %s101, %s104
    %p113 = scmp.eq.s32.totalorder %s14, 11
    %p114 = por %p112, %p113
    %p115 = scmp.ne.s32.totalorder %s104, %s105
    %p116 = scmp.eq.s32.totalorder %s14, 0
    %p117 = por %p115, %p116
    %p118 = scmp.ne.s32.totalorder %s104, %s105
    %p119 = scmp.eq.s32.totalorder %s15, 11
    %p120 = por %p118, %p119
    %p122 = scmp.ne.s32.totalorder %s105, %s121
    %p123 = scmp.eq.s32.totalorder %s15, 0
    %p124 = por %p122, %p123
    %p125 = scmp.le.s32.totalorder 1, %s9
    %p126 = scmp.lt.s32.totalorder %s9, 13
    %p127 = pnand %p125, %p126
    %p128 = pneg %p127
    // Predicated region
    $region9: #{cnn_forward.12} parent=5 // pred_check
      _
    $region10: #{cnn_forward.12} parent=5 // pred_check_branch
      %130 = sbr.rel (%p127) target = $region12
    $region11: #{cnn_forward.12} parent=5 // pred_region
      %s131 = ssub.s32 %s9, 1
      // Predicated region
      $region13: #{cnn_forward.12} parent=11 // pred_check
        %p132 = pneg %p68
      $region14: #{cnn_forward.12} parent=11 // pred_check_branch
        %134 = sbr.rel (%p132) target = $region16
      $region15: #{cnn_forward.12} parent=11 // pred_region
        _
      $region16: #{cnn_forward.12} parent=11 // pred_fallthru
        _
      // Predicated region
      $region17: #{cnn_forward.12} parent=11 // pred_check
        %p135 = pneg %p89
      $region18: #{cnn_forward.12} parent=11 // pred_check_branch
        %137 = sbr.rel (%p135) target = $region20
      $region19: #{cnn_forward.12} parent=11 // pred_region
        _
      $region20: #{cnn_forward.12} parent=11 // pred_fallthru
        _
    $region12: #{cnn_forward.12} parent=5 // pred_fallthru
      _
    %p138 = scmp.lt.s32.totalorder %s9, 12
    // Predicated region
    $region21: #{cnn_forward.12} parent=5 // pred_check
      %p139 = pneg %p138
    $region22: #{cnn_forward.12} parent=5 // pred_check_branch
      %141 = sbr.rel (%p139) target = $region24
    $region23: #{cnn_forward.12} parent=5 // pred_region
      // Predicated region
      $region25: #{cnn_forward.12} parent=23 // pred_check
        %p142 = pneg %p41
      $region26: #{cnn_forward.12} parent=23 // pred_check_branch
        %144 = sbr.rel (%p142) target = $region28
      $region27: #{cnn_forward.12} parent=23 // pred_region
        %p145 = scmp.lt.s32.totalorder %s16, 1
        %s146 = scalar_select %p145, %s16, 1
        %s147 = smul.addr %s146, 896
        %s148 = smul.addr %s147, 4
        %s149 = scalar_lea.vmem %s0, %s148
      $region28: #{cnn_forward.12} parent=23 // pred_fallthru
        _
    $region24: #{cnn_forward.12} parent=5 // pred_fallthru
      _
    %p150 = scmp.le.s32.totalorder 1, %s9
    %p151 = scmp.lt.s32.totalorder %s9, 13
    %p152 = pnand %p150, %p151
    %p153 = pneg %p152
    // Predicated region
    $region29: #{cnn_forward.12} parent=5 // pred_check
      _
    $region30: #{cnn_forward.12} parent=5 // pred_check_branch
      %155 = sbr.rel (%p152) target = $region32
    $region31: #{cnn_forward.12} parent=5 // pred_region
      %s156 = ssub.s32 %s9, 1
      %p157 = scmp.lt.s32.totalorder %s18, 1
      %s158 = scalar_select %p157, %s18, 1
      %s159 = smul.addr %s158, 896
      %s160 = smul.addr %s159, 4
      %s161 = scalar_lea.vmem %s0, %s160
      %p162 = pneg %p47
      %p163 = pneg %p44
      %p164 = pneg %p68
      %p165 = pneg %p65
      %p166 = pneg %p89
      %p167 = pneg %p86
      %p168 = pneg %p117
      %p169 = pneg %p114
      %s170 = smul.u32 37, %s19
      %p171 = scmp.lt.s32.totalorder %s18, 1
      %s172 = scalar_select %p171, %s18, 1
      %p173 = scmp.lt.s32.totalorder %s170, 221
      %s174 = scalar_select %p173, %s170, 221
      %s175 = smul.addr %s174, 8
      %s176 = smul.addr %s172, 1776
      %s177 = sadd.s32 %s175, %s176
      %s178 = smul.addr %s177, 4
      %s179 = scalar_lea.vmem %s3, %s178
      %p180 = scmp.lt.s32.totalorder %s18, 1
      %s181 = scalar_select %p180, %s18, 1
      %s182 = smul.addr %s181, 896
      %s183 = smul.addr %s182, 4
      %s184 = scalar_lea.vmem %s0, %s183
      %s185 = smul.u32 37, %s19
      %p186 = scmp.lt.s32.totalorder %s18, 1
      %s187 = scalar_select %p186, %s18, 1
      %p188 = scmp.lt.s32.totalorder %s185, 221
      %s189 = scalar_select %p188, %s185, 221
      %s190 = smul.addr %s189, 8
      %s191 = smul.addr %s187, 1776
      %s192 = sadd.s32 %s190, %s191
      %s193 = smul.addr %s192, 4
      %s194 = scalar_lea.vmem %s3, %s193
      %s195 = smul.u32 37, %s19
      %s197 = smul.u32 %s19, 37
      %v198 = vld [vmem:[%s2] sm:$0xff]
      %v199 = vld [vmem:[%s2 + $0x8] sm:$0xff]
      %v200 = vld [vmem:[%s2 + $0x10] sm:$0xff]
      %v201 = vld [vmem:[%s2 + $0x18] sm:$0xff]
      %203 = vset.pattern.permute.xlu0 0
      %204 = vperm.xlu0 %203, %v198
      %v205 = vpop.permute.xlu0 %204
      %208 = vset.pattern.permute.xlu0 0
      %209 = vperm.xlu0 %208, %v199
      %v210 = vpop.permute.xlu0 %209
      %213 = vset.pattern.permute.xlu0 0
      %214 = vperm.xlu0 %213, %v200
      %v215 = vpop.permute.xlu0 %214
      %218 = vset.pattern.permute.xlu0 0
      %219 = vperm.xlu0 %218, %v201
      %v220 = vpop.permute.xlu0 %219
      loop: start=0, step=1, limit=37
      $region33: #{cnn_forward.12} parent=31 // loop_pre_header
        _
      $region34: #{cnn_forward.12} parent=31 // loop_header
        %s223 = sphi 0, %s227
        %p224 = scmp.ge.s32.totalorder %s223, 37
      $region35: #{cnn_forward.12} parent=31 // loop_header_branch
        %226 = sbr.rel (%p224) target = $region39
      $region36: #{cnn_forward.12} parent=31 // loop_body
        %s228 = sadd.s32 %s197, %s223
        %s229 = smul.u32 %s228, 4
        %s230 = smul.addr %s229, 4
        %s231 = scalar_lea.vmem %s184, %s230
        %v232 = vld [vmem:[%s231] sm:$0xff]
        %v233 = vld [vmem:[%s231 + $0x8] sm:$0xff]
        %s234 = sadd.s32 %s228, 1
        %s235 = smul.u32 %s234, 4
        %s236 = smul.addr %s235, 4
        %s237 = scalar_lea.vmem %s184, %s236
        %v238 = vld [vmem:[%s237] sm:$0xff]
        %v239 = vld [vmem:[%s237 + $0x8] sm:$0xff]
        %s240 = sadd.s32 %s228, 2
        %s241 = smul.u32 %s240, 4
        %s242 = smul.addr %s241, 4
        %s243 = scalar_lea.vmem %s184, %s242
        %v244 = vld [vmem:[%s243] sm:$0xff]
        %v245 = vld [vmem:[%s243 + $0x8] sm:$0xff]
        %v248 = vunpack.c.l.b16 %v232
        %v249 = vunpack.c.h.b16 %v232
        %v250 = vunpack.c.l.b16 %v233
        %v251 = vunpack.c.h.b16 %v233
        %v252 = vpack.c.b16 %v250, %v248
        %v253 = vpack.c.b16 %v251, %v249
        %v258 = vunpack.c.l.b16 %v238
        %v259 = vunpack.c.h.b16 %v238
        %v260 = vunpack.c.l.b16 %v239
        %v261 = vunpack.c.h.b16 %v239
        %v262 = vpack.c.b16 %v260, %v258
        %v263 = vpack.c.b16 %v261, %v259
        %v268 = vunpack.c.l.b16 %v244
        %v269 = vunpack.c.h.b16 %v244
        %v270 = vunpack.c.l.b16 %v245
        %v271 = vunpack.c.h.b16 %v245
        %v272 = vpack.c.b16 %v270, %v268
        %v273 = vpack.c.b16 %v271, %v269
        %276 = vrot.lane.b32.xlu0 %v252, 127
        %v277 = vpop.permute.xlu0 %276
        %278 = vrot.lane.b32.xlu0 %v253, 127
        %v279 = vpop.permute.xlu0 %278
        %280 = vrot.lane.b32.xlu0 %v262, 127
        %v281 = vpop.permute.xlu0 %280
        %282 = vrot.lane.b32.xlu0 %v263, 127
        %v283 = vpop.permute.xlu0 %282
        %284 = vrot.lane.b32.xlu0 %v272, 127
        %v285 = vpop.permute.xlu0 %284
        %286 = vrot.lane.b32.xlu0 %v273, 127
        %v287 = vpop.permute.xlu0 %286
        %vm288 = vcmask 1039360
        %v289 = vsel %vm288, %v277, %v279
        %v290 = vsel %vm288, %v281, %v283
        %v291 = vsel %vm288, %v285, %v287
        %298 = vrot.lane.b32.xlu0 %v252, 126
        %v299 = vpop.permute.xlu0 %298
        %300 = vrot.lane.b32.xlu0 %v253, 126
        %v301 = vpop.permute.xlu0 %300
        %302 = vrot.lane.b32.xlu0 %v262, 126
        %v303 = vpop.permute.xlu0 %302
        %304 = vrot.lane.b32.xlu0 %v263, 126
        %v305 = vpop.permute.xlu0 %304
        %306 = vrot.lane.b32.xlu0 %v272, 126
        %v307 = vpop.permute.xlu0 %306
        %308 = vrot.lane.b32.xlu0 %v273, 126
        %v309 = vpop.permute.xlu0 %308
        %vm310 = vcmask 1031168
        %v311 = vsel %vm310, %v299, %v301
        %v312 = vsel %vm310, %v303, %v305
        %v313 = vsel %vm310, %v307, %v309
        %v320 = vld [vmem:[%s1] sm:$0xff]
        %v321 = vld [vmem:[%s1 + $0x8] sm:$0xff]
        %v322 = vld [vmem:[%s1 + $0x10] sm:$0xff]
        %v323 = vld [vmem:[%s1 + $0x18] sm:$0xff]
        %v328 = vunpack.c.l.b16 %v320
        %v329 = vunpack.c.h.b16 %v320
        %v330 = vunpack.c.l.b16 %v321
        %v331 = vunpack.c.h.b16 %v321
        %v332 = vunpack.c.l.b16 %v322
        %v333 = vunpack.c.h.b16 %v322
        %v334 = vunpack.c.l.b16 %v323
        %v335 = vunpack.c.h.b16 %v323
        %v336 = vpack.c.b16 %v330, %v328
        %v337 = vpack.c.b16 %v331, %v329
        %v338 = vpack.c.b16 %v334, %v332
        %v339 = vpack.c.b16 %v335, %v333
        %vm342 = vcmask 130048
        %v344 = vsel %vm342, %v337, 0
        %v347 = vsel %vm342, %v339, 0
        %349 = vmatprep.subr.bf16.mxu0 %v253
        %350 = vmatpush1.bf16.msra.mxu0 %v252
        %351 = vmatprep.subr.bf16.mxu0 %v263
        %352 = vmatpush1.bf16.msra.mxu0 %v262
        %353 = vmatprep.subr.bf16.mxu0 %v273
        %354 = vmatpush1.bf16.msra.mxu0 %v272
        %355 = vmatprep.subr.bf16.mxu0 %v279
        %356 = vmatpush1.bf16.msra.mxu0 %v289
        %357 = vmatprep.subr.bf16.mxu0 %v283
        %358 = vmatpush1.bf16.msra.mxu0 %v290
        %359 = vmatprep.subr.bf16.mxu0 %v287
        %360 = vmatpush1.bf16.msra.mxu0 %v291
        %361 = vmatprep.subr.bf16.mxu0 %v301
        %362 = vmatpush1.bf16.msra.mxu0 %v311
        %363 = vmatprep.subr.bf16.mxu0 %v305
        %364 = vmatpush1.bf16.msra.mxu0 %v312
        %365 = vmatprep.subr.bf16.mxu0 %v309
        %366 = vmatpush1.bf16.msra.mxu0 %v313
        %367 = vmatprep.subr.bf16.mxu0 0
        %368 = vmatpush1.bf16.msra.mxu0 0
        %369 = vmatprep.subr.bf16.mxu0 0
        %370 = vmatpush1.bf16.msra.mxu0 0
        %371 = vmatprep.subr.bf16.mxu0 0
        %372 = vmatpush1.bf16.msra.mxu0 0
        %373 = vmatprep.subr.bf16.mxu0 0
        %374 = vmatpush1.bf16.msra.mxu0 0
        %375 = vmatprep.subr.bf16.mxu0 0
        %376 = vmatpush1.bf16.msra.mxu0 0
        %377 = vmatprep.subr.bf16.mxu0 0
        %378 = vmatpush1.bf16.msra.mxu0 0
        %379 = vmatprep.subr.bf16.mxu0 0
        %380 = vmatpush1.bf16.msra.mxu0 0
        %381 = vmatprep.mubr.bf16.mxu0 %v344
        %382 = vmatmul.mubr.bf16.gmra.mrb[0].mxu0 %v336
        %v383 = vpop.f32.mrb[0].mxu0
        %v384 = vadd.f32 %v205, %v383
        %v385 = vpop.f32.mrb[0].mxu0
        %v386 = vadd.f32 %v205, %v385
        %v387 = vpop.f32.mrb[0].mxu0
        %v388 = vadd.f32 %v210, %v387
        %v389 = vpop.f32.mrb[0].mxu0
        %v390 = vadd.f32 %v210, %v389
        %391 = vmatprep.mubr.bf16.mxu0 %v347
        %392 = vmatmul.mubr.bf16.gmra.mrb[0].mxu0 %v338
        %v393 = vpop.f32.mrb[0].mxu0
        %v394 = vadd.f32 %v215, %v393
        %v395 = vpop.f32.mrb[0].mxu0
        %v396 = vadd.f32 %v215, %v395
        %v397 = vpop.f32.mrb[0].mxu0
        %v398 = vadd.f32 %v220, %v397
        %v399 = vpop.f32.mrb[0].mxu0
        %v400 = vadd.f32 %v220, %v399
        %401 = vdwg.mxu0
        %v402 = vmax.f32 %v384, 0.0
        %v403 = vmax.f32 %v386, 0.0
        %v404 = vmax.f32 %v388, 0.0
        %v405 = vmax.f32 %v390, 0.0
        %v406 = vmax.f32 %v394, 0.0
        %v407 = vmax.f32 %v396, 0.0
        %v408 = vmax.f32 %v398, 0.0
        %v409 = vmax.f32 %v400, 0.0
        %v410 = vpack.c.bf16 %v404, %v402
        %v411 = vpack.c.bf16 %v405, %v403
        %v412 = vpack.c.bf16 %v408, %v406
        %v413 = vpack.c.bf16 %v409, %v407
        %v418 = vunpack.c.l.b16 %v410
        %v419 = vunpack.c.l.b16 %v411
        %v420 = vunpack.c.h.b16 %v410
        %v421 = vunpack.c.h.b16 %v411
        %v422 = vunpack.c.l.b16 %v412
        %v423 = vunpack.c.l.b16 %v413
        %v424 = vunpack.c.h.b16 %v412
        %v425 = vunpack.c.h.b16 %v413
        %v426 = vpack.c.b16 %v419, %v418
        %v427 = vpack.c.b16 %v421, %v420
        %v428 = vpack.c.b16 %v423, %v422
        %v429 = vpack.c.b16 %v425, %v424
        %s434 = smul.u32 %s223, 8
        %s435 = smul.addr %s434, 4
        %s436 = scalar_lea.vmem %s194, %s435
        %vm437 = vcmask 1043456
        %vm438 = vcmask 769028
        %vm439 = vmor %vm438, %vm437
        %440 = vst.msk [vmem:[%s436] sm:$0xff] %vm439, %v426
        %441 = vst.msk [vmem:[%s436 + $0x8] sm:$0xff] %vm439, %v427
        %442 = vst.msk [vmem:[%s436 + $0x10] sm:$0xff] %vm439, %v428
        %443 = vst.msk [vmem:[%s436 + $0x18] sm:$0xff] %vm439, %v429
      $region37: #{cnn_forward.12} parent=31 // loop_footer
        %s227 = sadd.s32 1, %s223
      $region38: #{cnn_forward.12} parent=31 // loop_footer_branch
        %222 = sbr.rel target = $region34
      $region39: #{cnn_forward.12} parent=31 // loop_exit
        _
      %s444 = smul.u32 37, %s19
      %p445 = scmp.lt.s32.totalorder %s18, 1
      %s446 = scalar_select %p445, %s18, 1
      %p447 = scmp.lt.s32.totalorder %s444, 221
      %s448 = scalar_select %p447, %s444, 221
      %s449 = smul.addr %s448, 8
      %s450 = smul.addr %s446, 1776
      %s451 = sadd.s32 %s449, %s450
      %s452 = smul.addr %s451, 4
      %s453 = scalar_lea.vmem %s3, %s452
      // Predicated region
      $region40: #{cnn_forward.12} parent=31 // pred_check
        %p454 = pneg %p114
      $region41: #{cnn_forward.12} parent=31 // pred_check_branch
        %456 = sbr.rel (%p454) target = $region43
      $region42: #{cnn_forward.12} parent=31 // pred_region
        %s457 = smul.u32 37, %s19
      $region43: #{cnn_forward.12} parent=31 // pred_fallthru
        _
    $region32: #{cnn_forward.12} parent=5 // pred_fallthru
      _
    %p458 = scmp.le.s32.totalorder 2, %s9
    // Predicated region
    $region44: #{cnn_forward.12} parent=5 // pred_check
      %p459 = pneg %p458
    $region45: #{cnn_forward.12} parent=5 // pred_check_branch
      %461 = sbr.rel (%p459) target = $region47
    $region46: #{cnn_forward.12} parent=5 // pred_region
      %s462 = ssub.s32 %s9, 2
      // Predicated region
      $region48: #{cnn_forward.12} parent=46 // pred_check
        %p463 = pneg %p120
      $region49: #{cnn_forward.12} parent=46 // pred_check_branch
        %465 = sbr.rel (%p463) target = $region51
      $region50: #{cnn_forward.12} parent=46 // pred_region
        %s466 = smul.u32 37, %s21
        %p467 = scmp.lt.s32.totalorder %s20, 1
        %s468 = scalar_select %p467, %s20, 1
        %p469 = scmp.lt.s32.totalorder %s466, 221
        %s470 = scalar_select %p469, %s466, 221
        %s471 = smul.addr %s470, 8
        %s472 = smul.addr %s468, 1776
        %s473 = sadd.s32 %s471, %s472
        %s474 = smul.addr %s473, 4
        %s475 = scalar_lea.vmem %s3, %s474
      $region51: #{cnn_forward.12} parent=46 // pred_fallthru
        _
    $region47: #{cnn_forward.12} parent=5 // pred_fallthru
      _
  $region6: #{cnn_forward.12} parent=0 // loop_footer
    %s13 = sadd.s32 1, %s9
  $region7: #{cnn_forward.12} parent=0 // loop_footer_branch
    %8 = sbr.rel target = $region3
  $region8: #{cnn_forward.12} parent=0 // loop_exit
    _

// kernel: cnn_forward.13
$region0: #{cnn_forward.13}
  #allocation0 [shape = 'u32[]', space=smem, size = 0x4, offset = 0x4, fixed_abs, tag = 'smem constant byte address 0x4 - core index']
  #allocation1 [shape = 'u32[144,128]{1,0:T(1,128)}', space=vmem, size = 0x12000, scoped, tag = 'internal scratch']
  %s0 = inlined_call_operand.vmem [shape: bf16[2,222,32,222], index: 0, kind: input, shape index: {}]
  %s1 = inlined_call_operand.vmem [shape: bf16[32,288], index: 1, kind: input, shape index: {}]
  %s2 = inlined_call_operand.vmem [shape: f32[32,1], index: 2, kind: input, shape index: {}]
  %s3 = inlined_call_operand.vmem [shape: bf16[2,220,32,220], index: 3, kind: output, shape index: {}]
  %s4 = sld [smem:[#allocation0]]
  $region52: #{cnn_forward.13} parent=0
    _
  %s6 = ssub.s32 1, %s4
  %s7 = scalar_select 0, %s6, %s4
  loop: start=0, step=1, limit=10
  $region2: #{cnn_forward.13} parent=0 // loop_pre_header
    _
  $region3: #{cnn_forward.13} parent=0 // loop_header
    %s9 = sphi 0, %s13
    %p10 = scmp.ge.s32.totalorder %s9, 10
    %s16 = sphi 0, %s28
    %s17 = sphi 0, %s24
    %s18 = sphi 0, %s16
    %s19 = sphi 0, %s17
    %s20 = sphi 0, %s18
    %s21 = sphi 0, %s19
    %s31 = sphi 0, %s33
    %s34 = sphi 0, %s31
    %s35 = sphi 0, %s34
    %s51 = sphi 0, %s35
    %s55 = sphi 0, %s55
    %s57 = sphi 0, %s55
    %s58 = sphi 0, %s57
    %s72 = sphi 0, %s58
    %s76 = sphi 0, %s76
    %s78 = sphi 0, %s76
    %s79 = sphi 0, %s78
    %s93 = sphi 0, %s79
    %s101 = sphi 0, %s103
    %s104 = sphi 0, %s101
    %s105 = sphi 0, %s104
    %s121 = sphi 0, %s105
  $region4: #{cnn_forward.13} parent=0 // loop_header_branch
    %12 = sbr.rel (%p10) target = $region8
  $region5: #{cnn_forward.13} parent=0 // loop_body
    %s14 = ssub.s32 %s9, 1
    %s15 = ssub.s32 %s9, 2
    %s22 = sadd.s32 1, %s17
    %p23 = scmp.ge.s32.totalorder %s22, 4
    %s24 = scalar_select %p23, 0, %s22
    %s25 = sadd.s32 1, %s16
    %s26 = scalar_select %p23, %s25, %s16
    %p27 = scmp.ge.s32.totalorder %s26, 2
    %s28 = scalar_select %p27, 0, %s26
    %s29 = ssub.s32 %s16, %s28
    %p30 = scmp.eq.s32.totalorder %s29, 0
    %s32 = sadd.s32 %s31, 1
    %s33 = scalar_select %p30, %s31, %s32
    %p36 = pneg %p30
    %p37 = scmp.eq.s32.totalorder %s9, 7
    %p38 = por %p36, %p37
    %p39 = scmp.ne.s32.totalorder %s31, %s34
    %p40 = scmp.eq.s32.totalorder %s9, 0
    %p41 = por %p39, %p40
    %p42 = scmp.ne.s32.totalorder %s31, %s34
    %p43 = scmp.eq.s32.totalorder %s14, 7
    %p44 = por %p42, %p43
    %p45 = scmp.ne.s32.totalorder %s34, %s35
    %p46 = scmp.eq.s32.totalorder %s14, 0
    %p47 = por %p45, %p46
    %p48 = scmp.ne.s32.totalorder %s34, %s35
    %p49 = scmp.eq.s32.totalorder %s15, 7
    %p50 = por %p48, %p49
    %p52 = scmp.ne.s32.totalorder %s35, %s51
    %p53 = scmp.eq.s32.totalorder %s15, 0
    %p54 = por %p52, %p53
    %s56 = sadd.s32 %s55, 1
    %p59 = scmp.eq.s32.totalorder %s9, 7
    %p60 = scmp.ne.s32.totalorder %s55, %s57
    %p61 = scmp.eq.s32.totalorder %s9, 0
    %p62 = por %p60, %p61
    %p63 = scmp.ne.s32.totalorder %s55, %s57
    %p64 = scmp.eq.s32.totalorder %s14, 7
    %p65 = por %p63, %p64
    %p66 = scmp.ne.s32.totalorder %s57, %s58
    %p67 = scmp.eq.s32.totalorder %s14, 0
    %p68 = por %p66, %p67
    %p69 = scmp.ne.s32.totalorder %s57, %s58
    %p70 = scmp.eq.s32.totalorder %s15, 7
    %p71 = por %p69, %p70
    %p73 = scmp.ne.s32.totalorder %s58, %s72
    %p74 = scmp.eq.s32.totalorder %s15, 0
    %p75 = por %p73, %p74
    %s77 = sadd.s32 %s76, 1
    %p80 = scmp.eq.s32.totalorder %s9, 7
    %p81 = scmp.ne.s32.totalorder %s76, %s78
    %p82 = scmp.eq.s32.totalorder %s9, 0
    %p83 = por %p81, %p82
    %p84 = scmp.ne.s32.totalorder %s76, %s78
    %p85 = scmp.eq.s32.totalorder %s14, 7
    %p86 = por %p84, %p85
    %p87 = scmp.ne.s32.totalorder %s78, %s79
    %p88 = scmp.eq.s32.totalorder %s14, 0
    %p89 = por %p87, %p88
    %p90 = scmp.ne.s32.totalorder %s78, %s79
    %p91 = scmp.eq.s32.totalorder %s15, 7
    %p92 = por %p90, %p91
    %p94 = scmp.ne.s32.totalorder %s79, %s93
    %p95 = scmp.eq.s32.totalorder %s15, 0
    %p96 = por %p94, %p95
    %s97 = ssub.s32 %s16, %s28
    %s98 = ssub.s32 %s17, %s24
    %s99 = sor.u32 %s97, %s98
    %p100 = scmp.eq.s32.totalorder %s99, 0
    %s102 = sadd.s32 %s101, 1
    %s103 = scalar_select %p100, %s101, %s102
    %p106 = pneg %p100
    %p107 = scmp.eq.s32.totalorder %s9, 7
    %p108 = por %p106, %p107
    %p109 = scmp.ne.s32.totalorder %s101, %s104
    %p110 = scmp.eq.s32.totalorder %s9, 0
    %p111 = por %p109, %p110
    %p112 = scmp.ne.s32.totalorder %s101, %s104
    %p113 = scmp.eq.s32.totalorder %s14, 7
    %p114 = por %p112, %p113
    %p115 = scmp.ne.s32.totalorder %s104, %s105
    %p116 = scmp.eq.s32.totalorder %s14, 0
    %p117 = por %p115, %p116
    %p118 = scmp.ne.s32.totalorder %s104, %s105
    %p119 = scmp.eq.s32.totalorder %s15, 7
    %p120 = por %p118, %p119
    %p122 = scmp.ne.s32.totalorder %s105, %s121
    %p123 = scmp.eq.s32.totalorder %s15, 0
    %p124 = por %p122, %p123
    %p125 = scmp.le.s32.totalorder 1, %s9
    %p126 = scmp.lt.s32.totalorder %s9, 9
    %p127 = pnand %p125, %p126
    %p128 = pneg %p127
    // Predicated region
    $region9: #{cnn_forward.13} parent=5 // pred_check
      _
    $region10: #{cnn_forward.13} parent=5 // pred_check_branch
      %130 = sbr.rel (%p127) target = $region12
    $region11: #{cnn_forward.13} parent=5 // pred_region
      %s131 = ssub.s32 %s9, 1
      // Predicated region
      $region13: #{cnn_forward.13} parent=11 // pred_check
        %p132 = pneg %p68
      $region14: #{cnn_forward.13} parent=11 // pred_check_branch
        %134 = sbr.rel (%p132) target = $region16
      $region15: #{cnn_forward.13} parent=11 // pred_region
        _
      $region16: #{cnn_forward.13} parent=11 // pred_fallthru
        _
      // Predicated region
      $region17: #{cnn_forward.13} parent=11 // pred_check
        %p135 = pneg %p89
      $region18: #{cnn_forward.13} parent=11 // pred_check_branch
        %137 = sbr.rel (%p135) target = $region20
      $region19: #{cnn_forward.13} parent=11 // pred_region
        _
      $region20: #{cnn_forward.13} parent=11 // pred_fallthru
        _
    $region12: #{cnn_forward.13} parent=5 // pred_fallthru
      _
    %p138 = scmp.lt.s32.totalorder %s9, 8
    // Predicated region
    $region21: #{cnn_forward.13} parent=5 // pred_check
      %p139 = pneg %p138
    $region22: #{cnn_forward.13} parent=5 // pred_check_branch
      %141 = sbr.rel (%p139) target = $region24
    $region23: #{cnn_forward.13} parent=5 // pred_region
      // Predicated region
      $region25: #{cnn_forward.13} parent=23 // pred_check
        %p142 = pneg %p41
      $region26: #{cnn_forward.13} parent=23 // pred_check_branch
        %144 = sbr.rel (%p142) target = $region28
      $region27: #{cnn_forward.13} parent=23 // pred_region
        %p145 = scmp.lt.s32.totalorder %s16, 1
        %s146 = scalar_select %p145, %s16, 1
        %s147 = smul.addr %s146, 1776
        %s148 = smul.addr %s147, 4
        %s149 = scalar_lea.vmem %s0, %s148
      $region28: #{cnn_forward.13} parent=23 // pred_fallthru
        _
    $region24: #{cnn_forward.13} parent=5 // pred_fallthru
      _
    %p150 = scmp.le.s32.totalorder 1, %s9
    %p151 = scmp.lt.s32.totalorder %s9, 9
    %p152 = pnand %p150, %p151
    %p153 = pneg %p152
    // Predicated region
    $region29: #{cnn_forward.13} parent=5 // pred_check
      _
    $region30: #{cnn_forward.13} parent=5 // pred_check_branch
      %155 = sbr.rel (%p152) target = $region32
    $region31: #{cnn_forward.13} parent=5 // pred_region
      %s156 = ssub.s32 %s9, 1
      %p157 = scmp.lt.s32.totalorder %s18, 1
      %s158 = scalar_select %p157, %s18, 1
      %s159 = smul.addr %s158, 1776
      %s160 = smul.addr %s159, 4
      %s161 = scalar_lea.vmem %s0, %s160
      %p162 = pneg %p47
      %p163 = pneg %p44
      %p164 = pneg %p68
      %p165 = pneg %p65
      %p166 = pneg %p89
      %p167 = pneg %p86
      %p168 = pneg %p117
      %p169 = pneg %p114
      %s170 = smul.u32 55, %s19
      %p171 = scmp.lt.s32.totalorder %s18, 1
      %s172 = scalar_select %p171, %s18, 1
      %p173 = scmp.lt.s32.totalorder %s170, 219
      %s174 = scalar_select %p173, %s170, 219
      %s175 = smul.addr %s174, 8
      %s176 = smul.addr %s172, 1760
      %s177 = sadd.s32 %s175, %s176
      %s178 = smul.addr %s177, 4
      %s179 = scalar_lea.vmem %s3, %s178
      %p180 = scmp.lt.s32.totalorder %s18, 1
      %s181 = scalar_select %p180, %s18, 1
      %s182 = smul.addr %s181, 1776
      %s183 = smul.addr %s182, 4
      %s184 = scalar_lea.vmem %s0, %s183
      %s185 = smul.u32 55, %s19
      %p186 = scmp.lt.s32.totalorder %s18, 1
      %s187 = scalar_select %p186, %s18, 1
      %p188 = scmp.lt.s32.totalorder %s185, 219
      %s189 = scalar_select %p188, %s185, 219
      %s190 = smul.addr %s189, 8
      %s191 = smul.addr %s187, 1760
      %s192 = sadd.s32 %s190, %s191
      %s193 = smul.addr %s192, 4
      %s194 = scalar_lea.vmem %s3, %s193
      %s195 = smul.u32 55, %s19
      %s197 = smul.u32 %s19, 55
      %v198 = vld [vmem:[%s2] sm:$0xff]
      %v199 = vld [vmem:[%s2 + $0x8] sm:$0xff]
      %v200 = vld [vmem:[%s2 + $0x10] sm:$0xff]
      %v201 = vld [vmem:[%s2 + $0x18] sm:$0xff]
      %203 = vset.pattern.permute.xlu0 0
      %204 = vperm.xlu0 %203, %v198
      %v205 = vpop.permute.xlu0 %204
      %208 = vset.pattern.permute.xlu0 0
      %209 = vperm.xlu0 %208, %v199
      %v210 = vpop.permute.xlu0 %209
      %213 = vset.pattern.permute.xlu0 0
      %214 = vperm.xlu0 %213, %v200
      %v215 = vpop.permute.xlu0 %214
      %218 = vset.pattern.permute.xlu0 0
      %219 = vperm.xlu0 %218, %v201
      %v220 = vpop.permute.xlu0 %219
      loop: start=0, step=1, limit=55
      $region33: #{cnn_forward.13} parent=31 // loop_pre_header
        _
      $region34: #{cnn_forward.13} parent=31 // loop_header
        %s223 = sphi 0, %s227
        %p224 = scmp.ge.s32.totalorder %s223, 55
      $region35: #{cnn_forward.13} parent=31 // loop_header_branch
        %226 = sbr.rel (%p224) target = $region39
      $region36: #{cnn_forward.13} parent=31 // loop_body
        %s228 = sadd.s32 %s197, %s223
        %s229 = smul.u32 %s228, 8
        %s230 = smul.addr %s229, 4
        %s231 = scalar_lea.vmem %s184, %s230
        %v232 = vld [vmem:[%s231] sm:$0xff]
        %v233 = vld [vmem:[%s231 + $0x8] sm:$0xff]
        %v234 = vld [vmem:[%s231 + $0x10] sm:$0xff]
        %v235 = vld [vmem:[%s231 + $0x18] sm:$0xff]
        %s236 = sadd.s32 %s228, 1
        %s237 = smul.u32 %s236, 8
        %s238 = smul.addr %s237, 4
        %s239 = scalar_lea.vmem %s184, %s238
        %v240 = vld [vmem:[%s239] sm:$0xff]
        %v241 = vld [vmem:[%s239 + $0x8] sm:$0xff]
        %v242 = vld [vmem:[%s239 + $0x10] sm:$0xff]
        %v243 = vld [vmem:[%s239 + $0x18] sm:$0xff]
        %s244 = sadd.s32 %s228, 2
        %s245 = smul.u32 %s244, 8
        %s246 = smul.addr %s245, 4
        %s247 = scalar_lea.vmem %s184, %s246
        %v248 = vld [vmem:[%s247] sm:$0xff]
        %v249 = vld [vmem:[%s247 + $0x8] sm:$0xff]
        %v250 = vld [vmem:[%s247 + $0x10] sm:$0xff]
        %v251 = vld [vmem:[%s247 + $0x18] sm:$0xff]
        %v256 = vunpack.c.l.b16 %v232
        %v257 = vunpack.c.h.b16 %v232
        %v258 = vunpack.c.l.b16 %v233
        %v259 = vunpack.c.h.b16 %v233
        %v260 = vunpack.c.l.b16 %v234
        %v261 = vunpack.c.h.b16 %v234
        %v262 = vunpack.c.l.b16 %v235
        %v263 = vunpack.c.h.b16 %v235
        %v264 = vpack.c.b16 %v258, %v256
        %v265 = vpack.c.b16 %v259, %v257
        %v266 = vpack.c.b16 %v262, %v260
        %v267 = vpack.c.b16 %v263, %v261
        %v276 = vunpack.c.l.b16 %v240
        %v277 = vunpack.c.h.b16 %v240
        %v278 = vunpack.c.l.b16 %v241
        %v279 = vunpack.c.h.b16 %v241
        %v280 = vunpack.c.l.b16 %v242
        %v281 = vunpack.c.h.b16 %v242
        %v282 = vunpack.c.l.b16 %v243
        %v283 = vunpack.c.h.b16 %v243
        %v284 = vpack.c.b16 %v278, %v276
        %v285 = vpack.c.b16 %v279, %v277
        %v286 = vpack.c.b16 %v282, %v280
        %v287 = vpack.c.b16 %v283, %v281
        %v296 = vunpack.c.l.b16 %v248
        %v297 = vunpack.c.h.b16 %v248
        %v298 = vunpack.c.l.b16 %v249
        %v299 = vunpack.c.h.b16 %v249
        %v300 = vunpack.c.l.b16 %v250
        %v301 = vunpack.c.h.b16 %v250
        %v302 = vunpack.c.l.b16 %v251
        %v303 = vunpack.c.h.b16 %v251
        %v304 = vpack.c.b16 %v298, %v296
        %v305 = vpack.c.b16 %v299, %v297
        %v306 = vpack.c.b16 %v302, %v300
        %v307 = vpack.c.b16 %v303, %v301
        %312 = vrot.lane.b32.xlu0 %v264, 127
        %v313 = vpop.permute.xlu0 %312
        %314 = vrot.lane.b32.xlu0 %v265, 127
        %v315 = vpop.permute.xlu0 %314
        %316 = vrot.lane.b32.xlu0 %v266, 127
        %v317 = vpop.permute.xlu0 %316
        %318 = vrot.lane.b32.xlu0 %v267, 127
        %v319 = vpop.permute.xlu0 %318
        %320 = vrot.lane.b32.xlu0 %v284, 127
        %v321 = vpop.permute.xlu0 %320
        %322 = vrot.lane.b32.xlu0 %v285, 127
        %v323 = vpop.permute.xlu0 %322
        %324 = vrot.lane.b32.xlu0 %v286, 127
        %v325 = vpop.permute.xlu0 %324
        %326 = vrot.lane.b32.xlu0 %v287, 127
        %v327 = vpop.permute.xlu0 %326
        %328 = vrot.lane.b32.xlu0 %v304, 127
        %v329 = vpop.permute.xlu0 %328
        %330 = vrot.lane.b32.xlu0 %v305, 127
        %v331 = vpop.permute.xlu0 %330
        %332 = vrot.lane.b32.xlu0 %v306, 127
        %v333 = vpop.permute.xlu0 %332
        %334 = vrot.lane.b32.xlu0 %v307, 127
        %v335 = vpop.permute.xlu0 %334
        %vm336 = vcmask 1039360
        %v337 = vsel %vm336, %v313, %v315
        %v338 = vsel %vm336, %v317, %v319
        %v339 = vsel %vm336, %v321, %v323
        %v340 = vsel %vm336, %v325, %v327
        %v341 = vsel %vm336, %v329, %v331
        %v342 = vsel %vm336, %v333, %v335
        %355 = vrot.lane.b32.xlu0 %v264, 126
        %v356 = vpop.permute.xlu0 %355
        %357 = vrot.lane.b32.xlu0 %v265, 126
        %v358 = vpop.permute.xlu0 %357
        %359 = vrot.lane.b32.xlu0 %v266, 126
        %v360 = vpop.permute.xlu0 %359
        %361 = vrot.lane.b32.xlu0 %v267, 126
        %v362 = vpop.permute.xlu0 %361
        %363 = vrot.lane.b32.xlu0 %v284, 126
        %v364 = vpop.permute.xlu0 %363
        %365 = vrot.lane.b32.xlu0 %v285, 126
        %v366 = vpop.permute.xlu0 %365
        %367 = vrot.lane.b32.xlu0 %v286, 126
        %v368 = vpop.permute.xlu0 %367
        %369 = vrot.lane.b32.xlu0 %v287, 126
        %v370 = vpop.permute.xlu0 %369
        %371 = vrot.lane.b32.xlu0 %v304, 126
        %v372 = vpop.permute.xlu0 %371
        %373 = vrot.lane.b32.xlu0 %v305, 126
        %v374 = vpop.permute.xlu0 %373
        %375 = vrot.lane.b32.xlu0 %v306, 126
        %v376 = vpop.permute.xlu0 %375
        %377 = vrot.lane.b32.xlu0 %v307, 126
        %v378 = vpop.permute.xlu0 %377
        %vm379 = vcmask 1031168
        %v380 = vsel %vm379, %v356, %v358
        %v381 = vsel %vm379, %v360, %v362
        %v382 = vsel %vm379, %v364, %v366
        %v383 = vsel %vm379, %v368, %v370
        %v384 = vsel %vm379, %v372, %v374
        %v385 = vsel %vm379, %v376, %v378
        %v398 = vld [vmem:[%s1] sm:$0xff]
        %v399 = vld [vmem:[%s1 + $0x8] sm:$0xf]
        %v400 = vld [vmem:[%s1 + $0xc] sm:$0xff]
        %v401 = vld [vmem:[%s1 + $0x14] sm:$0xf]
        %v402 = vld [vmem:[%s1 + $0x18] sm:$0xff]
        %v403 = vld [vmem:[%s1 + $0x20] sm:$0xf]
        %v404 = vld [vmem:[%s1 + $0x24] sm:$0xff]
        %v405 = vld [vmem:[%s1 + $0x2c] sm:$0xf]
        %v414 = vunpack.c.l.b16 %v398
        %v415 = vunpack.c.h.b16 %v398
        %v416 = vunpack.c.l.b16 %v399
        %v417 = vunpack.c.l.b16 %v400
        %v418 = vunpack.c.h.b16 %v400
        %v419 = vunpack.c.l.b16 %v401
        %v420 = vunpack.c.l.b16 %v402
        %v421 = vunpack.c.h.b16 %v402
        %v422 = vunpack.c.l.b16 %v403
        %v423 = vunpack.c.l.b16 %v404
        %v424 = vunpack.c.h.b16 %v404
        %v425 = vunpack.c.l.b16 %v405
        %v426 = vpack.c.b16 %v417, %v414
        %v427 = vpack.c.b16 %v418, %v415
        %v428 = vpack.c.b16 %v419, %v416
        %v429 = vpack.c.b16 %v423, %v420
        %v430 = vpack.c.b16 %v424, %v421
        %v431 = vpack.c.b16 %v425, %v422
        %vm436 = vcmask 261120
        %v438 = vsel %vm436, %v428, 0
        %v441 = vsel %vm436, %v431, 0
        %443 = vmatprep.subr.bf16.mxu0 %v265
        %444 = vmatpush1.bf16.msra.mxu0 %v264
        %445 = vmatprep.subr.bf16.mxu0 %v267
        %446 = vmatpush1.bf16.msra.mxu0 %v266
        %447 = vmatprep.subr.bf16.mxu0 %v285
        %448 = vmatpush1.bf16.msra.mxu0 %v284
        %449 = vmatprep.subr.bf16.mxu0 %v287
        %450 = vmatpush1.bf16.msra.mxu0 %v286
        %451 = vmatprep.subr.bf16.mxu0 %v305
        %452 = vmatpush1.bf16.msra.mxu0 %v304
        %453 = vmatprep.subr.bf16.mxu0 %v307
        %454 = vmatpush1.bf16.msra.mxu0 %v306
        %455 = vmatprep.subr.bf16.mxu0 %v315
        %456 = vmatpush1.bf16.msra.mxu0 %v337
        %457 = vmatprep.subr.bf16.mxu0 %v319
        %458 = vmatpush1.bf16.msra.mxu0 %v338
        %459 = vmatprep.subr.bf16.mxu0 %v323
        %460 = vmatpush1.bf16.msra.mxu0 %v339
        %461 = vmatprep.subr.bf16.mxu0 %v327
        %462 = vmatpush1.bf16.msra.mxu0 %v340
        %463 = vmatprep.subr.bf16.mxu0 %v331
        %464 = vmatpush1.bf16.msra.mxu0 %v341
        %465 = vmatprep.subr.bf16.mxu0 %v335
        %466 = vmatpush1.bf16.msra.mxu0 %v342
        %467 = vmatprep.subr.bf16.mxu0 %v358
        %468 = vmatpush1.bf16.msra.mxu0 %v380
        %469 = vmatprep.subr.bf16.mxu0 %v362
        %470 = vmatpush1.bf16.msra.mxu0 %v381
        %471 = vmatprep.subr.bf16.mxu0 %v366
        %472 = vmatpush1.bf16.msra.mxu0 %v382
        %473 = vmatprep.subr.bf16.mxu0 %v370
        %474 = vmatpush1.bf16.msra.mxu0 %v383
        %475 = vmatprep.mubr.bf16.mxu0 %v427
        %476 = vmatmul.mubr.bf16.gmra.mrb[0].mxu0 %v426
        %v477 = vpop.f32.mrb[0].mxu0
        %v478 = vadd.f32 %v205, %v477
        %v479 = vpop.f32.mrb[0].mxu0
        %v480 = vadd.f32 %v205, %v479
        %v481 = vpop.f32.mrb[0].mxu0
        %v482 = vadd.f32 %v210, %v481
        %v483 = vpop.f32.mrb[0].mxu0
        %v484 = vadd.f32 %v210, %v483
        %485 = vmatprep.mubr.bf16.mxu0 %v430
        %486 = vmatmul.mubr.bf16.gmra.mrb[0].mxu0 %v429
        %v487 = vpop.f32.mrb[0].mxu0
        %v488 = vadd.f32 %v215, %v487
        %v489 = vpop.f32.mrb[0].mxu0
        %v490 = vadd.f32 %v215, %v489
        %v491 = vpop.f32.mrb[0].mxu0
        %v492 = vadd.f32 %v220, %v491
        %v493 = vpop.f32.mrb[0].mxu0
        %v494 = vadd.f32 %v220, %v493
        %495 = vdwg.mxu0
        %496 = vmatprep.subr.bf16.mxu0 %v374
        %497 = vmatpush1.bf16.msra.mxu0 %v384
        %498 = vmatprep.subr.bf16.mxu0 %v378
        %499 = vmatpush1.bf16.msra.mxu0 %v385
        %500 = vmatprep.subr.bf16.mxu0 0
        %501 = vmatpush1.bf16.msra.mxu0 0
        %502 = vmatprep.subr.bf16.mxu0 0
        %503 = vmatpush1.bf16.msra.mxu0 0
        %504 = vmatprep.subr.bf16.mxu0 0
        %505 = vmatpush1.bf16.msra.mxu0 0
        %506 = vmatprep.subr.bf16.mxu0 0
        %507 = vmatpush1.bf16.msra.mxu0 0
        %508 = vmatprep.subr.bf16.mxu0 0
        %509 = vmatpush1.bf16.msra.mxu0 0
        %510 = vmatprep.subr.bf16.mxu0 0
        %511 = vmatpush1.bf16.msra.mxu0 0
        %512 = vmatprep.subr.bf16.mxu0 0
        %513 = vmatpush1.bf16.msra.mxu0 0
        %514 = vmatprep.subr.bf16.mxu0 0
        %515 = vmatpush1.bf16.msra.mxu0 0
        %516 = vmatprep.subr.bf16.mxu0 0
        %517 = vmatpush1.bf16.msra.mxu0 0
        %518 = vmatprep.subr.bf16.mxu0 0
        %519 = vmatpush1.bf16.msra.mxu0 0
        %520 = vmatprep.subr.bf16.mxu0 0
        %521 = vmatpush1.bf16.msra.mxu0 0
        %522 = vmatprep.subr.bf16.mxu0 0
        %523 = vmatpush1.bf16.msra.mxu0 0
        %524 = vmatprep.subr.bf16.mxu0 0
        %525 = vmatpush1.bf16.msra.mxu0 0
        %526 = vmatprep.subr.bf16.mxu0 0
        %527 = vmatpush1.bf16.msra.mxu0 0
        %528 = vmatprep.mubr.bf16.mxu0 0
        %529 = vmatmul.mubr.bf16.gmra.mrb[0].mxu0 %v438
        %v530 = vpop.f32.mrb[0].mxu0
        %v531 = vadd.f32 %v478, %v530
        %v532 = vpop.f32.mrb[0].mxu0
        %v533 = vadd.f32 %v480, %v532
        %v534 = vpop.f32.mrb[0].mxu0
        %v535 = vadd.f32 %v482, %v534
        %v536 = vpop.f32.mrb[0].mxu0
        %v537 = vadd.f32 %v484, %v536
        %538 = vmatprep.mubr.bf16.mxu0 0
        %539 = vmatmul.mubr.bf16.gmra.mrb[0].mxu0 %v441
        %v540 = vpop.f32.mrb[0].mxu0
        %v541 = vadd.f32 %v488, %v540
        %v542 = vpop.f32.mrb[0].mxu0
        %v543 = vadd.f32 %v490, %v542
        %v544 = vpop.f32.mrb[0].mxu0
        %v545 = vadd.f32 %v492, %v544
        %v546 = vpop.f32.mrb[0].mxu0
        %v547 = vadd.f32 %v494, %v546
        %548 = vdwg.mxu0
        %v549 = vmax.f32 %v531, 0.0
        %v550 = vmax.f32 %v533, 0.0
        %v551 = vmax.f32 %v535, 0.0
        %v552 = vmax.f32 %v537, 0.0
        %v553 = vmax.f32 %v541, 0.0
        %v554 = vmax.f32 %v543, 0.0
        %v555 = vmax.f32 %v545, 0.0
        %v556 = vmax.f32 %v547, 0.0
        %v557 = vpack.c.bf16 %v551, %v549
        %v558 = vpack.c.bf16 %v552, %v550
        %v559 = vpack.c.bf16 %v555, %v553
        %v560 = vpack.c.bf16 %v556, %v554
        %v565 = vunpack.c.l.b16 %v557
        %v566 = vunpack.c.l.b16 %v558
        %v567 = vunpack.c.h.b16 %v557
        %v568 = vunpack.c.h.b16 %v558
        %v569 = vunpack.c.l.b16 %v559
        %v570 = vunpack.c.l.b16 %v560
        %v571 = vunpack.c.h.b16 %v559
        %v572 = vunpack.c.h.b16 %v560
        %v573 = vpack.c.b16 %v566, %v565
        %v574 = vpack.c.b16 %v568, %v567
        %v575 = vpack.c.b16 %v570, %v569
        %v576 = vpack.c.b16 %v572, %v571
        %s581 = smul.u32 %s223, 8
        %s582 = smul.addr %s581, 4
        %s583 = scalar_lea.vmem %s194, %s582
        %vm584 = vcmask 1043456
        %vm585 = vcmask 752644
        %vm586 = vmor %vm585, %vm584
        %587 = vst.msk [vmem:[%s583] sm:$0xff] %vm586, %v573
        %588 = vst.msk [vmem:[%s583 + $0x8] sm:$0xff] %vm586, %v574
        %589 = vst.msk [vmem:[%s583 + $0x10] sm:$0xff] %vm586, %v575
        %590 = vst.msk [vmem:[%s583 + $0x18] sm:$0xff] %vm586, %v576
      $region37: #{cnn_forward.13} parent=31 // loop_footer
        %s227 = sadd.s32 1, %s223
      $region38: #{cnn_forward.13} parent=31 // loop_footer_branch
        %222 = sbr.rel target = $region34
      $region39: #{cnn_forward.13} parent=31 // loop_exit
        _
      %s591 = smul.u32 55, %s19
      %p592 = scmp.lt.s32.totalorder %s18, 1
      %s593 = scalar_select %p592, %s18, 1
      %p594 = scmp.lt.s32.totalorder %s591, 219
      %s595 = scalar_select %p594, %s591, 219
      %s596 = smul.addr %s595, 8
      %s597 = smul.addr %s593, 1760
      %s598 = sadd.s32 %s596, %s597
      %s599 = smul.addr %s598, 4
      %s600 = scalar_lea.vmem %s3, %s599
      // Predicated region
      $region40: #{cnn_forward.13} parent=31 // pred_check
        %p601 = pneg %p114
      $region41: #{cnn_forward.13} parent=31 // pred_check_branch
        %603 = sbr.rel (%p601) target = $region43
      $region42: #{cnn_forward.13} parent=31 // pred_region
        %s604 = smul.u32 55, %s19
      $region43: #{cnn_forward.13} parent=31 // pred_fallthru
        _
    $region32: #{cnn_forward.13} parent=5 // pred_fallthru
      _
    %p605 = scmp.le.s32.totalorder 2, %s9
    // Predicated region
    $region44: #{cnn_forward.13} parent=5 // pred_check
      %p606 = pneg %p605
    $region45: #{cnn_forward.13} parent=5 // pred_check_branch
      %608 = sbr.rel (%p606) target = $region47
    $region46: #{cnn_forward.13} parent=5 // pred_region
      %s609 = ssub.s32 %s9, 2
      // Predicated region
      $region48: #{cnn_forward.13} parent=46 // pred_check
        %p610 = pneg %p120
      $region49: #{cnn_forward.13} parent=46 // pred_check_branch
        %612 = sbr.rel (%p610) target = $region51
      $region50: #{cnn_forward.13} parent=46 // pred_region
        %s613 = smul.u32 55, %s21
        %p614 = scmp.lt.s32.totalorder %s20, 1
        %s615 = scalar_select %p614, %s20, 1
        %p616 = scmp.lt.s32.totalorder %s613, 219
        %s617 = scalar_select %p616, %s613, 219
        %s618 = smul.addr %s617, 8
        %s619 = smul.addr %s615, 1760
        %s620 = sadd.s32 %s618, %s619
        %s621 = smul.addr %s620, 4
        %s622 = scalar_lea.vmem %s3, %s621
      $region51: #{cnn_forward.13} parent=46 // pred_fallthru
        _
    $region47: #{cnn_forward.13} parent=5 // pred_fallthru
      _
  $region6: #{cnn_forward.13} parent=0 // loop_footer
    %s13 = sadd.s32 1, %s9
  $region7: #{cnn_forward.13} parent=0 // loop_footer_branch
    %8 = sbr.rel target = $region3
  $region8: #{cnn_forward.13} parent=0 // loop_exit
    _

// kernel: cnn_forward.14
$region0: #{cnn_forward.14}
  #allocation0 [shape = 'u32[]', space=smem, size = 0x4, offset = 0x4, fixed_abs, tag = 'smem constant byte address 0x4 - core index']
  #allocation1 [shape = 'u32[144,128]{1,0:T(1,128)}', space=vmem, size = 0x12000, scoped, tag = 'internal scratch']
  %s0 = inlined_call_operand.vmem [shape: bf16[2,220,32,220], index: 0, kind: input, shape index: {}]
  %s1 = inlined_call_operand.vmem [shape: bf16[218,109], index: 1, kind: input, shape index: {}]
  %s2 = inlined_call_operand.vmem [shape: bf16[2,109,32,109], index: 2, kind: output, shape index: {}]
  %s3 = sld [smem:[#allocation0]]
  $region48: #{cnn_forward.14} parent=0
    _
  %s5 = ssub.s32 1, %s3
  %s6 = scalar_select 0, %s5, %s3
  loop: start=0, step=1, limit=4
  $region2: #{cnn_forward.14} parent=0 // loop_pre_header
    _
  $region3: #{cnn_forward.14} parent=0 // loop_header
    %s8 = sphi 0, %s12
    %p9 = scmp.ge.s32.totalorder %s8, 4
    %s18 = sphi 0, %s20
    %s21 = sphi 0, %s18
    %s22 = sphi 0, %s21
    %s38 = sphi 0, %s22
    %s42 = sphi 0, %s42
    %s44 = sphi 0, %s42
    %s45 = sphi 0, %s44
    %s59 = sphi 0, %s45
    %s65 = sphi 0, %s67
    %s68 = sphi 0, %s65
    %s69 = sphi 0, %s68
    %s85 = sphi 0, %s69
  $region4: #{cnn_forward.14} parent=0 // loop_header_branch
    %11 = sbr.rel (%p9) target = $region8
  $region5: #{cnn_forward.14} parent=0 // loop_body
    %s13 = ssub.s32 %s8, 1
    %s14 = ssub.s32 %s8, 2
    %s15 = sadd.s32 %s8, 1
    %s16 = ssub.s32 %s8, %s15
    %p17 = scmp.eq.s32.totalorder %s16, 0
    %s19 = sadd.s32 %s18, 1
    %s20 = scalar_select %p17, %s18, %s19
    %p23 = pneg %p17
    %p24 = scmp.eq.s32.totalorder %s8, 1
    %p25 = por %p23, %p24
    %p26 = scmp.ne.s32.totalorder %s18, %s21
    %p27 = scmp.eq.s32.totalorder %s8, 0
    %p28 = por %p26, %p27
    %p29 = scmp.ne.s32.totalorder %s18, %s21
    %p30 = scmp.eq.s32.totalorder %s13, 1
    %p31 = por %p29, %p30
    %p32 = scmp.ne.s32.totalorder %s21, %s22
    %p33 = scmp.eq.s32.totalorder %s13, 0
    %p34 = por %p32, %p33
    %p35 = scmp.ne.s32.totalorder %s21, %s22
    %p36 = scmp.eq.s32.totalorder %s14, 1
    %p37 = por %p35, %p36
    %p39 = scmp.ne.s32.totalorder %s22, %s38
    %p40 = scmp.eq.s32.totalorder %s14, 0
    %p41 = por %p39, %p40
    %s43 = sadd.s32 %s42, 1
    %p46 = scmp.eq.s32.totalorder %s8, 1
    %p47 = scmp.ne.s32.totalorder %s42, %s44
    %p48 = scmp.eq.s32.totalorder %s8, 0
    %p49 = por %p47, %p48
    %p50 = scmp.ne.s32.totalorder %s42, %s44
    %p51 = scmp.eq.s32.totalorder %s13, 1
    %p52 = por %p50, %p51
    %p53 = scmp.ne.s32.totalorder %s44, %s45
    %p54 = scmp.eq.s32.totalorder %s13, 0
    %p55 = por %p53, %p54
    %p56 = scmp.ne.s32.totalorder %s44, %s45
    %p57 = scmp.eq.s32.totalorder %s14, 1
    %p58 = por %p56, %p57
    %p60 = scmp.ne.s32.totalorder %s45, %s59
    %p61 = scmp.eq.s32.totalorder %s14, 0
    %p62 = por %p60, %p61
    %s63 = ssub.s32 %s8, %s15
    %p64 = scmp.eq.s32.totalorder %s63, 0
    %s66 = sadd.s32 %s65, 1
    %s67 = scalar_select %p64, %s65, %s66
    %p70 = pneg %p64
    %p71 = scmp.eq.s32.totalorder %s8, 1
    %p72 = por %p70, %p71
    %p73 = scmp.ne.s32.totalorder %s65, %s68
    %p74 = scmp.eq.s32.totalorder %s8, 0
    %p75 = por %p73, %p74
    %p76 = scmp.ne.s32.totalorder %s65, %s68
    %p77 = scmp.eq.s32.totalorder %s13, 1
    %p78 = por %p76, %p77
    %p79 = scmp.ne.s32.totalorder %s68, %s69
    %p80 = scmp.eq.s32.totalorder %s13, 0
    %p81 = por %p79, %p80
    %p82 = scmp.ne.s32.totalorder %s68, %s69
    %p83 = scmp.eq.s32.totalorder %s14, 1
    %p84 = por %p82, %p83
    %p86 = scmp.ne.s32.totalorder %s69, %s85
    %p87 = scmp.eq.s32.totalorder %s14, 0
    %p88 = por %p86, %p87
    %p89 = scmp.le.s32.totalorder 1, %s8
    %p90 = scmp.lt.s32.totalorder %s8, 3
    %p91 = pnand %p89, %p90
    %p92 = pneg %p91
    // Predicated region
    $region9: #{cnn_forward.14} parent=5 // pred_check
      _
    $region10: #{cnn_forward.14} parent=5 // pred_check_branch
      %94 = sbr.rel (%p91) target = $region12
    $region11: #{cnn_forward.14} parent=5 // pred_region
      %s95 = ssub.s32 %s8, 1
      // Predicated region
      $region13: #{cnn_forward.14} parent=11 // pred_check
        %p96 = pneg %p55
      $region14: #{cnn_forward.14} parent=11 // pred_check_branch
        %98 = sbr.rel (%p96) target = $region16
      $region15: #{cnn_forward.14} parent=11 // pred_region
        _
      $region16: #{cnn_forward.14} parent=11 // pred_fallthru
        _
    $region12: #{cnn_forward.14} parent=5 // pred_fallthru
      _
    %p99 = scmp.lt.s32.totalorder %s8, 2
    // Predicated region
    $region17: #{cnn_forward.14} parent=5 // pred_check
      %p100 = pneg %p99
    $region18: #{cnn_forward.14} parent=5 // pred_check_branch
      %102 = sbr.rel (%p100) target = $region20
    $region19: #{cnn_forward.14} parent=5 // pred_region
      // Predicated region
      $region21: #{cnn_forward.14} parent=19 // pred_check
        %p103 = pneg %p28
      $region22: #{cnn_forward.14} parent=19 // pred_check_branch
        %105 = sbr.rel (%p103) target = $region24
      $region23: #{cnn_forward.14} parent=19 // pred_region
        %p106 = scmp.lt.s32.totalorder %s8, 1
        %s107 = scalar_select %p106, %s8, 1
        %s108 = smul.addr %s107, 1760
        %s109 = smul.addr %s108, 4
        %s110 = scalar_lea.vmem %s0, %s109
      $region24: #{cnn_forward.14} parent=19 // pred_fallthru
        _
    $region20: #{cnn_forward.14} parent=5 // pred_fallthru
      _
    %p111 = scmp.le.s32.totalorder 1, %s8
    %p112 = scmp.lt.s32.totalorder %s8, 3
    %p113 = pnand %p111, %p112
    %p114 = pneg %p113
    // Predicated region
    $region25: #{cnn_forward.14} parent=5 // pred_check
      _
    $region26: #{cnn_forward.14} parent=5 // pred_check_branch
      %116 = sbr.rel (%p113) target = $region28
    $region27: #{cnn_forward.14} parent=5 // pred_region
      %s117 = ssub.s32 %s8, 1
      %p118 = scmp.lt.s32.totalorder %s13, 1
      %s119 = scalar_select %p118, %s13, 1
      %s120 = smul.addr %s119, 1760
      %s121 = smul.addr %s120, 4
      %s122 = scalar_lea.vmem %s0, %s121
      %p123 = pneg %p34
      %p124 = pneg %p31
      %p125 = pneg %p55
      %p126 = pneg %p52
      %p127 = pneg %p81
      %p128 = pneg %p78
      %p129 = scmp.lt.s32.totalorder %s13, 1
      %s130 = scalar_select %p129, %s13, 1
      %s131 = smul.addr %s130, 436
      %s132 = smul.addr %s131, 4
      %s133 = scalar_lea.vmem %s2, %s132
      %p134 = scmp.lt.s32.totalorder %s13, 1
      %s135 = scalar_select %p134, %s13, 1
      %s136 = smul.addr %s135, 1760
      %s137 = smul.addr %s136, 4
      %s138 = scalar_lea.vmem %s0, %s137
      %p139 = scmp.lt.s32.totalorder %s13, 1
      %s140 = scalar_select %p139, %s13, 1
      %s141 = smul.addr %s140, 436
      %s142 = smul.addr %s141, 4
      %s143 = scalar_lea.vmem %s2, %s142
      %v145 = vld [vmem:[%s1] sm:$0xf]
      %v146 = vld [vmem:[%s1 + $0x4] sm:$0xf]
      %v147 = vld [vmem:[%s1 + $0x8] sm:$0xf]
      %v148 = vld [vmem:[%s1 + $0xc] sm:$0xf]
      %v149 = vld [vmem:[%s1 + $0x10] sm:$0xf]
      %v150 = vld [vmem:[%s1 + $0x14] sm:$0xf]
      %v151 = vld [vmem:[%s1 + $0x18] sm:$0xf]
      %v152 = vld [vmem:[%s1 + $0x1c] sm:$0xf]
      %v153 = vld [vmem:[%s1 + $0x20] sm:$0xf]
      %v154 = vld [vmem:[%s1 + $0x24] sm:$0xf]
      %v155 = vld [vmem:[%s1 + $0x28] sm:$0xf]
      %v156 = vld [vmem:[%s1 + $0x2c] sm:$0xf]
      %v157 = vld [vmem:[%s1 + $0x30] sm:$0xf]
      %v158 = vld [vmem:[%s1 + $0x34] sm:$0xf]
      %v159 = vld [vmem:[%s1 + $0x38] sm:$0xf]
      %v160 = vld [vmem:[%s1 + $0x3c] sm:$0xf]
      %v161 = vld [vmem:[%s1 + $0x40] sm:$0xf]
      %v162 = vld [vmem:[%s1 + $0x44] sm:$0xf]
      %v163 = vld [vmem:[%s1 + $0x48] sm:$0xf]
      %v164 = vld [vmem:[%s1 + $0x4c] sm:$0xf]
      %v165 = vld [vmem:[%s1 + $0x50] sm:$0xf]
      %v166 = vld [vmem:[%s1 + $0x54] sm:$0xf]
      %v167 = vld [vmem:[%s1 + $0x58] sm:$0xf]
      %v168 = vld [vmem:[%s1 + $0x5c] sm:$0xf]
      %v169 = vld [vmem:[%s1 + $0x60] sm:$0xf]
      %v170 = vld [vmem:[%s1 + $0x64] sm:$0xf]
      %v171 = vld [vmem:[%s1 + $0x68] sm:$0xf]
      %v172 = vld [vmem:[%s1 + $0x6c] sm:$0x1]
      loop: start=0, step=1, limit=109
      $region29: #{cnn_forward.14} parent=27 // loop_pre_header
        _
      $region30: #{cnn_forward.14} parent=27 // loop_header
        %s174 = sphi 0, %s178
        %p175 = scmp.ge.s32.totalorder %s174, 109
      $region31: #{cnn_forward.14} parent=27 // loop_header_branch
        %177 = sbr.rel (%p175) target = $region35
      $region32: #{cnn_forward.14} parent=27 // loop_body
        %s179 = smul.u32 %s174, 2
        %s180 = smul.u32 %s179, 8
        %s181 = smul.addr %s180, 4
        %s182 = scalar_lea.vmem %s138, %s181
        %v183 = vld [vmem:[%s182] sm:$0xff]
        %v184 = vld [vmem:[%s182 + $0x8] sm:$0xff]
        %v185 = vld [vmem:[%s182 + $0x10] sm:$0xff]
        %v186 = vld [vmem:[%s182 + $0x18] sm:$0xff]
        %s187 = sadd.s32 %s179, 1
        %s188 = smul.u32 %s187, 8
        %s189 = smul.addr %s188, 4
        %s190 = scalar_lea.vmem %s138, %s189
        %v191 = vld [vmem:[%s190] sm:$0xff]
        %v192 = vld [vmem:[%s190 + $0x8] sm:$0xff]
        %v193 = vld [vmem:[%s190 + $0x10] sm:$0xff]
        %v194 = vld [vmem:[%s190 + $0x18] sm:$0xff]
        %v195 = vmax.bf16 %v183, %v191
        %v196 = vmax.bf16 %v184, %v192
        %v197 = vmax.bf16 %v185, %v193
        %v198 = vmax.bf16 %v186, %v194
        %s199 = sadd.s32 %s179, 2
        %s200 = smul.u32 %s199, 8
        %s201 = smul.addr %s200, 4
        %s202 = scalar_lea.vmem %s138, %s201
        %v203 = vld [vmem:[%s202] sm:$0xff]
        %v204 = vld [vmem:[%s202 + $0x8] sm:$0xff]
        %v205 = vld [vmem:[%s202 + $0x10] sm:$0xff]
        %v206 = vld [vmem:[%s202 + $0x18] sm:$0xff]
        %v207 = vmax.bf16 %v195, %v203
        %v208 = vmax.bf16 %v196, %v204
        %v209 = vmax.bf16 %v197, %v205
        %v210 = vmax.bf16 %v198, %v206
        %215 = vrot.lane.b32.xlu0 %v207, 127
        %v216 = vpop.permute.xlu0 %215
        %217 = vrot.lane.b32.xlu0 %v208, 127
        %v218 = vpop.permute.xlu0 %217
        %219 = vrot.lane.b32.xlu0 %v209, 127
        %v220 = vpop.permute.xlu0 %219
        %221 = vrot.lane.b32.xlu0 %v210, 127
        %v222 = vpop.permute.xlu0 %221
        %v223 = vrot.slane %v216, 4
        %v224 = vrot.slane %v218, 4
        %v225 = vrot.slane %v220, 4
        %v226 = vrot.slane %v222, 4
        %vm227 = vcmask 1039360
        %v228 = vsel %vm227, %v216, %v223
        %v229 = vsel %vm227, %v218, %v224
        %v230 = vsel %vm227, %v220, %v225
        %v231 = vsel %vm227, %v222, %v226
        %v236 = vmax.bf16 %v207, %v228
        %v237 = vmax.bf16 %v208, %v229
        %v238 = vmax.bf16 %v209, %v230
        %v239 = vmax.bf16 %v210, %v231
        %240 = vrot.lane.b32.xlu0 %v207, 126
        %v241 = vpop.permute.xlu0 %240
        %242 = vrot.lane.b32.xlu0 %v208, 126
        %v243 = vpop.permute.xlu0 %242
        %244 = vrot.lane.b32.xlu0 %v209, 126
        %v245 = vpop.permute.xlu0 %244
        %246 = vrot.lane.b32.xlu0 %v210, 126
        %v247 = vpop.permute.xlu0 %246
        %v248 = vrot.slane %v241, 4
        %v249 = vrot.slane %v243, 4
        %v250 = vrot.slane %v245, 4
        %v251 = vrot.slane %v247, 4
        %vm252 = vcmask 1031168
        %v253 = vsel %vm252, %v241, %v248
        %v254 = vsel %vm252, %v243, %v249
        %v255 = vsel %vm252, %v245, %v250
        %v256 = vsel %vm252, %v247, %v251
        %v261 = vmax.bf16 %v236, %v253
        %v262 = vmax.bf16 %v237, %v254
        %v263 = vmax.bf16 %v238, %v255
        %v264 = vmax.bf16 %v239, %v256
        %v269 = vunpack.c.l.b16 %v261
        %v270 = vunpack.c.h.b16 %v261
        %v271 = vunpack.c.l.b16 %v262
        %v272 = vunpack.c.h.b16 %v262
        %v273 = vunpack.c.l.b16 %v263
        %v274 = vunpack.c.h.b16 %v263
        %v275 = vunpack.c.l.b16 %v264
        %v276 = vunpack.c.h.b16 %v264
        %v277 = vpack.c.b16 %v271, %v269
        %v278 = vpack.c.b16 %v272, %v270
        %v279 = vpack.c.b16 %v275, %v273
        %v280 = vpack.c.b16 %v276, %v274
        %v311 = vunpack.c.l.b16 %v145
        %v312 = vunpack.c.l.b16 %v146
        %v313 = vunpack.c.l.b16 %v147
        %v314 = vunpack.c.l.b16 %v148
        %v315 = vunpack.c.l.b16 %v149
        %v316 = vunpack.c.l.b16 %v150
        %v317 = vunpack.c.l.b16 %v151
        %v318 = vunpack.c.l.b16 %v152
        %v319 = vunpack.c.l.b16 %v153
        %v320 = vunpack.c.l.b16 %v154
        %v321 = vunpack.c.l.b16 %v155
        %v322 = vunpack.c.l.b16 %v156
        %v323 = vunpack.c.l.b16 %v157
        %v324 = vunpack.c.l.b16 %v158
        %v325 = vunpack.c.l.b16 %v159
        %v326 = vunpack.c.l.b16 %v160
        %v327 = vunpack.c.l.b16 %v161
        %v328 = vunpack.c.l.b16 %v162
        %v329 = vunpack.c.l.b16 %v163
        %v330 = vunpack.c.l.b16 %v164
        %v331 = vunpack.c.l.b16 %v165
        %v332 = vunpack.c.l.b16 %v166
        %v333 = vunpack.c.l.b16 %v167
        %v334 = vunpack.c.l.b16 %v168
        %v335 = vunpack.c.l.b16 %v169
        %v336 = vunpack.c.l.b16 %v170
        %v337 = vunpack.c.l.b16 %v171
        %v338 = vunpack.c.l.b16 %v172
        %v339 = vpack.c.b16 %v312, %v311
        %v340 = vpack.c.b16 %v314, %v313
        %v341 = vpack.c.b16 %v316, %v315
        %v342 = vpack.c.b16 %v318, %v317
        %v343 = vpack.c.b16 %v320, %v319
        %v344 = vpack.c.b16 %v322, %v321
        %v345 = vpack.c.b16 %v324, %v323
        %v346 = vpack.c.b16 %v326, %v325
        %v347 = vpack.c.b16 %v328, %v327
        %v348 = vpack.c.b16 %v330, %v329
        %v349 = vpack.c.b16 %v332, %v331
        %v350 = vpack.c.b16 %v334, %v333
        %v351 = vpack.c.b16 %v336, %v335
        %v352 = vpack.c.b16 %v338, %v337
        %vm366 = vcmask 736256
        %v368 = vsel %vm366, %v278, 0
        %v371 = vsel %vm366, %v280, 0
        %vm373 = vcmask 1044480
        %v375 = vsel %vm373, %v352, 0
        %377 = vmatprep.subr.bf16.mxu0 0
        %378 = vmatpush1.bf16.msra.mxu0 %v339
        %379 = vmatprep.subr.bf16.mxu0 0
        %380 = vmatpush1.bf16.msra.mxu0 %v340
        %381 = vmatprep.subr.bf16.mxu0 0
        %382 = vmatpush1.bf16.msra.mxu0 %v341
        %383 = vmatprep.subr.bf16.mxu0 0
        %384 = vmatpush1.bf16.msra.mxu0 %v342
        %385 = vmatprep.subr.bf16.mxu0 0
        %386 = vmatpush1.bf16.msra.mxu0 %v343
        %387 = vmatprep.subr.bf16.mxu0 0
        %388 = vmatpush1.bf16.msra.mxu0 %v344
        %389 = vmatprep.subr.bf16.mxu0 0
        %390 = vmatpush1.bf16.msra.mxu0 %v345
        %391 = vmatprep.subr.bf16.mxu0 0
        %392 = vmatpush1.bf16.msra.mxu0 %v346
        %393 = vmatprep.subr.bf16.mxu0 0
        %394 = vmatpush1.bf16.msra.mxu0 %v347
        %395 = vmatprep.subr.bf16.mxu0 0
        %396 = vmatpush1.bf16.msra.mxu0 %v348
        %397 = vmatprep.subr.bf16.mxu0 0
        %398 = vmatpush1.bf16.msra.mxu0 %v349
        %399 = vmatprep.subr.bf16.mxu0 0
        %400 = vmatpush1.bf16.msra.mxu0 %v350
        %401 = vmatprep.subr.bf16.mxu0 0
        %402 = vmatpush1.bf16.msra.mxu0 %v351
        %403 = vmatprep.subr.bf16.mxu0 0
        %404 = vmatpush1.bf16.msra.mxu0 %v375
        %405 = vmatprep.subr.bf16.mxu0 0
        %406 = vmatpush1.bf16.msra.mxu0 0
        %407 = vmatprep.subr.bf16.mxu0 0
        %408 = vmatpush1.bf16.msra.mxu0 0
        %409 = vmatprep.mubr.bf16.mxu0 %v368
        %410 = vmatmul.mubr.bf16.gmra.mrb[0].mxu0 %v277
        %v411 = vpop.f32.mrb[0].mxu0
        %v412 = vadd.f32 0.0, %v411
        %v413 = vpop.f32.mrb[0].mxu0
        %v414 = vpop.f32.mrb[0].mxu0
        %v415 = vadd.f32 0.0, %v414
        %v416 = vpop.f32.mrb[0].mxu0
        %417 = vmatprep.mubr.bf16.mxu0 %v371
        %418 = vmatmul.mubr.bf16.gmra.mrb[0].mxu0 %v279
        %v419 = vpop.f32.mrb[0].mxu0
        %v420 = vadd.f32 0.0, %v419
        %v421 = vpop.f32.mrb[0].mxu0
        %v422 = vpop.f32.mrb[0].mxu0
        %v423 = vadd.f32 0.0, %v422
        %v424 = vpop.f32.mrb[0].mxu0
        %425 = vdwg.mxu0
        %v426 = vpack.c.bf16 %v415, %v412
        %v427 = vpack.c.bf16 %v423, %v420
        %v430 = vunpack.c.l.b16 %v426
        %v431 = vunpack.c.h.b16 %v426
        %v432 = vunpack.c.l.b16 %v427
        %v433 = vunpack.c.h.b16 %v427
        %v434 = vpack.c.b16 %v430, %v430
        %v435 = vpack.c.b16 %v431, %v431
        %v436 = vpack.c.b16 %v432, %v432
        %v437 = vpack.c.b16 %v433, %v433
        %s442 = smul.u32 %s174, 4
        %s443 = smul.addr %s442, 4
        %s444 = scalar_lea.vmem %s143, %s443
        %vm445 = vcmask 887808
        %446 = vst.msk [vmem:[%s444] sm:$0xf] %vm445, %v434
        %447 = vst.msk [vmem:[%s444 + $0x4] sm:$0xf] %vm445, %v435
        %448 = vst.msk [vmem:[%s444 + $0x8] sm:$0xf] %vm445, %v436
        %449 = vst.msk [vmem:[%s444 + $0xc] sm:$0xf] %vm445, %v437
      $region33: #{cnn_forward.14} parent=27 // loop_footer
        %s178 = sadd.s32 1, %s174
      $region34: #{cnn_forward.14} parent=27 // loop_footer_branch
        %173 = sbr.rel target = $region30
      $region35: #{cnn_forward.14} parent=27 // loop_exit
        _
      %p450 = scmp.lt.s32.totalorder %s13, 1
      %s451 = scalar_select %p450, %s13, 1
      %s452 = smul.addr %s451, 436
      %s453 = smul.addr %s452, 4
      %s454 = scalar_lea.vmem %s2, %s453
      // Predicated region
      $region36: #{cnn_forward.14} parent=27 // pred_check
        %p455 = pneg %p78
      $region37: #{cnn_forward.14} parent=27 // pred_check_branch
        %457 = sbr.rel (%p455) target = $region39
      $region38: #{cnn_forward.14} parent=27 // pred_region
        _
      $region39: #{cnn_forward.14} parent=27 // pred_fallthru
        _
    $region28: #{cnn_forward.14} parent=5 // pred_fallthru
      _
    %p458 = scmp.le.s32.totalorder 2, %s8
    // Predicated region
    $region40: #{cnn_forward.14} parent=5 // pred_check
      %p459 = pneg %p458
    $region41: #{cnn_forward.14} parent=5 // pred_check_branch
      %461 = sbr.rel (%p459) target = $region43
    $region42: #{cnn_forward.14} parent=5 // pred_region
      %s462 = ssub.s32 %s8, 2
      // Predicated region
      $region44: #{cnn_forward.14} parent=42 // pred_check
        %p463 = pneg %p84
      $region45: #{cnn_forward.14} parent=42 // pred_check_branch
        %465 = sbr.rel (%p463) target = $region47
      $region46: #{cnn_forward.14} parent=42 // pred_region
        %p466 = scmp.lt.s32.totalorder %s14, 1
        %s467 = scalar_select %p466, %s14, 1
        %s468 = smul.addr %s467, 436
        %s469 = smul.addr %s468, 4
        %s470 = scalar_lea.vmem %s2, %s469
      $region47: #{cnn_forward.14} parent=42 // pred_fallthru
        _
    $region43: #{cnn_forward.14} parent=5 // pred_fallthru
      _
  $region6: #{cnn_forward.14} parent=0 // loop_footer
    %s12 = sadd.s32 1, %s8
  $region7: #{cnn_forward.14} parent=0 // loop_footer_branch
    %7 = sbr.rel target = $region3
  $region8: #{cnn_forward.14} parent=0 // loop_exit
    _

// kernel: cnn_forward.15
$region0: #{cnn_forward.15}
  #allocation0 [shape = 'u32[]', space=smem, size = 0x4, offset = 0x4, fixed_abs, tag = 'smem constant byte address 0x4 - core index']
  #allocation1 [shape = 'u32[144,128]{1,0:T(1,128)}', space=vmem, size = 0x12000, scoped, tag = 'internal scratch']
  %s0 = inlined_call_operand.vmem [shape: bf16[2,109,32,109], index: 0, kind: input, shape index: {}]
  %s1 = inlined_call_operand.vmem [shape: bf16[32,288], index: 1, kind: input, shape index: {}]
  %s2 = inlined_call_operand.vmem [shape: f32[32,1], index: 2, kind: input, shape index: {}]
  %s3 = inlined_call_operand.vmem [shape: bf16[2,107,32,107], index: 3, kind: output, shape index: {}]
  %s4 = sld [smem:[#allocation0]]
  $region52: #{cnn_forward.15} parent=0
    _
  %s6 = ssub.s32 1, %s4
  %s7 = scalar_select 0, %s6, %s4
  loop: start=0, step=1, limit=4
  $region2: #{cnn_forward.15} parent=0 // loop_pre_header
    _
  $region3: #{cnn_forward.15} parent=0 // loop_header
    %s9 = sphi 0, %s13
    %p10 = scmp.ge.s32.totalorder %s9, 4
    %s16 = sphi 0, %s28
    %s17 = sphi 0, %s24
    %s18 = sphi 0, %s16
    %s19 = sphi 0, %s17
    %s20 = sphi 0, %s18
    %s21 = sphi 0, %s19
    %s31 = sphi 0, %s33
    %s34 = sphi 0, %s31
    %s35 = sphi 0, %s34
    %s51 = sphi 0, %s35
    %s55 = sphi 0, %s55
    %s57 = sphi 0, %s55
    %s58 = sphi 0, %s57
    %s72 = sphi 0, %s58
    %s76 = sphi 0, %s76
    %s78 = sphi 0, %s76
    %s79 = sphi 0, %s78
    %s93 = sphi 0, %s79
    %s101 = sphi 0, %s103
    %s104 = sphi 0, %s101
    %s105 = sphi 0, %s104
    %s121 = sphi 0, %s105
  $region4: #{cnn_forward.15} parent=0 // loop_header_branch
    %12 = sbr.rel (%p10) target = $region8
  $region5: #{cnn_forward.15} parent=0 // loop_body
    %s14 = ssub.s32 %s9, 1
    %s15 = ssub.s32 %s9, 2
    %s22 = sadd.s32 1, %s17
    %p23 = scmp.ge.s32.totalorder %s22, 1
    %s24 = scalar_select %p23, 0, %s22
    %s25 = sadd.s32 1, %s16
    %s26 = scalar_select %p23, %s25, %s16
    %p27 = scmp.ge.s32.totalorder %s26, 2
    %s28 = scalar_select %p27, 0, %s26
    %s29 = ssub.s32 %s16, %s28
    %p30 = scmp.eq.s32.totalorder %s29, 0
    %s32 = sadd.s32 %s31, 1
    %s33 = scalar_select %p30, %s31, %s32
    %p36 = pneg %p30
    %p37 = scmp.eq.s32.totalorder %s9, 1
    %p38 = por %p36, %p37
    %p39 = scmp.ne.s32.totalorder %s31, %s34
    %p40 = scmp.eq.s32.totalorder %s9, 0
    %p41 = por %p39, %p40
    %p42 = scmp.ne.s32.totalorder %s31, %s34
    %p43 = scmp.eq.s32.totalorder %s14, 1
    %p44 = por %p42, %p43
    %p45 = scmp.ne.s32.totalorder %s34, %s35
    %p46 = scmp.eq.s32.totalorder %s14, 0
    %p47 = por %p45, %p46
    %p48 = scmp.ne.s32.totalorder %s34, %s35
    %p49 = scmp.eq.s32.totalorder %s15, 1
    %p50 = por %p48, %p49
    %p52 = scmp.ne.s32.totalorder %s35, %s51
    %p53 = scmp.eq.s32.totalorder %s15, 0
    %p54 = por %p52, %p53
    %s56 = sadd.s32 %s55, 1
    %p59 = scmp.eq.s32.totalorder %s9, 1
    %p60 = scmp.ne.s32.totalorder %s55, %s57
    %p61 = scmp.eq.s32.totalorder %s9, 0
    %p62 = por %p60, %p61
    %p63 = scmp.ne.s32.totalorder %s55, %s57
    %p64 = scmp.eq.s32.totalorder %s14, 1
    %p65 = por %p63, %p64
    %p66 = scmp.ne.s32.totalorder %s57, %s58
    %p67 = scmp.eq.s32.totalorder %s14, 0
    %p68 = por %p66, %p67
    %p69 = scmp.ne.s32.totalorder %s57, %s58
    %p70 = scmp.eq.s32.totalorder %s15, 1
    %p71 = por %p69, %p70
    %p73 = scmp.ne.s32.totalorder %s58, %s72
    %p74 = scmp.eq.s32.totalorder %s15, 0
    %p75 = por %p73, %p74
    %s77 = sadd.s32 %s76, 1
    %p80 = scmp.eq.s32.totalorder %s9, 1
    %p81 = scmp.ne.s32.totalorder %s76, %s78
    %p82 = scmp.eq.s32.totalorder %s9, 0
    %p83 = por %p81, %p82
    %p84 = scmp.ne.s32.totalorder %s76, %s78
    %p85 = scmp.eq.s32.totalorder %s14, 1
    %p86 = por %p84, %p85
    %p87 = scmp.ne.s32.totalorder %s78, %s79
    %p88 = scmp.eq.s32.totalorder %s14, 0
    %p89 = por %p87, %p88
    %p90 = scmp.ne.s32.totalorder %s78, %s79
    %p91 = scmp.eq.s32.totalorder %s15, 1
    %p92 = por %p90, %p91
    %p94 = scmp.ne.s32.totalorder %s79, %s93
    %p95 = scmp.eq.s32.totalorder %s15, 0
    %p96 = por %p94, %p95
    %s97 = ssub.s32 %s16, %s28
    %s98 = ssub.s32 %s17, %s24
    %s99 = sor.u32 %s97, %s98
    %p100 = scmp.eq.s32.totalorder %s99, 0
    %s102 = sadd.s32 %s101, 1
    %s103 = scalar_select %p100, %s101, %s102
    %p106 = pneg %p100
    %p107 = scmp.eq.s32.totalorder %s9, 1
    %p108 = por %p106, %p107
    %p109 = scmp.ne.s32.totalorder %s101, %s104
    %p110 = scmp.eq.s32.totalorder %s9, 0
    %p111 = por %p109, %p110
    %p112 = scmp.ne.s32.totalorder %s101, %s104
    %p113 = scmp.eq.s32.totalorder %s14, 1
    %p114 = por %p112, %p113
    %p115 = scmp.ne.s32.totalorder %s104, %s105
    %p116 = scmp.eq.s32.totalorder %s14, 0
    %p117 = por %p115, %p116
    %p118 = scmp.ne.s32.totalorder %s104, %s105
    %p119 = scmp.eq.s32.totalorder %s15, 1
    %p120 = por %p118, %p119
    %p122 = scmp.ne.s32.totalorder %s105, %s121
    %p123 = scmp.eq.s32.totalorder %s15, 0
    %p124 = por %p122, %p123
    %p125 = scmp.le.s32.totalorder 1, %s9
    %p126 = scmp.lt.s32.totalorder %s9, 3
    %p127 = pnand %p125, %p126
    %p128 = pneg %p127
    // Predicated region
    $region9: #{cnn_forward.15} parent=5 // pred_check
      _
    $region10: #{cnn_forward.15} parent=5 // pred_check_branch
      %130 = sbr.rel (%p127) target = $region12
    $region11: #{cnn_forward.15} parent=5 // pred_region
      %s131 = ssub.s32 %s9, 1
      // Predicated region
      $region13: #{cnn_forward.15} parent=11 // pred_check
        %p132 = pneg %p68
      $region14: #{cnn_forward.15} parent=11 // pred_check_branch
        %134 = sbr.rel (%p132) target = $region16
      $region15: #{cnn_forward.15} parent=11 // pred_region
        _
      $region16: #{cnn_forward.15} parent=11 // pred_fallthru
        _
      // Predicated region
      $region17: #{cnn_forward.15} parent=11 // pred_check
        %p135 = pneg %p89
      $region18: #{cnn_forward.15} parent=11 // pred_check_branch
        %137 = sbr.rel (%p135) target = $region20
      $region19: #{cnn_forward.15} parent=11 // pred_region
        _
      $region20: #{cnn_forward.15} parent=11 // pred_fallthru
        _
    $region12: #{cnn_forward.15} parent=5 // pred_fallthru
      _
    %p138 = scmp.lt.s32.totalorder %s9, 2
    // Predicated region
    $region21: #{cnn_forward.15} parent=5 // pred_check
      %p139 = pneg %p138
    $region22: #{cnn_forward.15} parent=5 // pred_check_branch
      %141 = sbr.rel (%p139) target = $region24
    $region23: #{cnn_forward.15} parent=5 // pred_region
      // Predicated region
      $region25: #{cnn_forward.15} parent=23 // pred_check
        %p142 = pneg %p41
      $region26: #{cnn_forward.15} parent=23 // pred_check_branch
        %144 = sbr.rel (%p142) target = $region28
      $region27: #{cnn_forward.15} parent=23 // pred_region
        %p145 = scmp.lt.s32.totalorder %s16, 1
        %s146 = scalar_select %p145, %s16, 1
        %s147 = smul.addr %s146, 436
        %s148 = smul.addr %s147, 4
        %s149 = scalar_lea.vmem %s0, %s148
      $region28: #{cnn_forward.15} parent=23 // pred_fallthru
        _
    $region24: #{cnn_forward.15} parent=5 // pred_fallthru
      _
    %p150 = scmp.le.s32.totalorder 1, %s9
    %p151 = scmp.lt.s32.totalorder %s9, 3
    %p152 = pnand %p150, %p151
    %p153 = pneg %p152
    // Predicated region
    $region29: #{cnn_forward.15} parent=5 // pred_check
      _
    $region30: #{cnn_forward.15} parent=5 // pred_check_branch
      %155 = sbr.rel (%p152) target = $region32
    $region31: #{cnn_forward.15} parent=5 // pred_region
      %s156 = ssub.s32 %s9, 1
      %p157 = scmp.lt.s32.totalorder %s18, 1
      %s158 = scalar_select %p157, %s18, 1
      %s159 = smul.addr %s158, 436
      %s160 = smul.addr %s159, 4
      %s161 = scalar_lea.vmem %s0, %s160
      %p162 = pneg %p47
      %p163 = pneg %p44
      %p164 = pneg %p68
      %p165 = pneg %p65
      %p166 = pneg %p89
      %p167 = pneg %p86
      %p168 = pneg %p117
      %p169 = pneg %p114
      %s170 = smul.u32 107, %s19
      %p171 = scmp.lt.s32.totalorder %s18, 1
      %s172 = scalar_select %p171, %s18, 1
      %p173 = scmp.lt.s32.totalorder %s170, 106
      %s174 = scalar_select %p173, %s170, 106
      %s175 = smul.addr %s174, 4
      %s176 = smul.addr %s172, 428
      %s177 = sadd.s32 %s175, %s176
      %s178 = smul.addr %s177, 4
      %s179 = scalar_lea.vmem %s3, %s178
      %p180 = scmp.lt.s32.totalorder %s18, 1
      %s181 = scalar_select %p180, %s18, 1
      %s182 = smul.addr %s181, 436
      %s183 = smul.addr %s182, 4
      %s184 = scalar_lea.vmem %s0, %s183
      %s185 = smul.u32 107, %s19
      %p186 = scmp.lt.s32.totalorder %s18, 1
      %s187 = scalar_select %p186, %s18, 1
      %p188 = scmp.lt.s32.totalorder %s185, 106
      %s189 = scalar_select %p188, %s185, 106
      %s190 = smul.addr %s189, 4
      %s191 = smul.addr %s187, 428
      %s192 = sadd.s32 %s190, %s191
      %s193 = smul.addr %s192, 4
      %s194 = scalar_lea.vmem %s3, %s193
      %s195 = smul.u32 107, %s19
      %s197 = smul.u32 %s19, 107
      %v198 = vld [vmem:[%s2] sm:$0xff]
      %v199 = vld [vmem:[%s2 + $0x8] sm:$0xff]
      %v200 = vld [vmem:[%s2 + $0x10] sm:$0xff]
      %v201 = vld [vmem:[%s2 + $0x18] sm:$0xff]
      %203 = vset.pattern.permute.xlu0 0
      %204 = vperm.xlu0 %203, %v198
      %v205 = vpop.permute.xlu0 %204
      %208 = vset.pattern.permute.xlu0 0
      %209 = vperm.xlu0 %208, %v199
      %v210 = vpop.permute.xlu0 %209
      %213 = vset.pattern.permute.xlu0 0
      %214 = vperm.xlu0 %213, %v200
      %v215 = vpop.permute.xlu0 %214
      %218 = vset.pattern.permute.xlu0 0
      %219 = vperm.xlu0 %218, %v201
      %v220 = vpop.permute.xlu0 %219
      loop: start=0, step=1, limit=107
      $region33: #{cnn_forward.15} parent=31 // loop_pre_header
        _
      $region34: #{cnn_forward.15} parent=31 // loop_header
        %s223 = sphi 0, %s227
        %p224 = scmp.ge.s32.totalorder %s223, 107
      $region35: #{cnn_forward.15} parent=31 // loop_header_branch
        %226 = sbr.rel (%p224) target = $region39
      $region36: #{cnn_forward.15} parent=31 // loop_body
        %s228 = sadd.s32 %s197, %s223
        %s229 = smul.u32 %s228, 4
        %s230 = smul.addr %s229, 4
        %s231 = scalar_lea.vmem %s184, %s230
        %v232 = vld [vmem:[%s231] sm:$0xf]
        %v233 = vld [vmem:[%s231 + $0x4] sm:$0xf]
        %v234 = vld [vmem:[%s231 + $0x8] sm:$0xf]
        %v235 = vld [vmem:[%s231 + $0xc] sm:$0xf]
        %s236 = sadd.s32 %s228, 1
        %s237 = smul.u32 %s236, 4
        %s238 = smul.addr %s237, 4
        %s239 = scalar_lea.vmem %s184, %s238
        %v240 = vld [vmem:[%s239] sm:$0xf]
        %v241 = vld [vmem:[%s239 + $0x4] sm:$0xf]
        %v242 = vld [vmem:[%s239 + $0x8] sm:$0xf]
        %v243 = vld [vmem:[%s239 + $0xc] sm:$0xf]
        %s244 = sadd.s32 %s228, 2
        %s245 = smul.u32 %s244, 4
        %s246 = smul.addr %s245, 4
        %s247 = scalar_lea.vmem %s184, %s246
        %v248 = vld [vmem:[%s247] sm:$0xf]
        %v249 = vld [vmem:[%s247 + $0x4] sm:$0xf]
        %v250 = vld [vmem:[%s247 + $0x8] sm:$0xf]
        %v251 = vld [vmem:[%s247 + $0xc] sm:$0xf]
        %v256 = vunpack.c.l.b16 %v232
        %v257 = vunpack.c.l.b16 %v233
        %v258 = vunpack.c.l.b16 %v234
        %v259 = vunpack.c.l.b16 %v235
        %v260 = vpack.c.b16 %v257, %v256
        %v261 = vpack.c.b16 %v259, %v258
        %v268 = vunpack.c.l.b16 %v240
        %v269 = vunpack.c.l.b16 %v241
        %v270 = vunpack.c.l.b16 %v242
        %v271 = vunpack.c.l.b16 %v243
        %v272 = vpack.c.b16 %v269, %v268
        %v273 = vpack.c.b16 %v271, %v270
        %v280 = vunpack.c.l.b16 %v248
        %v281 = vunpack.c.l.b16 %v249
        %v282 = vunpack.c.l.b16 %v250
        %v283 = vunpack.c.l.b16 %v251
        %v284 = vpack.c.b16 %v281, %v280
        %v285 = vpack.c.b16 %v283, %v282
        %288 = vrot.lane.b32.xlu0 %v260, 127
        %v289 = vpop.permute.xlu0 %288
        %290 = vrot.lane.b32.xlu0 %v261, 127
        %v291 = vpop.permute.xlu0 %290
        %292 = vrot.lane.b32.xlu0 %v272, 127
        %v293 = vpop.permute.xlu0 %292
        %294 = vrot.lane.b32.xlu0 %v273, 127
        %v295 = vpop.permute.xlu0 %294
        %296 = vrot.lane.b32.xlu0 %v284, 127
        %v297 = vpop.permute.xlu0 %296
        %298 = vrot.lane.b32.xlu0 %v285, 127
        %v299 = vpop.permute.xlu0 %298
        %306 = vrot.lane.b32.xlu0 %v260, 126
        %v307 = vpop.permute.xlu0 %306
        %308 = vrot.lane.b32.xlu0 %v261, 126
        %v309 = vpop.permute.xlu0 %308
        %310 = vrot.lane.b32.xlu0 %v272, 126
        %v311 = vpop.permute.xlu0 %310
        %312 = vrot.lane.b32.xlu0 %v273, 126
        %v313 = vpop.permute.xlu0 %312
        %314 = vrot.lane.b32.xlu0 %v284, 126
        %v315 = vpop.permute.xlu0 %314
        %316 = vrot.lane.b32.xlu0 %v285, 126
        %v317 = vpop.permute.xlu0 %316
        %v324 = vld [vmem:[%s1] sm:$0xff]
        %v325 = vld [vmem:[%s1 + $0x8] sm:$0xf]
        %v326 = vld [vmem:[%s1 + $0xc] sm:$0xff]
        %v327 = vld [vmem:[%s1 + $0x14] sm:$0xf]
        %v328 = vld [vmem:[%s1 + $0x18] sm:$0xff]
        %v329 = vld [vmem:[%s1 + $0x20] sm:$0xf]
        %v330 = vld [vmem:[%s1 + $0x24] sm:$0xff]
        %v331 = vld [vmem:[%s1 + $0x2c] sm:$0xf]
        %v340 = vunpack.c.l.b16 %v324
        %v341 = vunpack.c.h.b16 %v324
        %v342 = vunpack.c.l.b16 %v325
        %v343 = vunpack.c.l.b16 %v326
        %v344 = vunpack.c.h.b16 %v326
        %v345 = vunpack.c.l.b16 %v327
        %v346 = vunpack.c.l.b16 %v328
        %v347 = vunpack.c.h.b16 %v328
        %v348 = vunpack.c.l.b16 %v329
        %v349 = vunpack.c.l.b16 %v330
        %v350 = vunpack.c.h.b16 %v330
        %v351 = vunpack.c.l.b16 %v331
        %v352 = vpack.c.b16 %v343, %v340
        %v353 = vpack.c.b16 %v344, %v341
        %v354 = vpack.c.b16 %v345, %v342
        %v355 = vpack.c.b16 %v349, %v346
        %v356 = vpack.c.b16 %v350, %v347
        %v357 = vpack.c.b16 %v351, %v348
        %vm362 = vcmask 261120
        %v364 = vsel %vm362, %v354, 0
        %v367 = vsel %vm362, %v357, 0
        %369 = vmatprep.subr.bf16.mxu0 0
        %370 = vmatpush1.bf16.msra.mxu0 %v260
        %371 = vmatprep.subr.bf16.mxu0 0
        %372 = vmatpush1.bf16.msra.mxu0 %v261
        %373 = vmatprep.subr.bf16.mxu0 0
        %374 = vmatpush1.bf16.msra.mxu0 %v272
        %375 = vmatprep.subr.bf16.mxu0 0
        %376 = vmatpush1.bf16.msra.mxu0 %v273
        %377 = vmatprep.subr.bf16.mxu0 0
        %378 = vmatpush1.bf16.msra.mxu0 %v284
        %379 = vmatprep.subr.bf16.mxu0 0
        %380 = vmatpush1.bf16.msra.mxu0 %v285
        %381 = vmatprep.subr.bf16.mxu0 0
        %382 = vmatpush1.bf16.msra.mxu0 %v289
        %383 = vmatprep.subr.bf16.mxu0 0
        %384 = vmatpush1.bf16.msra.mxu0 %v291
        %385 = vmatprep.subr.bf16.mxu0 0
        %386 = vmatpush1.bf16.msra.mxu0 %v293
        %387 = vmatprep.subr.bf16.mxu0 0
        %388 = vmatpush1.bf16.msra.mxu0 %v295
        %389 = vmatprep.subr.bf16.mxu0 0
        %390 = vmatpush1.bf16.msra.mxu0 %v297
        %391 = vmatprep.subr.bf16.mxu0 0
        %392 = vmatpush1.bf16.msra.mxu0 %v299
        %393 = vmatprep.subr.bf16.mxu0 0
        %394 = vmatpush1.bf16.msra.mxu0 %v307
        %395 = vmatprep.subr.bf16.mxu0 0
        %396 = vmatpush1.bf16.msra.mxu0 %v309
        %397 = vmatprep.subr.bf16.mxu0 0
        %398 = vmatpush1.bf16.msra.mxu0 %v311
        %399 = vmatprep.subr.bf16.mxu0 0
        %400 = vmatpush1.bf16.msra.mxu0 %v313
        %401 = vmatprep.mubr.bf16.mxu0 %v353
        %402 = vmatmul.mubr.bf16.gmra.mrb[0].mxu0 %v352
        %v403 = vpop.f32.mrb[0].mxu0
        %v404 = vadd.f32 %v205, %v403
        %v405 = vpop.f32.mrb[0].mxu0
        %v406 = vpop.f32.mrb[0].mxu0
        %v407 = vadd.f32 %v210, %v406
        %v408 = vpop.f32.mrb[0].mxu0
        %409 = vmatprep.mubr.bf16.mxu0 %v356
        %410 = vmatmul.mubr.bf16.gmra.mrb[0].mxu0 %v355
        %v411 = vpop.f32.mrb[0].mxu0
        %v412 = vadd.f32 %v215, %v411
        %v413 = vpop.f32.mrb[0].mxu0
        %v414 = vpop.f32.mrb[0].mxu0
        %v415 = vadd.f32 %v220, %v414
        %v416 = vpop.f32.mrb[0].mxu0
        %417 = vdwg.mxu0
        %418 = vmatprep.subr.bf16.mxu0 0
        %419 = vmatpush1.bf16.msra.mxu0 %v315
        %420 = vmatprep.subr.bf16.mxu0 0
        %421 = vmatpush1.bf16.msra.mxu0 %v317
        %422 = vmatprep.subr.bf16.mxu0 0
        %423 = vmatpush1.bf16.msra.mxu0 0
        %424 = vmatprep.subr.bf16.mxu0 0
        %425 = vmatpush1.bf16.msra.mxu0 0
        %426 = vmatprep.subr.bf16.mxu0 0
        %427 = vmatpush1.bf16.msra.mxu0 0
        %428 = vmatprep.subr.bf16.mxu0 0
        %429 = vmatpush1.bf16.msra.mxu0 0
        %430 = vmatprep.subr.bf16.mxu0 0
        %431 = vmatpush1.bf16.msra.mxu0 0
        %432 = vmatprep.subr.bf16.mxu0 0
        %433 = vmatpush1.bf16.msra.mxu0 0
        %434 = vmatprep.subr.bf16.mxu0 0
        %435 = vmatpush1.bf16.msra.mxu0 0
        %436 = vmatprep.subr.bf16.mxu0 0
        %437 = vmatpush1.bf16.msra.mxu0 0
        %438 = vmatprep.subr.bf16.mxu0 0
        %439 = vmatpush1.bf16.msra.mxu0 0
        %440 = vmatprep.subr.bf16.mxu0 0
        %441 = vmatpush1.bf16.msra.mxu0 0
        %442 = vmatprep.subr.bf16.mxu0 0
        %443 = vmatpush1.bf16.msra.mxu0 0
        %444 = vmatprep.subr.bf16.mxu0 0
        %445 = vmatpush1.bf16.msra.mxu0 0
        %446 = vmatprep.subr.bf16.mxu0 0
        %447 = vmatpush1.bf16.msra.mxu0 0
        %448 = vmatprep.subr.bf16.mxu0 0
        %449 = vmatpush1.bf16.msra.mxu0 0
        %450 = vmatprep.mubr.bf16.mxu0 0
        %451 = vmatmul.mubr.bf16.gmra.mrb[0].mxu0 %v364
        %v452 = vpop.f32.mrb[0].mxu0
        %v453 = vadd.f32 %v404, %v452
        %v454 = vpop.f32.mrb[0].mxu0
        %v455 = vpop.f32.mrb[0].mxu0
        %v456 = vadd.f32 %v407, %v455
        %v457 = vpop.f32.mrb[0].mxu0
        %458 = vmatprep.mubr.bf16.mxu0 0
        %459 = vmatmul.mubr.bf16.gmra.mrb[0].mxu0 %v367
        %v460 = vpop.f32.mrb[0].mxu0
        %v461 = vadd.f32 %v412, %v460
        %v462 = vpop.f32.mrb[0].mxu0
        %v463 = vpop.f32.mrb[0].mxu0
        %v464 = vadd.f32 %v415, %v463
        %v465 = vpop.f32.mrb[0].mxu0
        %466 = vdwg.mxu0
        %v467 = vmax.f32 %v453, 0.0
        %v468 = vmax.f32 %v456, 0.0
        %v469 = vmax.f32 %v461, 0.0
        %v470 = vmax.f32 %v464, 0.0
        %v471 = vpack.c.bf16 %v468, %v467
        %v472 = vpack.c.bf16 %v470, %v469
        %v475 = vunpack.c.l.b16 %v471
        %v476 = vunpack.c.h.b16 %v471
        %v477 = vunpack.c.l.b16 %v472
        %v478 = vunpack.c.h.b16 %v472
        %v479 = vpack.c.b16 %v475, %v475
        %v480 = vpack.c.b16 %v476, %v476
        %v481 = vpack.c.b16 %v477, %v477
        %v482 = vpack.c.b16 %v478, %v478
        %s487 = smul.u32 %s223, 4
        %s488 = smul.addr %s487, 4
        %s489 = scalar_lea.vmem %s194, %s488
        %vm490 = vcmask 871424
        %491 = vst.msk [vmem:[%s489] sm:$0xf] %vm490, %v479
        %492 = vst.msk [vmem:[%s489 + $0x4] sm:$0xf] %vm490, %v480
        %493 = vst.msk [vmem:[%s489 + $0x8] sm:$0xf] %vm490, %v481
        %494 = vst.msk [vmem:[%s489 + $0xc] sm:$0xf] %vm490, %v482
      $region37: #{cnn_forward.15} parent=31 // loop_footer
        %s227 = sadd.s32 1, %s223
      $region38: #{cnn_forward.15} parent=31 // loop_footer_branch
        %222 = sbr.rel target = $region34
      $region39: #{cnn_forward.15} parent=31 // loop_exit
        _
      %s495 = smul.u32 107, %s19
      %p496 = scmp.lt.s32.totalorder %s18, 1
      %s497 = scalar_select %p496, %s18, 1
      %p498 = scmp.lt.s32.totalorder %s495, 106
      %s499 = scalar_select %p498, %s495, 106
      %s500 = smul.addr %s499, 4
      %s501 = smul.addr %s497, 428
      %s502 = sadd.s32 %s500, %s501
      %s503 = smul.addr %s502, 4
      %s504 = scalar_lea.vmem %s3, %s503
      // Predicated region
      $region40: #{cnn_forward.15} parent=31 // pred_check
        %p505 = pneg %p114
      $region41: #{cnn_forward.15} parent=31 // pred_check_branch
        %507 = sbr.rel (%p505) target = $region43
      $region42: #{cnn_forward.15} parent=31 // pred_region
        %s508 = smul.u32 107, %s19
      $region43: #{cnn_forward.15} parent=31 // pred_fallthru
        _
    $region32: #{cnn_forward.15} parent=5 // pred_fallthru
      _
    %p509 = scmp.le.s32.totalorder 2, %s9
    // Predicated region
    $region44: #{cnn_forward.15} parent=5 // pred_check
      %p510 = pneg %p509
    $region45: #{cnn_forward.15} parent=5 // pred_check_branch
      %512 = sbr.rel (%p510) target = $region47
    $region46: #{cnn_forward.15} parent=5 // pred_region
      %s513 = ssub.s32 %s9, 2
      // Predicated region
      $region48: #{cnn_forward.15} parent=46 // pred_check
        %p514 = pneg %p120
      $region49: #{cnn_forward.15} parent=46 // pred_check_branch
        %516 = sbr.rel (%p514) target = $region51
      $region50: #{cnn_forward.15} parent=46 // pred_region
        %s517 = smul.u32 107, %s21
        %p518 = scmp.lt.s32.totalorder %s20, 1
        %s519 = scalar_select %p518, %s20, 1
        %p520 = scmp.lt.s32.totalorder %s517, 106
        %s521 = scalar_select %p520, %s517, 106
        %s522 = smul.addr %s521, 4
        %s523 = smul.addr %s519, 428
        %s524 = sadd.s32 %s522, %s523
        %s525 = smul.addr %s524, 4
        %s526 = scalar_lea.vmem %s3, %s525
      $region51: #{cnn_forward.15} parent=46 // pred_fallthru
        _
    $region47: #{cnn_forward.15} parent=5 // pred_fallthru
      _
  $region6: #{cnn_forward.15} parent=0 // loop_footer
    %s13 = sadd.s32 1, %s9
  $region7: #{cnn_forward.15} parent=0 // loop_footer_branch
    %8 = sbr.rel target = $region3
  $region8: #{cnn_forward.15} parent=0 // loop_exit
    _

// kernel: cnn_forward.16
$region0: #{cnn_forward.16}
  #allocation0 [shape = 'u32[]', space=smem, size = 0x4, offset = 0x4, fixed_abs, tag = 'smem constant byte address 0x4 - core index']
  #allocation1 [shape = 'u32[144,128]{1,0:T(1,128)}', space=vmem, size = 0x12000, scoped, tag = 'internal scratch']
  %s0 = inlined_call_operand.vmem [shape: bf16[2,107,32,107], index: 0, kind: input, shape index: {}]
  %s1 = inlined_call_operand.vmem [shape: bf16[105,53], index: 1, kind: input, shape index: {}]
  %s2 = inlined_call_operand.vmem [shape: bf16[2,53,32,53], index: 2, kind: output, shape index: {}]
  %s3 = sld [smem:[#allocation0]]
  $region48: #{cnn_forward.16} parent=0
    _
  %s5 = ssub.s32 1, %s3
  %s6 = scalar_select 0, %s5, %s3
  loop: start=0, step=1, limit=4
  $region2: #{cnn_forward.16} parent=0 // loop_pre_header
    _
  $region3: #{cnn_forward.16} parent=0 // loop_header
    %s8 = sphi 0, %s12
    %p9 = scmp.ge.s32.totalorder %s8, 4
    %s18 = sphi 0, %s20
    %s21 = sphi 0, %s18
    %s22 = sphi 0, %s21
    %s38 = sphi 0, %s22
    %s42 = sphi 0, %s42
    %s44 = sphi 0, %s42
    %s45 = sphi 0, %s44
    %s59 = sphi 0, %s45
    %s65 = sphi 0, %s67
    %s68 = sphi 0, %s65
    %s69 = sphi 0, %s68
    %s85 = sphi 0, %s69
  $region4: #{cnn_forward.16} parent=0 // loop_header_branch
    %11 = sbr.rel (%p9) target = $region8
  $region5: #{cnn_forward.16} parent=0 // loop_body
    %s13 = ssub.s32 %s8, 1
    %s14 = ssub.s32 %s8, 2
    %s15 = sadd.s32 %s8, 1
    %s16 = ssub.s32 %s8, %s15
    %p17 = scmp.eq.s32.totalorder %s16, 0
    %s19 = sadd.s32 %s18, 1
    %s20 = scalar_select %p17, %s18, %s19
    %p23 = pneg %p17
    %p24 = scmp.eq.s32.totalorder %s8, 1
    %p25 = por %p23, %p24
    %p26 = scmp.ne.s32.totalorder %s18, %s21
    %p27 = scmp.eq.s32.totalorder %s8, 0
    %p28 = por %p26, %p27
    %p29 = scmp.ne.s32.totalorder %s18, %s21
    %p30 = scmp.eq.s32.totalorder %s13, 1
    %p31 = por %p29, %p30
    %p32 = scmp.ne.s32.totalorder %s21, %s22
    %p33 = scmp.eq.s32.totalorder %s13, 0
    %p34 = por %p32, %p33
    %p35 = scmp.ne.s32.totalorder %s21, %s22
    %p36 = scmp.eq.s32.totalorder %s14, 1
    %p37 = por %p35, %p36
    %p39 = scmp.ne.s32.totalorder %s22, %s38
    %p40 = scmp.eq.s32.totalorder %s14, 0
    %p41 = por %p39, %p40
    %s43 = sadd.s32 %s42, 1
    %p46 = scmp.eq.s32.totalorder %s8, 1
    %p47 = scmp.ne.s32.totalorder %s42, %s44
    %p48 = scmp.eq.s32.totalorder %s8, 0
    %p49 = por %p47, %p48
    %p50 = scmp.ne.s32.totalorder %s42, %s44
    %p51 = scmp.eq.s32.totalorder %s13, 1
    %p52 = por %p50, %p51
    %p53 = scmp.ne.s32.totalorder %s44, %s45
    %p54 = scmp.eq.s32.totalorder %s13, 0
    %p55 = por %p53, %p54
    %p56 = scmp.ne.s32.totalorder %s44, %s45
    %p57 = scmp.eq.s32.totalorder %s14, 1
    %p58 = por %p56, %p57
    %p60 = scmp.ne.s32.totalorder %s45, %s59
    %p61 = scmp.eq.s32.totalorder %s14, 0
    %p62 = por %p60, %p61
    %s63 = ssub.s32 %s8, %s15
    %p64 = scmp.eq.s32.totalorder %s63, 0
    %s66 = sadd.s32 %s65, 1
    %s67 = scalar_select %p64, %s65, %s66
    %p70 = pneg %p64
    %p71 = scmp.eq.s32.totalorder %s8, 1
    %p72 = por %p70, %p71
    %p73 = scmp.ne.s32.totalorder %s65, %s68
    %p74 = scmp.eq.s32.totalorder %s8, 0
    %p75 = por %p73, %p74
    %p76 = scmp.ne.s32.totalorder %s65, %s68
    %p77 = scmp.eq.s32.totalorder %s13, 1
    %p78 = por %p76, %p77
    %p79 = scmp.ne.s32.totalorder %s68, %s69
    %p80 = scmp.eq.s32.totalorder %s13, 0
    %p81 = por %p79, %p80
    %p82 = scmp.ne.s32.totalorder %s68, %s69
    %p83 = scmp.eq.s32.totalorder %s14, 1
    %p84 = por %p82, %p83
    %p86 = scmp.ne.s32.totalorder %s69, %s85
    %p87 = scmp.eq.s32.totalorder %s14, 0
    %p88 = por %p86, %p87
    %p89 = scmp.le.s32.totalorder 1, %s8
    %p90 = scmp.lt.s32.totalorder %s8, 3
    %p91 = pnand %p89, %p90
    %p92 = pneg %p91
    // Predicated region
    $region9: #{cnn_forward.16} parent=5 // pred_check
      _
    $region10: #{cnn_forward.16} parent=5 // pred_check_branch
      %94 = sbr.rel (%p91) target = $region12
    $region11: #{cnn_forward.16} parent=5 // pred_region
      %s95 = ssub.s32 %s8, 1
      // Predicated region
      $region13: #{cnn_forward.16} parent=11 // pred_check
        %p96 = pneg %p55
      $region14: #{cnn_forward.16} parent=11 // pred_check_branch
        %98 = sbr.rel (%p96) target = $region16
      $region15: #{cnn_forward.16} parent=11 // pred_region
        _
      $region16: #{cnn_forward.16} parent=11 // pred_fallthru
        _
    $region12: #{cnn_forward.16} parent=5 // pred_fallthru
      _
    %p99 = scmp.lt.s32.totalorder %s8, 2
    // Predicated region
    $region17: #{cnn_forward.16} parent=5 // pred_check
      %p100 = pneg %p99
    $region18: #{cnn_forward.16} parent=5 // pred_check_branch
      %102 = sbr.rel (%p100) target = $region20
    $region19: #{cnn_forward.16} parent=5 // pred_region
      // Predicated region
      $region21: #{cnn_forward.16} parent=19 // pred_check
        %p103 = pneg %p28
      $region22: #{cnn_forward.16} parent=19 // pred_check_branch
        %105 = sbr.rel (%p103) target = $region24
      $region23: #{cnn_forward.16} parent=19 // pred_region
        %p106 = scmp.lt.s32.totalorder %s8, 1
        %s107 = scalar_select %p106, %s8, 1
        %s108 = smul.addr %s107, 428
        %s109 = smul.addr %s108, 4
        %s110 = scalar_lea.vmem %s0, %s109
      $region24: #{cnn_forward.16} parent=19 // pred_fallthru
        _
    $region20: #{cnn_forward.16} parent=5 // pred_fallthru
      _
    %p111 = scmp.le.s32.totalorder 1, %s8
    %p112 = scmp.lt.s32.totalorder %s8, 3
    %p113 = pnand %p111, %p112
    %p114 = pneg %p113
    // Predicated region
    $region25: #{cnn_forward.16} parent=5 // pred_check
      _
    $region26: #{cnn_forward.16} parent=5 // pred_check_branch
      %116 = sbr.rel (%p113) target = $region28
    $region27: #{cnn_forward.16} parent=5 // pred_region
      %s117 = ssub.s32 %s8, 1
      %p118 = scmp.lt.s32.totalorder %s13, 1
      %s119 = scalar_select %p118, %s13, 1
      %s120 = smul.addr %s119, 428
      %s121 = smul.addr %s120, 4
      %s122 = scalar_lea.vmem %s0, %s121
      %p123 = pneg %p34
      %p124 = pneg %p31
      %p125 = pneg %p55
      %p126 = pneg %p52
      %p127 = pneg %p81
      %p128 = pneg %p78
      %p129 = scmp.lt.s32.totalorder %s13, 1
      %s130 = scalar_select %p129, %s13, 1
      %s131 = smul.addr %s130, 212
      %s132 = smul.addr %s131, 4
      %s133 = scalar_lea.vmem %s2, %s132
      %p134 = scmp.lt.s32.totalorder %s13, 1
      %s135 = scalar_select %p134, %s13, 1
      %s136 = smul.addr %s135, 428
      %s137 = smul.addr %s136, 4
      %s138 = scalar_lea.vmem %s0, %s137
      %p139 = scmp.lt.s32.totalorder %s13, 1
      %s140 = scalar_select %p139, %s13, 1
      %s141 = smul.addr %s140, 212
      %s142 = smul.addr %s141, 4
      %s143 = scalar_lea.vmem %s2, %s142
      %v145 = vld [vmem:[%s1] sm:$0xf]
      %v146 = vld [vmem:[%s1 + $0x4] sm:$0xf]
      %v147 = vld [vmem:[%s1 + $0x8] sm:$0xf]
      %v148 = vld [vmem:[%s1 + $0xc] sm:$0xf]
      %v149 = vld [vmem:[%s1 + $0x10] sm:$0xf]
      %v150 = vld [vmem:[%s1 + $0x14] sm:$0xf]
      %v151 = vld [vmem:[%s1 + $0x18] sm:$0xf]
      %v152 = vld [vmem:[%s1 + $0x1c] sm:$0xf]
      %v153 = vld [vmem:[%s1 + $0x20] sm:$0xf]
      %v154 = vld [vmem:[%s1 + $0x24] sm:$0xf]
      %v155 = vld [vmem:[%s1 + $0x28] sm:$0xf]
      %v156 = vld [vmem:[%s1 + $0x2c] sm:$0xf]
      %v157 = vld [vmem:[%s1 + $0x30] sm:$0xf]
      %v158 = vld [vmem:[%s1 + $0x34] sm:$0x1]
      loop: start=0, step=1, limit=53
      $region29: #{cnn_forward.16} parent=27 // loop_pre_header
        _
      $region30: #{cnn_forward.16} parent=27 // loop_header
        %s160 = sphi 0, %s164
        %p161 = scmp.ge.s32.totalorder %s160, 53
      $region31: #{cnn_forward.16} parent=27 // loop_header_branch
        %163 = sbr.rel (%p161) target = $region35
      $region32: #{cnn_forward.16} parent=27 // loop_body
        %s165 = smul.u32 %s160, 2
        %s166 = smul.u32 %s165, 4
        %s167 = smul.addr %s166, 4
        %s168 = scalar_lea.vmem %s138, %s167
        %v169 = vld [vmem:[%s168] sm:$0xf]
        %v170 = vld [vmem:[%s168 + $0x4] sm:$0xf]
        %v171 = vld [vmem:[%s168 + $0x8] sm:$0xf]
        %v172 = vld [vmem:[%s168 + $0xc] sm:$0xf]
        %s173 = sadd.s32 %s165, 1
        %s174 = smul.u32 %s173, 4
        %s175 = smul.addr %s174, 4
        %s176 = scalar_lea.vmem %s138, %s175
        %v177 = vld [vmem:[%s176] sm:$0xf]
        %v178 = vld [vmem:[%s176 + $0x4] sm:$0xf]
        %v179 = vld [vmem:[%s176 + $0x8] sm:$0xf]
        %v180 = vld [vmem:[%s176 + $0xc] sm:$0xf]
        %v181 = vmax.bf16 %v169, %v177
        %v182 = vmax.bf16 %v170, %v178
        %v183 = vmax.bf16 %v171, %v179
        %v184 = vmax.bf16 %v172, %v180
        %s185 = sadd.s32 %s165, 2
        %s186 = smul.u32 %s185, 4
        %s187 = smul.addr %s186, 4
        %s188 = scalar_lea.vmem %s138, %s187
        %v189 = vld [vmem:[%s188] sm:$0xf]
        %v190 = vld [vmem:[%s188 + $0x4] sm:$0xf]
        %v191 = vld [vmem:[%s188 + $0x8] sm:$0xf]
        %v192 = vld [vmem:[%s188 + $0xc] sm:$0xf]
        %v193 = vmax.bf16 %v181, %v189
        %v194 = vmax.bf16 %v182, %v190
        %v195 = vmax.bf16 %v183, %v191
        %v196 = vmax.bf16 %v184, %v192
        %201 = vrot.lane.b32.xlu0 %v193, 127
        %v202 = vpop.permute.xlu0 %201
        %203 = vrot.lane.b32.xlu0 %v194, 127
        %v204 = vpop.permute.xlu0 %203
        %205 = vrot.lane.b32.xlu0 %v195, 127
        %v206 = vpop.permute.xlu0 %205
        %207 = vrot.lane.b32.xlu0 %v196, 127
        %v208 = vpop.permute.xlu0 %207
        %v213 = vmax.bf16 %v193, %v202
        %v214 = vmax.bf16 %v194, %v204
        %v215 = vmax.bf16 %v195, %v206
        %v216 = vmax.bf16 %v196, %v208
        %217 = vrot.lane.b32.xlu0 %v193, 126
        %v218 = vpop.permute.xlu0 %217
        %219 = vrot.lane.b32.xlu0 %v194, 126
        %v220 = vpop.permute.xlu0 %219
        %221 = vrot.lane.b32.xlu0 %v195, 126
        %v222 = vpop.permute.xlu0 %221
        %223 = vrot.lane.b32.xlu0 %v196, 126
        %v224 = vpop.permute.xlu0 %223
        %v229 = vmax.bf16 %v213, %v218
        %v230 = vmax.bf16 %v214, %v220
        %v231 = vmax.bf16 %v215, %v222
        %v232 = vmax.bf16 %v216, %v224
        %v237 = vunpack.c.l.b16 %v229
        %v238 = vunpack.c.l.b16 %v230
        %v239 = vunpack.c.l.b16 %v231
        %v240 = vunpack.c.l.b16 %v232
        %v241 = vpack.c.b16 %v238, %v237
        %v242 = vpack.c.b16 %v240, %v239
        %v257 = vunpack.c.l.b16 %v145
        %v258 = vunpack.c.l.b16 %v146
        %v259 = vunpack.c.l.b16 %v147
        %v260 = vunpack.c.l.b16 %v148
        %v261 = vunpack.c.l.b16 %v149
        %v262 = vunpack.c.l.b16 %v150
        %v263 = vunpack.c.l.b16 %v151
        %v264 = vunpack.c.l.b16 %v152
        %v265 = vunpack.c.l.b16 %v153
        %v266 = vunpack.c.l.b16 %v154
        %v267 = vunpack.c.l.b16 %v155
        %v268 = vunpack.c.l.b16 %v156
        %v269 = vunpack.c.l.b16 %v157
        %v270 = vunpack.c.l.b16 %v158
        %v271 = vpack.c.b16 %v258, %v257
        %v272 = vpack.c.b16 %v260, %v259
        %v273 = vpack.c.b16 %v262, %v261
        %v274 = vpack.c.b16 %v264, %v263
        %v275 = vpack.c.b16 %v266, %v265
        %v276 = vpack.c.b16 %v268, %v267
        %v277 = vpack.c.b16 %v270, %v269
        %vm284 = vcmask 859136
        %v286 = vsel %vm284, %v241, 0
        %v289 = vsel %vm284, %v242, 0
        %vm291 = vcmask 1043456
        %vm292 = vcmask 1044480
        %v293 = vsel %vm291, 4294967295, 65535
        %v294 = vsel %vm292, %v293, 0
        %v296 = vand.u32 %v277, %v294
        %298 = vmatprep.subr.bf16.mxu0 0
        %299 = vmatpush1.bf16.msra.mxu0 %v271
        %300 = vmatprep.subr.bf16.mxu0 0
        %301 = vmatpush1.bf16.msra.mxu0 %v272
        %302 = vmatprep.subr.bf16.mxu0 0
        %303 = vmatpush1.bf16.msra.mxu0 %v273
        %304 = vmatprep.subr.bf16.mxu0 0
        %305 = vmatpush1.bf16.msra.mxu0 %v274
        %306 = vmatprep.subr.bf16.mxu0 0
        %307 = vmatpush1.bf16.msra.mxu0 %v275
        %308 = vmatprep.subr.bf16.mxu0 0
        %309 = vmatpush1.bf16.msra.mxu0 %v276
        %310 = vmatprep.subr.bf16.mxu0 0
        %311 = vmatpush1.bf16.msra.mxu0 %v296
        %312 = vmatprep.subr.bf16.mxu0 0
        %313 = vmatpush1.bf16.msra.mxu0 0
        %314 = vmatprep.subr.bf16.mxu0 0
        %315 = vmatpush1.bf16.msra.mxu0 0
        %316 = vmatprep.subr.bf16.mxu0 0
        %317 = vmatpush1.bf16.msra.mxu0 0
        %318 = vmatprep.subr.bf16.mxu0 0
        %319 = vmatpush1.bf16.msra.mxu0 0
        %320 = vmatprep.subr.bf16.mxu0 0
        %321 = vmatpush1.bf16.msra.mxu0 0
        %322 = vmatprep.subr.bf16.mxu0 0
        %323 = vmatpush1.bf16.msra.mxu0 0
        %324 = vmatprep.subr.bf16.mxu0 0
        %325 = vmatpush1.bf16.msra.mxu0 0
        %326 = vmatprep.subr.bf16.mxu0 0
        %327 = vmatpush1.bf16.msra.mxu0 0
        %328 = vmatprep.subr.bf16.mxu0 0
        %329 = vmatpush1.bf16.msra.mxu0 0
        %330 = vmatprep.mubr.bf16.mxu0 0
        %331 = vmatmul.mubr.bf16.gmra.mrb[0].mxu0 %v286
        %v332 = vpop.f32.mrb[0].mxu0
        %v333 = vadd.f32 0.0, %v332
        %v334 = vpop.f32.mrb[0].mxu0
        %v335 = vpop.f32.mrb[0].mxu0
        %v336 = vadd.f32 0.0, %v335
        %v337 = vpop.f32.mrb[0].mxu0
        %338 = vmatprep.mubr.bf16.mxu0 0
        %339 = vmatmul.mubr.bf16.gmra.mrb[0].mxu0 %v289
        %v340 = vpop.f32.mrb[0].mxu0
        %v341 = vadd.f32 0.0, %v340
        %v342 = vpop.f32.mrb[0].mxu0
        %v343 = vpop.f32.mrb[0].mxu0
        %v344 = vadd.f32 0.0, %v343
        %v345 = vpop.f32.mrb[0].mxu0
        %346 = vdwg.mxu0
        %v347 = vpack.c.bf16 %v336, %v333
        %v348 = vpack.c.bf16 %v344, %v341
        %v351 = vunpack.c.l.b16 %v347
        %v352 = vunpack.c.h.b16 %v347
        %v353 = vunpack.c.l.b16 %v348
        %v354 = vunpack.c.h.b16 %v348
        %v355 = vpack.c.b16 %v351, %v351
        %v356 = vpack.c.b16 %v352, %v352
        %v357 = vpack.c.b16 %v353, %v353
        %v358 = vpack.c.b16 %v354, %v354
        %s363 = smul.u32 %s160, 4
        %s364 = smul.addr %s363, 4
        %s365 = scalar_lea.vmem %s143, %s364
        %vm366 = vcmask 429056
        %367 = vst.msk [vmem:[%s365] sm:$0xf] %vm366, %v355
        %368 = vst.msk [vmem:[%s365 + $0x4] sm:$0xf] %vm366, %v356
        %369 = vst.msk [vmem:[%s365 + $0x8] sm:$0xf] %vm366, %v357
        %370 = vst.msk [vmem:[%s365 + $0xc] sm:$0xf] %vm366, %v358
      $region33: #{cnn_forward.16} parent=27 // loop_footer
        %s164 = sadd.s32 1, %s160
      $region34: #{cnn_forward.16} parent=27 // loop_footer_branch
        %159 = sbr.rel target = $region30
      $region35: #{cnn_forward.16} parent=27 // loop_exit
        _
      %p371 = scmp.lt.s32.totalorder %s13, 1
      %s372 = scalar_select %p371, %s13, 1
      %s373 = smul.addr %s372, 212
      %s374 = smul.addr %s373, 4
      %s375 = scalar_lea.vmem %s2, %s374
      // Predicated region
      $region36: #{cnn_forward.16} parent=27 // pred_check
        %p376 = pneg %p78
      $region37: #{cnn_forward.16} parent=27 // pred_check_branch
        %378 = sbr.rel (%p376) target = $region39
      $region38: #{cnn_forward.16} parent=27 // pred_region
        _
      $region39: #{cnn_forward.16} parent=27 // pred_fallthru
        _
    $region28: #{cnn_forward.16} parent=5 // pred_fallthru
      _
    %p379 = scmp.le.s32.totalorder 2, %s8
    // Predicated region
    $region40: #{cnn_forward.16} parent=5 // pred_check
      %p380 = pneg %p379
    $region41: #{cnn_forward.16} parent=5 // pred_check_branch
      %382 = sbr.rel (%p380) target = $region43
    $region42: #{cnn_forward.16} parent=5 // pred_region
      %s383 = ssub.s32 %s8, 2
      // Predicated region
      $region44: #{cnn_forward.16} parent=42 // pred_check
        %p384 = pneg %p84
      $region45: #{cnn_forward.16} parent=42 // pred_check_branch
        %386 = sbr.rel (%p384) target = $region47
      $region46: #{cnn_forward.16} parent=42 // pred_region
        %p387 = scmp.lt.s32.totalorder %s14, 1
        %s388 = scalar_select %p387, %s14, 1
        %s389 = smul.addr %s388, 212
        %s390 = smul.addr %s389, 4
        %s391 = scalar_lea.vmem %s2, %s390
      $region47: #{cnn_forward.16} parent=42 // pred_fallthru
        _
    $region43: #{cnn_forward.16} parent=5 // pred_fallthru
      _
  $region6: #{cnn_forward.16} parent=0 // loop_footer
    %s12 = sadd.s32 1, %s8
  $region7: #{cnn_forward.16} parent=0 // loop_footer_branch
    %7 = sbr.rel target = $region3
  $region8: #{cnn_forward.16} parent=0 // loop_exit
    _

// kernel: cnn_forward.17
$region0: #{cnn_forward.17}
  #allocation0 [shape = 'u32[]', space=smem, size = 0x4, offset = 0x4, fixed_abs, tag = 'smem constant byte address 0x4 - core index']
  #allocation1 [shape = 'u32[144,128]{1,0:T(1,128)}', space=vmem, size = 0x12000, scoped, tag = 'internal scratch']
  %s0 = inlined_call_operand.vmem [shape: bf16[2,53,32,53], index: 0, kind: input, shape index: {}]
  %s1 = inlined_call_operand.vmem [shape: bf16[64,288], index: 1, kind: input, shape index: {}]
  %s2 = inlined_call_operand.vmem [shape: f32[64,1], index: 2, kind: input, shape index: {}]
  %s3 = inlined_call_operand.vmem [shape: bf16[2,51,64,51], index: 3, kind: output, shape index: {}]
  %s4 = sld [smem:[#allocation0]]
  $region52: #{cnn_forward.17} parent=0
    _
  %s6 = ssub.s32 1, %s4
  %s7 = scalar_select 0, %s6, %s4
  loop: start=0, step=1, limit=4
  $region2: #{cnn_forward.17} parent=0 // loop_pre_header
    _
  $region3: #{cnn_forward.17} parent=0 // loop_header
    %s9 = sphi 0, %s13
    %p10 = scmp.ge.s32.totalorder %s9, 4
    %s16 = sphi 0, %s28
    %s17 = sphi 0, %s24
    %s18 = sphi 0, %s16
    %s19 = sphi 0, %s17
    %s20 = sphi 0, %s18
    %s21 = sphi 0, %s19
    %s31 = sphi 0, %s33
    %s34 = sphi 0, %s31
    %s35 = sphi 0, %s34
    %s51 = sphi 0, %s35
    %s55 = sphi 0, %s55
    %s57 = sphi 0, %s55
    %s58 = sphi 0, %s57
    %s72 = sphi 0, %s58
    %s76 = sphi 0, %s76
    %s78 = sphi 0, %s76
    %s79 = sphi 0, %s78
    %s93 = sphi 0, %s79
    %s101 = sphi 0, %s103
    %s104 = sphi 0, %s101
    %s105 = sphi 0, %s104
    %s121 = sphi 0, %s105
  $region4: #{cnn_forward.17} parent=0 // loop_header_branch
    %12 = sbr.rel (%p10) target = $region8
  $region5: #{cnn_forward.17} parent=0 // loop_body
    %s14 = ssub.s32 %s9, 1
    %s15 = ssub.s32 %s9, 2
    %s22 = sadd.s32 1, %s17
    %p23 = scmp.ge.s32.totalorder %s22, 1
    %s24 = scalar_select %p23, 0, %s22
    %s25 = sadd.s32 1, %s16
    %s26 = scalar_select %p23, %s25, %s16
    %p27 = scmp.ge.s32.totalorder %s26, 2
    %s28 = scalar_select %p27, 0, %s26
    %s29 = ssub.s32 %s16, %s28
    %p30 = scmp.eq.s32.totalorder %s29, 0
    %s32 = sadd.s32 %s31, 1
    %s33 = scalar_select %p30, %s31, %s32
    %p36 = pneg %p30
    %p37 = scmp.eq.s32.totalorder %s9, 1
    %p38 = por %p36, %p37
    %p39 = scmp.ne.s32.totalorder %s31, %s34
    %p40 = scmp.eq.s32.totalorder %s9, 0
    %p41 = por %p39, %p40
    %p42 = scmp.ne.s32.totalorder %s31, %s34
    %p43 = scmp.eq.s32.totalorder %s14, 1
    %p44 = por %p42, %p43
    %p45 = scmp.ne.s32.totalorder %s34, %s35
    %p46 = scmp.eq.s32.totalorder %s14, 0
    %p47 = por %p45, %p46
    %p48 = scmp.ne.s32.totalorder %s34, %s35
    %p49 = scmp.eq.s32.totalorder %s15, 1
    %p50 = por %p48, %p49
    %p52 = scmp.ne.s32.totalorder %s35, %s51
    %p53 = scmp.eq.s32.totalorder %s15, 0
    %p54 = por %p52, %p53
    %s56 = sadd.s32 %s55, 1
    %p59 = scmp.eq.s32.totalorder %s9, 1
    %p60 = scmp.ne.s32.totalorder %s55, %s57
    %p61 = scmp.eq.s32.totalorder %s9, 0
    %p62 = por %p60, %p61
    %p63 = scmp.ne.s32.totalorder %s55, %s57
    %p64 = scmp.eq.s32.totalorder %s14, 1
    %p65 = por %p63, %p64
    %p66 = scmp.ne.s32.totalorder %s57, %s58
    %p67 = scmp.eq.s32.totalorder %s14, 0
    %p68 = por %p66, %p67
    %p69 = scmp.ne.s32.totalorder %s57, %s58
    %p70 = scmp.eq.s32.totalorder %s15, 1
    %p71 = por %p69, %p70
    %p73 = scmp.ne.s32.totalorder %s58, %s72
    %p74 = scmp.eq.s32.totalorder %s15, 0
    %p75 = por %p73, %p74
    %s77 = sadd.s32 %s76, 1
    %p80 = scmp.eq.s32.totalorder %s9, 1
    %p81 = scmp.ne.s32.totalorder %s76, %s78
    %p82 = scmp.eq.s32.totalorder %s9, 0
    %p83 = por %p81, %p82
    %p84 = scmp.ne.s32.totalorder %s76, %s78
    %p85 = scmp.eq.s32.totalorder %s14, 1
    %p86 = por %p84, %p85
    %p87 = scmp.ne.s32.totalorder %s78, %s79
    %p88 = scmp.eq.s32.totalorder %s14, 0
    %p89 = por %p87, %p88
    %p90 = scmp.ne.s32.totalorder %s78, %s79
    %p91 = scmp.eq.s32.totalorder %s15, 1
    %p92 = por %p90, %p91
    %p94 = scmp.ne.s32.totalorder %s79, %s93
    %p95 = scmp.eq.s32.totalorder %s15, 0
    %p96 = por %p94, %p95
    %s97 = ssub.s32 %s16, %s28
    %s98 = ssub.s32 %s17, %s24
    %s99 = sor.u32 %s97, %s98
    %p100 = scmp.eq.s32.totalorder %s99, 0
    %s102 = sadd.s32 %s101, 1
    %s103 = scalar_select %p100, %s101, %s102
    %p106 = pneg %p100
    %p107 = scmp.eq.s32.totalorder %s9, 1
    %p108 = por %p106, %p107
    %p109 = scmp.ne.s32.totalorder %s101, %s104
    %p110 = scmp.eq.s32.totalorder %s9, 0
    %p111 = por %p109, %p110
    %p112 = scmp.ne.s32.totalorder %s101, %s104
    %p113 = scmp.eq.s32.totalorder %s14, 1
    %p114 = por %p112, %p113
    %p115 = scmp.ne.s32.totalorder %s104, %s105
    %p116 = scmp.eq.s32.totalorder %s14, 0
    %p117 = por %p115, %p116
    %p118 = scmp.ne.s32.totalorder %s104, %s105
    %p119 = scmp.eq.s32.totalorder %s15, 1
    %p120 = por %p118, %p119
    %p122 = scmp.ne.s32.totalorder %s105, %s121
    %p123 = scmp.eq.s32.totalorder %s15, 0
    %p124 = por %p122, %p123
    %p125 = scmp.le.s32.totalorder 1, %s9
    %p126 = scmp.lt.s32.totalorder %s9, 3
    %p127 = pnand %p125, %p126
    %p128 = pneg %p127
    // Predicated region
    $region9: #{cnn_forward.17} parent=5 // pred_check
      _
    $region10: #{cnn_forward.17} parent=5 // pred_check_branch
      %130 = sbr.rel (%p127) target = $region12
    $region11: #{cnn_forward.17} parent=5 // pred_region
      %s131 = ssub.s32 %s9, 1
      // Predicated region
      $region13: #{cnn_forward.17} parent=11 // pred_check
        %p132 = pneg %p68
      $region14: #{cnn_forward.17} parent=11 // pred_check_branch
        %134 = sbr.rel (%p132) target = $region16
      $region15: #{cnn_forward.17} parent=11 // pred_region
        _
      $region16: #{cnn_forward.17} parent=11 // pred_fallthru
        _
      // Predicated region
      $region17: #{cnn_forward.17} parent=11 // pred_check
        %p135 = pneg %p89
      $region18: #{cnn_forward.17} parent=11 // pred_check_branch
        %137 = sbr.rel (%p135) target = $region20
      $region19: #{cnn_forward.17} parent=11 // pred_region
        _
      $region20: #{cnn_forward.17} parent=11 // pred_fallthru
        _
    $region12: #{cnn_forward.17} parent=5 // pred_fallthru
      _
    %p138 = scmp.lt.s32.totalorder %s9, 2
    // Predicated region
    $region21: #{cnn_forward.17} parent=5 // pred_check
      %p139 = pneg %p138
    $region22: #{cnn_forward.17} parent=5 // pred_check_branch
      %141 = sbr.rel (%p139) target = $region24
    $region23: #{cnn_forward.17} parent=5 // pred_region
      // Predicated region
      $region25: #{cnn_forward.17} parent=23 // pred_check
        %p142 = pneg %p41
      $region26: #{cnn_forward.17} parent=23 // pred_check_branch
        %144 = sbr.rel (%p142) target = $region28
      $region27: #{cnn_forward.17} parent=23 // pred_region
        %p145 = scmp.lt.s32.totalorder %s16, 1
        %s146 = scalar_select %p145, %s16, 1
        %s147 = smul.addr %s146, 212
        %s148 = smul.addr %s147, 4
        %s149 = scalar_lea.vmem %s0, %s148
      $region28: #{cnn_forward.17} parent=23 // pred_fallthru
        _
    $region24: #{cnn_forward.17} parent=5 // pred_fallthru
      _
    %p150 = scmp.le.s32.totalorder 1, %s9
    %p151 = scmp.lt.s32.totalorder %s9, 3
    %p152 = pnand %p150, %p151
    %p153 = pneg %p152
    // Predicated region
    $region29: #{cnn_forward.17} parent=5 // pred_check
      _
    $region30: #{cnn_forward.17} parent=5 // pred_check_branch
      %155 = sbr.rel (%p152) target = $region32
    $region31: #{cnn_forward.17} parent=5 // pred_region
      %s156 = ssub.s32 %s9, 1
      %p157 = scmp.lt.s32.totalorder %s18, 1
      %s158 = scalar_select %p157, %s18, 1
      %s159 = smul.addr %s158, 212
      %s160 = smul.addr %s159, 4
      %s161 = scalar_lea.vmem %s0, %s160
      %p162 = pneg %p47
      %p163 = pneg %p44
      %p164 = pneg %p68
      %p165 = pneg %p65
      %p166 = pneg %p89
      %p167 = pneg %p86
      %p168 = pneg %p117
      %p169 = pneg %p114
      %s170 = smul.u32 51, %s19
      %p171 = scmp.lt.s32.totalorder %s18, 1
      %s172 = scalar_select %p171, %s18, 1
      %p173 = scmp.lt.s32.totalorder %s170, 50
      %s174 = scalar_select %p173, %s170, 50
      %s175 = smul.addr %s174, 8
      %s176 = smul.addr %s172, 408
      %s177 = sadd.s32 %s175, %s176
      %s178 = smul.addr %s177, 4
      %s179 = scalar_lea.vmem %s3, %s178
      %p180 = scmp.lt.s32.totalorder %s18, 1
      %s181 = scalar_select %p180, %s18, 1
      %s182 = smul.addr %s181, 212
      %s183 = smul.addr %s182, 4
      %s184 = scalar_lea.vmem %s0, %s183
      %s185 = smul.u32 51, %s19
      %p186 = scmp.lt.s32.totalorder %s18, 1
      %s187 = scalar_select %p186, %s18, 1
      %p188 = scmp.lt.s32.totalorder %s185, 50
      %s189 = scalar_select %p188, %s185, 50
      %s190 = smul.addr %s189, 8
      %s191 = smul.addr %s187, 408
      %s192 = sadd.s32 %s190, %s191
      %s193 = smul.addr %s192, 4
      %s194 = scalar_lea.vmem %s3, %s193
      %s195 = smul.u32 51, %s19
      %s197 = smul.u32 %s19, 51
      %v198 = vld [vmem:[%s2] sm:$0xff]
      %v199 = vld [vmem:[%s2 + $0x8] sm:$0xff]
      %v200 = vld [vmem:[%s2 + $0x10] sm:$0xff]
      %v201 = vld [vmem:[%s2 + $0x18] sm:$0xff]
      %v202 = vld [vmem:[%s2 + $0x20] sm:$0xff]
      %v203 = vld [vmem:[%s2 + $0x28] sm:$0xff]
      %v204 = vld [vmem:[%s2 + $0x30] sm:$0xff]
      %v205 = vld [vmem:[%s2 + $0x38] sm:$0xff]
      %207 = vset.pattern.permute.xlu0 0
      %208 = vperm.xlu0 %207, %v198
      %v209 = vpop.permute.xlu0 %208
      %212 = vset.pattern.permute.xlu0 0
      %213 = vperm.xlu0 %212, %v199
      %v214 = vpop.permute.xlu0 %213
      %217 = vset.pattern.permute.xlu0 0
      %218 = vperm.xlu0 %217, %v200
      %v219 = vpop.permute.xlu0 %218
      %222 = vset.pattern.permute.xlu0 0
      %223 = vperm.xlu0 %222, %v201
      %v224 = vpop.permute.xlu0 %223
      %227 = vset.pattern.permute.xlu0 0
      %228 = vperm.xlu0 %227, %v202
      %v229 = vpop.permute.xlu0 %228
      %232 = vset.pattern.permute.xlu0 0
      %233 = vperm.xlu0 %232, %v203
      %v234 = vpop.permute.xlu0 %233
      %237 = vset.pattern.permute.xlu0 0
      %238 = vperm.xlu0 %237, %v204
      %v239 = vpop.permute.xlu0 %238
      %242 = vset.pattern.permute.xlu0 0
      %243 = vperm.xlu0 %242, %v205
      %v244 = vpop.permute.xlu0 %243
      loop: start=0, step=1, limit=51
      $region33: #{cnn_forward.17} parent=31 // loop_pre_header
        _
      $region34: #{cnn_forward.17} parent=31 // loop_header
        %s247 = sphi 0, %s251
        %p248 = scmp.ge.s32.totalorder %s247, 51
      $region35: #{cnn_forward.17} parent=31 // loop_header_branch
        %250 = sbr.rel (%p248) target = $region39
      $region36: #{cnn_forward.17} parent=31 // loop_body
        %s252 = sadd.s32 %s197, %s247
        %s253 = smul.u32 %s252, 4
        %s254 = smul.addr %s253, 4
        %s255 = scalar_lea.vmem %s184, %s254
        %v256 = vld [vmem:[%s255] sm:$0xf]
        %v257 = vld [vmem:[%s255 + $0x4] sm:$0xf]
        %v258 = vld [vmem:[%s255 + $0x8] sm:$0xf]
        %v259 = vld [vmem:[%s255 + $0xc] sm:$0xf]
        %s260 = sadd.s32 %s252, 1
        %s261 = smul.u32 %s260, 4
        %s262 = smul.addr %s261, 4
        %s263 = scalar_lea.vmem %s184, %s262
        %v264 = vld [vmem:[%s263] sm:$0xf]
        %v265 = vld [vmem:[%s263 + $0x4] sm:$0xf]
        %v266 = vld [vmem:[%s263 + $0x8] sm:$0xf]
        %v267 = vld [vmem:[%s263 + $0xc] sm:$0xf]
        %s268 = sadd.s32 %s252, 2
        %s269 = smul.u32 %s268, 4
        %s270 = smul.addr %s269, 4
        %s271 = scalar_lea.vmem %s184, %s270
        %v272 = vld [vmem:[%s271] sm:$0xf]
        %v273 = vld [vmem:[%s271 + $0x4] sm:$0xf]
        %v274 = vld [vmem:[%s271 + $0x8] sm:$0xf]
        %v275 = vld [vmem:[%s271 + $0xc] sm:$0xf]
        %v280 = vunpack.c.l.b16 %v256
        %v281 = vunpack.c.l.b16 %v257
        %v282 = vunpack.c.l.b16 %v258
        %v283 = vunpack.c.l.b16 %v259
        %v284 = vpack.c.b16 %v281, %v280
        %v285 = vpack.c.b16 %v283, %v282
        %v292 = vunpack.c.l.b16 %v264
        %v293 = vunpack.c.l.b16 %v265
        %v294 = vunpack.c.l.b16 %v266
        %v295 = vunpack.c.l.b16 %v267
        %v296 = vpack.c.b16 %v293, %v292
        %v297 = vpack.c.b16 %v295, %v294
        %v304 = vunpack.c.l.b16 %v272
        %v305 = vunpack.c.l.b16 %v273
        %v306 = vunpack.c.l.b16 %v274
        %v307 = vunpack.c.l.b16 %v275
        %v308 = vpack.c.b16 %v305, %v304
        %v309 = vpack.c.b16 %v307, %v306
        %312 = vrot.lane.b32.xlu0 %v284, 127
        %v313 = vpop.permute.xlu0 %312
        %314 = vrot.lane.b32.xlu0 %v285, 127
        %v315 = vpop.permute.xlu0 %314
        %316 = vrot.lane.b32.xlu0 %v296, 127
        %v317 = vpop.permute.xlu0 %316
        %318 = vrot.lane.b32.xlu0 %v297, 127
        %v319 = vpop.permute.xlu0 %318
        %320 = vrot.lane.b32.xlu0 %v308, 127
        %v321 = vpop.permute.xlu0 %320
        %322 = vrot.lane.b32.xlu0 %v309, 127
        %v323 = vpop.permute.xlu0 %322
        %330 = vrot.lane.b32.xlu0 %v284, 126
        %v331 = vpop.permute.xlu0 %330
        %332 = vrot.lane.b32.xlu0 %v285, 126
        %v333 = vpop.permute.xlu0 %332
        %334 = vrot.lane.b32.xlu0 %v296, 126
        %v335 = vpop.permute.xlu0 %334
        %336 = vrot.lane.b32.xlu0 %v297, 126
        %v337 = vpop.permute.xlu0 %336
        %338 = vrot.lane.b32.xlu0 %v308, 126
        %v339 = vpop.permute.xlu0 %338
        %340 = vrot.lane.b32.xlu0 %v309, 126
        %v341 = vpop.permute.xlu0 %340
        %v348 = vld [vmem:[%s1] sm:$0xff]
        %v349 = vld [vmem:[%s1 + $0x8] sm:$0xf]
        %v350 = vld [vmem:[%s1 + $0xc] sm:$0xff]
        %v351 = vld [vmem:[%s1 + $0x14] sm:$0xf]
        %v352 = vld [vmem:[%s1 + $0x18] sm:$0xff]
        %v353 = vld [vmem:[%s1 + $0x20] sm:$0xf]
        %v354 = vld [vmem:[%s1 + $0x24] sm:$0xff]
        %v355 = vld [vmem:[%s1 + $0x2c] sm:$0xf]
        %v356 = vld [vmem:[%s1 + $0x30] sm:$0xff]
        %v357 = vld [vmem:[%s1 + $0x38] sm:$0xf]
        %v358 = vld [vmem:[%s1 + $0x3c] sm:$0xff]
        %v359 = vld [vmem:[%s1 + $0x44] sm:$0xf]
        %v360 = vld [vmem:[%s1 + $0x48] sm:$0xff]
        %v361 = vld [vmem:[%s1 + $0x50] sm:$0xf]
        %v362 = vld [vmem:[%s1 + $0x54] sm:$0xff]
        %v363 = vld [vmem:[%s1 + $0x5c] sm:$0xf]
        %v380 = vunpack.c.l.b16 %v348
        %v381 = vunpack.c.h.b16 %v348
        %v382 = vunpack.c.l.b16 %v349
        %v383 = vunpack.c.l.b16 %v350
        %v384 = vunpack.c.h.b16 %v350
        %v385 = vunpack.c.l.b16 %v351
        %v386 = vunpack.c.l.b16 %v352
        %v387 = vunpack.c.h.b16 %v352
        %v388 = vunpack.c.l.b16 %v353
        %v389 = vunpack.c.l.b16 %v354
        %v390 = vunpack.c.h.b16 %v354
        %v391 = vunpack.c.l.b16 %v355
        %v392 = vunpack.c.l.b16 %v356
        %v393 = vunpack.c.h.b16 %v356
        %v394 = vunpack.c.l.b16 %v357
        %v395 = vunpack.c.l.b16 %v358
        %v396 = vunpack.c.h.b16 %v358
        %v397 = vunpack.c.l.b16 %v359
        %v398 = vunpack.c.l.b16 %v360
        %v399 = vunpack.c.h.b16 %v360
        %v400 = vunpack.c.l.b16 %v361
        %v401 = vunpack.c.l.b16 %v362
        %v402 = vunpack.c.h.b16 %v362
        %v403 = vunpack.c.l.b16 %v363
        %v404 = vpack.c.b16 %v383, %v380
        %v405 = vpack.c.b16 %v384, %v381
        %v406 = vpack.c.b16 %v385, %v382
        %v407 = vpack.c.b16 %v389, %v386
        %v408 = vpack.c.b16 %v390, %v387
        %v409 = vpack.c.b16 %v391, %v388
        %v410 = vpack.c.b16 %v395, %v392
        %v411 = vpack.c.b16 %v396, %v393
        %v412 = vpack.c.b16 %v397, %v394
        %v413 = vpack.c.b16 %v401, %v398
        %v414 = vpack.c.b16 %v402, %v399
        %v415 = vpack.c.b16 %v403, %v400
        %vm424 = vcmask 261120
        %v426 = vsel %vm424, %v406, 0
        %v429 = vsel %vm424, %v409, 0
        %v432 = vsel %vm424, %v412, 0
        %v435 = vsel %vm424, %v415, 0
        %437 = vmatprep.subr.bf16.mxu0 0
        %438 = vmatpush1.bf16.msra.mxu0 %v284
        %439 = vmatprep.subr.bf16.mxu0 0
        %440 = vmatpush1.bf16.msra.mxu0 %v285
        %441 = vmatprep.subr.bf16.mxu0 0
        %442 = vmatpush1.bf16.msra.mxu0 %v296
        %443 = vmatprep.subr.bf16.mxu0 0
        %444 = vmatpush1.bf16.msra.mxu0 %v297
        %445 = vmatprep.subr.bf16.mxu0 0
        %446 = vmatpush1.bf16.msra.mxu0 %v308
        %447 = vmatprep.subr.bf16.mxu0 0
        %448 = vmatpush1.bf16.msra.mxu0 %v309
        %449 = vmatprep.subr.bf16.mxu0 0
        %450 = vmatpush1.bf16.msra.mxu0 %v313
        %451 = vmatprep.subr.bf16.mxu0 0
        %452 = vmatpush1.bf16.msra.mxu0 %v315
        %453 = vmatprep.subr.bf16.mxu0 0
        %454 = vmatpush1.bf16.msra.mxu0 %v317
        %455 = vmatprep.subr.bf16.mxu0 0
        %456 = vmatpush1.bf16.msra.mxu0 %v319
        %457 = vmatprep.subr.bf16.mxu0 0
        %458 = vmatpush1.bf16.msra.mxu0 %v321
        %459 = vmatprep.subr.bf16.mxu0 0
        %460 = vmatpush1.bf16.msra.mxu0 %v323
        %461 = vmatprep.subr.bf16.mxu0 0
        %462 = vmatpush1.bf16.msra.mxu0 %v331
        %463 = vmatprep.subr.bf16.mxu0 0
        %464 = vmatpush1.bf16.msra.mxu0 %v333
        %465 = vmatprep.subr.bf16.mxu0 0
        %466 = vmatpush1.bf16.msra.mxu0 %v335
        %467 = vmatprep.subr.bf16.mxu0 0
        %468 = vmatpush1.bf16.msra.mxu0 %v337
        %469 = vmatprep.mubr.bf16.mxu0 %v405
        %470 = vmatmul.mubr.bf16.gmra.mrb[0].mxu0 %v404
        %v471 = vpop.f32.mrb[0].mxu0
        %v472 = vadd.f32 %v209, %v471
        %v473 = vpop.f32.mrb[0].mxu0
        %v474 = vpop.f32.mrb[0].mxu0
        %v475 = vadd.f32 %v214, %v474
        %v476 = vpop.f32.mrb[0].mxu0
        %477 = vmatprep.mubr.bf16.mxu0 %v408
        %478 = vmatmul.mubr.bf16.gmra.mrb[0].mxu0 %v407
        %v479 = vpop.f32.mrb[0].mxu0
        %v480 = vadd.f32 %v219, %v479
        %v481 = vpop.f32.mrb[0].mxu0
        %v482 = vpop.f32.mrb[0].mxu0
        %v483 = vadd.f32 %v224, %v482
        %v484 = vpop.f32.mrb[0].mxu0
        %485 = vmatprep.mubr.bf16.mxu0 %v411
        %486 = vmatmul.mubr.bf16.gmra.mrb[0].mxu0 %v410
        %v487 = vpop.f32.mrb[0].mxu0
        %v488 = vadd.f32 %v229, %v487
        %v489 = vpop.f32.mrb[0].mxu0
        %v490 = vpop.f32.mrb[0].mxu0
        %v491 = vadd.f32 %v234, %v490
        %v492 = vpop.f32.mrb[0].mxu0
        %493 = vmatprep.mubr.bf16.mxu0 %v414
        %494 = vmatmul.mubr.bf16.gmra.mrb[0].mxu0 %v413
        %v495 = vpop.f32.mrb[0].mxu0
        %v496 = vadd.f32 %v239, %v495
        %v497 = vpop.f32.mrb[0].mxu0
        %v498 = vpop.f32.mrb[0].mxu0
        %v499 = vadd.f32 %v244, %v498
        %v500 = vpop.f32.mrb[0].mxu0
        %501 = vdwg.mxu0
        %502 = vmatprep.subr.bf16.mxu0 0
        %503 = vmatpush1.bf16.msra.mxu0 %v339
        %504 = vmatprep.subr.bf16.mxu0 0
        %505 = vmatpush1.bf16.msra.mxu0 %v341
        %506 = vmatprep.subr.bf16.mxu0 0
        %507 = vmatpush1.bf16.msra.mxu0 0
        %508 = vmatprep.subr.bf16.mxu0 0
        %509 = vmatpush1.bf16.msra.mxu0 0
        %510 = vmatprep.subr.bf16.mxu0 0
        %511 = vmatpush1.bf16.msra.mxu0 0
        %512 = vmatprep.subr.bf16.mxu0 0
        %513 = vmatpush1.bf16.msra.mxu0 0
        %514 = vmatprep.subr.bf16.mxu0 0
        %515 = vmatpush1.bf16.msra.mxu0 0
        %516 = vmatprep.subr.bf16.mxu0 0
        %517 = vmatpush1.bf16.msra.mxu0 0
        %518 = vmatprep.subr.bf16.mxu0 0
        %519 = vmatpush1.bf16.msra.mxu0 0
        %520 = vmatprep.subr.bf16.mxu0 0
        %521 = vmatpush1.bf16.msra.mxu0 0
        %522 = vmatprep.subr.bf16.mxu0 0
        %523 = vmatpush1.bf16.msra.mxu0 0
        %524 = vmatprep.subr.bf16.mxu0 0
        %525 = vmatpush1.bf16.msra.mxu0 0
        %526 = vmatprep.subr.bf16.mxu0 0
        %527 = vmatpush1.bf16.msra.mxu0 0
        %528 = vmatprep.subr.bf16.mxu0 0
        %529 = vmatpush1.bf16.msra.mxu0 0
        %530 = vmatprep.subr.bf16.mxu0 0
        %531 = vmatpush1.bf16.msra.mxu0 0
        %532 = vmatprep.subr.bf16.mxu0 0
        %533 = vmatpush1.bf16.msra.mxu0 0
        %534 = vmatprep.mubr.bf16.mxu0 0
        %535 = vmatmul.mubr.bf16.gmra.mrb[0].mxu0 %v426
        %v536 = vpop.f32.mrb[0].mxu0
        %v537 = vadd.f32 %v472, %v536
        %v538 = vpop.f32.mrb[0].mxu0
        %v539 = vpop.f32.mrb[0].mxu0
        %v540 = vadd.f32 %v475, %v539
        %v541 = vpop.f32.mrb[0].mxu0
        %542 = vmatprep.mubr.bf16.mxu0 0
        %543 = vmatmul.mubr.bf16.gmra.mrb[0].mxu0 %v429
        %v544 = vpop.f32.mrb[0].mxu0
        %v545 = vadd.f32 %v480, %v544
        %v546 = vpop.f32.mrb[0].mxu0
        %v547 = vpop.f32.mrb[0].mxu0
        %v548 = vadd.f32 %v483, %v547
        %v549 = vpop.f32.mrb[0].mxu0
        %550 = vmatprep.mubr.bf16.mxu0 0
        %551 = vmatmul.mubr.bf16.gmra.mrb[0].mxu0 %v432
        %v552 = vpop.f32.mrb[0].mxu0
        %v553 = vadd.f32 %v488, %v552
        %v554 = vpop.f32.mrb[0].mxu0
        %v555 = vpop.f32.mrb[0].mxu0
        %v556 = vadd.f32 %v491, %v555
        %v557 = vpop.f32.mrb[0].mxu0
        %558 = vmatprep.mubr.bf16.mxu0 0
        %559 = vmatmul.mubr.bf16.gmra.mrb[0].mxu0 %v435
        %v560 = vpop.f32.mrb[0].mxu0
        %v561 = vadd.f32 %v496, %v560
        %v562 = vpop.f32.mrb[0].mxu0
        %v563 = vpop.f32.mrb[0].mxu0
        %v564 = vadd.f32 %v499, %v563
        %v565 = vpop.f32.mrb[0].mxu0
        %566 = vdwg.mxu0
        %v567 = vmax.f32 %v537, 0.0
        %v568 = vmax.f32 %v540, 0.0
        %v569 = vmax.f32 %v545, 0.0
        %v570 = vmax.f32 %v548, 0.0
        %v571 = vmax.f32 %v553, 0.0
        %v572 = vmax.f32 %v556, 0.0
        %v573 = vmax.f32 %v561, 0.0
        %v574 = vmax.f32 %v564, 0.0
        %v575 = vpack.c.bf16 %v568, %v567
        %v576 = vpack.c.bf16 %v570, %v569
        %v577 = vpack.c.bf16 %v572, %v571
        %v578 = vpack.c.bf16 %v574, %v573
        %v583 = vunpack.c.l.b16 %v575
        %v584 = vunpack.c.h.b16 %v575
        %v585 = vunpack.c.l.b16 %v576
        %v586 = vunpack.c.h.b16 %v576
        %v587 = vunpack.c.l.b16 %v577
        %v588 = vunpack.c.h.b16 %v577
        %v589 = vunpack.c.l.b16 %v578
        %v590 = vunpack.c.h.b16 %v578
        %v591 = vpack.c.b16 %v583, %v583
        %v592 = vpack.c.b16 %v584, %v584
        %v593 = vpack.c.b16 %v585, %v585
        %v594 = vpack.c.b16 %v586, %v586
        %v595 = vpack.c.b16 %v587, %v587
        %v596 = vpack.c.b16 %v588, %v588
        %v597 = vpack.c.b16 %v589, %v589
        %v598 = vpack.c.b16 %v590, %v590
        %s607 = smul.u32 %s247, 8
        %s608 = smul.addr %s607, 4
        %s609 = scalar_lea.vmem %s194, %s608
        %vm610 = vcmask 412672
        %611 = vst.msk [vmem:[%s609] sm:$0xf] %vm610, %v591
        %612 = vst.msk [vmem:[%s609 + $0x4] sm:$0xf] %vm610, %v592
        %613 = vst.msk [vmem:[%s609 + $0x8] sm:$0xf] %vm610, %v593
        %614 = vst.msk [vmem:[%s609 + $0xc] sm:$0xf] %vm610, %v594
        %615 = vst.msk [vmem:[%s609 + $0x10] sm:$0xf] %vm610, %v595
        %616 = vst.msk [vmem:[%s609 + $0x14] sm:$0xf] %vm610, %v596
        %617 = vst.msk [vmem:[%s609 + $0x18] sm:$0xf] %vm610, %v597
        %618 = vst.msk [vmem:[%s609 + $0x1c] sm:$0xf] %vm610, %v598
      $region37: #{cnn_forward.17} parent=31 // loop_footer
        %s251 = sadd.s32 1, %s247
      $region38: #{cnn_forward.17} parent=31 // loop_footer_branch
        %246 = sbr.rel target = $region34
      $region39: #{cnn_forward.17} parent=31 // loop_exit
        _
      %s619 = smul.u32 51, %s19
      %p620 = scmp.lt.s32.totalorder %s18, 1
      %s621 = scalar_select %p620, %s18, 1
      %p622 = scmp.lt.s32.totalorder %s619, 50
      %s623 = scalar_select %p622, %s619, 50
      %s624 = smul.addr %s623, 8
      %s625 = smul.addr %s621, 408
      %s626 = sadd.s32 %s624, %s625
      %s627 = smul.addr %s626, 4
      %s628 = scalar_lea.vmem %s3, %s627
      // Predicated region
      $region40: #{cnn_forward.17} parent=31 // pred_check
        %p629 = pneg %p114
      $region41: #{cnn_forward.17} parent=31 // pred_check_branch
        %631 = sbr.rel (%p629) target = $region43
      $region42: #{cnn_forward.17} parent=31 // pred_region
        %s632 = smul.u32 51, %s19
      $region43: #{cnn_forward.17} parent=31 // pred_fallthru
        _
    $region32: #{cnn_forward.17} parent=5 // pred_fallthru
      _
    %p633 = scmp.le.s32.totalorder 2, %s9
    // Predicated region
    $region44: #{cnn_forward.17} parent=5 // pred_check
      %p634 = pneg %p633
    $region45: #{cnn_forward.17} parent=5 // pred_check_branch
      %636 = sbr.rel (%p634) target = $region47
    $region46: #{cnn_forward.17} parent=5 // pred_region
      %s637 = ssub.s32 %s9, 2
      // Predicated region
      $region48: #{cnn_forward.17} parent=46 // pred_check
        %p638 = pneg %p120
      $region49: #{cnn_forward.17} parent=46 // pred_check_branch
        %640 = sbr.rel (%p638) target = $region51
      $region50: #{cnn_forward.17} parent=46 // pred_region
        %s641 = smul.u32 51, %s21
        %p642 = scmp.lt.s32.totalorder %s20, 1
        %s643 = scalar_select %p642, %s20, 1
        %p644 = scmp.lt.s32.totalorder %s641, 50
        %s645 = scalar_select %p644, %s641, 50
        %s646 = smul.addr %s645, 8
        %s647 = smul.addr %s643, 408
        %s648 = sadd.s32 %s646, %s647
        %s649 = smul.addr %s648, 4
        %s650 = scalar_lea.vmem %s3, %s649
      $region51: #{cnn_forward.17} parent=46 // pred_fallthru
        _
    $region47: #{cnn_forward.17} parent=5 // pred_fallthru
      _
  $region6: #{cnn_forward.17} parent=0 // loop_footer
    %s13 = sadd.s32 1, %s9
  $region7: #{cnn_forward.17} parent=0 // loop_footer_branch
    %8 = sbr.rel target = $region3
  $region8: #{cnn_forward.17} parent=0 // loop_exit
    _

// kernel: cnn_forward.18
$region0: #{cnn_forward.18}
  #allocation0 [shape = 'u32[]', space=smem, size = 0x4, offset = 0x4, fixed_abs, tag = 'smem constant byte address 0x4 - core index']
  #allocation1 [shape = 'u32[144,128]{1,0:T(1,128)}', space=vmem, size = 0x12000, scoped, tag = 'internal scratch']
  %s0 = inlined_call_operand.vmem [shape: bf16[2,51,64,51], index: 0, kind: input, shape index: {}]
  %s1 = inlined_call_operand.vmem [shape: bf16[49,25], index: 1, kind: input, shape index: {}]
  %s2 = inlined_call_operand.vmem [shape: bf16[2,25,64,25], index: 2, kind: output, shape index: {}]
  %s3 = sld [smem:[#allocation0]]
  $region48: #{cnn_forward.18} parent=0
    _
  %s5 = ssub.s32 1, %s3
  %s6 = scalar_select 0, %s5, %s3
  loop: start=0, step=1, limit=4
  $region2: #{cnn_forward.18} parent=0 // loop_pre_header
    _
  $region3: #{cnn_forward.18} parent=0 // loop_header
    %s8 = sphi 0, %s12
    %p9 = scmp.ge.s32.totalorder %s8, 4
    %s18 = sphi 0, %s20
    %s21 = sphi 0, %s18
    %s22 = sphi 0, %s21
    %s38 = sphi 0, %s22
    %s42 = sphi 0, %s42
    %s44 = sphi 0, %s42
    %s45 = sphi 0, %s44
    %s59 = sphi 0, %s45
    %s65 = sphi 0, %s67
    %s68 = sphi 0, %s65
    %s69 = sphi 0, %s68
    %s85 = sphi 0, %s69
  $region4: #{cnn_forward.18} parent=0 // loop_header_branch
    %11 = sbr.rel (%p9) target = $region8
  $region5: #{cnn_forward.18} parent=0 // loop_body
    %s13 = ssub.s32 %s8, 1
    %s14 = ssub.s32 %s8, 2
    %s15 = sadd.s32 %s8, 1
    %s16 = ssub.s32 %s8, %s15
    %p17 = scmp.eq.s32.totalorder %s16, 0
    %s19 = sadd.s32 %s18, 1
    %s20 = scalar_select %p17, %s18, %s19
    %p23 = pneg %p17
    %p24 = scmp.eq.s32.totalorder %s8, 1
    %p25 = por %p23, %p24
    %p26 = scmp.ne.s32.totalorder %s18, %s21
    %p27 = scmp.eq.s32.totalorder %s8, 0
    %p28 = por %p26, %p27
    %p29 = scmp.ne.s32.totalorder %s18, %s21
    %p30 = scmp.eq.s32.totalorder %s13, 1
    %p31 = por %p29, %p30
    %p32 = scmp.ne.s32.totalorder %s21, %s22
    %p33 = scmp.eq.s32.totalorder %s13, 0
    %p34 = por %p32, %p33
    %p35 = scmp.ne.s32.totalorder %s21, %s22
    %p36 = scmp.eq.s32.totalorder %s14, 1
    %p37 = por %p35, %p36
    %p39 = scmp.ne.s32.totalorder %s22, %s38
    %p40 = scmp.eq.s32.totalorder %s14, 0
    %p41 = por %p39, %p40
    %s43 = sadd.s32 %s42, 1
    %p46 = scmp.eq.s32.totalorder %s8, 1
    %p47 = scmp.ne.s32.totalorder %s42, %s44
    %p48 = scmp.eq.s32.totalorder %s8, 0
    %p49 = por %p47, %p48
    %p50 = scmp.ne.s32.totalorder %s42, %s44
    %p51 = scmp.eq.s32.totalorder %s13, 1
    %p52 = por %p50, %p51
    %p53 = scmp.ne.s32.totalorder %s44, %s45
    %p54 = scmp.eq.s32.totalorder %s13, 0
    %p55 = por %p53, %p54
    %p56 = scmp.ne.s32.totalorder %s44, %s45
    %p57 = scmp.eq.s32.totalorder %s14, 1
    %p58 = por %p56, %p57
    %p60 = scmp.ne.s32.totalorder %s45, %s59
    %p61 = scmp.eq.s32.totalorder %s14, 0
    %p62 = por %p60, %p61
    %s63 = ssub.s32 %s8, %s15
    %p64 = scmp.eq.s32.totalorder %s63, 0
    %s66 = sadd.s32 %s65, 1
    %s67 = scalar_select %p64, %s65, %s66
    %p70 = pneg %p64
    %p71 = scmp.eq.s32.totalorder %s8, 1
    %p72 = por %p70, %p71
    %p73 = scmp.ne.s32.totalorder %s65, %s68
    %p74 = scmp.eq.s32.totalorder %s8, 0
    %p75 = por %p73, %p74
    %p76 = scmp.ne.s32.totalorder %s65, %s68
    %p77 = scmp.eq.s32.totalorder %s13, 1
    %p78 = por %p76, %p77
    %p79 = scmp.ne.s32.totalorder %s68, %s69
    %p80 = scmp.eq.s32.totalorder %s13, 0
    %p81 = por %p79, %p80
    %p82 = scmp.ne.s32.totalorder %s68, %s69
    %p83 = scmp.eq.s32.totalorder %s14, 1
    %p84 = por %p82, %p83
    %p86 = scmp.ne.s32.totalorder %s69, %s85
    %p87 = scmp.eq.s32.totalorder %s14, 0
    %p88 = por %p86, %p87
    %p89 = scmp.le.s32.totalorder 1, %s8
    %p90 = scmp.lt.s32.totalorder %s8, 3
    %p91 = pnand %p89, %p90
    %p92 = pneg %p91
    // Predicated region
    $region9: #{cnn_forward.18} parent=5 // pred_check
      _
    $region10: #{cnn_forward.18} parent=5 // pred_check_branch
      %94 = sbr.rel (%p91) target = $region12
    $region11: #{cnn_forward.18} parent=5 // pred_region
      %s95 = ssub.s32 %s8, 1
      // Predicated region
      $region13: #{cnn_forward.18} parent=11 // pred_check
        %p96 = pneg %p55
      $region14: #{cnn_forward.18} parent=11 // pred_check_branch
        %98 = sbr.rel (%p96) target = $region16
      $region15: #{cnn_forward.18} parent=11 // pred_region
        _
      $region16: #{cnn_forward.18} parent=11 // pred_fallthru
        _
    $region12: #{cnn_forward.18} parent=5 // pred_fallthru
      _
    %p99 = scmp.lt.s32.totalorder %s8, 2
    // Predicated region
    $region17: #{cnn_forward.18} parent=5 // pred_check
      %p100 = pneg %p99
    $region18: #{cnn_forward.18} parent=5 // pred_check_branch
      %102 = sbr.rel (%p100) target = $region20
    $region19: #{cnn_forward.18} parent=5 // pred_region
      // Predicated region
      $region21: #{cnn_forward.18} parent=19 // pred_check
        %p103 = pneg %p28
      $region22: #{cnn_forward.18} parent=19 // pred_check_branch
        %105 = sbr.rel (%p103) target = $region24
      $region23: #{cnn_forward.18} parent=19 // pred_region
        %p106 = scmp.lt.s32.totalorder %s8, 1
        %s107 = scalar_select %p106, %s8, 1
        %s108 = smul.addr %s107, 408
        %s109 = smul.addr %s108, 4
        %s110 = scalar_lea.vmem %s0, %s109
      $region24: #{cnn_forward.18} parent=19 // pred_fallthru
        _
    $region20: #{cnn_forward.18} parent=5 // pred_fallthru
      _
    %p111 = scmp.le.s32.totalorder 1, %s8
    %p112 = scmp.lt.s32.totalorder %s8, 3
    %p113 = pnand %p111, %p112
    %p114 = pneg %p113
    // Predicated region
    $region25: #{cnn_forward.18} parent=5 // pred_check
      _
    $region26: #{cnn_forward.18} parent=5 // pred_check_branch
      %116 = sbr.rel (%p113) target = $region28
    $region27: #{cnn_forward.18} parent=5 // pred_region
      %s117 = ssub.s32 %s8, 1
      %p118 = scmp.lt.s32.totalorder %s13, 1
      %s119 = scalar_select %p118, %s13, 1
      %s120 = smul.addr %s119, 408
      %s121 = smul.addr %s120, 4
      %s122 = scalar_lea.vmem %s0, %s121
      %p123 = pneg %p34
      %p124 = pneg %p31
      %p125 = pneg %p55
      %p126 = pneg %p52
      %p127 = pneg %p81
      %p128 = pneg %p78
      %p129 = scmp.lt.s32.totalorder %s13, 1
      %s130 = scalar_select %p129, %s13, 1
      %s131 = smul.addr %s130, 200
      %s132 = smul.addr %s131, 4
      %s133 = scalar_lea.vmem %s2, %s132
      %p134 = scmp.lt.s32.totalorder %s13, 1
      %s135 = scalar_select %p134, %s13, 1
      %s136 = smul.addr %s135, 408
      %s137 = smul.addr %s136, 4
      %s138 = scalar_lea.vmem %s0, %s137
      %p139 = scmp.lt.s32.totalorder %s13, 1
      %s140 = scalar_select %p139, %s13, 1
      %s141 = smul.addr %s140, 200
      %s142 = smul.addr %s141, 4
      %s143 = scalar_lea.vmem %s2, %s142
      %v145 = vld [vmem:[%s1] sm:$0xf]
      %v146 = vld [vmem:[%s1 + $0x4] sm:$0xf]
      %v147 = vld [vmem:[%s1 + $0x8] sm:$0xf]
      %v148 = vld [vmem:[%s1 + $0xc] sm:$0xf]
      %v149 = vld [vmem:[%s1 + $0x10] sm:$0xf]
      %v150 = vld [vmem:[%s1 + $0x14] sm:$0xf]
      %v151 = vld [vmem:[%s1 + $0x18] sm:$0x1]
      loop: start=0, step=1, limit=25
      $region29: #{cnn_forward.18} parent=27 // loop_pre_header
        _
      $region30: #{cnn_forward.18} parent=27 // loop_header
        %s153 = sphi 0, %s157
        %p154 = scmp.ge.s32.totalorder %s153, 25
      $region31: #{cnn_forward.18} parent=27 // loop_header_branch
        %156 = sbr.rel (%p154) target = $region35
      $region32: #{cnn_forward.18} parent=27 // loop_body
        %s158 = smul.u32 %s153, 2
        %s159 = smul.u32 %s158, 8
        %s160 = smul.addr %s159, 4
        %s161 = scalar_lea.vmem %s138, %s160
        %v162 = vld [vmem:[%s161] sm:$0xf]
        %v163 = vld [vmem:[%s161 + $0x4] sm:$0xf]
        %v164 = vld [vmem:[%s161 + $0x8] sm:$0xf]
        %v165 = vld [vmem:[%s161 + $0xc] sm:$0xf]
        %v166 = vld [vmem:[%s161 + $0x10] sm:$0xf]
        %v167 = vld [vmem:[%s161 + $0x14] sm:$0xf]
        %v168 = vld [vmem:[%s161 + $0x18] sm:$0xf]
        %v169 = vld [vmem:[%s161 + $0x1c] sm:$0xf]
        %s170 = sadd.s32 %s158, 1
        %s171 = smul.u32 %s170, 8
        %s172 = smul.addr %s171, 4
        %s173 = scalar_lea.vmem %s138, %s172
        %v174 = vld [vmem:[%s173] sm:$0xf]
        %v175 = vld [vmem:[%s173 + $0x4] sm:$0xf]
        %v176 = vld [vmem:[%s173 + $0x8] sm:$0xf]
        %v177 = vld [vmem:[%s173 + $0xc] sm:$0xf]
        %v178 = vld [vmem:[%s173 + $0x10] sm:$0xf]
        %v179 = vld [vmem:[%s173 + $0x14] sm:$0xf]
        %v180 = vld [vmem:[%s173 + $0x18] sm:$0xf]
        %v181 = vld [vmem:[%s173 + $0x1c] sm:$0xf]
        %v182 = vmax.bf16 %v162, %v174
        %v183 = vmax.bf16 %v163, %v175
        %v184 = vmax.bf16 %v164, %v176
        %v185 = vmax.bf16 %v165, %v177
        %v186 = vmax.bf16 %v166, %v178
        %v187 = vmax.bf16 %v167, %v179
        %v188 = vmax.bf16 %v168, %v180
        %v189 = vmax.bf16 %v169, %v181
        %s190 = sadd.s32 %s158, 2
        %s191 = smul.u32 %s190, 8
        %s192 = smul.addr %s191, 4
        %s193 = scalar_lea.vmem %s138, %s192
        %v194 = vld [vmem:[%s193] sm:$0xf]
        %v195 = vld [vmem:[%s193 + $0x4] sm:$0xf]
        %v196 = vld [vmem:[%s193 + $0x8] sm:$0xf]
        %v197 = vld [vmem:[%s193 + $0xc] sm:$0xf]
        %v198 = vld [vmem:[%s193 + $0x10] sm:$0xf]
        %v199 = vld [vmem:[%s193 + $0x14] sm:$0xf]
        %v200 = vld [vmem:[%s193 + $0x18] sm:$0xf]
        %v201 = vld [vmem:[%s193 + $0x1c] sm:$0xf]
        %v202 = vmax.bf16 %v182, %v194
        %v203 = vmax.bf16 %v183, %v195
        %v204 = vmax.bf16 %v184, %v196
        %v205 = vmax.bf16 %v185, %v197
        %v206 = vmax.bf16 %v186, %v198
        %v207 = vmax.bf16 %v187, %v199
        %v208 = vmax.bf16 %v188, %v200
        %v209 = vmax.bf16 %v189, %v201
        %218 = vrot.lane.b32.xlu0 %v202, 127
        %v219 = vpop.permute.xlu0 %218
        %220 = vrot.lane.b32.xlu0 %v203, 127
        %v221 = vpop.permute.xlu0 %220
        %222 = vrot.lane.b32.xlu0 %v204, 127
        %v223 = vpop.permute.xlu0 %222
        %224 = vrot.lane.b32.xlu0 %v205, 127
        %v225 = vpop.permute.xlu0 %224
        %226 = vrot.lane.b32.xlu0 %v206, 127
        %v227 = vpop.permute.xlu0 %226
        %228 = vrot.lane.b32.xlu0 %v207, 127
        %v229 = vpop.permute.xlu0 %228
        %230 = vrot.lane.b32.xlu0 %v208, 127
        %v231 = vpop.permute.xlu0 %230
        %232 = vrot.lane.b32.xlu0 %v209, 127
        %v233 = vpop.permute.xlu0 %232
        %v242 = vmax.bf16 %v202, %v219
        %v243 = vmax.bf16 %v203, %v221
        %v244 = vmax.bf16 %v204, %v223
        %v245 = vmax.bf16 %v205, %v225
        %v246 = vmax.bf16 %v206, %v227
        %v247 = vmax.bf16 %v207, %v229
        %v248 = vmax.bf16 %v208, %v231
        %v249 = vmax.bf16 %v209, %v233
        %250 = vrot.lane.b32.xlu0 %v202, 126
        %v251 = vpop.permute.xlu0 %250
        %252 = vrot.lane.b32.xlu0 %v203, 126
        %v253 = vpop.permute.xlu0 %252
        %254 = vrot.lane.b32.xlu0 %v204, 126
        %v255 = vpop.permute.xlu0 %254
        %256 = vrot.lane.b32.xlu0 %v205, 126
        %v257 = vpop.permute.xlu0 %256
        %258 = vrot.lane.b32.xlu0 %v206, 126
        %v259 = vpop.permute.xlu0 %258
        %260 = vrot.lane.b32.xlu0 %v207, 126
        %v261 = vpop.permute.xlu0 %260
        %262 = vrot.lane.b32.xlu0 %v208, 126
        %v263 = vpop.permute.xlu0 %262
        %264 = vrot.lane.b32.xlu0 %v209, 126
        %v265 = vpop.permute.xlu0 %264
        %v274 = vmax.bf16 %v242, %v251
        %v275 = vmax.bf16 %v243, %v253
        %v276 = vmax.bf16 %v244, %v255
        %v277 = vmax.bf16 %v245, %v257
        %v278 = vmax.bf16 %v246, %v259
        %v279 = vmax.bf16 %v247, %v261
        %v280 = vmax.bf16 %v248, %v263
        %v281 = vmax.bf16 %v249, %v265
        %v290 = vunpack.c.l.b16 %v274
        %v291 = vunpack.c.l.b16 %v275
        %v292 = vunpack.c.l.b16 %v276
        %v293 = vunpack.c.l.b16 %v277
        %v294 = vunpack.c.l.b16 %v278
        %v295 = vunpack.c.l.b16 %v279
        %v296 = vunpack.c.l.b16 %v280
        %v297 = vunpack.c.l.b16 %v281
        %v298 = vpack.c.b16 %v291, %v290
        %v299 = vpack.c.b16 %v293, %v292
        %v300 = vpack.c.b16 %v295, %v294
        %v301 = vpack.c.b16 %v297, %v296
        %v309 = vunpack.c.l.b16 %v145
        %v310 = vunpack.c.l.b16 %v146
        %v311 = vunpack.c.l.b16 %v147
        %v312 = vunpack.c.l.b16 %v148
        %v313 = vunpack.c.l.b16 %v149
        %v314 = vunpack.c.l.b16 %v150
        %v315 = vunpack.c.l.b16 %v151
        %v316 = vpack.c.b16 %v310, %v309
        %v317 = vpack.c.b16 %v312, %v311
        %v318 = vpack.c.b16 %v314, %v313
        %v319 = vpack.c.b16 %v315, %v315
        %vm323 = vcmask 400384
        %v325 = vsel %vm323, %v298, 0
        %v328 = vsel %vm323, %v299, 0
        %v331 = vsel %vm323, %v300, 0
        %v334 = vsel %vm323, %v301, 0
        %vm336 = vcmask 1040384
        %v337 = vsel 0, 4294967295, 65535
        %v338 = vsel %vm336, %v337, 0
        %v340 = vand.u32 %v319, %v338
        %342 = vmatprep.subr.bf16.mxu0 0
        %343 = vmatpush1.bf16.msra.mxu0 %v316
        %344 = vmatprep.subr.bf16.mxu0 0
        %345 = vmatpush1.bf16.msra.mxu0 %v317
        %346 = vmatprep.subr.bf16.mxu0 0
        %347 = vmatpush1.bf16.msra.mxu0 %v318
        %348 = vmatprep.subr.bf16.mxu0 0
        %349 = vmatpush1.bf16.msra.mxu0 %v340
        %350 = vmatprep.subr.bf16.mxu0 0
        %351 = vmatpush1.bf16.msra.mxu0 0
        %352 = vmatprep.subr.bf16.mxu0 0
        %353 = vmatpush1.bf16.msra.mxu0 0
        %354 = vmatprep.subr.bf16.mxu0 0
        %355 = vmatpush1.bf16.msra.mxu0 0
        %356 = vmatprep.subr.bf16.mxu0 0
        %357 = vmatpush1.bf16.msra.mxu0 0
        %358 = vmatprep.subr.bf16.mxu0 0
        %359 = vmatpush1.bf16.msra.mxu0 0
        %360 = vmatprep.subr.bf16.mxu0 0
        %361 = vmatpush1.bf16.msra.mxu0 0
        %362 = vmatprep.subr.bf16.mxu0 0
        %363 = vmatpush1.bf16.msra.mxu0 0
        %364 = vmatprep.subr.bf16.mxu0 0
        %365 = vmatpush1.bf16.msra.mxu0 0
        %366 = vmatprep.subr.bf16.mxu0 0
        %367 = vmatpush1.bf16.msra.mxu0 0
        %368 = vmatprep.subr.bf16.mxu0 0
        %369 = vmatpush1.bf16.msra.mxu0 0
        %370 = vmatprep.subr.bf16.mxu0 0
        %371 = vmatpush1.bf16.msra.mxu0 0
        %372 = vmatprep.subr.bf16.mxu0 0
        %373 = vmatpush1.bf16.msra.mxu0 0
        %374 = vmatprep.mubr.bf16.mxu0 0
        %375 = vmatmul.mubr.bf16.gmra.mrb[0].mxu0 %v325
        %v376 = vpop.f32.mrb[0].mxu0
        %v377 = vadd.f32 0.0, %v376
        %v378 = vpop.f32.mrb[0].mxu0
        %v379 = vpop.f32.mrb[0].mxu0
        %v380 = vadd.f32 0.0, %v379
        %v381 = vpop.f32.mrb[0].mxu0
        %382 = vmatprep.mubr.bf16.mxu0 0
        %383 = vmatmul.mubr.bf16.gmra.mrb[0].mxu0 %v328
        %v384 = vpop.f32.mrb[0].mxu0
        %v385 = vadd.f32 0.0, %v384
        %v386 = vpop.f32.mrb[0].mxu0
        %v387 = vpop.f32.mrb[0].mxu0
        %v388 = vadd.f32 0.0, %v387
        %v389 = vpop.f32.mrb[0].mxu0
        %390 = vmatprep.mubr.bf16.mxu0 0
        %391 = vmatmul.mubr.bf16.gmra.mrb[0].mxu0 %v331
        %v392 = vpop.f32.mrb[0].mxu0
        %v393 = vadd.f32 0.0, %v392
        %v394 = vpop.f32.mrb[0].mxu0
        %v395 = vpop.f32.mrb[0].mxu0
        %v396 = vadd.f32 0.0, %v395
        %v397 = vpop.f32.mrb[0].mxu0
        %398 = vmatprep.mubr.bf16.mxu0 0
        %399 = vmatmul.mubr.bf16.gmra.mrb[0].mxu0 %v334
        %v400 = vpop.f32.mrb[0].mxu0
        %v401 = vadd.f32 0.0, %v400
        %v402 = vpop.f32.mrb[0].mxu0
        %v403 = vpop.f32.mrb[0].mxu0
        %v404 = vadd.f32 0.0, %v403
        %v405 = vpop.f32.mrb[0].mxu0
        %406 = vdwg.mxu0
        %v407 = vpack.c.bf16 %v380, %v377
        %v408 = vpack.c.bf16 %v388, %v385
        %v409 = vpack.c.bf16 %v396, %v393
        %v410 = vpack.c.bf16 %v404, %v401
        %v415 = vunpack.c.l.b16 %v407
        %v416 = vunpack.c.h.b16 %v407
        %v417 = vunpack.c.l.b16 %v408
        %v418 = vunpack.c.h.b16 %v408
        %v419 = vunpack.c.l.b16 %v409
        %v420 = vunpack.c.h.b16 %v409
        %v421 = vunpack.c.l.b16 %v410
        %v422 = vunpack.c.h.b16 %v410
        %v423 = vpack.c.b16 %v415, %v415
        %v424 = vpack.c.b16 %v416, %v416
        %v425 = vpack.c.b16 %v417, %v417
        %v426 = vpack.c.b16 %v418, %v418
        %v427 = vpack.c.b16 %v419, %v419
        %v428 = vpack.c.b16 %v420, %v420
        %v429 = vpack.c.b16 %v421, %v421
        %v430 = vpack.c.b16 %v422, %v422
        %s439 = smul.u32 %s153, 8
        %s440 = smul.addr %s439, 4
        %s441 = scalar_lea.vmem %s143, %s440
        %vm442 = vcmask 199680
        %443 = vst.msk [vmem:[%s441] sm:$0xf] %vm442, %v423
        %444 = vst.msk [vmem:[%s441 + $0x4] sm:$0xf] %vm442, %v424
        %445 = vst.msk [vmem:[%s441 + $0x8] sm:$0xf] %vm442, %v425
        %446 = vst.msk [vmem:[%s441 + $0xc] sm:$0xf] %vm442, %v426
        %447 = vst.msk [vmem:[%s441 + $0x10] sm:$0xf] %vm442, %v427
        %448 = vst.msk [vmem:[%s441 + $0x14] sm:$0xf] %vm442, %v428
        %449 = vst.msk [vmem:[%s441 + $0x18] sm:$0xf] %vm442, %v429
        %450 = vst.msk [vmem:[%s441 + $0x1c] sm:$0xf] %vm442, %v430
      $region33: #{cnn_forward.18} parent=27 // loop_footer
        %s157 = sadd.s32 1, %s153
      $region34: #{cnn_forward.18} parent=27 // loop_footer_branch
        %152 = sbr.rel target = $region30
      $region35: #{cnn_forward.18} parent=27 // loop_exit
        _
      %p451 = scmp.lt.s32.totalorder %s13, 1
      %s452 = scalar_select %p451, %s13, 1
      %s453 = smul.addr %s452, 200
      %s454 = smul.addr %s453, 4
      %s455 = scalar_lea.vmem %s2, %s454
      // Predicated region
      $region36: #{cnn_forward.18} parent=27 // pred_check
        %p456 = pneg %p78
      $region37: #{cnn_forward.18} parent=27 // pred_check_branch
        %458 = sbr.rel (%p456) target = $region39
      $region38: #{cnn_forward.18} parent=27 // pred_region
        _
      $region39: #{cnn_forward.18} parent=27 // pred_fallthru
        _
    $region28: #{cnn_forward.18} parent=5 // pred_fallthru
      _
    %p459 = scmp.le.s32.totalorder 2, %s8
    // Predicated region
    $region40: #{cnn_forward.18} parent=5 // pred_check
      %p460 = pneg %p459
    $region41: #{cnn_forward.18} parent=5 // pred_check_branch
      %462 = sbr.rel (%p460) target = $region43
    $region42: #{cnn_forward.18} parent=5 // pred_region
      %s463 = ssub.s32 %s8, 2
      // Predicated region
      $region44: #{cnn_forward.18} parent=42 // pred_check
        %p464 = pneg %p84
      $region45: #{cnn_forward.18} parent=42 // pred_check_branch
        %466 = sbr.rel (%p464) target = $region47
      $region46: #{cnn_forward.18} parent=42 // pred_region
        %p467 = scmp.lt.s32.totalorder %s14, 1
        %s468 = scalar_select %p467, %s14, 1
        %s469 = smul.addr %s468, 200
        %s470 = smul.addr %s469, 4
        %s471 = scalar_lea.vmem %s2, %s470
      $region47: #{cnn_forward.18} parent=42 // pred_fallthru
        _
    $region43: #{cnn_forward.18} parent=5 // pred_fallthru
      _
  $region6: #{cnn_forward.18} parent=0 // loop_footer
    %s12 = sadd.s32 1, %s8
  $region7: #{cnn_forward.18} parent=0 // loop_footer_branch
    %7 = sbr.rel target = $region3
  $region8: #{cnn_forward.18} parent=0 // loop_exit
    _

// kernel: cnn_forward.19
$region0: #{cnn_forward.19}
  #allocation0 [shape = 'u32[]', space=smem, size = 0x4, offset = 0x4, fixed_abs, tag = 'smem constant byte address 0x4 - core index']
  #allocation1 [shape = 'u32[144,128]{1,0:T(1,128)}', space=vmem, size = 0x12000, scoped, tag = 'internal scratch']
  %s0 = inlined_call_operand.vmem [shape: bf16[2,25,64,25], index: 0, kind: input, shape index: {}]
  %s1 = inlined_call_operand.vmem [shape: bf16[64,576], index: 1, kind: input, shape index: {}]
  %s2 = inlined_call_operand.vmem [shape: f32[64,1], index: 2, kind: input, shape index: {}]
  %s3 = inlined_call_operand.vmem [shape: bf16[2,23,64,23], index: 3, kind: output, shape index: {}]
  %s4 = sld [smem:[#allocation0]]
  $region52: #{cnn_forward.19} parent=0
    _
  %s6 = ssub.s32 1, %s4
  %s7 = scalar_select 0, %s6, %s4
  loop: start=0, step=1, limit=4
  $region2: #{cnn_forward.19} parent=0 // loop_pre_header
    _
  $region3: #{cnn_forward.19} parent=0 // loop_header
    %s9 = sphi 0, %s13
    %p10 = scmp.ge.s32.totalorder %s9, 4
    %s16 = sphi 0, %s28
    %s17 = sphi 0, %s24
    %s18 = sphi 0, %s16
    %s19 = sphi 0, %s17
    %s20 = sphi 0, %s18
    %s21 = sphi 0, %s19
    %s31 = sphi 0, %s33
    %s34 = sphi 0, %s31
    %s35 = sphi 0, %s34
    %s51 = sphi 0, %s35
    %s55 = sphi 0, %s55
    %s57 = sphi 0, %s55
    %s58 = sphi 0, %s57
    %s72 = sphi 0, %s58
    %s76 = sphi 0, %s76
    %s78 = sphi 0, %s76
    %s79 = sphi 0, %s78
    %s93 = sphi 0, %s79
    %s101 = sphi 0, %s103
    %s104 = sphi 0, %s101
    %s105 = sphi 0, %s104
    %s121 = sphi 0, %s105
  $region4: #{cnn_forward.19} parent=0 // loop_header_branch
    %12 = sbr.rel (%p10) target = $region8
  $region5: #{cnn_forward.19} parent=0 // loop_body
    %s14 = ssub.s32 %s9, 1
    %s15 = ssub.s32 %s9, 2
    %s22 = sadd.s32 1, %s17
    %p23 = scmp.ge.s32.totalorder %s22, 1
    %s24 = scalar_select %p23, 0, %s22
    %s25 = sadd.s32 1, %s16
    %s26 = scalar_select %p23, %s25, %s16
    %p27 = scmp.ge.s32.totalorder %s26, 2
    %s28 = scalar_select %p27, 0, %s26
    %s29 = ssub.s32 %s16, %s28
    %p30 = scmp.eq.s32.totalorder %s29, 0
    %s32 = sadd.s32 %s31, 1
    %s33 = scalar_select %p30, %s31, %s32
    %p36 = pneg %p30
    %p37 = scmp.eq.s32.totalorder %s9, 1
    %p38 = por %p36, %p37
    %p39 = scmp.ne.s32.totalorder %s31, %s34
    %p40 = scmp.eq.s32.totalorder %s9, 0
    %p41 = por %p39, %p40
    %p42 = scmp.ne.s32.totalorder %s31, %s34
    %p43 = scmp.eq.s32.totalorder %s14, 1
    %p44 = por %p42, %p43
    %p45 = scmp.ne.s32.totalorder %s34, %s35
    %p46 = scmp.eq.s32.totalorder %s14, 0
    %p47 = por %p45, %p46
    %p48 = scmp.ne.s32.totalorder %s34, %s35
    %p49 = scmp.eq.s32.totalorder %s15, 1
    %p50 = por %p48, %p49
    %p52 = scmp.ne.s32.totalorder %s35, %s51
    %p53 = scmp.eq.s32.totalorder %s15, 0
    %p54 = por %p52, %p53
    %s56 = sadd.s32 %s55, 1
    %p59 = scmp.eq.s32.totalorder %s9, 1
    %p60 = scmp.ne.s32.totalorder %s55, %s57
    %p61 = scmp.eq.s32.totalorder %s9, 0
    %p62 = por %p60, %p61
    %p63 = scmp.ne.s32.totalorder %s55, %s57
    %p64 = scmp.eq.s32.totalorder %s14, 1
    %p65 = por %p63, %p64
    %p66 = scmp.ne.s32.totalorder %s57, %s58
    %p67 = scmp.eq.s32.totalorder %s14, 0
    %p68 = por %p66, %p67
    %p69 = scmp.ne.s32.totalorder %s57, %s58
    %p70 = scmp.eq.s32.totalorder %s15, 1
    %p71 = por %p69, %p70
    %p73 = scmp.ne.s32.totalorder %s58, %s72
    %p74 = scmp.eq.s32.totalorder %s15, 0
    %p75 = por %p73, %p74
    %s77 = sadd.s32 %s76, 1
    %p80 = scmp.eq.s32.totalorder %s9, 1
    %p81 = scmp.ne.s32.totalorder %s76, %s78
    %p82 = scmp.eq.s32.totalorder %s9, 0
    %p83 = por %p81, %p82
    %p84 = scmp.ne.s32.totalorder %s76, %s78
    %p85 = scmp.eq.s32.totalorder %s14, 1
    %p86 = por %p84, %p85
    %p87 = scmp.ne.s32.totalorder %s78, %s79
    %p88 = scmp.eq.s32.totalorder %s14, 0
    %p89 = por %p87, %p88
    %p90 = scmp.ne.s32.totalorder %s78, %s79
    %p91 = scmp.eq.s32.totalorder %s15, 1
    %p92 = por %p90, %p91
    %p94 = scmp.ne.s32.totalorder %s79, %s93
    %p95 = scmp.eq.s32.totalorder %s15, 0
    %p96 = por %p94, %p95
    %s97 = ssub.s32 %s16, %s28
    %s98 = ssub.s32 %s17, %s24
    %s99 = sor.u32 %s97, %s98
    %p100 = scmp.eq.s32.totalorder %s99, 0
    %s102 = sadd.s32 %s101, 1
    %s103 = scalar_select %p100, %s101, %s102
    %p106 = pneg %p100
    %p107 = scmp.eq.s32.totalorder %s9, 1
    %p108 = por %p106, %p107
    %p109 = scmp.ne.s32.totalorder %s101, %s104
    %p110 = scmp.eq.s32.totalorder %s9, 0
    %p111 = por %p109, %p110
    %p112 = scmp.ne.s32.totalorder %s101, %s104
    %p113 = scmp.eq.s32.totalorder %s14, 1
    %p114 = por %p112, %p113
    %p115 = scmp.ne.s32.totalorder %s104, %s105
    %p116 = scmp.eq.s32.totalorder %s14, 0
    %p117 = por %p115, %p116
    %p118 = scmp.ne.s32.totalorder %s104, %s105
    %p119 = scmp.eq.s32.totalorder %s15, 1
    %p120 = por %p118, %p119
    %p122 = scmp.ne.s32.totalorder %s105, %s121
    %p123 = scmp.eq.s32.totalorder %s15, 0
    %p124 = por %p122, %p123
    %p125 = scmp.le.s32.totalorder 1, %s9
    %p126 = scmp.lt.s32.totalorder %s9, 3
    %p127 = pnand %p125, %p126
    %p128 = pneg %p127
    // Predicated region
    $region9: #{cnn_forward.19} parent=5 // pred_check
      _
    $region10: #{cnn_forward.19} parent=5 // pred_check_branch
      %130 = sbr.rel (%p127) target = $region12
    $region11: #{cnn_forward.19} parent=5 // pred_region
      %s131 = ssub.s32 %s9, 1
      // Predicated region
      $region13: #{cnn_forward.19} parent=11 // pred_check
        %p132 = pneg %p68
      $region14: #{cnn_forward.19} parent=11 // pred_check_branch
        %134 = sbr.rel (%p132) target = $region16
      $region15: #{cnn_forward.19} parent=11 // pred_region
        _
      $region16: #{cnn_forward.19} parent=11 // pred_fallthru
        _
      // Predicated region
      $region17: #{cnn_forward.19} parent=11 // pred_check
        %p135 = pneg %p89
      $region18: #{cnn_forward.19} parent=11 // pred_check_branch
        %137 = sbr.rel (%p135) target = $region20
      $region19: #{cnn_forward.19} parent=11 // pred_region
        _
      $region20: #{cnn_forward.19} parent=11 // pred_fallthru
        _
    $region12: #{cnn_forward.19} parent=5 // pred_fallthru
      _
    %p138 = scmp.lt.s32.totalorder %s9, 2
    // Predicated region
    $region21: #{cnn_forward.19} parent=5 // pred_check
      %p139 = pneg %p138
    $region22: #{cnn_forward.19} parent=5 // pred_check_branch
      %141 = sbr.rel (%p139) target = $region24
    $region23: #{cnn_forward.19} parent=5 // pred_region
      // Predicated region
      $region25: #{cnn_forward.19} parent=23 // pred_check
        %p142 = pneg %p41
      $region26: #{cnn_forward.19} parent=23 // pred_check_branch
        %144 = sbr.rel (%p142) target = $region28
      $region27: #{cnn_forward.19} parent=23 // pred_region
        %p145 = scmp.lt.s32.totalorder %s16, 1
        %s146 = scalar_select %p145, %s16, 1
        %s147 = smul.addr %s146, 200
        %s148 = smul.addr %s147, 4
        %s149 = scalar_lea.vmem %s0, %s148
      $region28: #{cnn_forward.19} parent=23 // pred_fallthru
        _
    $region24: #{cnn_forward.19} parent=5 // pred_fallthru
      _
    %p150 = scmp.le.s32.totalorder 1, %s9
    %p151 = scmp.lt.s32.totalorder %s9, 3
    %p152 = pnand %p150, %p151
    %p153 = pneg %p152
    // Predicated region
    $region29: #{cnn_forward.19} parent=5 // pred_check
      _
    $region30: #{cnn_forward.19} parent=5 // pred_check_branch
      %155 = sbr.rel (%p152) target = $region32
    $region31: #{cnn_forward.19} parent=5 // pred_region
      %s156 = ssub.s32 %s9, 1
      %p157 = scmp.lt.s32.totalorder %s18, 1
      %s158 = scalar_select %p157, %s18, 1
      %s159 = smul.addr %s158, 200
      %s160 = smul.addr %s159, 4
      %s161 = scalar_lea.vmem %s0, %s160
      %p162 = pneg %p47
      %p163 = pneg %p44
      %p164 = pneg %p68
      %p165 = pneg %p65
      %p166 = pneg %p89
      %p167 = pneg %p86
      %p168 = pneg %p117
      %p169 = pneg %p114
      %s170 = smul.u32 23, %s19
      %p171 = scmp.lt.s32.totalorder %s18, 1
      %s172 = scalar_select %p171, %s18, 1
      %p173 = scmp.lt.s32.totalorder %s170, 22
      %s174 = scalar_select %p173, %s170, 22
      %s175 = smul.addr %s174, 8
      %s176 = smul.addr %s172, 184
      %s177 = sadd.s32 %s175, %s176
      %s178 = smul.addr %s177, 4
      %s179 = scalar_lea.vmem %s3, %s178
      %p180 = scmp.lt.s32.totalorder %s18, 1
      %s181 = scalar_select %p180, %s18, 1
      %s182 = smul.addr %s181, 200
      %s183 = smul.addr %s182, 4
      %s184 = scalar_lea.vmem %s0, %s183
      %s185 = smul.u32 23, %s19
      %p186 = scmp.lt.s32.totalorder %s18, 1
      %s187 = scalar_select %p186, %s18, 1
      %p188 = scmp.lt.s32.totalorder %s185, 22
      %s189 = scalar_select %p188, %s185, 22
      %s190 = smul.addr %s189, 8
      %s191 = smul.addr %s187, 184
      %s192 = sadd.s32 %s190, %s191
      %s193 = smul.addr %s192, 4
      %s194 = scalar_lea.vmem %s3, %s193
      %s195 = smul.u32 23, %s19
      %s197 = smul.u32 %s19, 23
      %v198 = vld [vmem:[%s2] sm:$0xff]
      %v199 = vld [vmem:[%s2 + $0x8] sm:$0xff]
      %v200 = vld [vmem:[%s2 + $0x10] sm:$0xff]
      %v201 = vld [vmem:[%s2 + $0x18] sm:$0xff]
      %v202 = vld [vmem:[%s2 + $0x20] sm:$0xff]
      %v203 = vld [vmem:[%s2 + $0x28] sm:$0xff]
      %v204 = vld [vmem:[%s2 + $0x30] sm:$0xff]
      %v205 = vld [vmem:[%s2 + $0x38] sm:$0xff]
      %207 = vset.pattern.permute.xlu0 0
      %208 = vperm.xlu0 %207, %v198
      %v209 = vpop.permute.xlu0 %208
      %212 = vset.pattern.permute.xlu0 0
      %213 = vperm.xlu0 %212, %v199
      %v214 = vpop.permute.xlu0 %213
      %217 = vset.pattern.permute.xlu0 0
      %218 = vperm.xlu0 %217, %v200
      %v219 = vpop.permute.xlu0 %218
      %222 = vset.pattern.permute.xlu0 0
      %223 = vperm.xlu0 %222, %v201
      %v224 = vpop.permute.xlu0 %223
      %227 = vset.pattern.permute.xlu0 0
      %228 = vperm.xlu0 %227, %v202
      %v229 = vpop.permute.xlu0 %228
      %232 = vset.pattern.permute.xlu0 0
      %233 = vperm.xlu0 %232, %v203
      %v234 = vpop.permute.xlu0 %233
      %237 = vset.pattern.permute.xlu0 0
      %238 = vperm.xlu0 %237, %v204
      %v239 = vpop.permute.xlu0 %238
      %242 = vset.pattern.permute.xlu0 0
      %243 = vperm.xlu0 %242, %v205
      %v244 = vpop.permute.xlu0 %243
      loop: start=0, step=1, limit=23
      $region33: #{cnn_forward.19} parent=31 // loop_pre_header
        _
      $region34: #{cnn_forward.19} parent=31 // loop_header
        %s247 = sphi 0, %s251
        %p248 = scmp.ge.s32.totalorder %s247, 23
      $region35: #{cnn_forward.19} parent=31 // loop_header_branch
        %250 = sbr.rel (%p248) target = $region39
      $region36: #{cnn_forward.19} parent=31 // loop_body
        %s252 = sadd.s32 %s197, %s247
        %s253 = smul.u32 %s252, 8
        %s254 = smul.addr %s253, 4
        %s255 = scalar_lea.vmem %s184, %s254
        %v256 = vld [vmem:[%s255] sm:$0xf]
        %v257 = vld [vmem:[%s255 + $0x4] sm:$0xf]
        %v258 = vld [vmem:[%s255 + $0x8] sm:$0xf]
        %v259 = vld [vmem:[%s255 + $0xc] sm:$0xf]
        %v260 = vld [vmem:[%s255 + $0x10] sm:$0xf]
        %v261 = vld [vmem:[%s255 + $0x14] sm:$0xf]
        %v262 = vld [vmem:[%s255 + $0x18] sm:$0xf]
        %v263 = vld [vmem:[%s255 + $0x1c] sm:$0xf]
        %s264 = sadd.s32 %s252, 1
        %s265 = smul.u32 %s264, 8
        %s266 = smul.addr %s265, 4
        %s267 = scalar_lea.vmem %s184, %s266
        %v268 = vld [vmem:[%s267] sm:$0xf]
        %v269 = vld [vmem:[%s267 + $0x4] sm:$0xf]
        %v270 = vld [vmem:[%s267 + $0x8] sm:$0xf]
        %v271 = vld [vmem:[%s267 + $0xc] sm:$0xf]
        %v272 = vld [vmem:[%s267 + $0x10] sm:$0xf]
        %v273 = vld [vmem:[%s267 + $0x14] sm:$0xf]
        %v274 = vld [vmem:[%s267 + $0x18] sm:$0xf]
        %v275 = vld [vmem:[%s267 + $0x1c] sm:$0xf]
        %s276 = sadd.s32 %s252, 2
        %s277 = smul.u32 %s276, 8
        %s278 = smul.addr %s277, 4
        %s279 = scalar_lea.vmem %s184, %s278
        %v280 = vld [vmem:[%s279] sm:$0xf]
        %v281 = vld [vmem:[%s279 + $0x4] sm:$0xf]
        %v282 = vld [vmem:[%s279 + $0x8] sm:$0xf]
        %v283 = vld [vmem:[%s279 + $0xc] sm:$0xf]
        %v284 = vld [vmem:[%s279 + $0x10] sm:$0xf]
        %v285 = vld [vmem:[%s279 + $0x14] sm:$0xf]
        %v286 = vld [vmem:[%s279 + $0x18] sm:$0xf]
        %v287 = vld [vmem:[%s279 + $0x1c] sm:$0xf]
        %v296 = vunpack.c.l.b16 %v256
        %v297 = vunpack.c.l.b16 %v257
        %v298 = vunpack.c.l.b16 %v258
        %v299 = vunpack.c.l.b16 %v259
        %v300 = vunpack.c.l.b16 %v260
        %v301 = vunpack.c.l.b16 %v261
        %v302 = vunpack.c.l.b16 %v262
        %v303 = vunpack.c.l.b16 %v263
        %v304 = vpack.c.b16 %v297, %v296
        %v305 = vpack.c.b16 %v299, %v298
        %v306 = vpack.c.b16 %v301, %v300
        %v307 = vpack.c.b16 %v303, %v302
        %v320 = vunpack.c.l.b16 %v268
        %v321 = vunpack.c.l.b16 %v269
        %v322 = vunpack.c.l.b16 %v270
        %v323 = vunpack.c.l.b16 %v271
        %v324 = vunpack.c.l.b16 %v272
        %v325 = vunpack.c.l.b16 %v273
        %v326 = vunpack.c.l.b16 %v274
        %v327 = vunpack.c.l.b16 %v275
        %v328 = vpack.c.b16 %v321, %v320
        %v329 = vpack.c.b16 %v323, %v322
        %v330 = vpack.c.b16 %v325, %v324
        %v331 = vpack.c.b16 %v327, %v326
        %v344 = vunpack.c.l.b16 %v280
        %v345 = vunpack.c.l.b16 %v281
        %v346 = vunpack.c.l.b16 %v282
        %v347 = vunpack.c.l.b16 %v283
        %v348 = vunpack.c.l.b16 %v284
        %v349 = vunpack.c.l.b16 %v285
        %v350 = vunpack.c.l.b16 %v286
        %v351 = vunpack.c.l.b16 %v287
        %v352 = vpack.c.b16 %v345, %v344
        %v353 = vpack.c.b16 %v347, %v346
        %v354 = vpack.c.b16 %v349, %v348
        %v355 = vpack.c.b16 %v351, %v350
        %360 = vrot.lane.b32.xlu0 %v304, 127
        %v361 = vpop.permute.xlu0 %360
        %362 = vrot.lane.b32.xlu0 %v305, 127
        %v363 = vpop.permute.xlu0 %362
        %364 = vrot.lane.b32.xlu0 %v306, 127
        %v365 = vpop.permute.xlu0 %364
        %366 = vrot.lane.b32.xlu0 %v307, 127
        %v367 = vpop.permute.xlu0 %366
        %368 = vrot.lane.b32.xlu0 %v328, 127
        %v369 = vpop.permute.xlu0 %368
        %370 = vrot.lane.b32.xlu0 %v329, 127
        %v371 = vpop.permute.xlu0 %370
        %372 = vrot.lane.b32.xlu0 %v330, 127
        %v373 = vpop.permute.xlu0 %372
        %374 = vrot.lane.b32.xlu0 %v331, 127
        %v375 = vpop.permute.xlu0 %374
        %376 = vrot.lane.b32.xlu0 %v352, 127
        %v377 = vpop.permute.xlu0 %376
        %378 = vrot.lane.b32.xlu0 %v353, 127
        %v379 = vpop.permute.xlu0 %378
        %380 = vrot.lane.b32.xlu0 %v354, 127
        %v381 = vpop.permute.xlu0 %380
        %382 = vrot.lane.b32.xlu0 %v355, 127
        %v383 = vpop.permute.xlu0 %382
        %396 = vrot.lane.b32.xlu0 %v304, 126
        %v397 = vpop.permute.xlu0 %396
        %398 = vrot.lane.b32.xlu0 %v305, 126
        %v399 = vpop.permute.xlu0 %398
        %400 = vrot.lane.b32.xlu0 %v306, 126
        %v401 = vpop.permute.xlu0 %400
        %402 = vrot.lane.b32.xlu0 %v307, 126
        %v403 = vpop.permute.xlu0 %402
        %404 = vrot.lane.b32.xlu0 %v328, 126
        %v405 = vpop.permute.xlu0 %404
        %406 = vrot.lane.b32.xlu0 %v329, 126
        %v407 = vpop.permute.xlu0 %406
        %408 = vrot.lane.b32.xlu0 %v330, 126
        %v409 = vpop.permute.xlu0 %408
        %410 = vrot.lane.b32.xlu0 %v331, 126
        %v411 = vpop.permute.xlu0 %410
        %412 = vrot.lane.b32.xlu0 %v352, 126
        %v413 = vpop.permute.xlu0 %412
        %414 = vrot.lane.b32.xlu0 %v353, 126
        %v415 = vpop.permute.xlu0 %414
        %416 = vrot.lane.b32.xlu0 %v354, 126
        %v417 = vpop.permute.xlu0 %416
        %418 = vrot.lane.b32.xlu0 %v355, 126
        %v419 = vpop.permute.xlu0 %418
        %v432 = vld [vmem:[%s1] sm:$0xff]
        %v433 = vld [vmem:[%s1 + $0x8] sm:$0xff]
        %v434 = vld [vmem:[%s1 + $0x10] sm:$0xf]
        %v435 = vld [vmem:[%s1 + $0x14] sm:$0xff]
        %v436 = vld [vmem:[%s1 + $0x1c] sm:$0xff]
        %v437 = vld [vmem:[%s1 + $0x24] sm:$0xf]
        %v438 = vld [vmem:[%s1 + $0x28] sm:$0xff]
        %v439 = vld [vmem:[%s1 + $0x30] sm:$0xff]
        %v440 = vld [vmem:[%s1 + $0x38] sm:$0xf]
        %v441 = vld [vmem:[%s1 + $0x3c] sm:$0xff]
        %v442 = vld [vmem:[%s1 + $0x44] sm:$0xff]
        %v443 = vld [vmem:[%s1 + $0x4c] sm:$0xf]
        %v444 = vld [vmem:[%s1 + $0x50] sm:$0xff]
        %v445 = vld [vmem:[%s1 + $0x58] sm:$0xff]
        %v446 = vld [vmem:[%s1 + $0x60] sm:$0xf]
        %v447 = vld [vmem:[%s1 + $0x64] sm:$0xff]
        %v448 = vld [vmem:[%s1 + $0x6c] sm:$0xff]
        %v449 = vld [vmem:[%s1 + $0x74] sm:$0xf]
        %v450 = vld [vmem:[%s1 + $0x78] sm:$0xff]
        %v451 = vld [vmem:[%s1 + $0x80] sm:$0xff]
        %v452 = vld [vmem:[%s1 + $0x88] sm:$0xf]
        %v453 = vld [vmem:[%s1 + $0x8c] sm:$0xff]
        %v454 = vld [vmem:[%s1 + $0x94] sm:$0xff]
        %v455 = vld [vmem:[%s1 + $0x9c] sm:$0xf]
        %v480 = vunpack.c.l.b16 %v432
        %v481 = vunpack.c.h.b16 %v432
        %v482 = vunpack.c.l.b16 %v433
        %v483 = vunpack.c.h.b16 %v433
        %v484 = vunpack.c.l.b16 %v434
        %v485 = vunpack.c.l.b16 %v435
        %v486 = vunpack.c.h.b16 %v435
        %v487 = vunpack.c.l.b16 %v436
        %v488 = vunpack.c.h.b16 %v436
        %v489 = vunpack.c.l.b16 %v437
        %v490 = vunpack.c.l.b16 %v438
        %v491 = vunpack.c.h.b16 %v438
        %v492 = vunpack.c.l.b16 %v439
        %v493 = vunpack.c.h.b16 %v439
        %v494 = vunpack.c.l.b16 %v440
        %v495 = vunpack.c.l.b16 %v441
        %v496 = vunpack.c.h.b16 %v441
        %v497 = vunpack.c.l.b16 %v442
        %v498 = vunpack.c.h.b16 %v442
        %v499 = vunpack.c.l.b16 %v443
        %v500 = vunpack.c.l.b16 %v444
        %v501 = vunpack.c.h.b16 %v444
        %v502 = vunpack.c.l.b16 %v445
        %v503 = vunpack.c.h.b16 %v445
        %v504 = vunpack.c.l.b16 %v446
        %v505 = vunpack.c.l.b16 %v447
        %v506 = vunpack.c.h.b16 %v447
        %v507 = vunpack.c.l.b16 %v448
        %v508 = vunpack.c.h.b16 %v448
        %v509 = vunpack.c.l.b16 %v449
        %v510 = vunpack.c.l.b16 %v450
        %v511 = vunpack.c.h.b16 %v450
        %v512 = vunpack.c.l.b16 %v451
        %v513 = vunpack.c.h.b16 %v451
        %v514 = vunpack.c.l.b16 %v452
        %v515 = vunpack.c.l.b16 %v453
        %v516 = vunpack.c.h.b16 %v453
        %v517 = vunpack.c.l.b16 %v454
        %v518 = vunpack.c.h.b16 %v454
        %v519 = vunpack.c.l.b16 %v455
        %v520 = vpack.c.b16 %v485, %v480
        %v521 = vpack.c.b16 %v486, %v481
        %v522 = vpack.c.b16 %v487, %v482
        %v523 = vpack.c.b16 %v488, %v483
        %v524 = vpack.c.b16 %v489, %v484
        %v525 = vpack.c.b16 %v495, %v490
        %v526 = vpack.c.b16 %v496, %v491
        %v527 = vpack.c.b16 %v497, %v492
        %v528 = vpack.c.b16 %v498, %v493
        %v529 = vpack.c.b16 %v499, %v494
        %v530 = vpack.c.b16 %v505, %v500
        %v531 = vpack.c.b16 %v506, %v501
        %v532 = vpack.c.b16 %v507, %v502
        %v533 = vpack.c.b16 %v508, %v503
        %v534 = vpack.c.b16 %v509, %v504
        %v535 = vpack.c.b16 %v515, %v510
        %v536 = vpack.c.b16 %v516, %v511
        %v537 = vpack.c.b16 %v517, %v512
        %v538 = vpack.c.b16 %v518, %v513
        %v539 = vpack.c.b16 %v519, %v514
        %vm556 = vcmask 523264
        %v558 = vsel %vm556, %v524, 0
        %v561 = vsel %vm556, %v529, 0
        %v564 = vsel %vm556, %v534, 0
        %v567 = vsel %vm556, %v539, 0
        %569 = vmatprep.subr.bf16.mxu0 0
        %570 = vmatpush1.bf16.msra.mxu0 %v304
        %571 = vmatprep.subr.bf16.mxu0 0
        %572 = vmatpush1.bf16.msra.mxu0 %v305
        %573 = vmatprep.subr.bf16.mxu0 0
        %574 = vmatpush1.bf16.msra.mxu0 %v306
        %575 = vmatprep.subr.bf16.mxu0 0
        %576 = vmatpush1.bf16.msra.mxu0 %v307
        %577 = vmatprep.subr.bf16.mxu0 0
        %578 = vmatpush1.bf16.msra.mxu0 %v328
        %579 = vmatprep.subr.bf16.mxu0 0
        %580 = vmatpush1.bf16.msra.mxu0 %v329
        %581 = vmatprep.subr.bf16.mxu0 0
        %582 = vmatpush1.bf16.msra.mxu0 %v330
        %583 = vmatprep.subr.bf16.mxu0 0
        %584 = vmatpush1.bf16.msra.mxu0 %v331
        %585 = vmatprep.subr.bf16.mxu0 0
        %586 = vmatpush1.bf16.msra.mxu0 %v352
        %587 = vmatprep.subr.bf16.mxu0 0
        %588 = vmatpush1.bf16.msra.mxu0 %v353
        %589 = vmatprep.subr.bf16.mxu0 0
        %590 = vmatpush1.bf16.msra.mxu0 %v354
        %591 = vmatprep.subr.bf16.mxu0 0
        %592 = vmatpush1.bf16.msra.mxu0 %v355
        %593 = vmatprep.subr.bf16.mxu0 0
        %594 = vmatpush1.bf16.msra.mxu0 %v361
        %595 = vmatprep.subr.bf16.mxu0 0
        %596 = vmatpush1.bf16.msra.mxu0 %v363
        %597 = vmatprep.subr.bf16.mxu0 0
        %598 = vmatpush1.bf16.msra.mxu0 %v365
        %599 = vmatprep.subr.bf16.mxu0 0
        %600 = vmatpush1.bf16.msra.mxu0 %v367
        %601 = vmatprep.mubr.bf16.mxu0 %v521
        %602 = vmatmul.mubr.bf16.gmra.mrb[0].mxu0 %v520
        %v603 = vpop.f32.mrb[0].mxu0
        %v604 = vadd.f32 %v209, %v603
        %v605 = vpop.f32.mrb[0].mxu0
        %v606 = vpop.f32.mrb[0].mxu0
        %v607 = vadd.f32 %v214, %v606
        %v608 = vpop.f32.mrb[0].mxu0
        %609 = vmatprep.mubr.bf16.mxu0 %v526
        %610 = vmatmul.mubr.bf16.gmra.mrb[0].mxu0 %v525
        %v611 = vpop.f32.mrb[0].mxu0
        %v612 = vadd.f32 %v219, %v611
        %v613 = vpop.f32.mrb[0].mxu0
        %v614 = vpop.f32.mrb[0].mxu0
        %v615 = vadd.f32 %v224, %v614
        %v616 = vpop.f32.mrb[0].mxu0
        %617 = vmatprep.mubr.bf16.mxu0 %v531
        %618 = vmatmul.mubr.bf16.gmra.mrb[0].mxu0 %v530
        %v619 = vpop.f32.mrb[0].mxu0
        %v620 = vadd.f32 %v229, %v619
        %v621 = vpop.f32.mrb[0].mxu0
        %v622 = vpop.f32.mrb[0].mxu0
        %v623 = vadd.f32 %v234, %v622
        %v624 = vpop.f32.mrb[0].mxu0
        %625 = vmatprep.mubr.bf16.mxu0 %v536
        %626 = vmatmul.mubr.bf16.gmra.mrb[0].mxu0 %v535
        %v627 = vpop.f32.mrb[0].mxu0
        %v628 = vadd.f32 %v239, %v627
        %v629 = vpop.f32.mrb[0].mxu0
        %v630 = vpop.f32.mrb[0].mxu0
        %v631 = vadd.f32 %v244, %v630
        %v632 = vpop.f32.mrb[0].mxu0
        %633 = vdwg.mxu0
        %634 = vmatprep.subr.bf16.mxu0 0
        %635 = vmatpush1.bf16.msra.mxu0 %v369
        %636 = vmatprep.subr.bf16.mxu0 0
        %637 = vmatpush1.bf16.msra.mxu0 %v371
        %638 = vmatprep.subr.bf16.mxu0 0
        %639 = vmatpush1.bf16.msra.mxu0 %v373
        %640 = vmatprep.subr.bf16.mxu0 0
        %641 = vmatpush1.bf16.msra.mxu0 %v375
        %642 = vmatprep.subr.bf16.mxu0 0
        %643 = vmatpush1.bf16.msra.mxu0 %v377
        %644 = vmatprep.subr.bf16.mxu0 0
        %645 = vmatpush1.bf16.msra.mxu0 %v379
        %646 = vmatprep.subr.bf16.mxu0 0
        %647 = vmatpush1.bf16.msra.mxu0 %v381
        %648 = vmatprep.subr.bf16.mxu0 0
        %649 = vmatpush1.bf16.msra.mxu0 %v383
        %650 = vmatprep.subr.bf16.mxu0 0
        %651 = vmatpush1.bf16.msra.mxu0 %v397
        %652 = vmatprep.subr.bf16.mxu0 0
        %653 = vmatpush1.bf16.msra.mxu0 %v399
        %654 = vmatprep.subr.bf16.mxu0 0
        %655 = vmatpush1.bf16.msra.mxu0 %v401
        %656 = vmatprep.subr.bf16.mxu0 0
        %657 = vmatpush1.bf16.msra.mxu0 %v403
        %658 = vmatprep.subr.bf16.mxu0 0
        %659 = vmatpush1.bf16.msra.mxu0 %v405
        %660 = vmatprep.subr.bf16.mxu0 0
        %661 = vmatpush1.bf16.msra.mxu0 %v407
        %662 = vmatprep.subr.bf16.mxu0 0
        %663 = vmatpush1.bf16.msra.mxu0 %v409
        %664 = vmatprep.subr.bf16.mxu0 0
        %665 = vmatpush1.bf16.msra.mxu0 %v411
        %666 = vmatprep.mubr.bf16.mxu0 %v523
        %667 = vmatmul.mubr.bf16.gmra.mrb[0].mxu0 %v522
        %v668 = vpop.f32.mrb[0].mxu0
        %v669 = vadd.f32 %v604, %v668
        %v670 = vpop.f32.mrb[0].mxu0
        %v671 = vpop.f32.mrb[0].mxu0
        %v672 = vadd.f32 %v607, %v671
        %v673 = vpop.f32.mrb[0].mxu0
        %674 = vmatprep.mubr.bf16.mxu0 %v528
        %675 = vmatmul.mubr.bf16.gmra.mrb[0].mxu0 %v527
        %v676 = vpop.f32.mrb[0].mxu0
        %v677 = vadd.f32 %v612, %v676
        %v678 = vpop.f32.mrb[0].mxu0
        %v679 = vpop.f32.mrb[0].mxu0
        %v680 = vadd.f32 %v615, %v679
        %v681 = vpop.f32.mrb[0].mxu0
        %682 = vmatprep.mubr.bf16.mxu0 %v533
        %683 = vmatmul.mubr.bf16.gmra.mrb[0].mxu0 %v532
        %v684 = vpop.f32.mrb[0].mxu0
        %v685 = vadd.f32 %v620, %v684
        %v686 = vpop.f32.mrb[0].mxu0
        %v687 = vpop.f32.mrb[0].mxu0
        %v688 = vadd.f32 %v623, %v687
        %v689 = vpop.f32.mrb[0].mxu0
        %690 = vmatprep.mubr.bf16.mxu0 %v538
        %691 = vmatmul.mubr.bf16.gmra.mrb[0].mxu0 %v537
        %v692 = vpop.f32.mrb[0].mxu0
        %v693 = vadd.f32 %v628, %v692
        %v694 = vpop.f32.mrb[0].mxu0
        %v695 = vpop.f32.mrb[0].mxu0
        %v696 = vadd.f32 %v631, %v695
        %v697 = vpop.f32.mrb[0].mxu0
        %698 = vdwg.mxu0
        %699 = vmatprep.subr.bf16.mxu0 0
        %700 = vmatpush1.bf16.msra.mxu0 %v413
        %701 = vmatprep.subr.bf16.mxu0 0
        %702 = vmatpush1.bf16.msra.mxu0 %v415
        %703 = vmatprep.subr.bf16.mxu0 0
        %704 = vmatpush1.bf16.msra.mxu0 %v417
        %705 = vmatprep.subr.bf16.mxu0 0
        %706 = vmatpush1.bf16.msra.mxu0 %v419
        %707 = vmatprep.subr.bf16.mxu0 0
        %708 = vmatpush1.bf16.msra.mxu0 0
        %709 = vmatprep.subr.bf16.mxu0 0
        %710 = vmatpush1.bf16.msra.mxu0 0
        %711 = vmatprep.subr.bf16.mxu0 0
        %712 = vmatpush1.bf16.msra.mxu0 0
        %713 = vmatprep.subr.bf16.mxu0 0
        %714 = vmatpush1.bf16.msra.mxu0 0
        %715 = vmatprep.subr.bf16.mxu0 0
        %716 = vmatpush1.bf16.msra.mxu0 0
        %717 = vmatprep.subr.bf16.mxu0 0
        %718 = vmatpush1.bf16.msra.mxu0 0
        %719 = vmatprep.subr.bf16.mxu0 0
        %720 = vmatpush1.bf16.msra.mxu0 0
        %721 = vmatprep.subr.bf16.mxu0 0
        %722 = vmatpush1.bf16.msra.mxu0 0
        %723 = vmatprep.subr.bf16.mxu0 0
        %724 = vmatpush1.bf16.msra.mxu0 0
        %725 = vmatprep.subr.bf16.mxu0 0
        %726 = vmatpush1.bf16.msra.mxu0 0
        %727 = vmatprep.subr.bf16.mxu0 0
        %728 = vmatpush1.bf16.msra.mxu0 0
        %729 = vmatprep.subr.bf16.mxu0 0
        %730 = vmatpush1.bf16.msra.mxu0 0
        %731 = vmatprep.mubr.bf16.mxu0 0
        %732 = vmatmul.mubr.bf16.gmra.mrb[0].mxu0 %v558
        %v733 = vpop.f32.mrb[0].mxu0
        %v734 = vadd.f32 %v669, %v733
        %v735 = vpop.f32.mrb[0].mxu0
        %v736 = vpop.f32.mrb[0].mxu0
        %v737 = vadd.f32 %v672, %v736
        %v738 = vpop.f32.mrb[0].mxu0
        %739 = vmatprep.mubr.bf16.mxu0 0
        %740 = vmatmul.mubr.bf16.gmra.mrb[0].mxu0 %v561
        %v741 = vpop.f32.mrb[0].mxu0
        %v742 = vadd.f32 %v677, %v741
        %v743 = vpop.f32.mrb[0].mxu0
        %v744 = vpop.f32.mrb[0].mxu0
        %v745 = vadd.f32 %v680, %v744
        %v746 = vpop.f32.mrb[0].mxu0
        %747 = vmatprep.mubr.bf16.mxu0 0
        %748 = vmatmul.mubr.bf16.gmra.mrb[0].mxu0 %v564
        %v749 = vpop.f32.mrb[0].mxu0
        %v750 = vadd.f32 %v685, %v749
        %v751 = vpop.f32.mrb[0].mxu0
        %v752 = vpop.f32.mrb[0].mxu0
        %v753 = vadd.f32 %v688, %v752
        %v754 = vpop.f32.mrb[0].mxu0
        %755 = vmatprep.mubr.bf16.mxu0 0
        %756 = vmatmul.mubr.bf16.gmra.mrb[0].mxu0 %v567
        %v757 = vpop.f32.mrb[0].mxu0
        %v758 = vadd.f32 %v693, %v757
        %v759 = vpop.f32.mrb[0].mxu0
        %v760 = vpop.f32.mrb[0].mxu0
        %v761 = vadd.f32 %v696, %v760
        %v762 = vpop.f32.mrb[0].mxu0
        %763 = vdwg.mxu0
        %v764 = vmax.f32 %v734, 0.0
        %v765 = vmax.f32 %v737, 0.0
        %v766 = vmax.f32 %v742, 0.0
        %v767 = vmax.f32 %v745, 0.0
        %v768 = vmax.f32 %v750, 0.0
        %v769 = vmax.f32 %v753, 0.0
        %v770 = vmax.f32 %v758, 0.0
        %v771 = vmax.f32 %v761, 0.0
        %v772 = vpack.c.bf16 %v765, %v764
        %v773 = vpack.c.bf16 %v767, %v766
        %v774 = vpack.c.bf16 %v769, %v768
        %v775 = vpack.c.bf16 %v771, %v770
        %v780 = vunpack.c.l.b16 %v772
        %v781 = vunpack.c.h.b16 %v772
        %v782 = vunpack.c.l.b16 %v773
        %v783 = vunpack.c.h.b16 %v773
        %v784 = vunpack.c.l.b16 %v774
        %v785 = vunpack.c.h.b16 %v774
        %v786 = vunpack.c.l.b16 %v775
        %v787 = vunpack.c.h.b16 %v775
        %v788 = vpack.c.b16 %v780, %v780
        %v789 = vpack.c.b16 %v781, %v781
        %v790 = vpack.c.b16 %v782, %v782
        %v791 = vpack.c.b16 %v783, %v783
        %v792 = vpack.c.b16 %v784, %v784
        %v793 = vpack.c.b16 %v785, %v785
        %v794 = vpack.c.b16 %v786, %v786
        %v795 = vpack.c.b16 %v787, %v787
        %s804 = smul.u32 %s247, 8
        %s805 = smul.addr %s804, 4
        %s806 = scalar_lea.vmem %s194, %s805
        %vm807 = vcmask 183296
        %808 = vst.msk [vmem:[%s806] sm:$0xf] %vm807, %v788
        %809 = vst.msk [vmem:[%s806 + $0x4] sm:$0xf] %vm807, %v789
        %810 = vst.msk [vmem:[%s806 + $0x8] sm:$0xf] %vm807, %v790
        %811 = vst.msk [vmem:[%s806 + $0xc] sm:$0xf] %vm807, %v791
        %812 = vst.msk [vmem:[%s806 + $0x10] sm:$0xf] %vm807, %v792
        %813 = vst.msk [vmem:[%s806 + $0x14] sm:$0xf] %vm807, %v793
        %814 = vst.msk [vmem:[%s806 + $0x18] sm:$0xf] %vm807, %v794
        %815 = vst.msk [vmem:[%s806 + $0x1c] sm:$0xf] %vm807, %v795
      $region37: #{cnn_forward.19} parent=31 // loop_footer
        %s251 = sadd.s32 1, %s247
      $region38: #{cnn_forward.19} parent=31 // loop_footer_branch
        %246 = sbr.rel target = $region34
      $region39: #{cnn_forward.19} parent=31 // loop_exit
        _
      %s816 = smul.u32 23, %s19
      %p817 = scmp.lt.s32.totalorder %s18, 1
      %s818 = scalar_select %p817, %s18, 1
      %p819 = scmp.lt.s32.totalorder %s816, 22
      %s820 = scalar_select %p819, %s816, 22
      %s821 = smul.addr %s820, 8
      %s822 = smul.addr %s818, 184
      %s823 = sadd.s32 %s821, %s822
      %s824 = smul.addr %s823, 4
      %s825 = scalar_lea.vmem %s3, %s824
      // Predicated region
      $region40: #{cnn_forward.19} parent=31 // pred_check
        %p826 = pneg %p114
      $region41: #{cnn_forward.19} parent=31 // pred_check_branch
        %828 = sbr.rel (%p826) target = $region43
      $region42: #{cnn_forward.19} parent=31 // pred_region
        %s829 = smul.u32 23, %s19
      $region43: #{cnn_forward.19} parent=31 // pred_fallthru
        _
    $region32: #{cnn_forward.19} parent=5 // pred_fallthru
      _
    %p830 = scmp.le.s32.totalorder 2, %s9
    // Predicated region
    $region44: #{cnn_forward.19} parent=5 // pred_check
      %p831 = pneg %p830
    $region45: #{cnn_forward.19} parent=5 // pred_check_branch
      %833 = sbr.rel (%p831) target = $region47
    $region46: #{cnn_forward.19} parent=5 // pred_region
      %s834 = ssub.s32 %s9, 2
      // Predicated region
      $region48: #{cnn_forward.19} parent=46 // pred_check
        %p835 = pneg %p120
      $region49: #{cnn_forward.19} parent=46 // pred_check_branch
        %837 = sbr.rel (%p835) target = $region51
      $region50: #{cnn_forward.19} parent=46 // pred_region
        %s838 = smul.u32 23, %s21
        %p839 = scmp.lt.s32.totalorder %s20, 1
        %s840 = scalar_select %p839, %s20, 1
        %p841 = scmp.lt.s32.totalorder %s838, 22
        %s842 = scalar_select %p841, %s838, 22
        %s843 = smul.addr %s842, 8
        %s844 = smul.addr %s840, 184
        %s845 = sadd.s32 %s843, %s844
        %s846 = smul.addr %s845, 4
        %s847 = scalar_lea.vmem %s3, %s846
      $region51: #{cnn_forward.19} parent=46 // pred_fallthru
        _
    $region47: #{cnn_forward.19} parent=5 // pred_fallthru
      _
  $region6: #{cnn_forward.19} parent=0 // loop_footer
    %s13 = sadd.s32 1, %s9
  $region7: #{cnn_forward.19} parent=0 // loop_footer_branch
    %8 = sbr.rel target = $region3
  $region8: #{cnn_forward.19} parent=0 // loop_exit
    _

// kernel: cnn_forward.20
$region0: #{cnn_forward.20}
  #allocation0 [shape = 'u32[]', space=smem, size = 0x4, offset = 0x4, fixed_abs, tag = 'smem constant byte address 0x4 - core index']
  #allocation1 [shape = 'u32[144,128]{1,0:T(1,128)}', space=vmem, size = 0x12000, scoped, tag = 'internal scratch']
  %s0 = inlined_call_operand.vmem [shape: bf16[2,23,64,23], index: 0, kind: input, shape index: {}]
  %s1 = inlined_call_operand.vmem [shape: bf16[21,11], index: 1, kind: input, shape index: {}]
  %s2 = inlined_call_operand.vmem [shape: bf16[2,11,64,11], index: 2, kind: output, shape index: {}]
  %s3 = sld [smem:[#allocation0]]
  $region48: #{cnn_forward.20} parent=0
    _
  %s5 = ssub.s32 1, %s3
  %s6 = scalar_select 0, %s5, %s3
  loop: start=0, step=1, limit=4
  $region2: #{cnn_forward.20} parent=0 // loop_pre_header
    _
  $region3: #{cnn_forward.20} parent=0 // loop_header
    %s8 = sphi 0, %s12
    %p9 = scmp.ge.s32.totalorder %s8, 4
    %s18 = sphi 0, %s20
    %s21 = sphi 0, %s18
    %s22 = sphi 0, %s21
    %s38 = sphi 0, %s22
    %s42 = sphi 0, %s42
    %s44 = sphi 0, %s42
    %s45 = sphi 0, %s44
    %s59 = sphi 0, %s45
    %s65 = sphi 0, %s67
    %s68 = sphi 0, %s65
    %s69 = sphi 0, %s68
    %s85 = sphi 0, %s69
  $region4: #{cnn_forward.20} parent=0 // loop_header_branch
    %11 = sbr.rel (%p9) target = $region8
  $region5: #{cnn_forward.20} parent=0 // loop_body
    %s13 = ssub.s32 %s8, 1
    %s14 = ssub.s32 %s8, 2
    %s15 = sadd.s32 %s8, 1
    %s16 = ssub.s32 %s8, %s15
    %p17 = scmp.eq.s32.totalorder %s16, 0
    %s19 = sadd.s32 %s18, 1
    %s20 = scalar_select %p17, %s18, %s19
    %p23 = pneg %p17
    %p24 = scmp.eq.s32.totalorder %s8, 1
    %p25 = por %p23, %p24
    %p26 = scmp.ne.s32.totalorder %s18, %s21
    %p27 = scmp.eq.s32.totalorder %s8, 0
    %p28 = por %p26, %p27
    %p29 = scmp.ne.s32.totalorder %s18, %s21
    %p30 = scmp.eq.s32.totalorder %s13, 1
    %p31 = por %p29, %p30
    %p32 = scmp.ne.s32.totalorder %s21, %s22
    %p33 = scmp.eq.s32.totalorder %s13, 0
    %p34 = por %p32, %p33
    %p35 = scmp.ne.s32.totalorder %s21, %s22
    %p36 = scmp.eq.s32.totalorder %s14, 1
    %p37 = por %p35, %p36
    %p39 = scmp.ne.s32.totalorder %s22, %s38
    %p40 = scmp.eq.s32.totalorder %s14, 0
    %p41 = por %p39, %p40
    %s43 = sadd.s32 %s42, 1
    %p46 = scmp.eq.s32.totalorder %s8, 1
    %p47 = scmp.ne.s32.totalorder %s42, %s44
    %p48 = scmp.eq.s32.totalorder %s8, 0
    %p49 = por %p47, %p48
    %p50 = scmp.ne.s32.totalorder %s42, %s44
    %p51 = scmp.eq.s32.totalorder %s13, 1
    %p52 = por %p50, %p51
    %p53 = scmp.ne.s32.totalorder %s44, %s45
    %p54 = scmp.eq.s32.totalorder %s13, 0
    %p55 = por %p53, %p54
    %p56 = scmp.ne.s32.totalorder %s44, %s45
    %p57 = scmp.eq.s32.totalorder %s14, 1
    %p58 = por %p56, %p57
    %p60 = scmp.ne.s32.totalorder %s45, %s59
    %p61 = scmp.eq.s32.totalorder %s14, 0
    %p62 = por %p60, %p61
    %s63 = ssub.s32 %s8, %s15
    %p64 = scmp.eq.s32.totalorder %s63, 0
    %s66 = sadd.s32 %s65, 1
    %s67 = scalar_select %p64, %s65, %s66
    %p70 = pneg %p64
    %p71 = scmp.eq.s32.totalorder %s8, 1
    %p72 = por %p70, %p71
    %p73 = scmp.ne.s32.totalorder %s65, %s68
    %p74 = scmp.eq.s32.totalorder %s8, 0
    %p75 = por %p73, %p74
    %p76 = scmp.ne.s32.totalorder %s65, %s68
    %p77 = scmp.eq.s32.totalorder %s13, 1
    %p78 = por %p76, %p77
    %p79 = scmp.ne.s32.totalorder %s68, %s69
    %p80 = scmp.eq.s32.totalorder %s13, 0
    %p81 = por %p79, %p80
    %p82 = scmp.ne.s32.totalorder %s68, %s69
    %p83 = scmp.eq.s32.totalorder %s14, 1
    %p84 = por %p82, %p83
    %p86 = scmp.ne.s32.totalorder %s69, %s85
    %p87 = scmp.eq.s32.totalorder %s14, 0
    %p88 = por %p86, %p87
    %p89 = scmp.le.s32.totalorder 1, %s8
    %p90 = scmp.lt.s32.totalorder %s8, 3
    %p91 = pnand %p89, %p90
    %p92 = pneg %p91
    // Predicated region
    $region9: #{cnn_forward.20} parent=5 // pred_check
      _
    $region10: #{cnn_forward.20} parent=5 // pred_check_branch
      %94 = sbr.rel (%p91) target = $region12
    $region11: #{cnn_forward.20} parent=5 // pred_region
      %s95 = ssub.s32 %s8, 1
      // Predicated region
      $region13: #{cnn_forward.20} parent=11 // pred_check
        %p96 = pneg %p55
      $region14: #{cnn_forward.20} parent=11 // pred_check_branch
        %98 = sbr.rel (%p96) target = $region16
      $region15: #{cnn_forward.20} parent=11 // pred_region
        _
      $region16: #{cnn_forward.20} parent=11 // pred_fallthru
        _
    $region12: #{cnn_forward.20} parent=5 // pred_fallthru
      _
    %p99 = scmp.lt.s32.totalorder %s8, 2
    // Predicated region
    $region17: #{cnn_forward.20} parent=5 // pred_check
      %p100 = pneg %p99
    $region18: #{cnn_forward.20} parent=5 // pred_check_branch
      %102 = sbr.rel (%p100) target = $region20
    $region19: #{cnn_forward.20} parent=5 // pred_region
      // Predicated region
      $region21: #{cnn_forward.20} parent=19 // pred_check
        %p103 = pneg %p28
      $region22: #{cnn_forward.20} parent=19 // pred_check_branch
        %105 = sbr.rel (%p103) target = $region24
      $region23: #{cnn_forward.20} parent=19 // pred_region
        %p106 = scmp.lt.s32.totalorder %s8, 1
        %s107 = scalar_select %p106, %s8, 1
        %s108 = smul.addr %s107, 184
        %s109 = smul.addr %s108, 4
        %s110 = scalar_lea.vmem %s0, %s109
      $region24: #{cnn_forward.20} parent=19 // pred_fallthru
        _
    $region20: #{cnn_forward.20} parent=5 // pred_fallthru
      _
    %p111 = scmp.le.s32.totalorder 1, %s8
    %p112 = scmp.lt.s32.totalorder %s8, 3
    %p113 = pnand %p111, %p112
    %p114 = pneg %p113
    // Predicated region
    $region25: #{cnn_forward.20} parent=5 // pred_check
      _
    $region26: #{cnn_forward.20} parent=5 // pred_check_branch
      %116 = sbr.rel (%p113) target = $region28
    $region27: #{cnn_forward.20} parent=5 // pred_region
      %s117 = ssub.s32 %s8, 1
      %p118 = scmp.lt.s32.totalorder %s13, 1
      %s119 = scalar_select %p118, %s13, 1
      %s120 = smul.addr %s119, 184
      %s121 = smul.addr %s120, 4
      %s122 = scalar_lea.vmem %s0, %s121
      %p123 = pneg %p34
      %p124 = pneg %p31
      %p125 = pneg %p55
      %p126 = pneg %p52
      %p127 = pneg %p81
      %p128 = pneg %p78
      %p129 = scmp.lt.s32.totalorder %s13, 1
      %s130 = scalar_select %p129, %s13, 1
      %s131 = smul.addr %s130, 88
      %s132 = smul.addr %s131, 4
      %s133 = scalar_lea.vmem %s2, %s132
      %p134 = scmp.lt.s32.totalorder %s13, 1
      %s135 = scalar_select %p134, %s13, 1
      %s136 = smul.addr %s135, 184
      %s137 = smul.addr %s136, 4
      %s138 = scalar_lea.vmem %s0, %s137
      %p139 = scmp.lt.s32.totalorder %s13, 1
      %s140 = scalar_select %p139, %s13, 1
      %s141 = smul.addr %s140, 88
      %s142 = smul.addr %s141, 4
      %s143 = scalar_lea.vmem %s2, %s142
      %v145 = vld [vmem:[%s1] sm:$0xf]
      %v146 = vld [vmem:[%s1 + $0x4] sm:$0xf]
      %v147 = vld [vmem:[%s1 + $0x8] sm:$0x7]
      loop: start=0, step=1, limit=11
      $region29: #{cnn_forward.20} parent=27 // loop_pre_header
        _
      $region30: #{cnn_forward.20} parent=27 // loop_header
        %s149 = sphi 0, %s153
        %p150 = scmp.ge.s32.totalorder %s149, 11
      $region31: #{cnn_forward.20} parent=27 // loop_header_branch
        %152 = sbr.rel (%p150) target = $region35
      $region32: #{cnn_forward.20} parent=27 // loop_body
        %s154 = smul.u32 %s149, 2
        %s155 = smul.u32 %s154, 8
        %s156 = smul.addr %s155, 4
        %s157 = scalar_lea.vmem %s138, %s156
        %v158 = vld [vmem:[%s157] sm:$0xf]
        %v159 = vld [vmem:[%s157 + $0x4] sm:$0xf]
        %v160 = vld [vmem:[%s157 + $0x8] sm:$0xf]
        %v161 = vld [vmem:[%s157 + $0xc] sm:$0xf]
        %v162 = vld [vmem:[%s157 + $0x10] sm:$0xf]
        %v163 = vld [vmem:[%s157 + $0x14] sm:$0xf]
        %v164 = vld [vmem:[%s157 + $0x18] sm:$0xf]
        %v165 = vld [vmem:[%s157 + $0x1c] sm:$0xf]
        %s166 = sadd.s32 %s154, 1
        %s167 = smul.u32 %s166, 8
        %s168 = smul.addr %s167, 4
        %s169 = scalar_lea.vmem %s138, %s168
        %v170 = vld [vmem:[%s169] sm:$0xf]
        %v171 = vld [vmem:[%s169 + $0x4] sm:$0xf]
        %v172 = vld [vmem:[%s169 + $0x8] sm:$0xf]
        %v173 = vld [vmem:[%s169 + $0xc] sm:$0xf]
        %v174 = vld [vmem:[%s169 + $0x10] sm:$0xf]
        %v175 = vld [vmem:[%s169 + $0x14] sm:$0xf]
        %v176 = vld [vmem:[%s169 + $0x18] sm:$0xf]
        %v177 = vld [vmem:[%s169 + $0x1c] sm:$0xf]
        %v178 = vmax.bf16 %v158, %v170
        %v179 = vmax.bf16 %v159, %v171
        %v180 = vmax.bf16 %v160, %v172
        %v181 = vmax.bf16 %v161, %v173
        %v182 = vmax.bf16 %v162, %v174
        %v183 = vmax.bf16 %v163, %v175
        %v184 = vmax.bf16 %v164, %v176
        %v185 = vmax.bf16 %v165, %v177
        %s186 = sadd.s32 %s154, 2
        %s187 = smul.u32 %s186, 8
        %s188 = smul.addr %s187, 4
        %s189 = scalar_lea.vmem %s138, %s188
        %v190 = vld [vmem:[%s189] sm:$0xf]
        %v191 = vld [vmem:[%s189 + $0x4] sm:$0xf]
        %v192 = vld [vmem:[%s189 + $0x8] sm:$0xf]
        %v193 = vld [vmem:[%s189 + $0xc] sm:$0xf]
        %v194 = vld [vmem:[%s189 + $0x10] sm:$0xf]
        %v195 = vld [vmem:[%s189 + $0x14] sm:$0xf]
        %v196 = vld [vmem:[%s189 + $0x18] sm:$0xf]
        %v197 = vld [vmem:[%s189 + $0x1c] sm:$0xf]
        %v198 = vmax.bf16 %v178, %v190
        %v199 = vmax.bf16 %v179, %v191
        %v200 = vmax.bf16 %v180, %v192
        %v201 = vmax.bf16 %v181, %v193
        %v202 = vmax.bf16 %v182, %v194
        %v203 = vmax.bf16 %v183, %v195
        %v204 = vmax.bf16 %v184, %v196
        %v205 = vmax.bf16 %v185, %v197
        %214 = vrot.lane.b32.xlu0 %v198, 127
        %v215 = vpop.permute.xlu0 %214
        %216 = vrot.lane.b32.xlu0 %v199, 127
        %v217 = vpop.permute.xlu0 %216
        %218 = vrot.lane.b32.xlu0 %v200, 127
        %v219 = vpop.permute.xlu0 %218
        %220 = vrot.lane.b32.xlu0 %v201, 127
        %v221 = vpop.permute.xlu0 %220
        %222 = vrot.lane.b32.xlu0 %v202, 127
        %v223 = vpop.permute.xlu0 %222
        %224 = vrot.lane.b32.xlu0 %v203, 127
        %v225 = vpop.permute.xlu0 %224
        %226 = vrot.lane.b32.xlu0 %v204, 127
        %v227 = vpop.permute.xlu0 %226
        %228 = vrot.lane.b32.xlu0 %v205, 127
        %v229 = vpop.permute.xlu0 %228
        %v238 = vmax.bf16 %v198, %v215
        %v239 = vmax.bf16 %v199, %v217
        %v240 = vmax.bf16 %v200, %v219
        %v241 = vmax.bf16 %v201, %v221
        %v242 = vmax.bf16 %v202, %v223
        %v243 = vmax.bf16 %v203, %v225
        %v244 = vmax.bf16 %v204, %v227
        %v245 = vmax.bf16 %v205, %v229
        %246 = vrot.lane.b32.xlu0 %v198, 126
        %v247 = vpop.permute.xlu0 %246
        %248 = vrot.lane.b32.xlu0 %v199, 126
        %v249 = vpop.permute.xlu0 %248
        %250 = vrot.lane.b32.xlu0 %v200, 126
        %v251 = vpop.permute.xlu0 %250
        %252 = vrot.lane.b32.xlu0 %v201, 126
        %v253 = vpop.permute.xlu0 %252
        %254 = vrot.lane.b32.xlu0 %v202, 126
        %v255 = vpop.permute.xlu0 %254
        %256 = vrot.lane.b32.xlu0 %v203, 126
        %v257 = vpop.permute.xlu0 %256
        %258 = vrot.lane.b32.xlu0 %v204, 126
        %v259 = vpop.permute.xlu0 %258
        %260 = vrot.lane.b32.xlu0 %v205, 126
        %v261 = vpop.permute.xlu0 %260
        %v270 = vmax.bf16 %v238, %v247
        %v271 = vmax.bf16 %v239, %v249
        %v272 = vmax.bf16 %v240, %v251
        %v273 = vmax.bf16 %v241, %v253
        %v274 = vmax.bf16 %v242, %v255
        %v275 = vmax.bf16 %v243, %v257
        %v276 = vmax.bf16 %v244, %v259
        %v277 = vmax.bf16 %v245, %v261
        %v286 = vunpack.c.l.b16 %v270
        %v287 = vunpack.c.l.b16 %v271
        %v288 = vunpack.c.l.b16 %v272
        %v289 = vunpack.c.l.b16 %v273
        %v290 = vunpack.c.l.b16 %v274
        %v291 = vunpack.c.l.b16 %v275
        %v292 = vunpack.c.l.b16 %v276
        %v293 = vunpack.c.l.b16 %v277
        %v294 = vpack.c.b16 %v287, %v286
        %v295 = vpack.c.b16 %v289, %v288
        %v296 = vpack.c.b16 %v291, %v290
        %v297 = vpack.c.b16 %v293, %v292
        %v301 = vunpack.c.l.b16 %v145
        %v302 = vunpack.c.l.b16 %v146
        %v303 = vunpack.c.l.b16 %v147
        %v304 = vpack.c.b16 %v302, %v301
        %v305 = vpack.c.b16 %v303, %v303
        %vm307 = vcmask 171008
        %v309 = vsel %vm307, %v294, 0
        %v312 = vsel %vm307, %v295, 0
        %v315 = vsel %vm307, %v296, 0
        %v318 = vsel %vm307, %v297, 0
        %vm320 = vcmask 1041408
        %vm321 = vcmask 1042432
        %v322 = vsel %vm320, 4294967295, 65535
        %v323 = vsel %vm321, %v322, 0
        %v325 = vand.u32 %v305, %v323
        %327 = vmatprep.subr.bf16.mxu0 0
        %328 = vmatpush1.bf16.msra.mxu0 %v304
        %329 = vmatprep.subr.bf16.mxu0 0
        %330 = vmatpush1.bf16.msra.mxu0 %v325
        %331 = vmatprep.subr.bf16.mxu0 0
        %332 = vmatpush1.bf16.msra.mxu0 0
        %333 = vmatprep.subr.bf16.mxu0 0
        %334 = vmatpush1.bf16.msra.mxu0 0
        %335 = vmatprep.subr.bf16.mxu0 0
        %336 = vmatpush1.bf16.msra.mxu0 0
        %337 = vmatprep.subr.bf16.mxu0 0
        %338 = vmatpush1.bf16.msra.mxu0 0
        %339 = vmatprep.subr.bf16.mxu0 0
        %340 = vmatpush1.bf16.msra.mxu0 0
        %341 = vmatprep.subr.bf16.mxu0 0
        %342 = vmatpush1.bf16.msra.mxu0 0
        %343 = vmatprep.subr.bf16.mxu0 0
        %344 = vmatpush1.bf16.msra.mxu0 0
        %345 = vmatprep.subr.bf16.mxu0 0
        %346 = vmatpush1.bf16.msra.mxu0 0
        %347 = vmatprep.subr.bf16.mxu0 0
        %348 = vmatpush1.bf16.msra.mxu0 0
        %349 = vmatprep.subr.bf16.mxu0 0
        %350 = vmatpush1.bf16.msra.mxu0 0
        %351 = vmatprep.subr.bf16.mxu0 0
        %352 = vmatpush1.bf16.msra.mxu0 0
        %353 = vmatprep.subr.bf16.mxu0 0
        %354 = vmatpush1.bf16.msra.mxu0 0
        %355 = vmatprep.subr.bf16.mxu0 0
        %356 = vmatpush1.bf16.msra.mxu0 0
        %357 = vmatprep.subr.bf16.mxu0 0
        %358 = vmatpush1.bf16.msra.mxu0 0
        %359 = vmatprep.mubr.bf16.mxu0 0
        %360 = vmatmul.mubr.bf16.gmra.mrb[0].mxu0 %v309
        %v361 = vpop.f32.mrb[0].mxu0
        %v362 = vadd.f32 0.0, %v361
        %v363 = vpop.f32.mrb[0].mxu0
        %v364 = vpop.f32.mrb[0].mxu0
        %v365 = vadd.f32 0.0, %v364
        %v366 = vpop.f32.mrb[0].mxu0
        %367 = vmatprep.mubr.bf16.mxu0 0
        %368 = vmatmul.mubr.bf16.gmra.mrb[0].mxu0 %v312
        %v369 = vpop.f32.mrb[0].mxu0
        %v370 = vadd.f32 0.0, %v369
        %v371 = vpop.f32.mrb[0].mxu0
        %v372 = vpop.f32.mrb[0].mxu0
        %v373 = vadd.f32 0.0, %v372
        %v374 = vpop.f32.mrb[0].mxu0
        %375 = vmatprep.mubr.bf16.mxu0 0
        %376 = vmatmul.mubr.bf16.gmra.mrb[0].mxu0 %v315
        %v377 = vpop.f32.mrb[0].mxu0
        %v378 = vadd.f32 0.0, %v377
        %v379 = vpop.f32.mrb[0].mxu0
        %v380 = vpop.f32.mrb[0].mxu0
        %v381 = vadd.f32 0.0, %v380
        %v382 = vpop.f32.mrb[0].mxu0
        %383 = vmatprep.mubr.bf16.mxu0 0
        %384 = vmatmul.mubr.bf16.gmra.mrb[0].mxu0 %v318
        %v385 = vpop.f32.mrb[0].mxu0
        %v386 = vadd.f32 0.0, %v385
        %v387 = vpop.f32.mrb[0].mxu0
        %v388 = vpop.f32.mrb[0].mxu0
        %v389 = vadd.f32 0.0, %v388
        %v390 = vpop.f32.mrb[0].mxu0
        %391 = vdwg.mxu0
        %v392 = vpack.c.bf16 %v365, %v362
        %v393 = vpack.c.bf16 %v373, %v370
        %v394 = vpack.c.bf16 %v381, %v378
        %v395 = vpack.c.bf16 %v389, %v386
        %v400 = vunpack.c.l.b16 %v392
        %v401 = vunpack.c.h.b16 %v392
        %v402 = vunpack.c.l.b16 %v393
        %v403 = vunpack.c.h.b16 %v393
        %v404 = vunpack.c.l.b16 %v394
        %v405 = vunpack.c.h.b16 %v394
        %v406 = vunpack.c.l.b16 %v395
        %v407 = vunpack.c.h.b16 %v395
        %v408 = vpack.c.b16 %v400, %v400
        %v409 = vpack.c.b16 %v401, %v401
        %v410 = vpack.c.b16 %v402, %v402
        %v411 = vpack.c.b16 %v403, %v403
        %v412 = vpack.c.b16 %v404, %v404
        %v413 = vpack.c.b16 %v405, %v405
        %v414 = vpack.c.b16 %v406, %v406
        %v415 = vpack.c.b16 %v407, %v407
        %s424 = smul.u32 %s149, 8
        %s425 = smul.addr %s424, 4
        %s426 = scalar_lea.vmem %s143, %s425
        %vm427 = vcmask 84992
        %428 = vst.msk [vmem:[%s426] sm:$0xf] %vm427, %v408
        %429 = vst.msk [vmem:[%s426 + $0x4] sm:$0xf] %vm427, %v409
        %430 = vst.msk [vmem:[%s426 + $0x8] sm:$0xf] %vm427, %v410
        %431 = vst.msk [vmem:[%s426 + $0xc] sm:$0xf] %vm427, %v411
        %432 = vst.msk [vmem:[%s426 + $0x10] sm:$0xf] %vm427, %v412
        %433 = vst.msk [vmem:[%s426 + $0x14] sm:$0xf] %vm427, %v413
        %434 = vst.msk [vmem:[%s426 + $0x18] sm:$0xf] %vm427, %v414
        %435 = vst.msk [vmem:[%s426 + $0x1c] sm:$0xf] %vm427, %v415
      $region33: #{cnn_forward.20} parent=27 // loop_footer
        %s153 = sadd.s32 1, %s149
      $region34: #{cnn_forward.20} parent=27 // loop_footer_branch
        %148 = sbr.rel target = $region30
      $region35: #{cnn_forward.20} parent=27 // loop_exit
        _
      %p436 = scmp.lt.s32.totalorder %s13, 1
      %s437 = scalar_select %p436, %s13, 1
      %s438 = smul.addr %s437, 88
      %s439 = smul.addr %s438, 4
      %s440 = scalar_lea.vmem %s2, %s439
      // Predicated region
      $region36: #{cnn_forward.20} parent=27 // pred_check
        %p441 = pneg %p78
      $region37: #{cnn_forward.20} parent=27 // pred_check_branch
        %443 = sbr.rel (%p441) target = $region39
      $region38: #{cnn_forward.20} parent=27 // pred_region
        _
      $region39: #{cnn_forward.20} parent=27 // pred_fallthru
        _
    $region28: #{cnn_forward.20} parent=5 // pred_fallthru
      _
    %p444 = scmp.le.s32.totalorder 2, %s8
    // Predicated region
    $region40: #{cnn_forward.20} parent=5 // pred_check
      %p445 = pneg %p444
    $region41: #{cnn_forward.20} parent=5 // pred_check_branch
      %447 = sbr.rel (%p445) target = $region43
    $region42: #{cnn_forward.20} parent=5 // pred_region
      %s448 = ssub.s32 %s8, 2
      // Predicated region
      $region44: #{cnn_forward.20} parent=42 // pred_check
        %p449 = pneg %p84
      $region45: #{cnn_forward.20} parent=42 // pred_check_branch
        %451 = sbr.rel (%p449) target = $region47
      $region46: #{cnn_forward.20} parent=42 // pred_region
        %p452 = scmp.lt.s32.totalorder %s14, 1
        %s453 = scalar_select %p452, %s14, 1
        %s454 = smul.addr %s453, 88
        %s455 = smul.addr %s454, 4
        %s456 = scalar_lea.vmem %s2, %s455
      $region47: #{cnn_forward.20} parent=42 // pred_fallthru
        _
    $region43: #{cnn_forward.20} parent=5 // pred_fallthru
      _
  $region6: #{cnn_forward.20} parent=0 // loop_footer
    %s12 = sadd.s32 1, %s8
  $region7: #{cnn_forward.20} parent=0 // loop_footer_branch
    %7 = sbr.rel target = $region3
  $region8: #{cnn_forward.20} parent=0 // loop_exit
    _

// kernel: cnn_forward.22
$region0: #{cnn_forward.22}
  #allocation0 [shape = 'u32[]', space=smem, size = 0x4, offset = 0x4, fixed_abs, tag = 'smem constant byte address 0x4 - core index']
  #allocation1 [shape = 'u32[144,128]{1,0:T(1,128)}', space=vmem, size = 0x12000, scoped, tag = 'internal scratch']
  #allocation2 [shape = 'f32[1,1]{1,0:T(1,128)S(1)}', space=vmem, size = 0x200, scoped, tag = 'scoped memory for cnn_forward.22']
  %s0 = inlined_call_operand.vmem [shape: bf16[2,9,16,9], index: 0, kind: input, shape index: {}]
  %s1 = inlined_call_operand.vmem [shape: bf16[1,144], index: 1, kind: input, shape index: {}]
  %s2 = inlined_call_operand.<no memory space> [shape: f32[1,1], index: 2, kind: input, shape index: {}]
  %s3 = inlined_call_operand.vmem [shape: bf16[2,7,1,7], index: 3, kind: output, shape index: {}]
  %s4 = sld [smem:[#allocation0]]
  $region52: #{cnn_forward.22} parent=0
    _
  %s6 = ssub.s32 1, %s4
  %s7 = scalar_select 0, %s6, %s4
  %v8 = vstv %s2
  %9 = vst [vmem:[#allocation2] sm:$0x1] %v8
  loop: start=0, step=1, limit=4
  $region2: #{cnn_forward.22} parent=0 // loop_pre_header
    _
  $region3: #{cnn_forward.22} parent=0 // loop_header
    %s11 = sphi 0, %s15
    %p12 = scmp.ge.s32.totalorder %s11, 4
    %s18 = sphi 0, %s30
    %s19 = sphi 0, %s26
    %s20 = sphi 0, %s18
    %s21 = sphi 0, %s19
    %s22 = sphi 0, %s20
    %s23 = sphi 0, %s21
    %s33 = sphi 0, %s35
    %s36 = sphi 0, %s33
    %s37 = sphi 0, %s36
    %s53 = sphi 0, %s37
    %s57 = sphi 0, %s57
    %s59 = sphi 0, %s57
    %s60 = sphi 0, %s59
    %s74 = sphi 0, %s60
    %s78 = sphi 0, %s78
    %s80 = sphi 0, %s78
    %s81 = sphi 0, %s80
    %s95 = sphi 0, %s81
    %s103 = sphi 0, %s105
    %s106 = sphi 0, %s103
    %s107 = sphi 0, %s106
    %s123 = sphi 0, %s107
  $region4: #{cnn_forward.22} parent=0 // loop_header_branch
    %14 = sbr.rel (%p12) target = $region8
  $region5: #{cnn_forward.22} parent=0 // loop_body
    %s16 = ssub.s32 %s11, 1
    %s17 = ssub.s32 %s11, 2
    %s24 = sadd.s32 1, %s19
    %p25 = scmp.ge.s32.totalorder %s24, 1
    %s26 = scalar_select %p25, 0, %s24
    %s27 = sadd.s32 1, %s18
    %s28 = scalar_select %p25, %s27, %s18
    %p29 = scmp.ge.s32.totalorder %s28, 2
    %s30 = scalar_select %p29, 0, %s28
    %s31 = ssub.s32 %s18, %s30
    %p32 = scmp.eq.s32.totalorder %s31, 0
    %s34 = sadd.s32 %s33, 1
    %s35 = scalar_select %p32, %s33, %s34
    %p38 = pneg %p32
    %p39 = scmp.eq.s32.totalorder %s11, 1
    %p40 = por %p38, %p39
    %p41 = scmp.ne.s32.totalorder %s33, %s36
    %p42 = scmp.eq.s32.totalorder %s11, 0
    %p43 = por %p41, %p42
    %p44 = scmp.ne.s32.totalorder %s33, %s36
    %p45 = scmp.eq.s32.totalorder %s16, 1
    %p46 = por %p44, %p45
    %p47 = scmp.ne.s32.totalorder %s36, %s37
    %p48 = scmp.eq.s32.totalorder %s16, 0
    %p49 = por %p47, %p48
    %p50 = scmp.ne.s32.totalorder %s36, %s37
    %p51 = scmp.eq.s32.totalorder %s17, 1
    %p52 = por %p50, %p51
    %p54 = scmp.ne.s32.totalorder %s37, %s53
    %p55 = scmp.eq.s32.totalorder %s17, 0
    %p56 = por %p54, %p55
    %s58 = sadd.s32 %s57, 1
    %p61 = scmp.eq.s32.totalorder %s11, 1
    %p62 = scmp.ne.s32.totalorder %s57, %s59
    %p63 = scmp.eq.s32.totalorder %s11, 0
    %p64 = por %p62, %p63
    %p65 = scmp.ne.s32.totalorder %s57, %s59
    %p66 = scmp.eq.s32.totalorder %s16, 1
    %p67 = por %p65, %p66
    %p68 = scmp.ne.s32.totalorder %s59, %s60
    %p69 = scmp.eq.s32.totalorder %s16, 0
    %p70 = por %p68, %p69
    %p71 = scmp.ne.s32.totalorder %s59, %s60
    %p72 = scmp.eq.s32.totalorder %s17, 1
    %p73 = por %p71, %p72
    %p75 = scmp.ne.s32.totalorder %s60, %s74
    %p76 = scmp.eq.s32.totalorder %s17, 0
    %p77 = por %p75, %p76
    %s79 = sadd.s32 %s78, 1
    %p82 = scmp.eq.s32.totalorder %s11, 1
    %p83 = scmp.ne.s32.totalorder %s78, %s80
    %p84 = scmp.eq.s32.totalorder %s11, 0
    %p85 = por %p83, %p84
    %p86 = scmp.ne.s32.totalorder %s78, %s80
    %p87 = scmp.eq.s32.totalorder %s16, 1
    %p88 = por %p86, %p87
    %p89 = scmp.ne.s32.totalorder %s80, %s81
    %p90 = scmp.eq.s32.totalorder %s16, 0
    %p91 = por %p89, %p90
    %p92 = scmp.ne.s32.totalorder %s80, %s81
    %p93 = scmp.eq.s32.totalorder %s17, 1
    %p94 = por %p92, %p93
    %p96 = scmp.ne.s32.totalorder %s81, %s95
    %p97 = scmp.eq.s32.totalorder %s17, 0
    %p98 = por %p96, %p97
    %s99 = ssub.s32 %s18, %s30
    %s100 = ssub.s32 %s19, %s26
    %s101 = sor.u32 %s99, %s100
    %p102 = scmp.eq.s32.totalorder %s101, 0
    %s104 = sadd.s32 %s103, 1
    %s105 = scalar_select %p102, %s103, %s104
    %p108 = pneg %p102
    %p109 = scmp.eq.s32.totalorder %s11, 1
    %p110 = por %p108, %p109
    %p111 = scmp.ne.s32.totalorder %s103, %s106
    %p112 = scmp.eq.s32.totalorder %s11, 0
    %p113 = por %p111, %p112
    %p114 = scmp.ne.s32.totalorder %s103, %s106
    %p115 = scmp.eq.s32.totalorder %s16, 1
    %p116 = por %p114, %p115
    %p117 = scmp.ne.s32.totalorder %s106, %s107
    %p118 = scmp.eq.s32.totalorder %s16, 0
    %p119 = por %p117, %p118
    %p120 = scmp.ne.s32.totalorder %s106, %s107
    %p121 = scmp.eq.s32.totalorder %s17, 1
    %p122 = por %p120, %p121
    %p124 = scmp.ne.s32.totalorder %s107, %s123
    %p125 = scmp.eq.s32.totalorder %s17, 0
    %p126 = por %p124, %p125
    %p127 = scmp.le.s32.totalorder 1, %s11
    %p128 = scmp.lt.s32.totalorder %s11, 3
    %p129 = pnand %p127, %p128
    %p130 = pneg %p129
    // Predicated region
    $region9: #{cnn_forward.22} parent=5 // pred_check
      _
    $region10: #{cnn_forward.22} parent=5 // pred_check_branch
      %132 = sbr.rel (%p129) target = $region12
    $region11: #{cnn_forward.22} parent=5 // pred_region
      %s133 = ssub.s32 %s11, 1
      // Predicated region
      $region13: #{cnn_forward.22} parent=11 // pred_check
        %p134 = pneg %p70
      $region14: #{cnn_forward.22} parent=11 // pred_check_branch
        %136 = sbr.rel (%p134) target = $region16
      $region15: #{cnn_forward.22} parent=11 // pred_region
        _
      $region16: #{cnn_forward.22} parent=11 // pred_fallthru
        _
      // Predicated region
      $region17: #{cnn_forward.22} parent=11 // pred_check
        %p137 = pneg %p91
      $region18: #{cnn_forward.22} parent=11 // pred_check_branch
        %139 = sbr.rel (%p137) target = $region20
      $region19: #{cnn_forward.22} parent=11 // pred_region
        _
      $region20: #{cnn_forward.22} parent=11 // pred_fallthru
        _
    $region12: #{cnn_forward.22} parent=5 // pred_fallthru
      _
    %p140 = scmp.lt.s32.totalorder %s11, 2
    // Predicated region
    $region21: #{cnn_forward.22} parent=5 // pred_check
      %p141 = pneg %p140
    $region22: #{cnn_forward.22} parent=5 // pred_check_branch
      %143 = sbr.rel (%p141) target = $region24
    $region23: #{cnn_forward.22} parent=5 // pred_region
      // Predicated region
      $region25: #{cnn_forward.22} parent=23 // pred_check
        %p144 = pneg %p43
      $region26: #{cnn_forward.22} parent=23 // pred_check_branch
        %146 = sbr.rel (%p144) target = $region28
      $region27: #{cnn_forward.22} parent=23 // pred_region
        %p147 = scmp.lt.s32.totalorder %s18, 1
        %s148 = scalar_select %p147, %s18, 1
        %s149 = smul.addr %s148, 18
        %s150 = smul.addr %s149, 4
        %s151 = scalar_lea.vmem %s0, %s150
      $region28: #{cnn_forward.22} parent=23 // pred_fallthru
        _
    $region24: #{cnn_forward.22} parent=5 // pred_fallthru
      _
    %p152 = scmp.le.s32.totalorder 1, %s11
    %p153 = scmp.lt.s32.totalorder %s11, 3
    %p154 = pnand %p152, %p153
    %p155 = pneg %p154
    // Predicated region
    $region29: #{cnn_forward.22} parent=5 // pred_check
      _
    $region30: #{cnn_forward.22} parent=5 // pred_check_branch
      %157 = sbr.rel (%p154) target = $region32
    $region31: #{cnn_forward.22} parent=5 // pred_region
      %s158 = ssub.s32 %s11, 1
      %p159 = scmp.lt.s32.totalorder %s20, 1
      %s160 = scalar_select %p159, %s20, 1
      %s161 = smul.addr %s160, 18
      %s162 = smul.addr %s161, 4
      %s163 = scalar_lea.vmem %s0, %s162
      %p164 = pneg %p49
      %p165 = pneg %p46
      %p166 = pneg %p70
      %p167 = pneg %p67
      %p168 = pneg %p91
      %p169 = pneg %p88
      %p170 = pneg %p119
      %p171 = pneg %p116
      %s172 = smul.u32 7, %s21
      %p173 = scmp.lt.s32.totalorder %s20, 1
      %s174 = scalar_select %p173, %s20, 1
      %p175 = scmp.lt.s32.totalorder %s172, 6
      %s176 = scalar_select %p175, %s172, 6
      %s177 = smul.addr %s174, 7
      %s178 = sadd.s32 %s176, %s177
      %s179 = scalar_lea.vmem %s3, %s178
      %p180 = scmp.lt.s32.totalorder %s20, 1
      %s181 = scalar_select %p180, %s20, 1
      %s182 = smul.addr %s181, 18
      %s183 = smul.addr %s182, 4
      %s184 = scalar_lea.vmem %s0, %s183
      %s185 = smul.u32 7, %s21
      %p186 = scmp.lt.s32.totalorder %s20, 1
      %s187 = scalar_select %p186, %s20, 1
      %p188 = scmp.lt.s32.totalorder %s185, 6
      %s189 = scalar_select %p188, %s185, 6
      %s190 = smul.addr %s187, 7
      %s191 = sadd.s32 %s189, %s190
      %s192 = scalar_lea.vmem %s3, %s191
      %s193 = smul.u32 7, %s21
      %s195 = smul.u32 %s21, 7
      %v196 = vld [vmem:[#allocation2] sm:$0x1]
      %198 = vset.pattern.permute.xlu0 0
      %199 = vperm.xlu0 %198, %v196
      %v200 = vpop.permute.xlu0 %199
      %v202 = vlaneseq
      %v203 = vshrl.u32 %v202, 7
      %v204 = vsub.s32 0, %v203
      %v205 = vrot.slane %v200, %v204
      loop: start=0, step=1, limit=7
      $region33: #{cnn_forward.22} parent=31 // loop_pre_header
        _
      $region34: #{cnn_forward.22} parent=31 // loop_header
        %s207 = sphi 0, %s211
        %p208 = scmp.ge.s32.totalorder %s207, 7
      $region35: #{cnn_forward.22} parent=31 // loop_header_branch
        %210 = sbr.rel (%p208) target = $region39
      $region36: #{cnn_forward.22} parent=31 // loop_body
        %s212 = sadd.s32 %s195, %s207
        %s213 = smul.u32 %s212, 2
        %s214 = smul.addr %s213, 4
        %s215 = scalar_lea.vmem %s184, %s214
        %v216 = vld [vmem:[%s215] sm:$0xf]
        %v217 = vld [vmem:[%s215 + $0x4] sm:$0xf]
        %s218 = sadd.s32 %s212, 1
        %s219 = smul.u32 %s218, 2
        %s220 = smul.addr %s219, 4
        %s221 = scalar_lea.vmem %s184, %s220
        %v222 = vld [vmem:[%s221] sm:$0xf]
        %v223 = vld [vmem:[%s221 + $0x4] sm:$0xf]
        %s224 = sadd.s32 %s212, 2
        %s225 = smul.u32 %s224, 2
        %s226 = smul.addr %s225, 4
        %s227 = scalar_lea.vmem %s184, %s226
        %v228 = vld [vmem:[%s227] sm:$0xf]
        %v229 = vld [vmem:[%s227 + $0x4] sm:$0xf]
        %v232 = vunpack.c.l.b16 %v216
        %v233 = vunpack.c.l.b16 %v217
        %v234 = vpack.c.b16 %v233, %v232
        %v238 = vunpack.c.l.b16 %v222
        %v239 = vunpack.c.l.b16 %v223
        %v240 = vpack.c.b16 %v239, %v238
        %v244 = vunpack.c.l.b16 %v228
        %v245 = vunpack.c.l.b16 %v229
        %v246 = vpack.c.b16 %v245, %v244
        %248 = vrot.lane.b32.xlu0 %v234, 127
        %v249 = vpop.permute.xlu0 %248
        %250 = vrot.lane.b32.xlu0 %v240, 127
        %v251 = vpop.permute.xlu0 %250
        %252 = vrot.lane.b32.xlu0 %v246, 127
        %v253 = vpop.permute.xlu0 %252
        %257 = vrot.lane.b32.xlu0 %v234, 126
        %v258 = vpop.permute.xlu0 %257
        %259 = vrot.lane.b32.xlu0 %v240, 126
        %v260 = vpop.permute.xlu0 %259
        %261 = vrot.lane.b32.xlu0 %v246, 126
        %v262 = vpop.permute.xlu0 %261
        %v266 = vld [vmem:[%s1] sm:$0x3]
        %v269 = vunpack.c.l.s4 1966171168
        %v270 = vunpack.c.0.s8 %v269
        %v271 = vlaneseq
        %v272 = vshrl.u32 %v271, 7
        %v273 = vsub.s32 %v270, %v272
        %v274 = vrot.slane %v266, %v273
        %v275 = vcombine.high %v274, %v274
        %v277 = vunpack.c.l.s4 1966171168
        %v278 = vunpack.c.0.s8 %v277
        %v279 = vlaneseq
        %v280 = vshrl.u32 %v279, 7
        %v281 = vsub.s32 %v278, %v280
        %v282 = vrot.slane %v274, %v281
        %v284 = vunpack.c.l.s4 1966171168
        %v285 = vunpack.c.0.s8 %v284
        %v286 = vlaneseq
        %v287 = vshrl.u32 %v286, 7
        %v288 = vsub.s32 %v285, %v287
        %v289 = vrot.slane %v275, %v288
        %vm291 = vcmask 130048
        %v293 = vsel %vm291, %v289, 0
        %295 = vmatprep.subr.bf16.mxu0 0
        %296 = vmatpush1.bf16.msra.mxu0 %v234
        %297 = vmatprep.subr.bf16.mxu0 0
        %298 = vmatpush1.bf16.msra.mxu0 %v240
        %299 = vmatprep.subr.bf16.mxu0 0
        %300 = vmatpush1.bf16.msra.mxu0 %v246
        %301 = vmatprep.subr.bf16.mxu0 0
        %302 = vmatpush1.bf16.msra.mxu0 %v249
        %303 = vmatprep.subr.bf16.mxu0 0
        %304 = vmatpush1.bf16.msra.mxu0 %v251
        %305 = vmatprep.subr.bf16.mxu0 0
        %306 = vmatpush1.bf16.msra.mxu0 %v253
        %307 = vmatprep.subr.bf16.mxu0 0
        %308 = vmatpush1.bf16.msra.mxu0 %v258
        %309 = vmatprep.subr.bf16.mxu0 0
        %310 = vmatpush1.bf16.msra.mxu0 %v260
        %311 = vmatprep.subr.bf16.mxu0 0
        %312 = vmatpush1.bf16.msra.mxu0 %v262
        %313 = vmatprep.subr.bf16.mxu0 0
        %314 = vmatpush1.bf16.msra.mxu0 0
        %315 = vmatprep.subr.bf16.mxu0 0
        %316 = vmatpush1.bf16.msra.mxu0 0
        %317 = vmatprep.subr.bf16.mxu0 0
        %318 = vmatpush1.bf16.msra.mxu0 0
        %319 = vmatprep.subr.bf16.mxu0 0
        %320 = vmatpush1.bf16.msra.mxu0 0
        %321 = vmatprep.subr.bf16.mxu0 0
        %322 = vmatpush1.bf16.msra.mxu0 0
        %323 = vmatprep.subr.bf16.mxu0 0
        %324 = vmatpush1.bf16.msra.mxu0 0
        %325 = vmatprep.subr.bf16.mxu0 0
        %326 = vmatpush1.bf16.msra.mxu0 0
        %327 = vmatprep.mubr.bf16.mxu0 %v293
        %328 = vmatmul.mubr.bf16.gmra.mrb[0].mxu0 %v282
        %v329 = vpop.f32.mrb[0].mxu0
        %v330 = vadd.f32 %v205, %v329
        %v331 = vpop.f32.mrb[0].mxu0
        %v332 = vpop.f32.mrb[0].mxu0
        %v333 = vpop.f32.mrb[0].mxu0
        %334 = vdwg.mxu0
        %v335 = vmax.f32 %v330, 0.0
        %v336 = vpack.c.bf16 %v335, %v335
        %s337 = scalar_lea.vmem %s192, %s207
        %vm338 = vcmask 49152
        %vm339 = vsmask.f32 256
        %vm340 = vmand %vm338, %vm339
        %v341 = vld [vmem:[%s337] sm:$0x1]
        %v342 = vsel %vm340, %v336, %v341
        %343 = vst [vmem:[%s337] sm:$0x1] %v342
      $region37: #{cnn_forward.22} parent=31 // loop_footer
        %s211 = sadd.s32 1, %s207
      $region38: #{cnn_forward.22} parent=31 // loop_footer_branch
        %206 = sbr.rel target = $region34
      $region39: #{cnn_forward.22} parent=31 // loop_exit
        _
      %s344 = smul.u32 7, %s21
      %p345 = scmp.lt.s32.totalorder %s20, 1
      %s346 = scalar_select %p345, %s20, 1
      %p347 = scmp.lt.s32.totalorder %s344, 6
      %s348 = scalar_select %p347, %s344, 6
      %s349 = smul.addr %s346, 7
      %s350 = sadd.s32 %s348, %s349
      %s351 = scalar_lea.vmem %s3, %s350
      // Predicated region
      $region40: #{cnn_forward.22} parent=31 // pred_check
        %p352 = pneg %p116
      $region41: #{cnn_forward.22} parent=31 // pred_check_branch
        %354 = sbr.rel (%p352) target = $region43
      $region42: #{cnn_forward.22} parent=31 // pred_region
        %s355 = smul.u32 7, %s21
      $region43: #{cnn_forward.22} parent=31 // pred_fallthru
        _
    $region32: #{cnn_forward.22} parent=5 // pred_fallthru
      _
    %p356 = scmp.le.s32.totalorder 2, %s11
    // Predicated region
    $region44: #{cnn_forward.22} parent=5 // pred_check
      %p357 = pneg %p356
    $region45: #{cnn_forward.22} parent=5 // pred_check_branch
      %359 = sbr.rel (%p357) target = $region47
    $region46: #{cnn_forward.22} parent=5 // pred_region
      %s360 = ssub.s32 %s11, 2
      // Predicated region
      $region48: #{cnn_forward.22} parent=46 // pred_check
        %p361 = pneg %p122
      $region49: #{cnn_forward.22} parent=46 // pred_check_branch
        %363 = sbr.rel (%p361) target = $region51
      $region50: #{cnn_forward.22} parent=46 // pred_region
        %s364 = smul.u32 7, %s23
        %p365 = scmp.lt.s32.totalorder %s22, 1
        %s366 = scalar_select %p365, %s22, 1
        %p367 = scmp.lt.s32.totalorder %s364, 6
        %s368 = scalar_select %p367, %s364, 6
        %s369 = smul.addr %s366, 7
        %s370 = sadd.s32 %s368, %s369
        %s371 = scalar_lea.vmem %s3, %s370
      $region51: #{cnn_forward.22} parent=46 // pred_fallthru
        _
    $region47: #{cnn_forward.22} parent=5 // pred_fallthru
      _
  $region6: #{cnn_forward.22} parent=0 // loop_footer
    %s15 = sadd.s32 1, %s11
  $region7: #{cnn_forward.22} parent=0 // loop_footer_branch
    %10 = sbr.rel target = $region3
  $region8: #{cnn_forward.22} parent=0 // loop_exit
    _

// kernel: cnn_forward.21
$region0: #{cnn_forward.21}
  #allocation0 [shape = 'u32[]', space=smem, size = 0x4, offset = 0x4, fixed_abs, tag = 'smem constant byte address 0x4 - core index']
  #allocation1 [shape = 'u32[144,128]{1,0:T(1,128)}', space=vmem, size = 0x12000, scoped, tag = 'internal scratch']
  %s0 = inlined_call_operand.vmem [shape: bf16[2,11,64,11], index: 0, kind: input, shape index: {}]
  %s1 = inlined_call_operand.vmem [shape: bf16[16,576], index: 1, kind: input, shape index: {}]
  %s2 = inlined_call_operand.vmem [shape: f32[16,1], index: 2, kind: input, shape index: {}]
  %s3 = inlined_call_operand.vmem [shape: bf16[2,9,16,9], index: 3, kind: output, shape index: {}]
  %s4 = sld [smem:[#allocation0]]
  $region52: #{cnn_forward.21} parent=0
    _
  %s6 = ssub.s32 1, %s4
  %s7 = scalar_select 0, %s6, %s4
  loop: start=0, step=1, limit=4
  $region2: #{cnn_forward.21} parent=0 // loop_pre_header
    _
  $region3: #{cnn_forward.21} parent=0 // loop_header
    %s9 = sphi 0, %s13
    %p10 = scmp.ge.s32.totalorder %s9, 4
    %s16 = sphi 0, %s28
    %s17 = sphi 0, %s24
    %s18 = sphi 0, %s16
    %s19 = sphi 0, %s17
    %s20 = sphi 0, %s18
    %s21 = sphi 0, %s19
    %s31 = sphi 0, %s33
    %s34 = sphi 0, %s31
    %s35 = sphi 0, %s34
    %s51 = sphi 0, %s35
    %s55 = sphi 0, %s55
    %s57 = sphi 0, %s55
    %s58 = sphi 0, %s57
    %s72 = sphi 0, %s58
    %s76 = sphi 0, %s76
    %s78 = sphi 0, %s76
    %s79 = sphi 0, %s78
    %s93 = sphi 0, %s79
    %s101 = sphi 0, %s103
    %s104 = sphi 0, %s101
    %s105 = sphi 0, %s104
    %s121 = sphi 0, %s105
  $region4: #{cnn_forward.21} parent=0 // loop_header_branch
    %12 = sbr.rel (%p10) target = $region8
  $region5: #{cnn_forward.21} parent=0 // loop_body
    %s14 = ssub.s32 %s9, 1
    %s15 = ssub.s32 %s9, 2
    %s22 = sadd.s32 1, %s17
    %p23 = scmp.ge.s32.totalorder %s22, 1
    %s24 = scalar_select %p23, 0, %s22
    %s25 = sadd.s32 1, %s16
    %s26 = scalar_select %p23, %s25, %s16
    %p27 = scmp.ge.s32.totalorder %s26, 2
    %s28 = scalar_select %p27, 0, %s26
    %s29 = ssub.s32 %s16, %s28
    %p30 = scmp.eq.s32.totalorder %s29, 0
    %s32 = sadd.s32 %s31, 1
    %s33 = scalar_select %p30, %s31, %s32
    %p36 = pneg %p30
    %p37 = scmp.eq.s32.totalorder %s9, 1
    %p38 = por %p36, %p37
    %p39 = scmp.ne.s32.totalorder %s31, %s34
    %p40 = scmp.eq.s32.totalorder %s9, 0
    %p41 = por %p39, %p40
    %p42 = scmp.ne.s32.totalorder %s31, %s34
    %p43 = scmp.eq.s32.totalorder %s14, 1
    %p44 = por %p42, %p43
    %p45 = scmp.ne.s32.totalorder %s34, %s35
    %p46 = scmp.eq.s32.totalorder %s14, 0
    %p47 = por %p45, %p46
    %p48 = scmp.ne.s32.totalorder %s34, %s35
    %p49 = scmp.eq.s32.totalorder %s15, 1
    %p50 = por %p48, %p49
    %p52 = scmp.ne.s32.totalorder %s35, %s51
    %p53 = scmp.eq.s32.totalorder %s15, 0
    %p54 = por %p52, %p53
    %s56 = sadd.s32 %s55, 1
    %p59 = scmp.eq.s32.totalorder %s9, 1
    %p60 = scmp.ne.s32.totalorder %s55, %s57
    %p61 = scmp.eq.s32.totalorder %s9, 0
    %p62 = por %p60, %p61
    %p63 = scmp.ne.s32.totalorder %s55, %s57
    %p64 = scmp.eq.s32.totalorder %s14, 1
    %p65 = por %p63, %p64
    %p66 = scmp.ne.s32.totalorder %s57, %s58
    %p67 = scmp.eq.s32.totalorder %s14, 0
    %p68 = por %p66, %p67
    %p69 = scmp.ne.s32.totalorder %s57, %s58
    %p70 = scmp.eq.s32.totalorder %s15, 1
    %p71 = por %p69, %p70
    %p73 = scmp.ne.s32.totalorder %s58, %s72
    %p74 = scmp.eq.s32.totalorder %s15, 0
    %p75 = por %p73, %p74
    %s77 = sadd.s32 %s76, 1
    %p80 = scmp.eq.s32.totalorder %s9, 1
    %p81 = scmp.ne.s32.totalorder %s76, %s78
    %p82 = scmp.eq.s32.totalorder %s9, 0
    %p83 = por %p81, %p82
    %p84 = scmp.ne.s32.totalorder %s76, %s78
    %p85 = scmp.eq.s32.totalorder %s14, 1
    %p86 = por %p84, %p85
    %p87 = scmp.ne.s32.totalorder %s78, %s79
    %p88 = scmp.eq.s32.totalorder %s14, 0
    %p89 = por %p87, %p88
    %p90 = scmp.ne.s32.totalorder %s78, %s79
    %p91 = scmp.eq.s32.totalorder %s15, 1
    %p92 = por %p90, %p91
    %p94 = scmp.ne.s32.totalorder %s79, %s93
    %p95 = scmp.eq.s32.totalorder %s15, 0
    %p96 = por %p94, %p95
    %s97 = ssub.s32 %s16, %s28
    %s98 = ssub.s32 %s17, %s24
    %s99 = sor.u32 %s97, %s98
    %p100 = scmp.eq.s32.totalorder %s99, 0
    %s102 = sadd.s32 %s101, 1
    %s103 = scalar_select %p100, %s101, %s102
    %p106 = pneg %p100
    %p107 = scmp.eq.s32.totalorder %s9, 1
    %p108 = por %p106, %p107
    %p109 = scmp.ne.s32.totalorder %s101, %s104
    %p110 = scmp.eq.s32.totalorder %s9, 0
    %p111 = por %p109, %p110
    %p112 = scmp.ne.s32.totalorder %s101, %s104
    %p113 = scmp.eq.s32.totalorder %s14, 1
    %p114 = por %p112, %p113
    %p115 = scmp.ne.s32.totalorder %s104, %s105
    %p116 = scmp.eq.s32.totalorder %s14, 0
    %p117 = por %p115, %p116
    %p118 = scmp.ne.s32.totalorder %s104, %s105
    %p119 = scmp.eq.s32.totalorder %s15, 1
    %p120 = por %p118, %p119
    %p122 = scmp.ne.s32.totalorder %s105, %s121
    %p123 = scmp.eq.s32.totalorder %s15, 0
    %p124 = por %p122, %p123
    %p125 = scmp.le.s32.totalorder 1, %s9
    %p126 = scmp.lt.s32.totalorder %s9, 3
    %p127 = pnand %p125, %p126
    %p128 = pneg %p127
    // Predicated region
    $region9: #{cnn_forward.21} parent=5 // pred_check
      _
    $region10: #{cnn_forward.21} parent=5 // pred_check_branch
      %130 = sbr.rel (%p127) target = $region12
    $region11: #{cnn_forward.21} parent=5 // pred_region
      %s131 = ssub.s32 %s9, 1
      // Predicated region
      $region13: #{cnn_forward.21} parent=11 // pred_check
        %p132 = pneg %p68
      $region14: #{cnn_forward.21} parent=11 // pred_check_branch
        %134 = sbr.rel (%p132) target = $region16
      $region15: #{cnn_forward.21} parent=11 // pred_region
        _
      $region16: #{cnn_forward.21} parent=11 // pred_fallthru
        _
      // Predicated region
      $region17: #{cnn_forward.21} parent=11 // pred_check
        %p135 = pneg %p89
      $region18: #{cnn_forward.21} parent=11 // pred_check_branch
        %137 = sbr.rel (%p135) target = $region20
      $region19: #{cnn_forward.21} parent=11 // pred_region
        _
      $region20: #{cnn_forward.21} parent=11 // pred_fallthru
        _
    $region12: #{cnn_forward.21} parent=5 // pred_fallthru
      _
    %p138 = scmp.lt.s32.totalorder %s9, 2
    // Predicated region
    $region21: #{cnn_forward.21} parent=5 // pred_check
      %p139 = pneg %p138
    $region22: #{cnn_forward.21} parent=5 // pred_check_branch
      %141 = sbr.rel (%p139) target = $region24
    $region23: #{cnn_forward.21} parent=5 // pred_region
      // Predicated region
      $region25: #{cnn_forward.21} parent=23 // pred_check
        %p142 = pneg %p41
      $region26: #{cnn_forward.21} parent=23 // pred_check_branch
        %144 = sbr.rel (%p142) target = $region28
      $region27: #{cnn_forward.21} parent=23 // pred_region
        %p145 = scmp.lt.s32.totalorder %s16, 1
        %s146 = scalar_select %p145, %s16, 1
        %s147 = smul.addr %s146, 88
        %s148 = smul.addr %s147, 4
        %s149 = scalar_lea.vmem %s0, %s148
      $region28: #{cnn_forward.21} parent=23 // pred_fallthru
        _
    $region24: #{cnn_forward.21} parent=5 // pred_fallthru
      _
    %p150 = scmp.le.s32.totalorder 1, %s9
    %p151 = scmp.lt.s32.totalorder %s9, 3
    %p152 = pnand %p150, %p151
    %p153 = pneg %p152
    // Predicated region
    $region29: #{cnn_forward.21} parent=5 // pred_check
      _
    $region30: #{cnn_forward.21} parent=5 // pred_check_branch
      %155 = sbr.rel (%p152) target = $region32
    $region31: #{cnn_forward.21} parent=5 // pred_region
      %s156 = ssub.s32 %s9, 1
      %p157 = scmp.lt.s32.totalorder %s18, 1
      %s158 = scalar_select %p157, %s18, 1
      %s159 = smul.addr %s158, 88
      %s160 = smul.addr %s159, 4
      %s161 = scalar_lea.vmem %s0, %s160
      %p162 = pneg %p47
      %p163 = pneg %p44
      %p164 = pneg %p68
      %p165 = pneg %p65
      %p166 = pneg %p89
      %p167 = pneg %p86
      %p168 = pneg %p117
      %p169 = pneg %p114
      %s170 = smul.u32 9, %s19
      %p171 = scmp.lt.s32.totalorder %s18, 1
      %s172 = scalar_select %p171, %s18, 1
      %p173 = scmp.lt.s32.totalorder %s170, 8
      %s174 = scalar_select %p173, %s170, 8
      %s175 = smul.addr %s174, 2
      %s176 = smul.addr %s172, 18
      %s177 = sadd.s32 %s175, %s176
      %s178 = smul.addr %s177, 4
      %s179 = scalar_lea.vmem %s3, %s178
      %p180 = scmp.lt.s32.totalorder %s18, 1
      %s181 = scalar_select %p180, %s18, 1
      %s182 = smul.addr %s181, 88
      %s183 = smul.addr %s182, 4
      %s184 = scalar_lea.vmem %s0, %s183
      %s185 = smul.u32 9, %s19
      %p186 = scmp.lt.s32.totalorder %s18, 1
      %s187 = scalar_select %p186, %s18, 1
      %p188 = scmp.lt.s32.totalorder %s185, 8
      %s189 = scalar_select %p188, %s185, 8
      %s190 = smul.addr %s189, 2
      %s191 = smul.addr %s187, 18
      %s192 = sadd.s32 %s190, %s191
      %s193 = smul.addr %s192, 4
      %s194 = scalar_lea.vmem %s3, %s193
      %s195 = smul.u32 9, %s19
      %s197 = smul.u32 %s19, 9
      %v198 = vld [vmem:[%s2] sm:$0xff]
      %v199 = vld [vmem:[%s2 + $0x8] sm:$0xff]
      %201 = vset.pattern.permute.xlu0 0
      %202 = vperm.xlu0 %201, %v198
      %v203 = vpop.permute.xlu0 %202
      %206 = vset.pattern.permute.xlu0 0
      %207 = vperm.xlu0 %206, %v199
      %v208 = vpop.permute.xlu0 %207
      loop: start=0, step=1, limit=9
      $region33: #{cnn_forward.21} parent=31 // loop_pre_header
        _
      $region34: #{cnn_forward.21} parent=31 // loop_header
        %s211 = sphi 0, %s215
        %p212 = scmp.ge.s32.totalorder %s211, 9
      $region35: #{cnn_forward.21} parent=31 // loop_header_branch
        %214 = sbr.rel (%p212) target = $region39
      $region36: #{cnn_forward.21} parent=31 // loop_body
        %s216 = sadd.s32 %s197, %s211
        %s217 = smul.u32 %s216, 8
        %s218 = smul.addr %s217, 4
        %s219 = scalar_lea.vmem %s184, %s218
        %v220 = vld [vmem:[%s219] sm:$0xf]
        %v221 = vld [vmem:[%s219 + $0x4] sm:$0xf]
        %v222 = vld [vmem:[%s219 + $0x8] sm:$0xf]
        %v223 = vld [vmem:[%s219 + $0xc] sm:$0xf]
        %v224 = vld [vmem:[%s219 + $0x10] sm:$0xf]
        %v225 = vld [vmem:[%s219 + $0x14] sm:$0xf]
        %v226 = vld [vmem:[%s219 + $0x18] sm:$0xf]
        %v227 = vld [vmem:[%s219 + $0x1c] sm:$0xf]
        %s228 = sadd.s32 %s216, 1
        %s229 = smul.u32 %s228, 8
        %s230 = smul.addr %s229, 4
        %s231 = scalar_lea.vmem %s184, %s230
        %v232 = vld [vmem:[%s231] sm:$0xf]
        %v233 = vld [vmem:[%s231 + $0x4] sm:$0xf]
        %v234 = vld [vmem:[%s231 + $0x8] sm:$0xf]
        %v235 = vld [vmem:[%s231 + $0xc] sm:$0xf]
        %v236 = vld [vmem:[%s231 + $0x10] sm:$0xf]
        %v237 = vld [vmem:[%s231 + $0x14] sm:$0xf]
        %v238 = vld [vmem:[%s231 + $0x18] sm:$0xf]
        %v239 = vld [vmem:[%s231 + $0x1c] sm:$0xf]
        %s240 = sadd.s32 %s216, 2
        %s241 = smul.u32 %s240, 8
        %s242 = smul.addr %s241, 4
        %s243 = scalar_lea.vmem %s184, %s242
        %v244 = vld [vmem:[%s243] sm:$0xf]
        %v245 = vld [vmem:[%s243 + $0x4] sm:$0xf]
        %v246 = vld [vmem:[%s243 + $0x8] sm:$0xf]
        %v247 = vld [vmem:[%s243 + $0xc] sm:$0xf]
        %v248 = vld [vmem:[%s243 + $0x10] sm:$0xf]
        %v249 = vld [vmem:[%s243 + $0x14] sm:$0xf]
        %v250 = vld [vmem:[%s243 + $0x18] sm:$0xf]
        %v251 = vld [vmem:[%s243 + $0x1c] sm:$0xf]
        %v260 = vunpack.c.l.b16 %v220
        %v261 = vunpack.c.l.b16 %v221
        %v262 = vunpack.c.l.b16 %v222
        %v263 = vunpack.c.l.b16 %v223
        %v264 = vunpack.c.l.b16 %v224
        %v265 = vunpack.c.l.b16 %v225
        %v266 = vunpack.c.l.b16 %v226
        %v267 = vunpack.c.l.b16 %v227
        %v268 = vpack.c.b16 %v261, %v260
        %v269 = vpack.c.b16 %v263, %v262
        %v270 = vpack.c.b16 %v265, %v264
        %v271 = vpack.c.b16 %v267, %v266
        %v284 = vunpack.c.l.b16 %v232
        %v285 = vunpack.c.l.b16 %v233
        %v286 = vunpack.c.l.b16 %v234
        %v287 = vunpack.c.l.b16 %v235
        %v288 = vunpack.c.l.b16 %v236
        %v289 = vunpack.c.l.b16 %v237
        %v290 = vunpack.c.l.b16 %v238
        %v291 = vunpack.c.l.b16 %v239
        %v292 = vpack.c.b16 %v285, %v284
        %v293 = vpack.c.b16 %v287, %v286
        %v294 = vpack.c.b16 %v289, %v288
        %v295 = vpack.c.b16 %v291, %v290
        %v308 = vunpack.c.l.b16 %v244
        %v309 = vunpack.c.l.b16 %v245
        %v310 = vunpack.c.l.b16 %v246
        %v311 = vunpack.c.l.b16 %v247
        %v312 = vunpack.c.l.b16 %v248
        %v313 = vunpack.c.l.b16 %v249
        %v314 = vunpack.c.l.b16 %v250
        %v315 = vunpack.c.l.b16 %v251
        %v316 = vpack.c.b16 %v309, %v308
        %v317 = vpack.c.b16 %v311, %v310
        %v318 = vpack.c.b16 %v313, %v312
        %v319 = vpack.c.b16 %v315, %v314
        %324 = vrot.lane.b32.xlu0 %v268, 127
        %v325 = vpop.permute.xlu0 %324
        %326 = vrot.lane.b32.xlu0 %v269, 127
        %v327 = vpop.permute.xlu0 %326
        %328 = vrot.lane.b32.xlu0 %v270, 127
        %v329 = vpop.permute.xlu0 %328
        %330 = vrot.lane.b32.xlu0 %v271, 127
        %v331 = vpop.permute.xlu0 %330
        %332 = vrot.lane.b32.xlu0 %v292, 127
        %v333 = vpop.permute.xlu0 %332
        %334 = vrot.lane.b32.xlu0 %v293, 127
        %v335 = vpop.permute.xlu0 %334
        %336 = vrot.lane.b32.xlu0 %v294, 127
        %v337 = vpop.permute.xlu0 %336
        %338 = vrot.lane.b32.xlu0 %v295, 127
        %v339 = vpop.permute.xlu0 %338
        %340 = vrot.lane.b32.xlu0 %v316, 127
        %v341 = vpop.permute.xlu0 %340
        %342 = vrot.lane.b32.xlu0 %v317, 127
        %v343 = vpop.permute.xlu0 %342
        %344 = vrot.lane.b32.xlu0 %v318, 127
        %v345 = vpop.permute.xlu0 %344
        %346 = vrot.lane.b32.xlu0 %v319, 127
        %v347 = vpop.permute.xlu0 %346
        %360 = vrot.lane.b32.xlu0 %v268, 126
        %v361 = vpop.permute.xlu0 %360
        %362 = vrot.lane.b32.xlu0 %v269, 126
        %v363 = vpop.permute.xlu0 %362
        %364 = vrot.lane.b32.xlu0 %v270, 126
        %v365 = vpop.permute.xlu0 %364
        %366 = vrot.lane.b32.xlu0 %v271, 126
        %v367 = vpop.permute.xlu0 %366
        %368 = vrot.lane.b32.xlu0 %v292, 126
        %v369 = vpop.permute.xlu0 %368
        %370 = vrot.lane.b32.xlu0 %v293, 126
        %v371 = vpop.permute.xlu0 %370
        %372 = vrot.lane.b32.xlu0 %v294, 126
        %v373 = vpop.permute.xlu0 %372
        %374 = vrot.lane.b32.xlu0 %v295, 126
        %v375 = vpop.permute.xlu0 %374
        %376 = vrot.lane.b32.xlu0 %v316, 126
        %v377 = vpop.permute.xlu0 %376
        %378 = vrot.lane.b32.xlu0 %v317, 126
        %v379 = vpop.permute.xlu0 %378
        %380 = vrot.lane.b32.xlu0 %v318, 126
        %v381 = vpop.permute.xlu0 %380
        %382 = vrot.lane.b32.xlu0 %v319, 126
        %v383 = vpop.permute.xlu0 %382
        %v396 = vld [vmem:[%s1] sm:$0xff]
        %v397 = vld [vmem:[%s1 + $0x8] sm:$0xff]
        %v398 = vld [vmem:[%s1 + $0x10] sm:$0xf]
        %v399 = vld [vmem:[%s1 + $0x14] sm:$0xff]
        %v400 = vld [vmem:[%s1 + $0x1c] sm:$0xff]
        %v401 = vld [vmem:[%s1 + $0x24] sm:$0xf]
        %v408 = vunpack.c.l.b16 %v396
        %v409 = vunpack.c.h.b16 %v396
        %v410 = vunpack.c.l.b16 %v397
        %v411 = vunpack.c.h.b16 %v397
        %v412 = vunpack.c.l.b16 %v398
        %v413 = vunpack.c.l.b16 %v399
        %v414 = vunpack.c.h.b16 %v399
        %v415 = vunpack.c.l.b16 %v400
        %v416 = vunpack.c.h.b16 %v400
        %v417 = vunpack.c.l.b16 %v401
        %v418 = vpack.c.b16 %v413, %v408
        %v419 = vpack.c.b16 %v414, %v409
        %v420 = vpack.c.b16 %v415, %v410
        %v421 = vpack.c.b16 %v416, %v411
        %v422 = vpack.c.b16 %v417, %v412
        %vm427 = vcmask 523264
        %v429 = vsel %vm427, %v422, 0
        %431 = vmatprep.subr.bf16.mxu0 0
        %432 = vmatpush1.bf16.msra.mxu0 %v268
        %433 = vmatprep.subr.bf16.mxu0 0
        %434 = vmatpush1.bf16.msra.mxu0 %v269
        %435 = vmatprep.subr.bf16.mxu0 0
        %436 = vmatpush1.bf16.msra.mxu0 %v270
        %437 = vmatprep.subr.bf16.mxu0 0
        %438 = vmatpush1.bf16.msra.mxu0 %v271
        %439 = vmatprep.subr.bf16.mxu0 0
        %440 = vmatpush1.bf16.msra.mxu0 %v292
        %441 = vmatprep.subr.bf16.mxu0 0
        %442 = vmatpush1.bf16.msra.mxu0 %v293
        %443 = vmatprep.subr.bf16.mxu0 0
        %444 = vmatpush1.bf16.msra.mxu0 %v294
        %445 = vmatprep.subr.bf16.mxu0 0
        %446 = vmatpush1.bf16.msra.mxu0 %v295
        %447 = vmatprep.subr.bf16.mxu0 0
        %448 = vmatpush1.bf16.msra.mxu0 %v316
        %449 = vmatprep.subr.bf16.mxu0 0
        %450 = vmatpush1.bf16.msra.mxu0 %v317
        %451 = vmatprep.subr.bf16.mxu0 0
        %452 = vmatpush1.bf16.msra.mxu0 %v318
        %453 = vmatprep.subr.bf16.mxu0 0
        %454 = vmatpush1.bf16.msra.mxu0 %v319
        %455 = vmatprep.subr.bf16.mxu0 0
        %456 = vmatpush1.bf16.msra.mxu0 %v325
        %457 = vmatprep.subr.bf16.mxu0 0
        %458 = vmatpush1.bf16.msra.mxu0 %v327
        %459 = vmatprep.subr.bf16.mxu0 0
        %460 = vmatpush1.bf16.msra.mxu0 %v329
        %461 = vmatprep.subr.bf16.mxu0 0
        %462 = vmatpush1.bf16.msra.mxu0 %v331
        %463 = vmatprep.mubr.bf16.mxu0 %v419
        %464 = vmatmul.mubr.bf16.gmra.mrb[0].mxu0 %v418
        %v465 = vpop.f32.mrb[0].mxu0
        %v466 = vadd.f32 %v203, %v465
        %v467 = vpop.f32.mrb[0].mxu0
        %v468 = vpop.f32.mrb[0].mxu0
        %v469 = vadd.f32 %v208, %v468
        %v470 = vpop.f32.mrb[0].mxu0
        %471 = vdwg.mxu0
        %472 = vmatprep.subr.bf16.mxu0 0
        %473 = vmatpush1.bf16.msra.mxu0 %v333
        %474 = vmatprep.subr.bf16.mxu0 0
        %475 = vmatpush1.bf16.msra.mxu0 %v335
        %476 = vmatprep.subr.bf16.mxu0 0
        %477 = vmatpush1.bf16.msra.mxu0 %v337
        %478 = vmatprep.subr.bf16.mxu0 0
        %479 = vmatpush1.bf16.msra.mxu0 %v339
        %480 = vmatprep.subr.bf16.mxu0 0
        %481 = vmatpush1.bf16.msra.mxu0 %v341
        %482 = vmatprep.subr.bf16.mxu0 0
        %483 = vmatpush1.bf16.msra.mxu0 %v343
        %484 = vmatprep.subr.bf16.mxu0 0
        %485 = vmatpush1.bf16.msra.mxu0 %v345
        %486 = vmatprep.subr.bf16.mxu0 0
        %487 = vmatpush1.bf16.msra.mxu0 %v347
        %488 = vmatprep.subr.bf16.mxu0 0
        %489 = vmatpush1.bf16.msra.mxu0 %v361
        %490 = vmatprep.subr.bf16.mxu0 0
        %491 = vmatpush1.bf16.msra.mxu0 %v363
        %492 = vmatprep.subr.bf16.mxu0 0
        %493 = vmatpush1.bf16.msra.mxu0 %v365
        %494 = vmatprep.subr.bf16.mxu0 0
        %495 = vmatpush1.bf16.msra.mxu0 %v367
        %496 = vmatprep.subr.bf16.mxu0 0
        %497 = vmatpush1.bf16.msra.mxu0 %v369
        %498 = vmatprep.subr.bf16.mxu0 0
        %499 = vmatpush1.bf16.msra.mxu0 %v371
        %500 = vmatprep.subr.bf16.mxu0 0
        %501 = vmatpush1.bf16.msra.mxu0 %v373
        %502 = vmatprep.subr.bf16.mxu0 0
        %503 = vmatpush1.bf16.msra.mxu0 %v375
        %504 = vmatprep.mubr.bf16.mxu0 %v421
        %505 = vmatmul.mubr.bf16.gmra.mrb[0].mxu0 %v420
        %v506 = vpop.f32.mrb[0].mxu0
        %v507 = vadd.f32 %v466, %v506
        %v508 = vpop.f32.mrb[0].mxu0
        %v509 = vpop.f32.mrb[0].mxu0
        %v510 = vadd.f32 %v469, %v509
        %v511 = vpop.f32.mrb[0].mxu0
        %512 = vdwg.mxu0
        %513 = vmatprep.subr.bf16.mxu0 0
        %514 = vmatpush1.bf16.msra.mxu0 %v377
        %515 = vmatprep.subr.bf16.mxu0 0
        %516 = vmatpush1.bf16.msra.mxu0 %v379
        %517 = vmatprep.subr.bf16.mxu0 0
        %518 = vmatpush1.bf16.msra.mxu0 %v381
        %519 = vmatprep.subr.bf16.mxu0 0
        %520 = vmatpush1.bf16.msra.mxu0 %v383
        %521 = vmatprep.subr.bf16.mxu0 0
        %522 = vmatpush1.bf16.msra.mxu0 0
        %523 = vmatprep.subr.bf16.mxu0 0
        %524 = vmatpush1.bf16.msra.mxu0 0
        %525 = vmatprep.subr.bf16.mxu0 0
        %526 = vmatpush1.bf16.msra.mxu0 0
        %527 = vmatprep.subr.bf16.mxu0 0
        %528 = vmatpush1.bf16.msra.mxu0 0
        %529 = vmatprep.subr.bf16.mxu0 0
        %530 = vmatpush1.bf16.msra.mxu0 0
        %531 = vmatprep.subr.bf16.mxu0 0
        %532 = vmatpush1.bf16.msra.mxu0 0
        %533 = vmatprep.subr.bf16.mxu0 0
        %534 = vmatpush1.bf16.msra.mxu0 0
        %535 = vmatprep.subr.bf16.mxu0 0
        %536 = vmatpush1.bf16.msra.mxu0 0
        %537 = vmatprep.subr.bf16.mxu0 0
        %538 = vmatpush1.bf16.msra.mxu0 0
        %539 = vmatprep.subr.bf16.mxu0 0
        %540 = vmatpush1.bf16.msra.mxu0 0
        %541 = vmatprep.subr.bf16.mxu0 0
        %542 = vmatpush1.bf16.msra.mxu0 0
        %543 = vmatprep.subr.bf16.mxu0 0
        %544 = vmatpush1.bf16.msra.mxu0 0
        %545 = vmatprep.mubr.bf16.mxu0 0
        %546 = vmatmul.mubr.bf16.gmra.mrb[0].mxu0 %v429
        %v547 = vpop.f32.mrb[0].mxu0
        %v548 = vadd.f32 %v507, %v547
        %v549 = vpop.f32.mrb[0].mxu0
        %v550 = vpop.f32.mrb[0].mxu0
        %v551 = vadd.f32 %v510, %v550
        %v552 = vpop.f32.mrb[0].mxu0
        %553 = vdwg.mxu0
        %v554 = vmax.f32 %v548, 0.0
        %v555 = vmax.f32 %v551, 0.0
        %v556 = vpack.c.bf16 %v555, %v554
        %v558 = vunpack.c.l.b16 %v556
        %v559 = vunpack.c.h.b16 %v556
        %v560 = vpack.c.b16 %v558, %v558
        %v561 = vpack.c.b16 %v559, %v559
        %s564 = smul.u32 %s211, 2
        %s565 = smul.addr %s564, 4
        %s566 = scalar_lea.vmem %s194, %s565
        %vm567 = vcmask 68608
        %568 = vst.msk [vmem:[%s566] sm:$0xf] %vm567, %v560
        %569 = vst.msk [vmem:[%s566 + $0x4] sm:$0xf] %vm567, %v561
      $region37: #{cnn_forward.21} parent=31 // loop_footer
        %s215 = sadd.s32 1, %s211
      $region38: #{cnn_forward.21} parent=31 // loop_footer_branch
        %210 = sbr.rel target = $region34
      $region39: #{cnn_forward.21} parent=31 // loop_exit
        _
      %s570 = smul.u32 9, %s19
      %p571 = scmp.lt.s32.totalorder %s18, 1
      %s572 = scalar_select %p571, %s18, 1
      %p573 = scmp.lt.s32.totalorder %s570, 8
      %s574 = scalar_select %p573, %s570, 8
      %s575 = smul.addr %s574, 2
      %s576 = smul.addr %s572, 18
      %s577 = sadd.s32 %s575, %s576
      %s578 = smul.addr %s577, 4
      %s579 = scalar_lea.vmem %s3, %s578
      // Predicated region
      $region40: #{cnn_forward.21} parent=31 // pred_check
        %p580 = pneg %p114
      $region41: #{cnn_forward.21} parent=31 // pred_check_branch
        %582 = sbr.rel (%p580) target = $region43
      $region42: #{cnn_forward.21} parent=31 // pred_region
        %s583 = smul.u32 9, %s19
      $region43: #{cnn_forward.21} parent=31 // pred_fallthru
        _
    $region32: #{cnn_forward.21} parent=5 // pred_fallthru
      _
    %p584 = scmp.le.s32.totalorder 2, %s9
    // Predicated region
    $region44: #{cnn_forward.21} parent=5 // pred_check
      %p585 = pneg %p584
    $region45: #{cnn_forward.21} parent=5 // pred_check_branch
      %587 = sbr.rel (%p585) target = $region47
    $region46: #{cnn_forward.21} parent=5 // pred_region
      %s588 = ssub.s32 %s9, 2
      // Predicated region
      $region48: #{cnn_forward.21} parent=46 // pred_check
        %p589 = pneg %p120
      $region49: #{cnn_forward.21} parent=46 // pred_check_branch
        %591 = sbr.rel (%p589) target = $region51
      $region50: #{cnn_forward.21} parent=46 // pred_region
        %s592 = smul.u32 9, %s21
        %p593 = scmp.lt.s32.totalorder %s20, 1
        %s594 = scalar_select %p593, %s20, 1
        %p595 = scmp.lt.s32.totalorder %s592, 8
        %s596 = scalar_select %p595, %s592, 8
        %s597 = smul.addr %s596, 2
        %s598 = smul.addr %s594, 18
        %s599 = sadd.s32 %s597, %s598
        %s600 = smul.addr %s599, 4
        %s601 = scalar_lea.vmem %s3, %s600
      $region51: #{cnn_forward.21} parent=46 // pred_fallthru
        _
    $region47: #{cnn_forward.21} parent=5 // pred_fallthru
      _
  $region6: #{cnn_forward.21} parent=0 // loop_footer
    %s13 = sadd.s32 1, %s9
  $region7: #{cnn_forward.21} parent=0 // loop_footer_branch
    %8 = sbr.rel target = $region3
  $region8: #{cnn_forward.21} parent=0 // loop_exit
    _

// kernel: cnn_forward.23
$region0: #{cnn_forward.23}
  #allocation0 [shape = 'u32[]', space=smem, size = 0x4, offset = 0x4, fixed_abs, tag = 'smem constant byte address 0x4 - core index']
  #allocation1 [shape = 'u32[144,128]{1,0:T(1,128)}', space=vmem, size = 0x12000, scoped, tag = 'internal scratch']
  %s0 = inlined_call_operand.vmem [shape: f32[2,16], index: 0, kind: input, shape index: {}]
  %s1 = inlined_call_operand.vmem [shape: f32[16,6], index: 1, kind: input, shape index: {}]
  %s2 = inlined_call_operand.vmem [shape: f32[1,6], index: 2, kind: input, shape index: {}]
  %s3 = inlined_call_operand.hbm [shape: f32[2,6], index: 3, kind: output, shape index: {}]
  %s4 = sld [smem:[#allocation0]]
  $region22: #{cnn_forward.23} parent=0
    _
  %s6 = ssub.s32 1, %s4
  %s7 = scalar_select 0, %s6, %s4
  $region1: #{cnn_forward.23} parent=0
    #allocation2 [shape = 'u8[1024]{0}', space=vmem, size = 0x400, scoped, tag = 'output window, operand 0, single buffered']
    #allocation3 [shape = 's32[1]{0}', space=sflag, size = 0x4, scoped, tag = 'scoped memory for cnn_forward.23']
    %8 = vsyncpa [#allocation3], 0
    // Predicated region
    $region2: #{cnn_forward.23} parent=1 // pred_check
      _
    $region3: #{cnn_forward.23} parent=1 // pred_check_branch
      %10 = sbr.rel (0) target = $region5
    $region4: #{cnn_forward.23} parent=1 // pred_region
      _
    $region5: #{cnn_forward.23} parent=1 // pred_fallthru
      _
    // Predicated region
    $region6: #{cnn_forward.23} parent=1 // pred_check
      _
    $region7: #{cnn_forward.23} parent=1 // pred_check_branch
      %12 = sbr.rel (0) target = $region9
    $region8: #{cnn_forward.23} parent=1 // pred_region
      _
    $region9: #{cnn_forward.23} parent=1 // pred_fallthru
      _
    // Predicated region
    $region10: #{cnn_forward.23} parent=1 // pred_check
      _
    $region11: #{cnn_forward.23} parent=1 // pred_check_branch
      %14 = sbr.rel (0) target = $region13
    $region12: #{cnn_forward.23} parent=1 // pred_region
      _
    $region13: #{cnn_forward.23} parent=1 // pred_fallthru
      _
    %v15 = vld [vmem:[%s0] sm:$0x3]
    %v16 = vld [vmem:[%s1] sm:$0xff]
    %v17 = vld [vmem:[%s1 + $0x8] sm:$0xff]
    %v18 = vld [vmem:[%s2] sm:$0x1]
    %v20 = vlaneseq
    %v21 = vshrl.u32 %v20, 7
    %v22 = vsub.s32 0, %v21
    %v23 = vrot.slane %v18, %v22
    %vm25 = vcmask 130048
    %v27 = vsel %vm25, %v15, 0
    %29 = vmatprep.subr.mxu0 0.0
    %30 = vmatpush1.msra.mxu0 %v16
    %31 = vmatprep.subr.mxu0 0.0
    %32 = vmatpush1.msra.mxu0 %v17
    %33 = vmatprep.subr.mxu0 0.0
    %34 = vmatpush1.msra.mxu0 0.0
    %35 = vmatprep.subr.mxu0 0.0
    %36 = vmatpush1.msra.mxu0 0.0
    %37 = vmatprep.subr.mxu0 0.0
    %38 = vmatpush1.msra.mxu0 0.0
    %39 = vmatprep.subr.mxu0 0.0
    %40 = vmatpush1.msra.mxu0 0.0
    %41 = vmatprep.subr.mxu0 0.0
    %42 = vmatpush1.msra.mxu0 0.0
    %43 = vmatprep.subr.mxu0 0.0
    %44 = vmatpush1.msra.mxu0 0.0
    %45 = vmatprep.subr.mxu0 0.0
    %46 = vmatpush1.msra.mxu0 0.0
    %47 = vmatprep.subr.mxu0 0.0
    %48 = vmatpush1.msra.mxu0 0.0
    %49 = vmatprep.subr.mxu0 0.0
    %50 = vmatpush1.msra.mxu0 0.0
    %51 = vmatprep.subr.mxu0 0.0
    %52 = vmatpush1.msra.mxu0 0.0
    %53 = vmatprep.subr.mxu0 0.0
    %54 = vmatpush1.msra.mxu0 0.0
    %55 = vmatprep.subr.mxu0 0.0
    %56 = vmatpush1.msra.mxu0 0.0
    %57 = vmatprep.subr.mxu0 0.0
    %58 = vmatpush1.msra.mxu0 0.0
    %59 = vmatprep.subr.mxu0 0.0
    %60 = vmatpush1.msra.mxu0 0.0
    %61 = vmatprep.subr.mxu0 0.0
    %62 = vmatpush1.msra.mxu0 0.0
    %63 = vmatprep.subr.mxu0 0.0
    %64 = vmatpush1.msra.mxu0 0.0
    %65 = vmatprep.subr.mxu0 0.0
    %66 = vmatpush1.msra.mxu0 0.0
    %67 = vmatprep.subr.mxu0 0.0
    %68 = vmatpush1.msra.mxu0 0.0
    %69 = vmatprep.subr.mxu0 0.0
    %70 = vmatpush1.msra.mxu0 0.0
    %71 = vmatprep.subr.mxu0 0.0
    %72 = vmatpush1.msra.mxu0 0.0
    %73 = vmatprep.subr.mxu0 0.0
    %74 = vmatpush1.msra.mxu0 0.0
    %75 = vmatprep.subr.mxu0 0.0
    %76 = vmatpush1.msra.mxu0 0.0
    %77 = vmatprep.subr.mxu0 0.0
    %78 = vmatpush1.msra.mxu0 0.0
    %79 = vmatprep.subr.mxu0 0.0
    %80 = vmatpush1.msra.mxu0 0.0
    %81 = vmatprep.subr.mxu0 0.0
    %82 = vmatpush1.msra.mxu0 0.0
    %83 = vmatprep.subr.mxu0 0.0
    %84 = vmatpush1.msra.mxu0 0.0
    %85 = vmatprep.subr.mxu0 0.0
    %86 = vmatpush1.msra.mxu0 0.0
    %87 = vmatprep.subr.mxu0 0.0
    %88 = vmatpush1.msra.mxu0 0.0
    %89 = vmatprep.subr.mxu0 0.0
    %90 = vmatpush1.msra.mxu0 0.0
    %91 = vmatprep.subr.mxu0 0.0
    %92 = vmatpush1.msra.mxu0 0.0
    %93 = vmatprep.mubr.f32.mxu0 0.0
    %94 = vmatmul.mubr.f32.gmra.mrb[0].mxu0 %v27
    %v95 = vpop.f32.mrb[0].mxu0
    %v96 = vadd.f32 %v23, %v95
    %v97 = vpop.f32.mrb[0].mxu0
    %98 = vdwg.mxu0
    %v99 = vmax.f32 %v96, 0.0
    %vm100 = vcmask 41984
    %101 = vst.msk [vmem:[#allocation2] sm:$0x3] %vm100, %v99
    // Predicated region
    $region14: #{cnn_forward.23} parent=1 // pred_check
      _
    $region15: #{cnn_forward.23} parent=1 // pred_check_branch
      %103 = sbr.rel (0) target = $region17
    $region16: #{cnn_forward.23} parent=1 // pred_region
      %s105 = ssub.s32 32, 32
      %106 = vsyncadd [#allocation3], %s105
      %s108 = sshll.u32 [#allocation2], 4
      %s109 = int_to_ptr.vmem [resolvable:$true] %s108
      %111 = dma.vmem_to_hbm [thread:$0]  %s109, 32, %s3, [#allocation3]
    $region17: #{cnn_forward.23} parent=1 // pred_fallthru
      _
    // Predicated region
    $region18: #{cnn_forward.23} parent=1 // pred_check
      _
    $region19: #{cnn_forward.23} parent=1 // pred_check_branch
      %113 = sbr.rel (0) target = $region21
    $region20: #{cnn_forward.23} parent=1 // pred_region
      %114 = dma.done [#allocation3], 32
    $region21: #{cnn_forward.23} parent=1 // pred_fallthru
      _
    %115 = vsyncpa [#allocation3], 1

</llo_original>
